<compile_context>
chip_gen: v7x
topology: tpu7x:2x2x1
jax: 0.10.0
libtpu: 0.0.40
codegen_flags: <defaults>
</compile_context>

<pallas_src>
import jax
import jax.numpy as jnp
from jax import lax
from jax.experimental import pallas as pl
from jax.experimental.pallas import tpu as pltpu


# ----------------------------------------------------------------------------
# Fused kernel: conv3x3 (kx-lowered, 3 matmuls) + folded BN + ReLU + conv1x1
# ----------------------------------------------------------------------------
def _fcn_head_kernel(xl_ref, w1_ref, s1_ref, b1_ref, w2_ref, b2_ref, o_ref):
    # xl_ref : (1, 1, TH+2, W, 3*Cin)  bf16, kx-lowered, zero-padded rows
    # w1_ref : (3, 3*Cin, Cmid)        bf16, conv1 weights lowered over kx
    # s1/b1  : (1, Cmid)               f32, folded BatchNorm scale / shift
    # w2_ref : (Cmid, Cpad)            bf16, 1x1 classifier (zero-padded lanes)
    # b2_ref : (1, Cpad)               f32
    # o_ref  : (1, 1, TH*W, Cpad)      bf16
    th_p2, w, k3 = xl_ref.shape[2], xl_ref.shape[3], xl_ref.shape[4]
    th = th_p2 - 2
    m = th * w

    # 3x3 conv == 3 bf16 MXU matmuls (one per ky tap) with K = 3*Cin.
    # Slices move only along the outer row axis and W is a multiple of 8, so
    # the reshape below is a free re-view (no sublane-shifted VMEM copies).
    # Accumulate in a local f32 value -- no scratch read-modify-write.
    acc = jnp.dot(xl_ref[0, 0, pl.ds(0, th)].reshape(m, k3), w1_ref[0],
                  preferred_element_type=jnp.float32)
    acc = acc + jnp.dot(xl_ref[0, 0, pl.ds(1, th)].reshape(m, k3), w1_ref[1],
                        preferred_element_type=jnp.float32)
    acc = acc + jnp.dot(xl_ref[0, 0, pl.ds(2, th)].reshape(m, k3), w1_ref[2],
                        preferred_element_type=jnp.float32)

    # Folded BatchNorm + ReLU in f32.
    # TODO(synk): Dropout(0.1) is identity in eval mode.
    hidden = jnp.maximum(acc * s1_ref[...] + b1_ref[...], 0.0)

    # 1x1 classifier conv; output channels padded to a 128-lane slab so the
    # store is lane-dense; stored as bf16 to halve writeback.
    logits = jnp.dot(hidden.astype(w2_ref.dtype), w2_ref[...],
                     preferred_element_type=jnp.float32) + b2_ref[...]
    o_ref[0, 0] = logits.astype(o_ref.dtype)


# ----------------------------------------------------------------------------
# Glue (plain JAX): BN folding, H-tile choice, wrapper
# ----------------------------------------------------------------------------
def fold_bn(gamma, beta, mean, var, eps=1e-5):
    scale = gamma * lax.rsqrt(var + eps)
    shift = beta - mean * scale
    return scale, shift


def _pick_h_tile(h, w, cin3, bytes_budget=4 * 1024 * 1024):
    """Largest divisor tile of H whose bf16 input block fits the VMEM budget.

    Budget is conservative (~4 MB per block, double-buffered ~8 MB) so the
    kernel stays inside the default scoped VMEM on every generation,
    including v7x's 64 MiB physical / 32 MiB default-scoped VMEM.
    """
    for th in (h, 64, 32, 16, 8, 4):
        if th <= h and h % th == 0 and (th + 2) * w * cin3 * 2 <= bytes_budget:
            return th
    return h  # tiny feature maps: single tile


def fcn_head_forward(x_nchw, params):
    n, cin, h, w = x_nchw.shape
    w1 = params['w1']                          # (3, 3, Cin, Cmid)  (HWIO)
    cmid = w1.shape[-1]
    w2 = params['w2']                          # (Cmid, channels)
    channels = w2.shape[-1]

    s1, b1 = fold_bn(params['gamma'], params['beta'],
                     params['mean'], params['var'])

    # NCHW -> NHWC, bf16 operands, zero-pad spatially by 1 (conv padding=1).
    # TODO(synk): accept NHWC inputs upstream to avoid this transpose
    # HBM round trip.
    x = jnp.transpose(x_nchw, (0, 2, 3, 1)).astype(jnp.bfloat16)
    xp = jnp.pad(x, ((0, 0), (1, 1), (1, 1), (0, 0)))

    # kx-lowered layout: xl[n, hp, w, kx*Cin + c] = xp[n, hp, w + kx, c].
    # 3x extra HBM input traffic, negligible vs. removing 9 relayouts/step.
    cin3 = 3 * cin
    xl = jnp.concatenate([xp[:, :, kx:kx + w, :] for kx in range(3)], axis=-1)

    # H tiles with a 2-row halo, materialized so every BlockSpec block is
    # disjoint (no overlapping index_map tricks needed).
    th = _pick_h_tile(h, w, cin3)
    n_ht = h // th
    x_tiles = jnp.stack([xl[:, t * th:t * th + th + 2] for t in range(n_ht)],
                        axis=1)                # (N, n_ht, TH+2, W, 3*Cin)

    # Conv1 weights lowered over kx: (3, 3*Cin, Cmid), bf16.
    w1_l = w1.reshape(3, cin3, cmid).astype(jnp.bfloat16)

    # Pad classifier output dim up to a full 128-lane slab (lane-dense vst).
    cpad = ((channels + 127) // 128) * 128
    w2_p = jnp.zeros((cmid, cpad), jnp.bfloat16).at[:, :channels].set(
        w2.astype(jnp.bfloat16))
    b2_p = jnp.zeros((1, cpad), jnp.float32).at[:, :channels].set(
        params['b2'].astype(jnp.float32))

    flops = 2 * n * h * w * (9 * cin * cmid + cmid * cpad)
    bytes_accessed = (x_tiles.size * 2 + w1_l.size * 2 + w2_p.size * 2
                      + n * n_ht * th * w * cpad * 2)

    out = pl.pallas_call(
        _fcn_head_kernel,
        out_shape=jax.ShapeDtypeStruct((n, n_ht, th * w, cpad), jnp.bfloat16),
        grid_spec=pltpu.PrefetchScalarGridSpec(
            num_scalar_prefetch=0,
            grid=(n, n_ht),                    # fully parallel, no reduction
            in_specs=[
                pl.BlockSpec((1, 1, th + 2, w, cin3),
                             lambda b, t: (b, t, 0, 0, 0)),
                pl.BlockSpec((3, cin3, cmid), lambda b, t: (0, 0, 0)),
                pl.BlockSpec((1, cmid), lambda b, t: (0, 0)),
                pl.BlockSpec((1, cmid), lambda b, t: (0, 0)),
                pl.BlockSpec((cmid, cpad), lambda b, t: (0, 0)),
                pl.BlockSpec((1, cpad), lambda b, t: (0, 0)),
            ],
            out_specs=pl.BlockSpec((1, 1, th * w, cpad),
                                   lambda b, t: (b, t, 0, 0)),
        ),
        compiler_params=pltpu.CompilerParams(
            dimension_semantics=("parallel", "parallel")),
        cost_estimate=pl.CostEstimate(flops=flops, transcendentals=0,
                                      bytes_accessed=bytes_accessed),
    )(x_tiles, w1_l,
      s1.reshape(1, cmid).astype(jnp.float32),
      b1.reshape(1, cmid).astype(jnp.float32),
      w2_p, b2_p)

    logits = out[:, :, :, :channels].reshape(n, h, w, channels)
    return jnp.transpose(logits, (0, 3, 1, 2)).astype(x_nchw.dtype)


# ----------------------------------------------------------------------------
# Pure-JAX reference (f32, HIGHEST precision) for self-check
# ----------------------------------------------------------------------------
def fcn_head_reference(x_nchw, params, eps=1e-5):
    x = jnp.transpose(x_nchw, (0, 2, 3, 1)).astype(jnp.float32)
    y = lax.conv_general_dilated(
        x, params['w1'].astype(jnp.float32), (1, 1), 'SAME',
        dimension_numbers=('NHWC', 'HWIO', 'NHWC'),
        precision=lax.Precision.HIGHEST)
    y = (y - params['mean']) * lax.rsqrt(params['var'] + eps)
    y = y * params['gamma'] + params['beta']
    y = jnp.maximum(y, 0.0)
    y = jnp.einsum('nhwc,cd->nhwd', y, params['w2'].astype(jnp.float32),
                   precision=lax.Precision.HIGHEST) + params['b2']
    return jnp.transpose(y, (0, 3, 1, 2))


# ----------------------------------------------------------------------------
# Deterministic synthetic parameters (match _FCNHead shapes)
# ----------------------------------------------------------------------------
def make_params(key, in_channels, channels):
    inter = in_channels // 4
    ks = jax.random.split(key, 7)
    return {
        'w1': jax.random.normal(ks[0], (3, 3, in_channels, inter),
                                jnp.float32) * 0.02,
        'gamma': 1.0 + 0.1 * jax.random.normal(ks[1], (inter,), jnp.float32),
        'beta': 0.1 * jax.random.normal(ks[2], (inter,), jnp.float32),
        'mean': 0.05 * jax.random.normal(ks[3], (inter,), jnp.float32),
        'var': jax.random.uniform(ks[4], (inter,), jnp.float32, 0.5, 1.5),
        'w2': jax.random.normal(ks[5], (inter, channels), jnp.float32) * 0.05,
        'b2': 0.1 * jax.random.normal(ks[6], (channels,), jnp.float32),
    }


# ----------------------------------------------------------------------------
if __name__ == "__main__":
    # Small shapes consistent with the module: inter_channels = 512 // 4 = 128.
    N, IN_CH, H, W = 2, 512, 16, 16
    CHANNELS = 8

    key = jax.random.PRNGKey(0)
    k_params, k_x = jax.random.split(key)
    params = make_params(k_params, IN_CH, CHANNELS)
    x = jax.random.normal(k_x, (N, IN_CH, H, W), jnp.float32)

    out = jax.block_until_ready(fcn_head_forward(x, params))
    assert out.shape == (N, CHANNELS, H, W), out.shape
    assert bool(jnp.all(jnp.isfinite(out)))

    # Loose-tolerance check vs an f32 reference (bf16 operands + bf16 output
    # store -> a few percent drift).
    ref = jax.block_until_ready(fcn_head_reference(x, params))
    max_err = float(jnp.max(jnp.abs(out.astype(jnp.float32) - ref)))
    ref_scale = float(jnp.max(jnp.abs(ref))) + 1e-6
    assert max_err <= 5e-2 * ref_scale, (max_err, ref_scale)

    print("KERNEL_OK")
</pallas_src>

<mosaic_0001>
module attributes {stable_mosaic.version = 11 : i64} {
  func.func @_fcn_head_kernel(%arg0: i32, %arg1: i32, %arg2: memref<1x1x18x16x1536xbf16, #tpu.memory_space<vmem>>, %arg3: memref<3x1536x128xbf16, #tpu.memory_space<vmem>>, %arg4: memref<1x128xf32, #tpu.memory_space<vmem>>, %arg5: memref<1x128xf32, #tpu.memory_space<vmem>>, %arg6: memref<128x128xbf16, #tpu.memory_space<vmem>>, %arg7: memref<1x128xf32, #tpu.memory_space<vmem>>, %arg8: memref<1x1x256x128xbf16, #tpu.memory_space<vmem>>) attributes {dimension_semantics = [#tpu.dimension_semantics<parallel>, #tpu.dimension_semantics<parallel>], iteration_bounds = array<i64: 2, 1>, scalar_prefetch = 0 : i64, scratch_operands = 0 : i64, tpu.core_type = #tpu.core_type<tc>, window_params = [{transform_indices = @transform_0, window_bounds = array<i64: 1, 1, 18, 16, 1536>}, {pipeline_mode = #tpu.pipeline_mode<synchronous>, transform_indices = @transform_1, window_bounds = array<i64: 3, 1536, 128>}, {pipeline_mode = #tpu.pipeline_mode<synchronous>, transform_indices = @transform_2, window_bounds = array<i64: 1, 128>}, {pipeline_mode = #tpu.pipeline_mode<synchronous>, transform_indices = @transform_3, window_bounds = array<i64: 1, 128>}, {pipeline_mode = #tpu.pipeline_mode<synchronous>, transform_indices = @transform_4, window_bounds = array<i64: 128, 128>}, {pipeline_mode = #tpu.pipeline_mode<synchronous>, transform_indices = @transform_5, window_bounds = array<i64: 1, 128>}, {transform_indices = @transform_6, window_bounds = array<i64: 1, 1, 256, 128>}]} {
    %c0 = arith.constant 0 : index
    %c0_0 = arith.constant 0 : index
    %c0_1 = arith.constant 0 : index
    %c0_2 = arith.constant 0 : index
    %c0_3 = arith.constant 0 : index
    %0 = vector.load %arg2[%c0, %c0_0, %c0_1, %c0_2, %c0_3] : memref<1x1x18x16x1536xbf16, #tpu.memory_space<vmem>>, vector<1x1x16x16x1536xbf16>
    %1 = vector.shape_cast %0 : vector<1x1x16x16x1536xbf16> to vector<16x16x1536xbf16>
    %2 = vector.shape_cast %1 : vector<16x16x1536xbf16> to vector<256x1536xbf16>
    %c0_4 = arith.constant 0 : index
    %c0_5 = arith.constant 0 : index
    %c0_6 = arith.constant 0 : index
    %3 = vector.load %arg3[%c0_4, %c0_5, %c0_6] : memref<3x1536x128xbf16, #tpu.memory_space<vmem>>, vector<1x1536x128xbf16>
    %4 = vector.shape_cast %3 : vector<1x1536x128xbf16> to vector<1536x128xbf16>
    %cst = arith.constant dense<0.000000e+00> : vector<256x128xf32>
    %5 = tpu.matmul %2, %4, %cst {dimension_numbers = #tpu.dot_dimension_numbers<[1], [0], [0], [1], [0, 0, 1, 1], [], []>} : vector<256x1536xbf16>, vector<1536x128xbf16>, vector<256x128xf32> -> vector<256x128xf32>
    %c0_7 = arith.constant 0 : index
    %c0_8 = arith.constant 0 : index
    %c1 = arith.constant 1 : index
    %c0_9 = arith.constant 0 : index
    %c0_10 = arith.constant 0 : index
    %6 = vector.load %arg2[%c0_7, %c0_8, %c1, %c0_9, %c0_10] : memref<1x1x18x16x1536xbf16, #tpu.memory_space<vmem>>, vector<1x1x16x16x1536xbf16>
    %7 = vector.shape_cast %6 : vector<1x1x16x16x1536xbf16> to vector<16x16x1536xbf16>
    %8 = vector.shape_cast %7 : vector<16x16x1536xbf16> to vector<256x1536xbf16>
    %c1_11 = arith.constant 1 : index
    %c0_12 = arith.constant 0 : index
    %c0_13 = arith.constant 0 : index
    %9 = vector.load %arg3[%c1_11, %c0_12, %c0_13] : memref<3x1536x128xbf16, #tpu.memory_space<vmem>>, vector<1x1536x128xbf16>
    %10 = vector.shape_cast %9 : vector<1x1536x128xbf16> to vector<1536x128xbf16>
    %cst_14 = arith.constant dense<0.000000e+00> : vector<256x128xf32>
    %11 = tpu.matmul %8, %10, %cst_14 {dimension_numbers = #tpu.dot_dimension_numbers<[1], [0], [0], [1], [0, 0, 1, 1], [], []>} : vector<256x1536xbf16>, vector<1536x128xbf16>, vector<256x128xf32> -> vector<256x128xf32>
    %12 = arith.addf %5, %11 : vector<256x128xf32>
    %c0_15 = arith.constant 0 : index
    %c0_16 = arith.constant 0 : index
    %c2 = arith.constant 2 : index
    %c0_17 = arith.constant 0 : index
    %c0_18 = arith.constant 0 : index
    %13 = vector.load %arg2[%c0_15, %c0_16, %c2, %c0_17, %c0_18] : memref<1x1x18x16x1536xbf16, #tpu.memory_space<vmem>>, vector<1x1x16x16x1536xbf16>
    %14 = vector.shape_cast %13 : vector<1x1x16x16x1536xbf16> to vector<16x16x1536xbf16>
    %15 = vector.shape_cast %14 : vector<16x16x1536xbf16> to vector<256x1536xbf16>
    %c2_19 = arith.constant 2 : index
    %c0_20 = arith.constant 0 : index
    %c0_21 = arith.constant 0 : index
    %16 = vector.load %arg3[%c2_19, %c0_20, %c0_21] : memref<3x1536x128xbf16, #tpu.memory_space<vmem>>, vector<1x1536x128xbf16>
    %17 = vector.shape_cast %16 : vector<1x1536x128xbf16> to vector<1536x128xbf16>
    %cst_22 = arith.constant dense<0.000000e+00> : vector<256x128xf32>
    %18 = tpu.matmul %15, %17, %cst_22 {dimension_numbers = #tpu.dot_dimension_numbers<[1], [0], [0], [1], [0, 0, 1, 1], [], []>} : vector<256x1536xbf16>, vector<1536x128xbf16>, vector<256x128xf32> -> vector<256x128xf32>
    %19 = arith.addf %12, %18 : vector<256x128xf32>
    %c0_23 = arith.constant 0 : index
    %c0_24 = arith.constant 0 : index
    %20 = vector.load %arg4[%c0_23, %c0_24] : memref<1x128xf32, #tpu.memory_space<vmem>>, vector<1x128xf32>
    %21 = vector.broadcast %20 : vector<1x128xf32> to vector<256x128xf32>
    %22 = arith.mulf %19, %21 : vector<256x128xf32>
    %c0_25 = arith.constant 0 : index
    %c0_26 = arith.constant 0 : index
    %23 = vector.load %arg5[%c0_25, %c0_26] : memref<1x128xf32, #tpu.memory_space<vmem>>, vector<1x128xf32>
    %24 = vector.broadcast %23 : vector<1x128xf32> to vector<256x128xf32>
    %25 = arith.addf %22, %24 : vector<256x128xf32>
    %cst_27 = arith.constant 0.000000e+00 : f32
    %26 = vector.broadcast %cst_27 : f32 to vector<256x128xf32>
    %27 = arith.maximumf %25, %26 : vector<256x128xf32>
    %28 = arith.truncf %27 : vector<256x128xf32> to vector<256x128xbf16>
    %c0_28 = arith.constant 0 : index
    %c0_29 = arith.constant 0 : index
    %29 = vector.load %arg6[%c0_28, %c0_29] : memref<128x128xbf16, #tpu.memory_space<vmem>>, vector<128x128xbf16>
    %cst_30 = arith.constant dense<0.000000e+00> : vector<256x128xf32>
    %30 = tpu.matmul %28, %29, %cst_30 {dimension_numbers = #tpu.dot_dimension_numbers<[1], [0], [0], [1], [0, 0, 1, 1], [], []>} : vector<256x128xbf16>, vector<128x128xbf16>, vector<256x128xf32> -> vector<256x128xf32>
    %c0_31 = arith.constant 0 : index
    %c0_32 = arith.constant 0 : index
    %31 = vector.load %arg7[%c0_31, %c0_32] : memref<1x128xf32, #tpu.memory_space<vmem>>, vector<1x128xf32>
    %32 = vector.broadcast %31 : vector<1x128xf32> to vector<256x128xf32>
    %33 = arith.addf %30, %32 : vector<256x128xf32>
    %34 = arith.truncf %33 : vector<256x128xf32> to vector<256x128xbf16>
    %c0_33 = arith.constant 0 : index
    %c0_34 = arith.constant 0 : index
    %c0_35 = arith.constant 0 : index
    %c0_36 = arith.constant 0 : index
    %35 = vector.load %arg8[%c0_33, %c0_34, %c0_35, %c0_36] : memref<1x1x256x128xbf16, #tpu.memory_space<vmem>>, vector<1x1x256x128xbf16>
    %36 = vector.shape_cast %35 : vector<1x1x256x128xbf16> to vector<256x128xbf16>
    %37 = vector.shape_cast %34 : vector<256x128xbf16> to vector<1x1x256x128xbf16>
    tpu.vector_store %arg8[%c0_33, %c0_34, %c0_35, %c0_36], %37 {strides = array<i32>} : memref<1x1x256x128xbf16, #tpu.memory_space<vmem>>, vector<1x1x256x128xbf16>,
    return
  }
  func.func @transform_0(%arg0: i32, %arg1: i32) -> (i32, i32, i32, i32, i32) {
    %c0_i32 = arith.constant 0 : i32
    %c0_i32_0 = arith.constant 0 : i32
    %c0_i32_1 = arith.constant 0 : i32
    %c0_i32_2 = arith.constant 0 : i32
    return %arg0, %arg1, %c0_i32, %c0_i32_0, %c0_i32_1 : i32, i32, i32, i32, i32
  }
  func.func @transform_1(%arg0: i32, %arg1: i32) -> (i32, i32, i32) {
    %c0_i32 = arith.constant 0 : i32
    %c0_i32_0 = arith.constant 0 : i32
    %c0_i32_1 = arith.constant 0 : i32
    %c0_i32_2 = arith.constant 0 : i32
    return %c0_i32, %c0_i32_0, %c0_i32_1 : i32, i32, i32
  }
  func.func @transform_2(%arg0: i32, %arg1: i32) -> (i32, i32) {
    %c0_i32 = arith.constant 0 : i32
    %c0_i32_0 = arith.constant 0 : i32
    %c0_i32_1 = arith.constant 0 : i32
    return %c0_i32, %c0_i32_0 : i32, i32
  }
  func.func @transform_3(%arg0: i32, %arg1: i32) -> (i32, i32) {
    %c0_i32 = arith.constant 0 : i32
    %c0_i32_0 = arith.constant 0 : i32
    %c0_i32_1 = arith.constant 0 : i32
    return %c0_i32, %c0_i32_0 : i32, i32
  }
  func.func @transform_4(%arg0: i32, %arg1: i32) -> (i32, i32) {
    %c0_i32 = arith.constant 0 : i32
    %c0_i32_0 = arith.constant 0 : i32
    %c0_i32_1 = arith.constant 0 : i32
    return %c0_i32, %c0_i32_0 : i32, i32
  }
  func.func @transform_5(%arg0: i32, %arg1: i32) -> (i32, i32) {
    %c0_i32 = arith.constant 0 : i32
    %c0_i32_0 = arith.constant 0 : i32
    %c0_i32_1 = arith.constant 0 : i32
    return %c0_i32, %c0_i32_0 : i32, i32
  }
  func.func @transform_6(%arg0: i32, %arg1: i32) -> (i32, i32, i32, i32) {
    %c0_i32 = arith.constant 0 : i32
    %c0_i32_0 = arith.constant 0 : i32
    %c0_i32_1 = arith.constant 0 : i32
    return %arg0, %arg1, %c0_i32, %c0_i32_0 : i32, i32, i32, i32
  }
}

</mosaic_0001>

<llo_original>
// kernel: tpu_custom_call.1
$region0: #{tpu_custom_call.1}
  #allocation0 [shape = 'u32[]', space=smem, size = 0x4, offset = 0x4, fixed_abs, tag = 'smem constant byte address 0x4 - core index']
  #allocation1 [shape = 'u32[144,128]{1,0:T(1,128)}', space=vmem, size = 0x12000, scoped, tag = 'internal scratch']
  %s0 = inlined_call_operand.hbm [shape: bf16[2,1,18,16,1536], index: 0, kind: input, shape index: {}]
  %s1 = inlined_call_operand.hbm [shape: bf16[3,1536,128], index: 1, kind: input, shape index: {}]
  %s2 = inlined_call_operand.hbm [shape: f32[1,128], index: 2, kind: input, shape index: {}]
  %s3 = inlined_call_operand.hbm [shape: f32[1,128], index: 3, kind: input, shape index: {}]
  %s4 = inlined_call_operand.hbm [shape: bf16[128,128], index: 4, kind: input, shape index: {}]
  %s5 = inlined_call_operand.hbm [shape: f32[1,128], index: 5, kind: input, shape index: {}]
  %s6 = inlined_call_operand.hbm [shape: bf16[2,1,256,128], index: 6, kind: output, shape index: {}]
  %s7 = sld [smem:[#allocation0]]
  $region81: #{tpu_custom_call.1} parent=0
    _
  %s9 = ssub.s32 1, %s7
  %s10 = scalar_select 0, %s9, %s7
  $region1: #{tpu_custom_call.1} parent=0
    #allocation2 [shape = 'u8[1769472]{0}', space=vmem, size = 0x1b0000, scoped, tag = 'input window, operand 0']
    #allocation3 [shape = 's32[2]{0}', space=sflag, size = 0x8, scoped, tag = 'scoped memory for tpu_custom_call.1']
    #allocation4 [shape = 's32[2]{0}', space=sflag, size = 0x8, scoped, tag = 'scoped memory for tpu_custom_call.1']
    #allocation5 [shape = 'u8[1179648]{0}', space=vmem, size = 0x120000, scoped, tag = 'input window, operand 1, single buffered']
    #allocation6 [shape = 's32[1]{0}', space=sflag, size = 0x4, scoped, tag = 'scoped memory for tpu_custom_call.1']
    #allocation7 [shape = 'u8[512]{0}', space=vmem, size = 0x400, scoped, tag = 'input window, operand 2, single buffered']
    #allocation8 [shape = 'u8[512]{0}', space=vmem, size = 0x400, scoped, tag = 'input window, operand 3, single buffered']
    #allocation9 [shape = 's32[1]{0}', space=sflag, size = 0x4, scoped, tag = 'scoped memory for tpu_custom_call.1']
    #allocation10 [shape = 'u8[32768]{0}', space=vmem, size = 0x8000, scoped, tag = 'input window, operand 4, single buffered']
    #allocation11 [shape = 'u8[512]{0}', space=vmem, size = 0x400, scoped, tag = 'input window, operand 5, single buffered']
    #allocation12 [shape = 's32[1]{0}', space=sflag, size = 0x4, scoped, tag = 'scoped memory for tpu_custom_call.1']
    #allocation13 [shape = 'u8[131072]{0}', space=vmem, size = 0x20000, scoped, tag = 'output window, operand 0']
    %11 = vsyncpa [#allocation3], 0
    %s12 = scalar_lea.sflag [#allocation3], 1
    %13 = vsyncpa %s12, 0
    %14 = vsyncpa [#allocation6], 0
    %15 = vsyncpa [#allocation9], 0
    %16 = vsyncpa [#allocation12], 0
    %17 = vsyncpa [#allocation4], 0
    %s18 = scalar_lea.sflag [#allocation4], 1
    %19 = vsyncpa %s18, 0
    loop: start=0, step=1, limit=4
    $region2: #{tpu_custom_call.1} parent=1 // loop_pre_header
      _
    $region3: #{tpu_custom_call.1} parent=1 // loop_header
      %s21 = sphi 0, %s25
      %p22 = scmp.ge.s32.totalorder %s21, 4
      %s28 = sphi 0, %s40
      %s29 = sphi 0, %s36
      %s30 = sphi 0, %s28
      %s31 = sphi 0, %s29
      %s32 = sphi 0, %s30
      %s33 = sphi 0, %s31
      %s45 = sphi 0, %s47
      %s48 = sphi 0, %s45
      %s49 = sphi 0, %s48
      %s65 = sphi 0, %s49
      %s69 = sphi 0, %s69
      %s71 = sphi 0, %s69
      %s72 = sphi 0, %s71
      %s86 = sphi 0, %s72
      %s90 = sphi 0, %s90
      %s92 = sphi 0, %s90
      %s93 = sphi 0, %s92
      %s107 = sphi 0, %s93
      %s111 = sphi 0, %s111
      %s113 = sphi 0, %s111
      %s114 = sphi 0, %s113
      %s128 = sphi 0, %s114
      %s132 = sphi 0, %s132
      %s134 = sphi 0, %s132
      %s135 = sphi 0, %s134
      %s149 = sphi 0, %s135
      %s153 = sphi 0, %s153
      %s155 = sphi 0, %s153
      %s156 = sphi 0, %s155
      %s170 = sphi 0, %s156
      %s178 = sphi 0, %s180
      %s181 = sphi 0, %s178
      %s182 = sphi 0, %s181
      %s198 = sphi 0, %s182
    $region4: #{tpu_custom_call.1} parent=1 // loop_header_branch
      %24 = sbr.rel (%p22) target = $region8
    $region5: #{tpu_custom_call.1} parent=1 // loop_body
      %s26 = ssub.s32 %s21, 1
      %s27 = ssub.s32 %s21, 2
      %s34 = sadd.s32 1, %s29
      %p35 = scmp.ge.s32.totalorder %s34, 1
      %s36 = scalar_select %p35, 0, %s34
      %s37 = sadd.s32 1, %s28
      %s38 = scalar_select %p35, %s37, %s28
      %p39 = scmp.ge.s32.totalorder %s38, 2
      %s40 = scalar_select %p39, 0, %s38
      %s41 = ssub.s32 %s28, %s40
      %s42 = ssub.s32 %s29, %s36
      %s43 = sor.u32 %s41, %s42
      %p44 = scmp.eq.s32.totalorder %s43, 0
      %s46 = sadd.s32 %s45, 1
      %s47 = scalar_select %p44, %s45, %s46
      %p50 = pneg %p44
      %p51 = scmp.eq.s32.totalorder %s21, 1
      %p52 = por %p50, %p51
      %p53 = scmp.ne.s32.totalorder %s45, %s48
      %p54 = scmp.eq.s32.totalorder %s21, 0
      %p55 = por %p53, %p54
      %p56 = scmp.ne.s32.totalorder %s45, %s48
      %p57 = scmp.eq.s32.totalorder %s26, 1
      %p58 = por %p56, %p57
      %p59 = scmp.ne.s32.totalorder %s48, %s49
      %p60 = scmp.eq.s32.totalorder %s26, 0
      %p61 = por %p59, %p60
      %p62 = scmp.ne.s32.totalorder %s48, %s49
      %p63 = scmp.eq.s32.totalorder %s27, 1
      %p64 = por %p62, %p63
      %p66 = scmp.ne.s32.totalorder %s49, %s65
      %p67 = scmp.eq.s32.totalorder %s27, 0
      %p68 = por %p66, %p67
      %s70 = sadd.s32 %s69, 1
      %p73 = scmp.eq.s32.totalorder %s21, 1
      %p74 = scmp.ne.s32.totalorder %s69, %s71
      %p75 = scmp.eq.s32.totalorder %s21, 0
      %p76 = por %p74, %p75
      %p77 = scmp.ne.s32.totalorder %s69, %s71
      %p78 = scmp.eq.s32.totalorder %s26, 1
      %p79 = por %p77, %p78
      %p80 = scmp.ne.s32.totalorder %s71, %s72
      %p81 = scmp.eq.s32.totalorder %s26, 0
      %p82 = por %p80, %p81
      %p83 = scmp.ne.s32.totalorder %s71, %s72
      %p84 = scmp.eq.s32.totalorder %s27, 1
      %p85 = por %p83, %p84
      %p87 = scmp.ne.s32.totalorder %s72, %s86
      %p88 = scmp.eq.s32.totalorder %s27, 0
      %p89 = por %p87, %p88
      %s91 = sadd.s32 %s90, 1
      %p94 = scmp.eq.s32.totalorder %s21, 1
      %p95 = scmp.ne.s32.totalorder %s90, %s92
      %p96 = scmp.eq.s32.totalorder %s21, 0
      %p97 = por %p95, %p96
      %p98 = scmp.ne.s32.totalorder %s90, %s92
      %p99 = scmp.eq.s32.totalorder %s26, 1
      %p100 = por %p98, %p99
      %p101 = scmp.ne.s32.totalorder %s92, %s93
      %p102 = scmp.eq.s32.totalorder %s26, 0
      %p103 = por %p101, %p102
      %p104 = scmp.ne.s32.totalorder %s92, %s93
      %p105 = scmp.eq.s32.totalorder %s27, 1
      %p106 = por %p104, %p105
      %p108 = scmp.ne.s32.totalorder %s93, %s107
      %p109 = scmp.eq.s32.totalorder %s27, 0
      %p110 = por %p108, %p109
      %s112 = sadd.s32 %s111, 1
      %p115 = scmp.eq.s32.totalorder %s21, 1
      %p116 = scmp.ne.s32.totalorder %s111, %s113
      %p117 = scmp.eq.s32.totalorder %s21, 0
      %p118 = por %p116, %p117
      %p119 = scmp.ne.s32.totalorder %s111, %s113
      %p120 = scmp.eq.s32.totalorder %s26, 1
      %p121 = por %p119, %p120
      %p122 = scmp.ne.s32.totalorder %s113, %s114
      %p123 = scmp.eq.s32.totalorder %s26, 0
      %p124 = por %p122, %p123
      %p125 = scmp.ne.s32.totalorder %s113, %s114
      %p126 = scmp.eq.s32.totalorder %s27, 1
      %p127 = por %p125, %p126
      %p129 = scmp.ne.s32.totalorder %s114, %s128
      %p130 = scmp.eq.s32.totalorder %s27, 0
      %p131 = por %p129, %p130
      %s133 = sadd.s32 %s132, 1
      %p136 = scmp.eq.s32.totalorder %s21, 1
      %p137 = scmp.ne.s32.totalorder %s132, %s134
      %p138 = scmp.eq.s32.totalorder %s21, 0
      %p139 = por %p137, %p138
      %p140 = scmp.ne.s32.totalorder %s132, %s134
      %p141 = scmp.eq.s32.totalorder %s26, 1
      %p142 = por %p140, %p141
      %p143 = scmp.ne.s32.totalorder %s134, %s135
      %p144 = scmp.eq.s32.totalorder %s26, 0
      %p145 = por %p143, %p144
      %p146 = scmp.ne.s32.totalorder %s134, %s135
      %p147 = scmp.eq.s32.totalorder %s27, 1
      %p148 = por %p146, %p147
      %p150 = scmp.ne.s32.totalorder %s135, %s149
      %p151 = scmp.eq.s32.totalorder %s27, 0
      %p152 = por %p150, %p151
      %s154 = sadd.s32 %s153, 1
      %p157 = scmp.eq.s32.totalorder %s21, 1
      %p158 = scmp.ne.s32.totalorder %s153, %s155
      %p159 = scmp.eq.s32.totalorder %s21, 0
      %p160 = por %p158, %p159
      %p161 = scmp.ne.s32.totalorder %s153, %s155
      %p162 = scmp.eq.s32.totalorder %s26, 1
      %p163 = por %p161, %p162
      %p164 = scmp.ne.s32.totalorder %s155, %s156
      %p165 = scmp.eq.s32.totalorder %s26, 0
      %p166 = por %p164, %p165
      %p167 = scmp.ne.s32.totalorder %s155, %s156
      %p168 = scmp.eq.s32.totalorder %s27, 1
      %p169 = por %p167, %p168
      %p171 = scmp.ne.s32.totalorder %s156, %s170
      %p172 = scmp.eq.s32.totalorder %s27, 0
      %p173 = por %p171, %p172
      %s174 = ssub.s32 %s28, %s40
      %s175 = ssub.s32 %s29, %s36
      %s176 = sor.u32 %s174, %s175
      %p177 = scmp.eq.s32.totalorder %s176, 0
      %s179 = sadd.s32 %s178, 1
      %s180 = scalar_select %p177, %s178, %s179
      %p183 = pneg %p177
      %p184 = scmp.eq.s32.totalorder %s21, 1
      %p185 = por %p183, %p184
      %p186 = scmp.ne.s32.totalorder %s178, %s181
      %p187 = scmp.eq.s32.totalorder %s21, 0
      %p188 = por %p186, %p187
      %p189 = scmp.ne.s32.totalorder %s178, %s181
      %p190 = scmp.eq.s32.totalorder %s26, 1
      %p191 = por %p189, %p190
      %p192 = scmp.ne.s32.totalorder %s181, %s182
      %p193 = scmp.eq.s32.totalorder %s26, 0
      %p194 = por %p192, %p193
      %p195 = scmp.ne.s32.totalorder %s181, %s182
      %p196 = scmp.eq.s32.totalorder %s27, 1
      %p197 = por %p195, %p196
      %p199 = scmp.ne.s32.totalorder %s182, %s198
      %p200 = scmp.eq.s32.totalorder %s27, 0
      %p201 = por %p199, %p200
      %p202 = scmp.le.s32.totalorder 1, %s21
      %p203 = scmp.lt.s32.totalorder %s21, 3
      %p204 = pnand %p202, %p203
      %p205 = pneg %p204
      // Predicated region
      $region9: #{tpu_custom_call.1} parent=5 // pred_check
        _
      $region10: #{tpu_custom_call.1} parent=5 // pred_check_branch
        %207 = sbr.rel (%p204) target = $region12
      $region11: #{tpu_custom_call.1} parent=5 // pred_region
        %s208 = ssub.s32 %s21, 1
        // Predicated region
        $region13: #{tpu_custom_call.1} parent=11 // pred_check
          %p209 = pneg %p82
        $region14: #{tpu_custom_call.1} parent=11 // pred_check_branch
          %211 = sbr.rel (%p209) target = $region16
        $region15: #{tpu_custom_call.1} parent=11 // pred_region
          %s213 = ssub.s32 36864, 36864
          %214 = vsyncadd [#allocation6], %s213
          %s215 = sshll.u32 [#allocation5], 4
          %s216 = int_to_ptr.vmem [resolvable:$true] %s215
          %221 = dma.hbm_to_vmem [thread:$0]  %s1, 36864, %s216, [#allocation6], 64, 64, 4
        $region16: #{tpu_custom_call.1} parent=11 // pred_fallthru
          _
        // Predicated region
        $region17: #{tpu_custom_call.1} parent=11 // pred_check
          %p222 = pneg %p103
        $region18: #{tpu_custom_call.1} parent=11 // pred_check_branch
          %224 = sbr.rel (%p222) target = $region20
        $region19: #{tpu_custom_call.1} parent=11 // pred_region
          %s226 = ssub.s32 16, 16
          %227 = vsyncadd [#allocation6], %s226
          %s229 = sshll.u32 [#allocation7], 4
          %s230 = int_to_ptr.vmem [resolvable:$true] %s229
          %232 = dma.hbm_to_vmem [thread:$0]  %s2, 16, %s230, [#allocation6]
        $region20: #{tpu_custom_call.1} parent=11 // pred_fallthru
          _
        // Predicated region
        $region21: #{tpu_custom_call.1} parent=11 // pred_check
          %p233 = pneg %p124
        $region22: #{tpu_custom_call.1} parent=11 // pred_check_branch
          %235 = sbr.rel (%p233) target = $region24
        $region23: #{tpu_custom_call.1} parent=11 // pred_region
          %s237 = ssub.s32 16, 16
          %238 = vsyncadd [#allocation9], %s237
          %s240 = sshll.u32 [#allocation8], 4
          %s241 = int_to_ptr.vmem [resolvable:$true] %s240
          %243 = dma.hbm_to_vmem [thread:$0]  %s3, 16, %s241, [#allocation9]
        $region24: #{tpu_custom_call.1} parent=11 // pred_fallthru
          _
        // Predicated region
        $region25: #{tpu_custom_call.1} parent=11 // pred_check
          %p244 = pneg %p145
        $region26: #{tpu_custom_call.1} parent=11 // pred_check_branch
          %246 = sbr.rel (%p244) target = $region28
        $region27: #{tpu_custom_call.1} parent=11 // pred_region
          %s248 = ssub.s32 1024, 1024
          %249 = vsyncadd [#allocation9], %s248
          %s250 = sshll.u32 [#allocation10], 4
          %s251 = int_to_ptr.vmem [resolvable:$true] %s250
          %256 = dma.hbm_to_vmem [thread:$0]  %s4, 1024, %s251, [#allocation9], 64, 64, 4
        $region28: #{tpu_custom_call.1} parent=11 // pred_fallthru
          _
        // Predicated region
        $region29: #{tpu_custom_call.1} parent=11 // pred_check
          %p257 = pneg %p166
        $region30: #{tpu_custom_call.1} parent=11 // pred_check_branch
          %259 = sbr.rel (%p257) target = $region32
        $region31: #{tpu_custom_call.1} parent=11 // pred_region
          %s261 = ssub.s32 16, 16
          %262 = vsyncadd [#allocation12], %s261
          %s264 = sshll.u32 [#allocation11], 4
          %s265 = int_to_ptr.vmem [resolvable:$true] %s264
          %267 = dma.hbm_to_vmem [thread:$0]  %s5, 16, %s265, [#allocation12]
        $region32: #{tpu_custom_call.1} parent=11 // pred_fallthru
          _
      $region12: #{tpu_custom_call.1} parent=5 // pred_fallthru
        _
      %p268 = scmp.lt.s32.totalorder %s21, 2
      // Predicated region
      $region33: #{tpu_custom_call.1} parent=5 // pred_check
        %p269 = pneg %p268
      $region34: #{tpu_custom_call.1} parent=5 // pred_check_branch
        %271 = sbr.rel (%p269) target = $region36
      $region35: #{tpu_custom_call.1} parent=5 // pred_region
        // Predicated region
        $region37: #{tpu_custom_call.1} parent=35 // pred_check
          %p272 = pneg %p55
        $region38: #{tpu_custom_call.1} parent=35 // pred_check_branch
          %274 = sbr.rel (%p272) target = $region40
        $region39: #{tpu_custom_call.1} parent=35 // pred_region
          %s275 = sand.u32 %s45, 1
          %s276 = scalar_lea.sflag [#allocation3], %s275
          %s277 = sand.u32 %s45, 1
          %s278 = smul.addr %s277, 1728
          %s279 = scalar_lea.vmem [#allocation2], %s278
          %s281 = ssub.s32 27648, 27648
          %282 = vsyncadd %s276, %s281
          %s283 = smul.addr %s29, 432
          %s284 = smul.addr %s28, 432
          %s285 = sadd.s32 %s283, %s284
          %s286 = smul.addr %s285, 64
          %s287 = scalar_lea.hbm %s0, %s286
          %s288 = sshll.u32 %s279, 4
          %s289 = int_to_ptr.vmem [resolvable:$true] %s288
          %294 = dma.hbm_to_vmem [thread:$0]  %s287, 27648, %s289, %s276, 768, 768, 48
        $region40: #{tpu_custom_call.1} parent=35 // pred_fallthru
          _
      $region36: #{tpu_custom_call.1} parent=5 // pred_fallthru
        _
      %p295 = scmp.le.s32.totalorder 1, %s21
      %p296 = scmp.lt.s32.totalorder %s21, 3
      %p297 = pnand %p295, %p296
      %p298 = pneg %p297
      // Predicated region
      $region41: #{tpu_custom_call.1} parent=5 // pred_check
        _
      $region42: #{tpu_custom_call.1} parent=5 // pred_check_branch
        %300 = sbr.rel (%p297) target = $region44
      $region43: #{tpu_custom_call.1} parent=5 // pred_region
        %s301 = ssub.s32 %s21, 1
        %s302 = sand.u32 %s48, 1
        %s303 = scalar_lea.sflag [#allocation3], %s302
        %s304 = sand.u32 %s48, 1
        %s305 = smul.addr %s304, 1728
        %s306 = scalar_lea.vmem [#allocation2], %s305
        // Predicated region
        $region45: #{tpu_custom_call.1} parent=43 // pred_check
          %p307 = pneg %p61
        $region46: #{tpu_custom_call.1} parent=43 // pred_check_branch
          %309 = sbr.rel (%p307) target = $region48
        $region47: #{tpu_custom_call.1} parent=43 // pred_region
          %310 = dma.done %s303, 27648
        $region48: #{tpu_custom_call.1} parent=43 // pred_fallthru
          _
        // Predicated region
        $region49: #{tpu_custom_call.1} parent=43 // pred_check
          %p311 = pneg %p82
        $region50: #{tpu_custom_call.1} parent=43 // pred_check_branch
          %313 = sbr.rel (%p311) target = $region52
        $region51: #{tpu_custom_call.1} parent=43 // pred_region
          %314 = dma.done [#allocation6], 36864
        $region52: #{tpu_custom_call.1} parent=43 // pred_fallthru
          _
        // Predicated region
        $region53: #{tpu_custom_call.1} parent=43 // pred_check
          %p315 = pneg %p103
        $region54: #{tpu_custom_call.1} parent=43 // pred_check_branch
          %317 = sbr.rel (%p315) target = $region56
        $region55: #{tpu_custom_call.1} parent=43 // pred_region
          %318 = dma.done [#allocation6], 16
        $region56: #{tpu_custom_call.1} parent=43 // pred_fallthru
          _
        // Predicated region
        $region57: #{tpu_custom_call.1} parent=43 // pred_check
          %p319 = pneg %p124
        $region58: #{tpu_custom_call.1} parent=43 // pred_check_branch
          %321 = sbr.rel (%p319) target = $region60
        $region59: #{tpu_custom_call.1} parent=43 // pred_region
          %322 = dma.done [#allocation9], 16
        $region60: #{tpu_custom_call.1} parent=43 // pred_fallthru
          _
        // Predicated region
        $region61: #{tpu_custom_call.1} parent=43 // pred_check
          %p323 = pneg %p145
        $region62: #{tpu_custom_call.1} parent=43 // pred_check_branch
          %325 = sbr.rel (%p323) target = $region64
        $region63: #{tpu_custom_call.1} parent=43 // pred_region
          %326 = dma.done [#allocation9], 1024
        $region64: #{tpu_custom_call.1} parent=43 // pred_fallthru
          _
        // Predicated region
        $region65: #{tpu_custom_call.1} parent=43 // pred_check
          %p327 = pneg %p166
        $region66: #{tpu_custom_call.1} parent=43 // pred_check_branch
          %329 = sbr.rel (%p327) target = $region68
        $region67: #{tpu_custom_call.1} parent=43 // pred_region
          %330 = dma.done [#allocation12], 16
        $region68: #{tpu_custom_call.1} parent=43 // pred_fallthru
          _
        %s331 = sand.u32 %s48, 1
        %s332 = scalar_lea.sflag [#allocation3], %s331
        %s333 = sand.u32 %s48, 1
        %s334 = smul.addr %s333, 1728
        %s335 = scalar_lea.vmem [#allocation2], %s334
        %p336 = pneg %p61
        %p337 = pneg %p58
        %p338 = pneg %p82
        %p339 = pneg %p79
        %p340 = pneg %p103
        %p341 = pneg %p100
        %p342 = pneg %p124
        %p343 = pneg %p121
        %p344 = pneg %p145
        %p345 = pneg %p142
        %p346 = pneg %p166
        %p347 = pneg %p163
        %p348 = pneg %p194
        %p349 = pneg %p191
        %s350 = sand.u32 %s181, 1
        %s351 = scalar_lea.sflag [#allocation4], %s350
        %s352 = sand.u32 %s181, 1
        %s353 = smul.addr %s352, 128
        %s354 = scalar_lea.vmem [#allocation13], %s353
        %v356 = vld [vmem:[%s306] sm:$0xff]
        %v357 = vld [vmem:[%s306 + $0x8] sm:$0xff]
        %v358 = vld [vmem:[%s306 + $0x10] sm:$0xff]
        %v359 = vld [vmem:[%s306 + $0x18] sm:$0xff]
        %v360 = vld [vmem:[%s306 + $0x20] sm:$0xff]
        %v361 = vld [vmem:[%s306 + $0x28] sm:$0xff]
        %v362 = vld [vmem:[%s306 + $0x30] sm:$0xff]
        %v363 = vld [vmem:[%s306 + $0x38] sm:$0xff]
        %v364 = vld [vmem:[%s306 + $0x40] sm:$0xff]
        %v365 = vld [vmem:[%s306 + $0x48] sm:$0xff]
        %v366 = vld [vmem:[%s306 + $0x50] sm:$0xff]
        %v367 = vld [vmem:[%s306 + $0x58] sm:$0xff]
        %v368 = vld [vmem:[%s306 + $0x60] sm:$0xff]
        %v369 = vld [vmem:[%s306 + $0x68] sm:$0xff]
        %v370 = vld [vmem:[%s306 + $0x70] sm:$0xff]
        %v371 = vld [vmem:[%s306 + $0x78] sm:$0xff]
        %v372 = vld [vmem:[%s306 + $0x80] sm:$0xff]
        %v373 = vld [vmem:[%s306 + $0x88] sm:$0xff]
        %v374 = vld [vmem:[%s306 + $0x90] sm:$0xff]
        %v375 = vld [vmem:[%s306 + $0x98] sm:$0xff]
        %v376 = vld [vmem:[%s306 + $0xa0] sm:$0xff]
        %v377 = vld [vmem:[%s306 + $0xa8] sm:$0xff]
        %v378 = vld [vmem:[%s306 + $0xb0] sm:$0xff]
        %v379 = vld [vmem:[%s306 + $0xb8] sm:$0xff]
        %v380 = vld [vmem:[%s306 + $0xc0] sm:$0xff]
        %v381 = vld [vmem:[%s306 + $0xc8] sm:$0xff]
        %v382 = vld [vmem:[%s306 + $0xd0] sm:$0xff]
        %v383 = vld [vmem:[%s306 + $0xd8] sm:$0xff]
        %v384 = vld [vmem:[%s306 + $0xe0] sm:$0xff]
        %v385 = vld [vmem:[%s306 + $0xe8] sm:$0xff]
        %v386 = vld [vmem:[%s306 + $0xf0] sm:$0xff]
        %v387 = vld [vmem:[%s306 + $0xf8] sm:$0xff]
        %v388 = vld [vmem:[%s306 + $0x100] sm:$0xff]
        %v389 = vld [vmem:[%s306 + $0x108] sm:$0xff]
        %v390 = vld [vmem:[%s306 + $0x110] sm:$0xff]
        %v391 = vld [vmem:[%s306 + $0x118] sm:$0xff]
        %v392 = vld [vmem:[%s306 + $0x120] sm:$0xff]
        %v393 = vld [vmem:[%s306 + $0x128] sm:$0xff]
        %v394 = vld [vmem:[%s306 + $0x130] sm:$0xff]
        %v395 = vld [vmem:[%s306 + $0x138] sm:$0xff]
        %v396 = vld [vmem:[%s306 + $0x140] sm:$0xff]
        %v397 = vld [vmem:[%s306 + $0x148] sm:$0xff]
        %v398 = vld [vmem:[%s306 + $0x150] sm:$0xff]
        %v399 = vld [vmem:[%s306 + $0x158] sm:$0xff]
        %v400 = vld [vmem:[%s306 + $0x160] sm:$0xff]
        %v401 = vld [vmem:[%s306 + $0x168] sm:$0xff]
        %v402 = vld [vmem:[%s306 + $0x170] sm:$0xff]
        %v403 = vld [vmem:[%s306 + $0x178] sm:$0xff]
        %v404 = vld [vmem:[%s306 + $0x180] sm:$0xff]
        %v405 = vld [vmem:[%s306 + $0x188] sm:$0xff]
        %v406 = vld [vmem:[%s306 + $0x190] sm:$0xff]
        %v407 = vld [vmem:[%s306 + $0x198] sm:$0xff]
        %v408 = vld [vmem:[%s306 + $0x1a0] sm:$0xff]
        %v409 = vld [vmem:[%s306 + $0x1a8] sm:$0xff]
        %v410 = vld [vmem:[%s306 + $0x1b0] sm:$0xff]
        %v411 = vld [vmem:[%s306 + $0x1b8] sm:$0xff]
        %v412 = vld [vmem:[%s306 + $0x1c0] sm:$0xff]
        %v413 = vld [vmem:[%s306 + $0x1c8] sm:$0xff]
        %v414 = vld [vmem:[%s306 + $0x1d0] sm:$0xff]
        %v415 = vld [vmem:[%s306 + $0x1d8] sm:$0xff]
        %v416 = vld [vmem:[%s306 + $0x1e0] sm:$0xff]
        %v417 = vld [vmem:[%s306 + $0x1e8] sm:$0xff]
        %v418 = vld [vmem:[%s306 + $0x1f0] sm:$0xff]
        %v419 = vld [vmem:[%s306 + $0x1f8] sm:$0xff]
        %v420 = vld [vmem:[%s306 + $0x200] sm:$0xff]
        %v421 = vld [vmem:[%s306 + $0x208] sm:$0xff]
        %v422 = vld [vmem:[%s306 + $0x210] sm:$0xff]
        %v423 = vld [vmem:[%s306 + $0x218] sm:$0xff]
        %v424 = vld [vmem:[%s306 + $0x220] sm:$0xff]
        %v425 = vld [vmem:[%s306 + $0x228] sm:$0xff]
        %v426 = vld [vmem:[%s306 + $0x230] sm:$0xff]
        %v427 = vld [vmem:[%s306 + $0x238] sm:$0xff]
        %v428 = vld [vmem:[%s306 + $0x240] sm:$0xff]
        %v429 = vld [vmem:[%s306 + $0x248] sm:$0xff]
        %v430 = vld [vmem:[%s306 + $0x250] sm:$0xff]
        %v431 = vld [vmem:[%s306 + $0x258] sm:$0xff]
        %v432 = vld [vmem:[%s306 + $0x260] sm:$0xff]
        %v433 = vld [vmem:[%s306 + $0x268] sm:$0xff]
        %v434 = vld [vmem:[%s306 + $0x270] sm:$0xff]
        %v435 = vld [vmem:[%s306 + $0x278] sm:$0xff]
        %v436 = vld [vmem:[%s306 + $0x280] sm:$0xff]
        %v437 = vld [vmem:[%s306 + $0x288] sm:$0xff]
        %v438 = vld [vmem:[%s306 + $0x290] sm:$0xff]
        %v439 = vld [vmem:[%s306 + $0x298] sm:$0xff]
        %v440 = vld [vmem:[%s306 + $0x2a0] sm:$0xff]
        %v441 = vld [vmem:[%s306 + $0x2a8] sm:$0xff]
        %v442 = vld [vmem:[%s306 + $0x2b0] sm:$0xff]
        %v443 = vld [vmem:[%s306 + $0x2b8] sm:$0xff]
        %v444 = vld [vmem:[%s306 + $0x2c0] sm:$0xff]
        %v445 = vld [vmem:[%s306 + $0x2c8] sm:$0xff]
        %v446 = vld [vmem:[%s306 + $0x2d0] sm:$0xff]
        %v447 = vld [vmem:[%s306 + $0x2d8] sm:$0xff]
        %v448 = vld [vmem:[%s306 + $0x2e0] sm:$0xff]
        %v449 = vld [vmem:[%s306 + $0x2e8] sm:$0xff]
        %v450 = vld [vmem:[%s306 + $0x2f0] sm:$0xff]
        %v451 = vld [vmem:[%s306 + $0x2f8] sm:$0xff]
        %v452 = vld [vmem:[%s306 + $0x300] sm:$0xff]
        %v453 = vld [vmem:[%s306 + $0x308] sm:$0xff]
        %v454 = vld [vmem:[%s306 + $0x310] sm:$0xff]
        %v455 = vld [vmem:[%s306 + $0x318] sm:$0xff]
        %v456 = vld [vmem:[%s306 + $0x320] sm:$0xff]
        %v457 = vld [vmem:[%s306 + $0x328] sm:$0xff]
        %v458 = vld [vmem:[%s306 + $0x330] sm:$0xff]
        %v459 = vld [vmem:[%s306 + $0x338] sm:$0xff]
        %v460 = vld [vmem:[%s306 + $0x340] sm:$0xff]
        %v461 = vld [vmem:[%s306 + $0x348] sm:$0xff]
        %v462 = vld [vmem:[%s306 + $0x350] sm:$0xff]
        %v463 = vld [vmem:[%s306 + $0x358] sm:$0xff]
        %v464 = vld [vmem:[%s306 + $0x360] sm:$0xff]
        %v465 = vld [vmem:[%s306 + $0x368] sm:$0xff]
        %v466 = vld [vmem:[%s306 + $0x370] sm:$0xff]
        %v467 = vld [vmem:[%s306 + $0x378] sm:$0xff]
        %v468 = vld [vmem:[%s306 + $0x380] sm:$0xff]
        %v469 = vld [vmem:[%s306 + $0x388] sm:$0xff]
        %v470 = vld [vmem:[%s306 + $0x390] sm:$0xff]
        %v471 = vld [vmem:[%s306 + $0x398] sm:$0xff]
        %v472 = vld [vmem:[%s306 + $0x3a0] sm:$0xff]
        %v473 = vld [vmem:[%s306 + $0x3a8] sm:$0xff]
        %v474 = vld [vmem:[%s306 + $0x3b0] sm:$0xff]
        %v475 = vld [vmem:[%s306 + $0x3b8] sm:$0xff]
        %v476 = vld [vmem:[%s306 + $0x3c0] sm:$0xff]
        %v477 = vld [vmem:[%s306 + $0x3c8] sm:$0xff]
        %v478 = vld [vmem:[%s306 + $0x3d0] sm:$0xff]
        %v479 = vld [vmem:[%s306 + $0x3d8] sm:$0xff]
        %v480 = vld [vmem:[%s306 + $0x3e0] sm:$0xff]
        %v481 = vld [vmem:[%s306 + $0x3e8] sm:$0xff]
        %v482 = vld [vmem:[%s306 + $0x3f0] sm:$0xff]
        %v483 = vld [vmem:[%s306 + $0x3f8] sm:$0xff]
        %v484 = vld [vmem:[%s306 + $0x400] sm:$0xff]
        %v485 = vld [vmem:[%s306 + $0x408] sm:$0xff]
        %v486 = vld [vmem:[%s306 + $0x410] sm:$0xff]
        %v487 = vld [vmem:[%s306 + $0x418] sm:$0xff]
        %v488 = vld [vmem:[%s306 + $0x420] sm:$0xff]
        %v489 = vld [vmem:[%s306 + $0x428] sm:$0xff]
        %v490 = vld [vmem:[%s306 + $0x430] sm:$0xff]
        %v491 = vld [vmem:[%s306 + $0x438] sm:$0xff]
        %v492 = vld [vmem:[%s306 + $0x440] sm:$0xff]
        %v493 = vld [vmem:[%s306 + $0x448] sm:$0xff]
        %v494 = vld [vmem:[%s306 + $0x450] sm:$0xff]
        %v495 = vld [vmem:[%s306 + $0x458] sm:$0xff]
        %v496 = vld [vmem:[%s306 + $0x460] sm:$0xff]
        %v497 = vld [vmem:[%s306 + $0x468] sm:$0xff]
        %v498 = vld [vmem:[%s306 + $0x470] sm:$0xff]
        %v499 = vld [vmem:[%s306 + $0x478] sm:$0xff]
        %v500 = vld [vmem:[%s306 + $0x480] sm:$0xff]
        %v501 = vld [vmem:[%s306 + $0x488] sm:$0xff]
        %v502 = vld [vmem:[%s306 + $0x490] sm:$0xff]
        %v503 = vld [vmem:[%s306 + $0x498] sm:$0xff]
        %v504 = vld [vmem:[%s306 + $0x4a0] sm:$0xff]
        %v505 = vld [vmem:[%s306 + $0x4a8] sm:$0xff]
        %v506 = vld [vmem:[%s306 + $0x4b0] sm:$0xff]
        %v507 = vld [vmem:[%s306 + $0x4b8] sm:$0xff]
        %v508 = vld [vmem:[%s306 + $0x4c0] sm:$0xff]
        %v509 = vld [vmem:[%s306 + $0x4c8] sm:$0xff]
        %v510 = vld [vmem:[%s306 + $0x4d0] sm:$0xff]
        %v511 = vld [vmem:[%s306 + $0x4d8] sm:$0xff]
        %v512 = vld [vmem:[%s306 + $0x4e0] sm:$0xff]
        %v513 = vld [vmem:[%s306 + $0x4e8] sm:$0xff]
        %v514 = vld [vmem:[%s306 + $0x4f0] sm:$0xff]
        %v515 = vld [vmem:[%s306 + $0x4f8] sm:$0xff]
        %v516 = vld [vmem:[%s306 + $0x500] sm:$0xff]
        %v517 = vld [vmem:[%s306 + $0x508] sm:$0xff]
        %v518 = vld [vmem:[%s306 + $0x510] sm:$0xff]
        %v519 = vld [vmem:[%s306 + $0x518] sm:$0xff]
        %v520 = vld [vmem:[%s306 + $0x520] sm:$0xff]
        %v521 = vld [vmem:[%s306 + $0x528] sm:$0xff]
        %v522 = vld [vmem:[%s306 + $0x530] sm:$0xff]
        %v523 = vld [vmem:[%s306 + $0x538] sm:$0xff]
        %v524 = vld [vmem:[%s306 + $0x540] sm:$0xff]
        %v525 = vld [vmem:[%s306 + $0x548] sm:$0xff]
        %v526 = vld [vmem:[%s306 + $0x550] sm:$0xff]
        %v527 = vld [vmem:[%s306 + $0x558] sm:$0xff]
        %v528 = vld [vmem:[%s306 + $0x560] sm:$0xff]
        %v529 = vld [vmem:[%s306 + $0x568] sm:$0xff]
        %v530 = vld [vmem:[%s306 + $0x570] sm:$0xff]
        %v531 = vld [vmem:[%s306 + $0x578] sm:$0xff]
        %v532 = vld [vmem:[%s306 + $0x580] sm:$0xff]
        %v533 = vld [vmem:[%s306 + $0x588] sm:$0xff]
        %v534 = vld [vmem:[%s306 + $0x590] sm:$0xff]
        %v535 = vld [vmem:[%s306 + $0x598] sm:$0xff]
        %v536 = vld [vmem:[%s306 + $0x5a0] sm:$0xff]
        %v537 = vld [vmem:[%s306 + $0x5a8] sm:$0xff]
        %v538 = vld [vmem:[%s306 + $0x5b0] sm:$0xff]
        %v539 = vld [vmem:[%s306 + $0x5b8] sm:$0xff]
        %v540 = vld [vmem:[%s306 + $0x5c0] sm:$0xff]
        %v541 = vld [vmem:[%s306 + $0x5c8] sm:$0xff]
        %v542 = vld [vmem:[%s306 + $0x5d0] sm:$0xff]
        %v543 = vld [vmem:[%s306 + $0x5d8] sm:$0xff]
        %v544 = vld [vmem:[%s306 + $0x5e0] sm:$0xff]
        %v545 = vld [vmem:[%s306 + $0x5e8] sm:$0xff]
        %v546 = vld [vmem:[%s306 + $0x5f0] sm:$0xff]
        %v547 = vld [vmem:[%s306 + $0x5f8] sm:$0xff]
        %v548 = vld [vmem:[#allocation5] sm:$0xf]
        %v549 = vld [vmem:[#allocation5 + $0x4] sm:$0xf]
        %v550 = vld [vmem:[#allocation5 + $0x8] sm:$0xf]
        %v551 = vld [vmem:[#allocation5 + $0xc] sm:$0xf]
        %v552 = vld [vmem:[#allocation5 + $0x10] sm:$0xf]
        %v553 = vld [vmem:[#allocation5 + $0x14] sm:$0xf]
        %v554 = vld [vmem:[#allocation5 + $0x18] sm:$0xf]
        %v555 = vld [vmem:[#allocation5 + $0x1c] sm:$0xf]
        %v556 = vld [vmem:[#allocation5 + $0x20] sm:$0xf]
        %v557 = vld [vmem:[#allocation5 + $0x24] sm:$0xf]
        %v558 = vld [vmem:[#allocation5 + $0x28] sm:$0xf]
        %v559 = vld [vmem:[#allocation5 + $0x2c] sm:$0xf]
        %v560 = vld [vmem:[#allocation5 + $0x30] sm:$0xf]
        %v561 = vld [vmem:[#allocation5 + $0x34] sm:$0xf]
        %v562 = vld [vmem:[#allocation5 + $0x38] sm:$0xf]
        %v563 = vld [vmem:[#allocation5 + $0x3c] sm:$0xf]
        %v564 = vld [vmem:[#allocation5 + $0x40] sm:$0xf]
        %v565 = vld [vmem:[#allocation5 + $0x44] sm:$0xf]
        %v566 = vld [vmem:[#allocation5 + $0x48] sm:$0xf]
        %v567 = vld [vmem:[#allocation5 + $0x4c] sm:$0xf]
        %v568 = vld [vmem:[#allocation5 + $0x50] sm:$0xf]
        %v569 = vld [vmem:[#allocation5 + $0x54] sm:$0xf]
        %v570 = vld [vmem:[#allocation5 + $0x58] sm:$0xf]
        %v571 = vld [vmem:[#allocation5 + $0x5c] sm:$0xf]
        %v572 = vld [vmem:[#allocation5 + $0x60] sm:$0xf]
        %v573 = vld [vmem:[#allocation5 + $0x64] sm:$0xf]
        %v574 = vld [vmem:[#allocation5 + $0x68] sm:$0xf]
        %v575 = vld [vmem:[#allocation5 + $0x6c] sm:$0xf]
        %v576 = vld [vmem:[#allocation5 + $0x70] sm:$0xf]
        %v577 = vld [vmem:[#allocation5 + $0x74] sm:$0xf]
        %v578 = vld [vmem:[#allocation5 + $0x78] sm:$0xf]
        %v579 = vld [vmem:[#allocation5 + $0x7c] sm:$0xf]
        %v580 = vld [vmem:[#allocation5 + $0x80] sm:$0xf]
        %v581 = vld [vmem:[#allocation5 + $0x84] sm:$0xf]
        %v582 = vld [vmem:[#allocation5 + $0x88] sm:$0xf]
        %v583 = vld [vmem:[#allocation5 + $0x8c] sm:$0xf]
        %v584 = vld [vmem:[#allocation5 + $0x90] sm:$0xf]
        %v585 = vld [vmem:[#allocation5 + $0x94] sm:$0xf]
        %v586 = vld [vmem:[#allocation5 + $0x98] sm:$0xf]
        %v587 = vld [vmem:[#allocation5 + $0x9c] sm:$0xf]
        %v588 = vld [vmem:[#allocation5 + $0xa0] sm:$0xf]
        %v589 = vld [vmem:[#allocation5 + $0xa4] sm:$0xf]
        %v590 = vld [vmem:[#allocation5 + $0xa8] sm:$0xf]
        %v591 = vld [vmem:[#allocation5 + $0xac] sm:$0xf]
        %v592 = vld [vmem:[#allocation5 + $0xb0] sm:$0xf]
        %v593 = vld [vmem:[#allocation5 + $0xb4] sm:$0xf]
        %v594 = vld [vmem:[#allocation5 + $0xb8] sm:$0xf]
        %v595 = vld [vmem:[#allocation5 + $0xbc] sm:$0xf]
        %v596 = vld [vmem:[#allocation5 + $0xc0] sm:$0xf]
        %v597 = vld [vmem:[#allocation5 + $0xc4] sm:$0xf]
        %v598 = vld [vmem:[#allocation5 + $0xc8] sm:$0xf]
        %v599 = vld [vmem:[#allocation5 + $0xcc] sm:$0xf]
        %v600 = vld [vmem:[#allocation5 + $0xd0] sm:$0xf]
        %v601 = vld [vmem:[#allocation5 + $0xd4] sm:$0xf]
        %v602 = vld [vmem:[#allocation5 + $0xd8] sm:$0xf]
        %v603 = vld [vmem:[#allocation5 + $0xdc] sm:$0xf]
        %v604 = vld [vmem:[#allocation5 + $0xe0] sm:$0xf]
        %v605 = vld [vmem:[#allocation5 + $0xe4] sm:$0xf]
        %v606 = vld [vmem:[#allocation5 + $0xe8] sm:$0xf]
        %v607 = vld [vmem:[#allocation5 + $0xec] sm:$0xf]
        %v608 = vld [vmem:[#allocation5 + $0xf0] sm:$0xf]
        %v609 = vld [vmem:[#allocation5 + $0xf4] sm:$0xf]
        %v610 = vld [vmem:[#allocation5 + $0xf8] sm:$0xf]
        %v611 = vld [vmem:[#allocation5 + $0xfc] sm:$0xf]
        %v612 = vld [vmem:[#allocation5 + $0x100] sm:$0xf]
        %v613 = vld [vmem:[#allocation5 + $0x104] sm:$0xf]
        %v614 = vld [vmem:[#allocation5 + $0x108] sm:$0xf]
        %v615 = vld [vmem:[#allocation5 + $0x10c] sm:$0xf]
        %v616 = vld [vmem:[#allocation5 + $0x110] sm:$0xf]
        %v617 = vld [vmem:[#allocation5 + $0x114] sm:$0xf]
        %v618 = vld [vmem:[#allocation5 + $0x118] sm:$0xf]
        %v619 = vld [vmem:[#allocation5 + $0x11c] sm:$0xf]
        %v620 = vld [vmem:[#allocation5 + $0x120] sm:$0xf]
        %v621 = vld [vmem:[#allocation5 + $0x124] sm:$0xf]
        %v622 = vld [vmem:[#allocation5 + $0x128] sm:$0xf]
        %v623 = vld [vmem:[#allocation5 + $0x12c] sm:$0xf]
        %v624 = vld [vmem:[#allocation5 + $0x130] sm:$0xf]
        %v625 = vld [vmem:[#allocation5 + $0x134] sm:$0xf]
        %v626 = vld [vmem:[#allocation5 + $0x138] sm:$0xf]
        %v627 = vld [vmem:[#allocation5 + $0x13c] sm:$0xf]
        %v628 = vld [vmem:[#allocation5 + $0x140] sm:$0xf]
        %v629 = vld [vmem:[#allocation5 + $0x144] sm:$0xf]
        %v630 = vld [vmem:[#allocation5 + $0x148] sm:$0xf]
        %v631 = vld [vmem:[#allocation5 + $0x14c] sm:$0xf]
        %v632 = vld [vmem:[#allocation5 + $0x150] sm:$0xf]
        %v633 = vld [vmem:[#allocation5 + $0x154] sm:$0xf]
        %v634 = vld [vmem:[#allocation5 + $0x158] sm:$0xf]
        %v635 = vld [vmem:[#allocation5 + $0x15c] sm:$0xf]
        %v636 = vld [vmem:[#allocation5 + $0x160] sm:$0xf]
        %v637 = vld [vmem:[#allocation5 + $0x164] sm:$0xf]
        %v638 = vld [vmem:[#allocation5 + $0x168] sm:$0xf]
        %v639 = vld [vmem:[#allocation5 + $0x16c] sm:$0xf]
        %v640 = vld [vmem:[#allocation5 + $0x170] sm:$0xf]
        %v641 = vld [vmem:[#allocation5 + $0x174] sm:$0xf]
        %v642 = vld [vmem:[#allocation5 + $0x178] sm:$0xf]
        %v643 = vld [vmem:[#allocation5 + $0x17c] sm:$0xf]
        %v644 = vld [vmem:[#allocation5 + $0x180] sm:$0xf]
        %v645 = vld [vmem:[#allocation5 + $0x184] sm:$0xf]
        %v646 = vld [vmem:[#allocation5 + $0x188] sm:$0xf]
        %v647 = vld [vmem:[#allocation5 + $0x18c] sm:$0xf]
        %v648 = vld [vmem:[#allocation5 + $0x190] sm:$0xf]
        %v649 = vld [vmem:[#allocation5 + $0x194] sm:$0xf]
        %v650 = vld [vmem:[#allocation5 + $0x198] sm:$0xf]
        %v651 = vld [vmem:[#allocation5 + $0x19c] sm:$0xf]
        %v652 = vld [vmem:[#allocation5 + $0x1a0] sm:$0xf]
        %v653 = vld [vmem:[#allocation5 + $0x1a4] sm:$0xf]
        %v654 = vld [vmem:[#allocation5 + $0x1a8] sm:$0xf]
        %v655 = vld [vmem:[#allocation5 + $0x1ac] sm:$0xf]
        %v656 = vld [vmem:[#allocation5 + $0x1b0] sm:$0xf]
        %v657 = vld [vmem:[#allocation5 + $0x1b4] sm:$0xf]
        %v658 = vld [vmem:[#allocation5 + $0x1b8] sm:$0xf]
        %v659 = vld [vmem:[#allocation5 + $0x1bc] sm:$0xf]
        %v660 = vld [vmem:[#allocation5 + $0x1c0] sm:$0xf]
        %v661 = vld [vmem:[#allocation5 + $0x1c4] sm:$0xf]
        %v662 = vld [vmem:[#allocation5 + $0x1c8] sm:$0xf]
        %v663 = vld [vmem:[#allocation5 + $0x1cc] sm:$0xf]
        %v664 = vld [vmem:[#allocation5 + $0x1d0] sm:$0xf]
        %v665 = vld [vmem:[#allocation5 + $0x1d4] sm:$0xf]
        %v666 = vld [vmem:[#allocation5 + $0x1d8] sm:$0xf]
        %v667 = vld [vmem:[#allocation5 + $0x1dc] sm:$0xf]
        %v668 = vld [vmem:[#allocation5 + $0x1e0] sm:$0xf]
        %v669 = vld [vmem:[#allocation5 + $0x1e4] sm:$0xf]
        %v670 = vld [vmem:[#allocation5 + $0x1e8] sm:$0xf]
        %v671 = vld [vmem:[#allocation5 + $0x1ec] sm:$0xf]
        %v672 = vld [vmem:[#allocation5 + $0x1f0] sm:$0xf]
        %v673 = vld [vmem:[#allocation5 + $0x1f4] sm:$0xf]
        %v674 = vld [vmem:[#allocation5 + $0x1f8] sm:$0xf]
        %v675 = vld [vmem:[#allocation5 + $0x1fc] sm:$0xf]
        %v676 = vld [vmem:[#allocation5 + $0x200] sm:$0xf]
        %v677 = vld [vmem:[#allocation5 + $0x204] sm:$0xf]
        %v678 = vld [vmem:[#allocation5 + $0x208] sm:$0xf]
        %v679 = vld [vmem:[#allocation5 + $0x20c] sm:$0xf]
        %v680 = vld [vmem:[#allocation5 + $0x210] sm:$0xf]
        %v681 = vld [vmem:[#allocation5 + $0x214] sm:$0xf]
        %v682 = vld [vmem:[#allocation5 + $0x218] sm:$0xf]
        %v683 = vld [vmem:[#allocation5 + $0x21c] sm:$0xf]
        %v684 = vld [vmem:[#allocation5 + $0x220] sm:$0xf]
        %v685 = vld [vmem:[#allocation5 + $0x224] sm:$0xf]
        %v686 = vld [vmem:[#allocation5 + $0x228] sm:$0xf]
        %v687 = vld [vmem:[#allocation5 + $0x22c] sm:$0xf]
        %v688 = vld [vmem:[#allocation5 + $0x230] sm:$0xf]
        %v689 = vld [vmem:[#allocation5 + $0x234] sm:$0xf]
        %v690 = vld [vmem:[#allocation5 + $0x238] sm:$0xf]
        %v691 = vld [vmem:[#allocation5 + $0x23c] sm:$0xf]
        %v692 = vld [vmem:[#allocation5 + $0x240] sm:$0xf]
        %v693 = vld [vmem:[#allocation5 + $0x244] sm:$0xf]
        %v694 = vld [vmem:[#allocation5 + $0x248] sm:$0xf]
        %v695 = vld [vmem:[#allocation5 + $0x24c] sm:$0xf]
        %v696 = vld [vmem:[#allocation5 + $0x250] sm:$0xf]
        %v697 = vld [vmem:[#allocation5 + $0x254] sm:$0xf]
        %v698 = vld [vmem:[#allocation5 + $0x258] sm:$0xf]
        %v699 = vld [vmem:[#allocation5 + $0x25c] sm:$0xf]
        %v700 = vld [vmem:[#allocation5 + $0x260] sm:$0xf]
        %v701 = vld [vmem:[#allocation5 + $0x264] sm:$0xf]
        %v702 = vld [vmem:[#allocation5 + $0x268] sm:$0xf]
        %v703 = vld [vmem:[#allocation5 + $0x26c] sm:$0xf]
        %v704 = vld [vmem:[#allocation5 + $0x270] sm:$0xf]
        %v705 = vld [vmem:[#allocation5 + $0x274] sm:$0xf]
        %v706 = vld [vmem:[#allocation5 + $0x278] sm:$0xf]
        %v707 = vld [vmem:[#allocation5 + $0x27c] sm:$0xf]
        %v708 = vld [vmem:[#allocation5 + $0x280] sm:$0xf]
        %v709 = vld [vmem:[#allocation5 + $0x284] sm:$0xf]
        %v710 = vld [vmem:[#allocation5 + $0x288] sm:$0xf]
        %v711 = vld [vmem:[#allocation5 + $0x28c] sm:$0xf]
        %v712 = vld [vmem:[#allocation5 + $0x290] sm:$0xf]
        %v713 = vld [vmem:[#allocation5 + $0x294] sm:$0xf]
        %v714 = vld [vmem:[#allocation5 + $0x298] sm:$0xf]
        %v715 = vld [vmem:[#allocation5 + $0x29c] sm:$0xf]
        %v716 = vld [vmem:[#allocation5 + $0x2a0] sm:$0xf]
        %v717 = vld [vmem:[#allocation5 + $0x2a4] sm:$0xf]
        %v718 = vld [vmem:[#allocation5 + $0x2a8] sm:$0xf]
        %v719 = vld [vmem:[#allocation5 + $0x2ac] sm:$0xf]
        %v720 = vld [vmem:[#allocation5 + $0x2b0] sm:$0xf]
        %v721 = vld [vmem:[#allocation5 + $0x2b4] sm:$0xf]
        %v722 = vld [vmem:[#allocation5 + $0x2b8] sm:$0xf]
        %v723 = vld [vmem:[#allocation5 + $0x2bc] sm:$0xf]
        %v724 = vld [vmem:[#allocation5 + $0x2c0] sm:$0xf]
        %v725 = vld [vmem:[#allocation5 + $0x2c4] sm:$0xf]
        %v726 = vld [vmem:[#allocation5 + $0x2c8] sm:$0xf]
        %v727 = vld [vmem:[#allocation5 + $0x2cc] sm:$0xf]
        %v728 = vld [vmem:[#allocation5 + $0x2d0] sm:$0xf]
        %v729 = vld [vmem:[#allocation5 + $0x2d4] sm:$0xf]
        %v730 = vld [vmem:[#allocation5 + $0x2d8] sm:$0xf]
        %v731 = vld [vmem:[#allocation5 + $0x2dc] sm:$0xf]
        %v732 = vld [vmem:[#allocation5 + $0x2e0] sm:$0xf]
        %v733 = vld [vmem:[#allocation5 + $0x2e4] sm:$0xf]
        %v734 = vld [vmem:[#allocation5 + $0x2e8] sm:$0xf]
        %v735 = vld [vmem:[#allocation5 + $0x2ec] sm:$0xf]
        %v736 = vld [vmem:[#allocation5 + $0x2f0] sm:$0xf]
        %v737 = vld [vmem:[#allocation5 + $0x2f4] sm:$0xf]
        %v738 = vld [vmem:[#allocation5 + $0x2f8] sm:$0xf]
        %v739 = vld [vmem:[#allocation5 + $0x2fc] sm:$0xf]
        %s740 = scalar_lea.vmem %s306, 96 [#allocation2]
        %v741 = vld [vmem:[%s740] sm:$0xff]
        %v742 = vld [vmem:[%s740 + $0x8] sm:$0xff]
        %v743 = vld [vmem:[%s740 + $0x10] sm:$0xff]
        %v744 = vld [vmem:[%s740 + $0x18] sm:$0xff]
        %v745 = vld [vmem:[%s740 + $0x20] sm:$0xff]
        %v746 = vld [vmem:[%s740 + $0x28] sm:$0xff]
        %v747 = vld [vmem:[%s740 + $0x30] sm:$0xff]
        %v748 = vld [vmem:[%s740 + $0x38] sm:$0xff]
        %v749 = vld [vmem:[%s740 + $0x40] sm:$0xff]
        %v750 = vld [vmem:[%s740 + $0x48] sm:$0xff]
        %v751 = vld [vmem:[%s740 + $0x50] sm:$0xff]
        %v752 = vld [vmem:[%s740 + $0x58] sm:$0xff]
        %v753 = vld [vmem:[%s740 + $0x60] sm:$0xff]
        %v754 = vld [vmem:[%s740 + $0x68] sm:$0xff]
        %v755 = vld [vmem:[%s740 + $0x70] sm:$0xff]
        %v756 = vld [vmem:[%s740 + $0x78] sm:$0xff]
        %v757 = vld [vmem:[%s740 + $0x80] sm:$0xff]
        %v758 = vld [vmem:[%s740 + $0x88] sm:$0xff]
        %v759 = vld [vmem:[%s740 + $0x90] sm:$0xff]
        %v760 = vld [vmem:[%s740 + $0x98] sm:$0xff]
        %v761 = vld [vmem:[%s740 + $0xa0] sm:$0xff]
        %v762 = vld [vmem:[%s740 + $0xa8] sm:$0xff]
        %v763 = vld [vmem:[%s740 + $0xb0] sm:$0xff]
        %v764 = vld [vmem:[%s740 + $0xb8] sm:$0xff]
        %v765 = vld [vmem:[%s740 + $0xc0] sm:$0xff]
        %v766 = vld [vmem:[%s740 + $0xc8] sm:$0xff]
        %v767 = vld [vmem:[%s740 + $0xd0] sm:$0xff]
        %v768 = vld [vmem:[%s740 + $0xd8] sm:$0xff]
        %v769 = vld [vmem:[%s740 + $0xe0] sm:$0xff]
        %v770 = vld [vmem:[%s740 + $0xe8] sm:$0xff]
        %v771 = vld [vmem:[%s740 + $0xf0] sm:$0xff]
        %v772 = vld [vmem:[%s740 + $0xf8] sm:$0xff]
        %v773 = vld [vmem:[%s740 + $0x100] sm:$0xff]
        %v774 = vld [vmem:[%s740 + $0x108] sm:$0xff]
        %v775 = vld [vmem:[%s740 + $0x110] sm:$0xff]
        %v776 = vld [vmem:[%s740 + $0x118] sm:$0xff]
        %v777 = vld [vmem:[%s740 + $0x120] sm:$0xff]
        %v778 = vld [vmem:[%s740 + $0x128] sm:$0xff]
        %v779 = vld [vmem:[%s740 + $0x130] sm:$0xff]
        %v780 = vld [vmem:[%s740 + $0x138] sm:$0xff]
        %v781 = vld [vmem:[%s740 + $0x140] sm:$0xff]
        %v782 = vld [vmem:[%s740 + $0x148] sm:$0xff]
        %v783 = vld [vmem:[%s740 + $0x150] sm:$0xff]
        %v784 = vld [vmem:[%s740 + $0x158] sm:$0xff]
        %v785 = vld [vmem:[%s740 + $0x160] sm:$0xff]
        %v786 = vld [vmem:[%s740 + $0x168] sm:$0xff]
        %v787 = vld [vmem:[%s740 + $0x170] sm:$0xff]
        %v788 = vld [vmem:[%s740 + $0x178] sm:$0xff]
        %v789 = vld [vmem:[%s740 + $0x180] sm:$0xff]
        %v790 = vld [vmem:[%s740 + $0x188] sm:$0xff]
        %v791 = vld [vmem:[%s740 + $0x190] sm:$0xff]
        %v792 = vld [vmem:[%s740 + $0x198] sm:$0xff]
        %v793 = vld [vmem:[%s740 + $0x1a0] sm:$0xff]
        %v794 = vld [vmem:[%s740 + $0x1a8] sm:$0xff]
        %v795 = vld [vmem:[%s740 + $0x1b0] sm:$0xff]
        %v796 = vld [vmem:[%s740 + $0x1b8] sm:$0xff]
        %v797 = vld [vmem:[%s740 + $0x1c0] sm:$0xff]
        %v798 = vld [vmem:[%s740 + $0x1c8] sm:$0xff]
        %v799 = vld [vmem:[%s740 + $0x1d0] sm:$0xff]
        %v800 = vld [vmem:[%s740 + $0x1d8] sm:$0xff]
        %v801 = vld [vmem:[%s740 + $0x1e0] sm:$0xff]
        %v802 = vld [vmem:[%s740 + $0x1e8] sm:$0xff]
        %v803 = vld [vmem:[%s740 + $0x1f0] sm:$0xff]
        %v804 = vld [vmem:[%s740 + $0x1f8] sm:$0xff]
        %v805 = vld [vmem:[%s740 + $0x200] sm:$0xff]
        %v806 = vld [vmem:[%s740 + $0x208] sm:$0xff]
        %v807 = vld [vmem:[%s740 + $0x210] sm:$0xff]
        %v808 = vld [vmem:[%s740 + $0x218] sm:$0xff]
        %v809 = vld [vmem:[%s740 + $0x220] sm:$0xff]
        %v810 = vld [vmem:[%s740 + $0x228] sm:$0xff]
        %v811 = vld [vmem:[%s740 + $0x230] sm:$0xff]
        %v812 = vld [vmem:[%s740 + $0x238] sm:$0xff]
        %v813 = vld [vmem:[%s740 + $0x240] sm:$0xff]
        %v814 = vld [vmem:[%s740 + $0x248] sm:$0xff]
        %v815 = vld [vmem:[%s740 + $0x250] sm:$0xff]
        %v816 = vld [vmem:[%s740 + $0x258] sm:$0xff]
        %v817 = vld [vmem:[%s740 + $0x260] sm:$0xff]
        %v818 = vld [vmem:[%s740 + $0x268] sm:$0xff]
        %v819 = vld [vmem:[%s740 + $0x270] sm:$0xff]
        %v820 = vld [vmem:[%s740 + $0x278] sm:$0xff]
        %v821 = vld [vmem:[%s740 + $0x280] sm:$0xff]
        %v822 = vld [vmem:[%s740 + $0x288] sm:$0xff]
        %v823 = vld [vmem:[%s740 + $0x290] sm:$0xff]
        %v824 = vld [vmem:[%s740 + $0x298] sm:$0xff]
        %v825 = vld [vmem:[%s740 + $0x2a0] sm:$0xff]
        %v826 = vld [vmem:[%s740 + $0x2a8] sm:$0xff]
        %v827 = vld [vmem:[%s740 + $0x2b0] sm:$0xff]
        %v828 = vld [vmem:[%s740 + $0x2b8] sm:$0xff]
        %v829 = vld [vmem:[%s740 + $0x2c0] sm:$0xff]
        %v830 = vld [vmem:[%s740 + $0x2c8] sm:$0xff]
        %v831 = vld [vmem:[%s740 + $0x2d0] sm:$0xff]
        %v832 = vld [vmem:[%s740 + $0x2d8] sm:$0xff]
        %v833 = vld [vmem:[%s740 + $0x2e0] sm:$0xff]
        %v834 = vld [vmem:[%s740 + $0x2e8] sm:$0xff]
        %v835 = vld [vmem:[%s740 + $0x2f0] sm:$0xff]
        %v836 = vld [vmem:[%s740 + $0x2f8] sm:$0xff]
        %v837 = vld [vmem:[%s740 + $0x300] sm:$0xff]
        %v838 = vld [vmem:[%s740 + $0x308] sm:$0xff]
        %v839 = vld [vmem:[%s740 + $0x310] sm:$0xff]
        %v840 = vld [vmem:[%s740 + $0x318] sm:$0xff]
        %v841 = vld [vmem:[%s740 + $0x320] sm:$0xff]
        %v842 = vld [vmem:[%s740 + $0x328] sm:$0xff]
        %v843 = vld [vmem:[%s740 + $0x330] sm:$0xff]
        %v844 = vld [vmem:[%s740 + $0x338] sm:$0xff]
        %v845 = vld [vmem:[%s740 + $0x340] sm:$0xff]
        %v846 = vld [vmem:[%s740 + $0x348] sm:$0xff]
        %v847 = vld [vmem:[%s740 + $0x350] sm:$0xff]
        %v848 = vld [vmem:[%s740 + $0x358] sm:$0xff]
        %v849 = vld [vmem:[%s740 + $0x360] sm:$0xff]
        %v850 = vld [vmem:[%s740 + $0x368] sm:$0xff]
        %v851 = vld [vmem:[%s740 + $0x370] sm:$0xff]
        %v852 = vld [vmem:[%s740 + $0x378] sm:$0xff]
        %v853 = vld [vmem:[%s740 + $0x380] sm:$0xff]
        %v854 = vld [vmem:[%s740 + $0x388] sm:$0xff]
        %v855 = vld [vmem:[%s740 + $0x390] sm:$0xff]
        %v856 = vld [vmem:[%s740 + $0x398] sm:$0xff]
        %v857 = vld [vmem:[%s740 + $0x3a0] sm:$0xff]
        %v858 = vld [vmem:[%s740 + $0x3a8] sm:$0xff]
        %v859 = vld [vmem:[%s740 + $0x3b0] sm:$0xff]
        %v860 = vld [vmem:[%s740 + $0x3b8] sm:$0xff]
        %v861 = vld [vmem:[%s740 + $0x3c0] sm:$0xff]
        %v862 = vld [vmem:[%s740 + $0x3c8] sm:$0xff]
        %v863 = vld [vmem:[%s740 + $0x3d0] sm:$0xff]
        %v864 = vld [vmem:[%s740 + $0x3d8] sm:$0xff]
        %v865 = vld [vmem:[%s740 + $0x3e0] sm:$0xff]
        %v866 = vld [vmem:[%s740 + $0x3e8] sm:$0xff]
        %v867 = vld [vmem:[%s740 + $0x3f0] sm:$0xff]
        %v868 = vld [vmem:[%s740 + $0x3f8] sm:$0xff]
        %v869 = vld [vmem:[%s740 + $0x400] sm:$0xff]
        %v870 = vld [vmem:[%s740 + $0x408] sm:$0xff]
        %v871 = vld [vmem:[%s740 + $0x410] sm:$0xff]
        %v872 = vld [vmem:[%s740 + $0x418] sm:$0xff]
        %v873 = vld [vmem:[%s740 + $0x420] sm:$0xff]
        %v874 = vld [vmem:[%s740 + $0x428] sm:$0xff]
        %v875 = vld [vmem:[%s740 + $0x430] sm:$0xff]
        %v876 = vld [vmem:[%s740 + $0x438] sm:$0xff]
        %v877 = vld [vmem:[%s740 + $0x440] sm:$0xff]
        %v878 = vld [vmem:[%s740 + $0x448] sm:$0xff]
        %v879 = vld [vmem:[%s740 + $0x450] sm:$0xff]
        %v880 = vld [vmem:[%s740 + $0x458] sm:$0xff]
        %v881 = vld [vmem:[%s740 + $0x460] sm:$0xff]
        %v882 = vld [vmem:[%s740 + $0x468] sm:$0xff]
        %v883 = vld [vmem:[%s740 + $0x470] sm:$0xff]
        %v884 = vld [vmem:[%s740 + $0x478] sm:$0xff]
        %v885 = vld [vmem:[%s740 + $0x480] sm:$0xff]
        %v886 = vld [vmem:[%s740 + $0x488] sm:$0xff]
        %v887 = vld [vmem:[%s740 + $0x490] sm:$0xff]
        %v888 = vld [vmem:[%s740 + $0x498] sm:$0xff]
        %v889 = vld [vmem:[%s740 + $0x4a0] sm:$0xff]
        %v890 = vld [vmem:[%s740 + $0x4a8] sm:$0xff]
        %v891 = vld [vmem:[%s740 + $0x4b0] sm:$0xff]
        %v892 = vld [vmem:[%s740 + $0x4b8] sm:$0xff]
        %v893 = vld [vmem:[%s740 + $0x4c0] sm:$0xff]
        %v894 = vld [vmem:[%s740 + $0x4c8] sm:$0xff]
        %v895 = vld [vmem:[%s740 + $0x4d0] sm:$0xff]
        %v896 = vld [vmem:[%s740 + $0x4d8] sm:$0xff]
        %v897 = vld [vmem:[%s740 + $0x4e0] sm:$0xff]
        %v898 = vld [vmem:[%s740 + $0x4e8] sm:$0xff]
        %v899 = vld [vmem:[%s740 + $0x4f0] sm:$0xff]
        %v900 = vld [vmem:[%s740 + $0x4f8] sm:$0xff]
        %v901 = vld [vmem:[%s740 + $0x500] sm:$0xff]
        %v902 = vld [vmem:[%s740 + $0x508] sm:$0xff]
        %v903 = vld [vmem:[%s740 + $0x510] sm:$0xff]
        %v904 = vld [vmem:[%s740 + $0x518] sm:$0xff]
        %v905 = vld [vmem:[%s740 + $0x520] sm:$0xff]
        %v906 = vld [vmem:[%s740 + $0x528] sm:$0xff]
        %v907 = vld [vmem:[%s740 + $0x530] sm:$0xff]
        %v908 = vld [vmem:[%s740 + $0x538] sm:$0xff]
        %v909 = vld [vmem:[%s740 + $0x540] sm:$0xff]
        %v910 = vld [vmem:[%s740 + $0x548] sm:$0xff]
        %v911 = vld [vmem:[%s740 + $0x550] sm:$0xff]
        %v912 = vld [vmem:[%s740 + $0x558] sm:$0xff]
        %v913 = vld [vmem:[%s740 + $0x560] sm:$0xff]
        %v914 = vld [vmem:[%s740 + $0x568] sm:$0xff]
        %v915 = vld [vmem:[%s740 + $0x570] sm:$0xff]
        %v916 = vld [vmem:[%s740 + $0x578] sm:$0xff]
        %v917 = vld [vmem:[%s740 + $0x580] sm:$0xff]
        %v918 = vld [vmem:[%s740 + $0x588] sm:$0xff]
        %v919 = vld [vmem:[%s740 + $0x590] sm:$0xff]
        %v920 = vld [vmem:[%s740 + $0x598] sm:$0xff]
        %v921 = vld [vmem:[%s740 + $0x5a0] sm:$0xff]
        %v922 = vld [vmem:[%s740 + $0x5a8] sm:$0xff]
        %v923 = vld [vmem:[%s740 + $0x5b0] sm:$0xff]
        %v924 = vld [vmem:[%s740 + $0x5b8] sm:$0xff]
        %v925 = vld [vmem:[%s740 + $0x5c0] sm:$0xff]
        %v926 = vld [vmem:[%s740 + $0x5c8] sm:$0xff]
        %v927 = vld [vmem:[%s740 + $0x5d0] sm:$0xff]
        %v928 = vld [vmem:[%s740 + $0x5d8] sm:$0xff]
        %v929 = vld [vmem:[%s740 + $0x5e0] sm:$0xff]
        %v930 = vld [vmem:[%s740 + $0x5e8] sm:$0xff]
        %v931 = vld [vmem:[%s740 + $0x5f0] sm:$0xff]
        %v932 = vld [vmem:[%s740 + $0x5f8] sm:$0xff]
        %s933 = scalar_lea.vmem [#allocation5], 768
        %v934 = vld [vmem:[%s933] sm:$0xf]
        %v935 = vld [vmem:[%s933 + $0x4] sm:$0xf]
        %v936 = vld [vmem:[%s933 + $0x8] sm:$0xf]
        %v937 = vld [vmem:[%s933 + $0xc] sm:$0xf]
        %v938 = vld [vmem:[%s933 + $0x10] sm:$0xf]
        %v939 = vld [vmem:[%s933 + $0x14] sm:$0xf]
        %v940 = vld [vmem:[%s933 + $0x18] sm:$0xf]
        %v941 = vld [vmem:[%s933 + $0x1c] sm:$0xf]
        %v942 = vld [vmem:[%s933 + $0x20] sm:$0xf]
        %v943 = vld [vmem:[%s933 + $0x24] sm:$0xf]
        %v944 = vld [vmem:[%s933 + $0x28] sm:$0xf]
        %v945 = vld [vmem:[%s933 + $0x2c] sm:$0xf]
        %v946 = vld [vmem:[%s933 + $0x30] sm:$0xf]
        %v947 = vld [vmem:[%s933 + $0x34] sm:$0xf]
        %v948 = vld [vmem:[%s933 + $0x38] sm:$0xf]
        %v949 = vld [vmem:[%s933 + $0x3c] sm:$0xf]
        %v950 = vld [vmem:[%s933 + $0x40] sm:$0xf]
        %v951 = vld [vmem:[%s933 + $0x44] sm:$0xf]
        %v952 = vld [vmem:[%s933 + $0x48] sm:$0xf]
        %v953 = vld [vmem:[%s933 + $0x4c] sm:$0xf]
        %v954 = vld [vmem:[%s933 + $0x50] sm:$0xf]
        %v955 = vld [vmem:[%s933 + $0x54] sm:$0xf]
        %v956 = vld [vmem:[%s933 + $0x58] sm:$0xf]
        %v957 = vld [vmem:[%s933 + $0x5c] sm:$0xf]
        %v958 = vld [vmem:[%s933 + $0x60] sm:$0xf]
        %v959 = vld [vmem:[%s933 + $0x64] sm:$0xf]
        %v960 = vld [vmem:[%s933 + $0x68] sm:$0xf]
        %v961 = vld [vmem:[%s933 + $0x6c] sm:$0xf]
        %v962 = vld [vmem:[%s933 + $0x70] sm:$0xf]
        %v963 = vld [vmem:[%s933 + $0x74] sm:$0xf]
        %v964 = vld [vmem:[%s933 + $0x78] sm:$0xf]
        %v965 = vld [vmem:[%s933 + $0x7c] sm:$0xf]
        %v966 = vld [vmem:[%s933 + $0x80] sm:$0xf]
        %v967 = vld [vmem:[%s933 + $0x84] sm:$0xf]
        %v968 = vld [vmem:[%s933 + $0x88] sm:$0xf]
        %v969 = vld [vmem:[%s933 + $0x8c] sm:$0xf]
        %v970 = vld [vmem:[%s933 + $0x90] sm:$0xf]
        %v971 = vld [vmem:[%s933 + $0x94] sm:$0xf]
        %v972 = vld [vmem:[%s933 + $0x98] sm:$0xf]
        %v973 = vld [vmem:[%s933 + $0x9c] sm:$0xf]
        %v974 = vld [vmem:[%s933 + $0xa0] sm:$0xf]
        %v975 = vld [vmem:[%s933 + $0xa4] sm:$0xf]
        %v976 = vld [vmem:[%s933 + $0xa8] sm:$0xf]
        %v977 = vld [vmem:[%s933 + $0xac] sm:$0xf]
        %v978 = vld [vmem:[%s933 + $0xb0] sm:$0xf]
        %v979 = vld [vmem:[%s933 + $0xb4] sm:$0xf]
        %v980 = vld [vmem:[%s933 + $0xb8] sm:$0xf]
        %v981 = vld [vmem:[%s933 + $0xbc] sm:$0xf]
        %v982 = vld [vmem:[%s933 + $0xc0] sm:$0xf]
        %v983 = vld [vmem:[%s933 + $0xc4] sm:$0xf]
        %v984 = vld [vmem:[%s933 + $0xc8] sm:$0xf]
        %v985 = vld [vmem:[%s933 + $0xcc] sm:$0xf]
        %v986 = vld [vmem:[%s933 + $0xd0] sm:$0xf]
        %v987 = vld [vmem:[%s933 + $0xd4] sm:$0xf]
        %v988 = vld [vmem:[%s933 + $0xd8] sm:$0xf]
        %v989 = vld [vmem:[%s933 + $0xdc] sm:$0xf]
        %v990 = vld [vmem:[%s933 + $0xe0] sm:$0xf]
        %v991 = vld [vmem:[%s933 + $0xe4] sm:$0xf]
        %v992 = vld [vmem:[%s933 + $0xe8] sm:$0xf]
        %v993 = vld [vmem:[%s933 + $0xec] sm:$0xf]
        %v994 = vld [vmem:[%s933 + $0xf0] sm:$0xf]
        %v995 = vld [vmem:[%s933 + $0xf4] sm:$0xf]
        %v996 = vld [vmem:[%s933 + $0xf8] sm:$0xf]
        %v997 = vld [vmem:[%s933 + $0xfc] sm:$0xf]
        %v998 = vld [vmem:[%s933 + $0x100] sm:$0xf]
        %v999 = vld [vmem:[%s933 + $0x104] sm:$0xf]
        %v1000 = vld [vmem:[%s933 + $0x108] sm:$0xf]
        %v1001 = vld [vmem:[%s933 + $0x10c] sm:$0xf]
        %v1002 = vld [vmem:[%s933 + $0x110] sm:$0xf]
        %v1003 = vld [vmem:[%s933 + $0x114] sm:$0xf]
        %v1004 = vld [vmem:[%s933 + $0x118] sm:$0xf]
        %v1005 = vld [vmem:[%s933 + $0x11c] sm:$0xf]
        %v1006 = vld [vmem:[%s933 + $0x120] sm:$0xf]
        %v1007 = vld [vmem:[%s933 + $0x124] sm:$0xf]
        %v1008 = vld [vmem:[%s933 + $0x128] sm:$0xf]
        %v1009 = vld [vmem:[%s933 + $0x12c] sm:$0xf]
        %v1010 = vld [vmem:[%s933 + $0x130] sm:$0xf]
        %v1011 = vld [vmem:[%s933 + $0x134] sm:$0xf]
        %v1012 = vld [vmem:[%s933 + $0x138] sm:$0xf]
        %v1013 = vld [vmem:[%s933 + $0x13c] sm:$0xf]
        %v1014 = vld [vmem:[%s933 + $0x140] sm:$0xf]
        %v1015 = vld [vmem:[%s933 + $0x144] sm:$0xf]
        %v1016 = vld [vmem:[%s933 + $0x148] sm:$0xf]
        %v1017 = vld [vmem:[%s933 + $0x14c] sm:$0xf]
        %v1018 = vld [vmem:[%s933 + $0x150] sm:$0xf]
        %v1019 = vld [vmem:[%s933 + $0x154] sm:$0xf]
        %v1020 = vld [vmem:[%s933 + $0x158] sm:$0xf]
        %v1021 = vld [vmem:[%s933 + $0x15c] sm:$0xf]
        %v1022 = vld [vmem:[%s933 + $0x160] sm:$0xf]
        %v1023 = vld [vmem:[%s933 + $0x164] sm:$0xf]
        %v1024 = vld [vmem:[%s933 + $0x168] sm:$0xf]
        %v1025 = vld [vmem:[%s933 + $0x16c] sm:$0xf]
        %v1026 = vld [vmem:[%s933 + $0x170] sm:$0xf]
        %v1027 = vld [vmem:[%s933 + $0x174] sm:$0xf]
        %v1028 = vld [vmem:[%s933 + $0x178] sm:$0xf]
        %v1029 = vld [vmem:[%s933 + $0x17c] sm:$0xf]
        %v1030 = vld [vmem:[%s933 + $0x180] sm:$0xf]
        %v1031 = vld [vmem:[%s933 + $0x184] sm:$0xf]
        %v1032 = vld [vmem:[%s933 + $0x188] sm:$0xf]
        %v1033 = vld [vmem:[%s933 + $0x18c] sm:$0xf]
        %v1034 = vld [vmem:[%s933 + $0x190] sm:$0xf]
        %v1035 = vld [vmem:[%s933 + $0x194] sm:$0xf]
        %v1036 = vld [vmem:[%s933 + $0x198] sm:$0xf]
        %v1037 = vld [vmem:[%s933 + $0x19c] sm:$0xf]
        %v1038 = vld [vmem:[%s933 + $0x1a0] sm:$0xf]
        %v1039 = vld [vmem:[%s933 + $0x1a4] sm:$0xf]
        %v1040 = vld [vmem:[%s933 + $0x1a8] sm:$0xf]
        %v1041 = vld [vmem:[%s933 + $0x1ac] sm:$0xf]
        %v1042 = vld [vmem:[%s933 + $0x1b0] sm:$0xf]
        %v1043 = vld [vmem:[%s933 + $0x1b4] sm:$0xf]
        %v1044 = vld [vmem:[%s933 + $0x1b8] sm:$0xf]
        %v1045 = vld [vmem:[%s933 + $0x1bc] sm:$0xf]
        %v1046 = vld [vmem:[%s933 + $0x1c0] sm:$0xf]
        %v1047 = vld [vmem:[%s933 + $0x1c4] sm:$0xf]
        %v1048 = vld [vmem:[%s933 + $0x1c8] sm:$0xf]
        %v1049 = vld [vmem:[%s933 + $0x1cc] sm:$0xf]
        %v1050 = vld [vmem:[%s933 + $0x1d0] sm:$0xf]
        %v1051 = vld [vmem:[%s933 + $0x1d4] sm:$0xf]
        %v1052 = vld [vmem:[%s933 + $0x1d8] sm:$0xf]
        %v1053 = vld [vmem:[%s933 + $0x1dc] sm:$0xf]
        %v1054 = vld [vmem:[%s933 + $0x1e0] sm:$0xf]
        %v1055 = vld [vmem:[%s933 + $0x1e4] sm:$0xf]
        %v1056 = vld [vmem:[%s933 + $0x1e8] sm:$0xf]
        %v1057 = vld [vmem:[%s933 + $0x1ec] sm:$0xf]
        %v1058 = vld [vmem:[%s933 + $0x1f0] sm:$0xf]
        %v1059 = vld [vmem:[%s933 + $0x1f4] sm:$0xf]
        %v1060 = vld [vmem:[%s933 + $0x1f8] sm:$0xf]
        %v1061 = vld [vmem:[%s933 + $0x1fc] sm:$0xf]
        %v1062 = vld [vmem:[%s933 + $0x200] sm:$0xf]
        %v1063 = vld [vmem:[%s933 + $0x204] sm:$0xf]
        %v1064 = vld [vmem:[%s933 + $0x208] sm:$0xf]
        %v1065 = vld [vmem:[%s933 + $0x20c] sm:$0xf]
        %v1066 = vld [vmem:[%s933 + $0x210] sm:$0xf]
        %v1067 = vld [vmem:[%s933 + $0x214] sm:$0xf]
        %v1068 = vld [vmem:[%s933 + $0x218] sm:$0xf]
        %v1069 = vld [vmem:[%s933 + $0x21c] sm:$0xf]
        %v1070 = vld [vmem:[%s933 + $0x220] sm:$0xf]
        %v1071 = vld [vmem:[%s933 + $0x224] sm:$0xf]
        %v1072 = vld [vmem:[%s933 + $0x228] sm:$0xf]
        %v1073 = vld [vmem:[%s933 + $0x22c] sm:$0xf]
        %v1074 = vld [vmem:[%s933 + $0x230] sm:$0xf]
        %v1075 = vld [vmem:[%s933 + $0x234] sm:$0xf]
        %v1076 = vld [vmem:[%s933 + $0x238] sm:$0xf]
        %v1077 = vld [vmem:[%s933 + $0x23c] sm:$0xf]
        %v1078 = vld [vmem:[%s933 + $0x240] sm:$0xf]
        %v1079 = vld [vmem:[%s933 + $0x244] sm:$0xf]
        %v1080 = vld [vmem:[%s933 + $0x248] sm:$0xf]
        %v1081 = vld [vmem:[%s933 + $0x24c] sm:$0xf]
        %v1082 = vld [vmem:[%s933 + $0x250] sm:$0xf]
        %v1083 = vld [vmem:[%s933 + $0x254] sm:$0xf]
        %v1084 = vld [vmem:[%s933 + $0x258] sm:$0xf]
        %v1085 = vld [vmem:[%s933 + $0x25c] sm:$0xf]
        %v1086 = vld [vmem:[%s933 + $0x260] sm:$0xf]
        %v1087 = vld [vmem:[%s933 + $0x264] sm:$0xf]
        %v1088 = vld [vmem:[%s933 + $0x268] sm:$0xf]
        %v1089 = vld [vmem:[%s933 + $0x26c] sm:$0xf]
        %v1090 = vld [vmem:[%s933 + $0x270] sm:$0xf]
        %v1091 = vld [vmem:[%s933 + $0x274] sm:$0xf]
        %v1092 = vld [vmem:[%s933 + $0x278] sm:$0xf]
        %v1093 = vld [vmem:[%s933 + $0x27c] sm:$0xf]
        %v1094 = vld [vmem:[%s933 + $0x280] sm:$0xf]
        %v1095 = vld [vmem:[%s933 + $0x284] sm:$0xf]
        %v1096 = vld [vmem:[%s933 + $0x288] sm:$0xf]
        %v1097 = vld [vmem:[%s933 + $0x28c] sm:$0xf]
        %v1098 = vld [vmem:[%s933 + $0x290] sm:$0xf]
        %v1099 = vld [vmem:[%s933 + $0x294] sm:$0xf]
        %v1100 = vld [vmem:[%s933 + $0x298] sm:$0xf]
        %v1101 = vld [vmem:[%s933 + $0x29c] sm:$0xf]
        %v1102 = vld [vmem:[%s933 + $0x2a0] sm:$0xf]
        %v1103 = vld [vmem:[%s933 + $0x2a4] sm:$0xf]
        %v1104 = vld [vmem:[%s933 + $0x2a8] sm:$0xf]
        %v1105 = vld [vmem:[%s933 + $0x2ac] sm:$0xf]
        %v1106 = vld [vmem:[%s933 + $0x2b0] sm:$0xf]
        %v1107 = vld [vmem:[%s933 + $0x2b4] sm:$0xf]
        %v1108 = vld [vmem:[%s933 + $0x2b8] sm:$0xf]
        %v1109 = vld [vmem:[%s933 + $0x2bc] sm:$0xf]
        %v1110 = vld [vmem:[%s933 + $0x2c0] sm:$0xf]
        %v1111 = vld [vmem:[%s933 + $0x2c4] sm:$0xf]
        %v1112 = vld [vmem:[%s933 + $0x2c8] sm:$0xf]
        %v1113 = vld [vmem:[%s933 + $0x2cc] sm:$0xf]
        %v1114 = vld [vmem:[%s933 + $0x2d0] sm:$0xf]
        %v1115 = vld [vmem:[%s933 + $0x2d4] sm:$0xf]
        %v1116 = vld [vmem:[%s933 + $0x2d8] sm:$0xf]
        %v1117 = vld [vmem:[%s933 + $0x2dc] sm:$0xf]
        %v1118 = vld [vmem:[%s933 + $0x2e0] sm:$0xf]
        %v1119 = vld [vmem:[%s933 + $0x2e4] sm:$0xf]
        %v1120 = vld [vmem:[%s933 + $0x2e8] sm:$0xf]
        %v1121 = vld [vmem:[%s933 + $0x2ec] sm:$0xf]
        %v1122 = vld [vmem:[%s933 + $0x2f0] sm:$0xf]
        %v1123 = vld [vmem:[%s933 + $0x2f4] sm:$0xf]
        %v1124 = vld [vmem:[%s933 + $0x2f8] sm:$0xf]
        %v1125 = vld [vmem:[%s933 + $0x2fc] sm:$0xf]
        %v1318 = vunpack.c.l.b16 %v741
        %v1319 = vunpack.c.h.b16 %v741
        %v1320 = vunpack.c.l.b16 %v742
        %v1321 = vunpack.c.h.b16 %v742
        %v1322 = vunpack.c.l.b16 %v743
        %v1323 = vunpack.c.h.b16 %v743
        %v1324 = vunpack.c.l.b16 %v744
        %v1325 = vunpack.c.h.b16 %v744
        %v1326 = vunpack.c.l.b16 %v745
        %v1327 = vunpack.c.h.b16 %v745
        %v1328 = vunpack.c.l.b16 %v746
        %v1329 = vunpack.c.h.b16 %v746
        %v1330 = vunpack.c.l.b16 %v747
        %v1331 = vunpack.c.h.b16 %v747
        %v1332 = vunpack.c.l.b16 %v748
        %v1333 = vunpack.c.h.b16 %v748
        %v1334 = vunpack.c.l.b16 %v749
        %v1335 = vunpack.c.h.b16 %v749
        %v1336 = vunpack.c.l.b16 %v750
        %v1337 = vunpack.c.h.b16 %v750
        %v1338 = vunpack.c.l.b16 %v751
        %v1339 = vunpack.c.h.b16 %v751
        %v1340 = vunpack.c.l.b16 %v752
        %v1341 = vunpack.c.h.b16 %v752
        %v1342 = vunpack.c.l.b16 %v753
        %v1343 = vunpack.c.h.b16 %v753
        %v1344 = vunpack.c.l.b16 %v754
        %v1345 = vunpack.c.h.b16 %v754
        %v1346 = vunpack.c.l.b16 %v755
        %v1347 = vunpack.c.h.b16 %v755
        %v1348 = vunpack.c.l.b16 %v756
        %v1349 = vunpack.c.h.b16 %v756
        %v1350 = vunpack.c.l.b16 %v757
        %v1351 = vunpack.c.h.b16 %v757
        %v1352 = vunpack.c.l.b16 %v758
        %v1353 = vunpack.c.h.b16 %v758
        %v1354 = vunpack.c.l.b16 %v759
        %v1355 = vunpack.c.h.b16 %v759
        %v1356 = vunpack.c.l.b16 %v760
        %v1357 = vunpack.c.h.b16 %v760
        %v1358 = vunpack.c.l.b16 %v761
        %v1359 = vunpack.c.h.b16 %v761
        %v1360 = vunpack.c.l.b16 %v762
        %v1361 = vunpack.c.h.b16 %v762
        %v1362 = vunpack.c.l.b16 %v763
        %v1363 = vunpack.c.h.b16 %v763
        %v1364 = vunpack.c.l.b16 %v764
        %v1365 = vunpack.c.h.b16 %v764
        %v1366 = vunpack.c.l.b16 %v765
        %v1367 = vunpack.c.h.b16 %v765
        %v1368 = vunpack.c.l.b16 %v766
        %v1369 = vunpack.c.h.b16 %v766
        %v1370 = vunpack.c.l.b16 %v767
        %v1371 = vunpack.c.h.b16 %v767
        %v1372 = vunpack.c.l.b16 %v768
        %v1373 = vunpack.c.h.b16 %v768
        %v1374 = vunpack.c.l.b16 %v769
        %v1375 = vunpack.c.h.b16 %v769
        %v1376 = vunpack.c.l.b16 %v770
        %v1377 = vunpack.c.h.b16 %v770
        %v1378 = vunpack.c.l.b16 %v771
        %v1379 = vunpack.c.h.b16 %v771
        %v1380 = vunpack.c.l.b16 %v772
        %v1381 = vunpack.c.h.b16 %v772
        %v1382 = vunpack.c.l.b16 %v773
        %v1383 = vunpack.c.h.b16 %v773
        %v1384 = vunpack.c.l.b16 %v774
        %v1385 = vunpack.c.h.b16 %v774
        %v1386 = vunpack.c.l.b16 %v775
        %v1387 = vunpack.c.h.b16 %v775
        %v1388 = vunpack.c.l.b16 %v776
        %v1389 = vunpack.c.h.b16 %v776
        %v1390 = vunpack.c.l.b16 %v777
        %v1391 = vunpack.c.h.b16 %v777
        %v1392 = vunpack.c.l.b16 %v778
        %v1393 = vunpack.c.h.b16 %v778
        %v1394 = vunpack.c.l.b16 %v779
        %v1395 = vunpack.c.h.b16 %v779
        %v1396 = vunpack.c.l.b16 %v780
        %v1397 = vunpack.c.h.b16 %v780
        %v1398 = vunpack.c.l.b16 %v781
        %v1399 = vunpack.c.h.b16 %v781
        %v1400 = vunpack.c.l.b16 %v782
        %v1401 = vunpack.c.h.b16 %v782
        %v1402 = vunpack.c.l.b16 %v783
        %v1403 = vunpack.c.h.b16 %v783
        %v1404 = vunpack.c.l.b16 %v784
        %v1405 = vunpack.c.h.b16 %v784
        %v1406 = vunpack.c.l.b16 %v785
        %v1407 = vunpack.c.h.b16 %v785
        %v1408 = vunpack.c.l.b16 %v786
        %v1409 = vunpack.c.h.b16 %v786
        %v1410 = vunpack.c.l.b16 %v787
        %v1411 = vunpack.c.h.b16 %v787
        %v1412 = vunpack.c.l.b16 %v788
        %v1413 = vunpack.c.h.b16 %v788
        %v1414 = vunpack.c.l.b16 %v789
        %v1415 = vunpack.c.h.b16 %v789
        %v1416 = vunpack.c.l.b16 %v790
        %v1417 = vunpack.c.h.b16 %v790
        %v1418 = vunpack.c.l.b16 %v791
        %v1419 = vunpack.c.h.b16 %v791
        %v1420 = vunpack.c.l.b16 %v792
        %v1421 = vunpack.c.h.b16 %v792
        %v1422 = vunpack.c.l.b16 %v793
        %v1423 = vunpack.c.h.b16 %v793
        %v1424 = vunpack.c.l.b16 %v794
        %v1425 = vunpack.c.h.b16 %v794
        %v1426 = vunpack.c.l.b16 %v795
        %v1427 = vunpack.c.h.b16 %v795
        %v1428 = vunpack.c.l.b16 %v796
        %v1429 = vunpack.c.h.b16 %v796
        %v1430 = vunpack.c.l.b16 %v797
        %v1431 = vunpack.c.h.b16 %v797
        %v1432 = vunpack.c.l.b16 %v798
        %v1433 = vunpack.c.h.b16 %v798
        %v1434 = vunpack.c.l.b16 %v799
        %v1435 = vunpack.c.h.b16 %v799
        %v1436 = vunpack.c.l.b16 %v800
        %v1437 = vunpack.c.h.b16 %v800
        %v1438 = vunpack.c.l.b16 %v801
        %v1439 = vunpack.c.h.b16 %v801
        %v1440 = vunpack.c.l.b16 %v802
        %v1441 = vunpack.c.h.b16 %v802
        %v1442 = vunpack.c.l.b16 %v803
        %v1443 = vunpack.c.h.b16 %v803
        %v1444 = vunpack.c.l.b16 %v804
        %v1445 = vunpack.c.h.b16 %v804
        %v1446 = vunpack.c.l.b16 %v805
        %v1447 = vunpack.c.h.b16 %v805
        %v1448 = vunpack.c.l.b16 %v806
        %v1449 = vunpack.c.h.b16 %v806
        %v1450 = vunpack.c.l.b16 %v807
        %v1451 = vunpack.c.h.b16 %v807
        %v1452 = vunpack.c.l.b16 %v808
        %v1453 = vunpack.c.h.b16 %v808
        %v1454 = vunpack.c.l.b16 %v809
        %v1455 = vunpack.c.h.b16 %v809
        %v1456 = vunpack.c.l.b16 %v810
        %v1457 = vunpack.c.h.b16 %v810
        %v1458 = vunpack.c.l.b16 %v811
        %v1459 = vunpack.c.h.b16 %v811
        %v1460 = vunpack.c.l.b16 %v812
        %v1461 = vunpack.c.h.b16 %v812
        %v1462 = vunpack.c.l.b16 %v813
        %v1463 = vunpack.c.h.b16 %v813
        %v1464 = vunpack.c.l.b16 %v814
        %v1465 = vunpack.c.h.b16 %v814
        %v1466 = vunpack.c.l.b16 %v815
        %v1467 = vunpack.c.h.b16 %v815
        %v1468 = vunpack.c.l.b16 %v816
        %v1469 = vunpack.c.h.b16 %v816
        %v1470 = vunpack.c.l.b16 %v817
        %v1471 = vunpack.c.h.b16 %v817
        %v1472 = vunpack.c.l.b16 %v818
        %v1473 = vunpack.c.h.b16 %v818
        %v1474 = vunpack.c.l.b16 %v819
        %v1475 = vunpack.c.h.b16 %v819
        %v1476 = vunpack.c.l.b16 %v820
        %v1477 = vunpack.c.h.b16 %v820
        %v1478 = vunpack.c.l.b16 %v821
        %v1479 = vunpack.c.h.b16 %v821
        %v1480 = vunpack.c.l.b16 %v822
        %v1481 = vunpack.c.h.b16 %v822
        %v1482 = vunpack.c.l.b16 %v823
        %v1483 = vunpack.c.h.b16 %v823
        %v1484 = vunpack.c.l.b16 %v824
        %v1485 = vunpack.c.h.b16 %v824
        %v1486 = vunpack.c.l.b16 %v825
        %v1487 = vunpack.c.h.b16 %v825
        %v1488 = vunpack.c.l.b16 %v826
        %v1489 = vunpack.c.h.b16 %v826
        %v1490 = vunpack.c.l.b16 %v827
        %v1491 = vunpack.c.h.b16 %v827
        %v1492 = vunpack.c.l.b16 %v828
        %v1493 = vunpack.c.h.b16 %v828
        %v1494 = vunpack.c.l.b16 %v829
        %v1495 = vunpack.c.h.b16 %v829
        %v1496 = vunpack.c.l.b16 %v830
        %v1497 = vunpack.c.h.b16 %v830
        %v1498 = vunpack.c.l.b16 %v831
        %v1499 = vunpack.c.h.b16 %v831
        %v1500 = vunpack.c.l.b16 %v832
        %v1501 = vunpack.c.h.b16 %v832
        %v1502 = vunpack.c.l.b16 %v833
        %v1503 = vunpack.c.h.b16 %v833
        %v1504 = vunpack.c.l.b16 %v834
        %v1505 = vunpack.c.h.b16 %v834
        %v1506 = vunpack.c.l.b16 %v835
        %v1507 = vunpack.c.h.b16 %v835
        %v1508 = vunpack.c.l.b16 %v836
        %v1509 = vunpack.c.h.b16 %v836
        %v1510 = vunpack.c.l.b16 %v837
        %v1511 = vunpack.c.h.b16 %v837
        %v1512 = vunpack.c.l.b16 %v838
        %v1513 = vunpack.c.h.b16 %v838
        %v1514 = vunpack.c.l.b16 %v839
        %v1515 = vunpack.c.h.b16 %v839
        %v1516 = vunpack.c.l.b16 %v840
        %v1517 = vunpack.c.h.b16 %v840
        %v1518 = vunpack.c.l.b16 %v841
        %v1519 = vunpack.c.h.b16 %v841
        %v1520 = vunpack.c.l.b16 %v842
        %v1521 = vunpack.c.h.b16 %v842
        %v1522 = vunpack.c.l.b16 %v843
        %v1523 = vunpack.c.h.b16 %v843
        %v1524 = vunpack.c.l.b16 %v844
        %v1525 = vunpack.c.h.b16 %v844
        %v1526 = vunpack.c.l.b16 %v845
        %v1527 = vunpack.c.h.b16 %v845
        %v1528 = vunpack.c.l.b16 %v846
        %v1529 = vunpack.c.h.b16 %v846
        %v1530 = vunpack.c.l.b16 %v847
        %v1531 = vunpack.c.h.b16 %v847
        %v1532 = vunpack.c.l.b16 %v848
        %v1533 = vunpack.c.h.b16 %v848
        %v1534 = vunpack.c.l.b16 %v849
        %v1535 = vunpack.c.h.b16 %v849
        %v1536 = vunpack.c.l.b16 %v850
        %v1537 = vunpack.c.h.b16 %v850
        %v1538 = vunpack.c.l.b16 %v851
        %v1539 = vunpack.c.h.b16 %v851
        %v1540 = vunpack.c.l.b16 %v852
        %v1541 = vunpack.c.h.b16 %v852
        %v1542 = vunpack.c.l.b16 %v853
        %v1543 = vunpack.c.h.b16 %v853
        %v1544 = vunpack.c.l.b16 %v854
        %v1545 = vunpack.c.h.b16 %v854
        %v1546 = vunpack.c.l.b16 %v855
        %v1547 = vunpack.c.h.b16 %v855
        %v1548 = vunpack.c.l.b16 %v856
        %v1549 = vunpack.c.h.b16 %v856
        %v1550 = vunpack.c.l.b16 %v857
        %v1551 = vunpack.c.h.b16 %v857
        %v1552 = vunpack.c.l.b16 %v858
        %v1553 = vunpack.c.h.b16 %v858
        %v1554 = vunpack.c.l.b16 %v859
        %v1555 = vunpack.c.h.b16 %v859
        %v1556 = vunpack.c.l.b16 %v860
        %v1557 = vunpack.c.h.b16 %v860
        %v1558 = vunpack.c.l.b16 %v861
        %v1559 = vunpack.c.h.b16 %v861
        %v1560 = vunpack.c.l.b16 %v862
        %v1561 = vunpack.c.h.b16 %v862
        %v1562 = vunpack.c.l.b16 %v863
        %v1563 = vunpack.c.h.b16 %v863
        %v1564 = vunpack.c.l.b16 %v864
        %v1565 = vunpack.c.h.b16 %v864
        %v1566 = vunpack.c.l.b16 %v865
        %v1567 = vunpack.c.h.b16 %v865
        %v1568 = vunpack.c.l.b16 %v866
        %v1569 = vunpack.c.h.b16 %v866
        %v1570 = vunpack.c.l.b16 %v867
        %v1571 = vunpack.c.h.b16 %v867
        %v1572 = vunpack.c.l.b16 %v868
        %v1573 = vunpack.c.h.b16 %v868
        %v1574 = vunpack.c.l.b16 %v869
        %v1575 = vunpack.c.h.b16 %v869
        %v1576 = vunpack.c.l.b16 %v870
        %v1577 = vunpack.c.h.b16 %v870
        %v1578 = vunpack.c.l.b16 %v871
        %v1579 = vunpack.c.h.b16 %v871
        %v1580 = vunpack.c.l.b16 %v872
        %v1581 = vunpack.c.h.b16 %v872
        %v1582 = vunpack.c.l.b16 %v873
        %v1583 = vunpack.c.h.b16 %v873
        %v1584 = vunpack.c.l.b16 %v874
        %v1585 = vunpack.c.h.b16 %v874
        %v1586 = vunpack.c.l.b16 %v875
        %v1587 = vunpack.c.h.b16 %v875
        %v1588 = vunpack.c.l.b16 %v876
        %v1589 = vunpack.c.h.b16 %v876
        %v1590 = vunpack.c.l.b16 %v877
        %v1591 = vunpack.c.h.b16 %v877
        %v1592 = vunpack.c.l.b16 %v878
        %v1593 = vunpack.c.h.b16 %v878
        %v1594 = vunpack.c.l.b16 %v879
        %v1595 = vunpack.c.h.b16 %v879
        %v1596 = vunpack.c.l.b16 %v880
        %v1597 = vunpack.c.h.b16 %v880
        %v1598 = vunpack.c.l.b16 %v881
        %v1599 = vunpack.c.h.b16 %v881
        %v1600 = vunpack.c.l.b16 %v882
        %v1601 = vunpack.c.h.b16 %v882
        %v1602 = vunpack.c.l.b16 %v883
        %v1603 = vunpack.c.h.b16 %v883
        %v1604 = vunpack.c.l.b16 %v884
        %v1605 = vunpack.c.h.b16 %v884
        %v1606 = vunpack.c.l.b16 %v885
        %v1607 = vunpack.c.h.b16 %v885
        %v1608 = vunpack.c.l.b16 %v886
        %v1609 = vunpack.c.h.b16 %v886
        %v1610 = vunpack.c.l.b16 %v887
        %v1611 = vunpack.c.h.b16 %v887
        %v1612 = vunpack.c.l.b16 %v888
        %v1613 = vunpack.c.h.b16 %v888
        %v1614 = vunpack.c.l.b16 %v889
        %v1615 = vunpack.c.h.b16 %v889
        %v1616 = vunpack.c.l.b16 %v890
        %v1617 = vunpack.c.h.b16 %v890
        %v1618 = vunpack.c.l.b16 %v891
        %v1619 = vunpack.c.h.b16 %v891
        %v1620 = vunpack.c.l.b16 %v892
        %v1621 = vunpack.c.h.b16 %v892
        %v1622 = vunpack.c.l.b16 %v893
        %v1623 = vunpack.c.h.b16 %v893
        %v1624 = vunpack.c.l.b16 %v894
        %v1625 = vunpack.c.h.b16 %v894
        %v1626 = vunpack.c.l.b16 %v895
        %v1627 = vunpack.c.h.b16 %v895
        %v1628 = vunpack.c.l.b16 %v896
        %v1629 = vunpack.c.h.b16 %v896
        %v1630 = vunpack.c.l.b16 %v897
        %v1631 = vunpack.c.h.b16 %v897
        %v1632 = vunpack.c.l.b16 %v898
        %v1633 = vunpack.c.h.b16 %v898
        %v1634 = vunpack.c.l.b16 %v899
        %v1635 = vunpack.c.h.b16 %v899
        %v1636 = vunpack.c.l.b16 %v900
        %v1637 = vunpack.c.h.b16 %v900
        %v1638 = vunpack.c.l.b16 %v901
        %v1639 = vunpack.c.h.b16 %v901
        %v1640 = vunpack.c.l.b16 %v902
        %v1641 = vunpack.c.h.b16 %v902
        %v1642 = vunpack.c.l.b16 %v903
        %v1643 = vunpack.c.h.b16 %v903
        %v1644 = vunpack.c.l.b16 %v904
        %v1645 = vunpack.c.h.b16 %v904
        %v1646 = vunpack.c.l.b16 %v905
        %v1647 = vunpack.c.h.b16 %v905
        %v1648 = vunpack.c.l.b16 %v906
        %v1649 = vunpack.c.h.b16 %v906
        %v1650 = vunpack.c.l.b16 %v907
        %v1651 = vunpack.c.h.b16 %v907
        %v1652 = vunpack.c.l.b16 %v908
        %v1653 = vunpack.c.h.b16 %v908
        %v1654 = vunpack.c.l.b16 %v909
        %v1655 = vunpack.c.h.b16 %v909
        %v1656 = vunpack.c.l.b16 %v910
        %v1657 = vunpack.c.h.b16 %v910
        %v1658 = vunpack.c.l.b16 %v911
        %v1659 = vunpack.c.h.b16 %v911
        %v1660 = vunpack.c.l.b16 %v912
        %v1661 = vunpack.c.h.b16 %v912
        %v1662 = vunpack.c.l.b16 %v913
        %v1663 = vunpack.c.h.b16 %v913
        %v1664 = vunpack.c.l.b16 %v914
        %v1665 = vunpack.c.h.b16 %v914
        %v1666 = vunpack.c.l.b16 %v915
        %v1667 = vunpack.c.h.b16 %v915
        %v1668 = vunpack.c.l.b16 %v916
        %v1669 = vunpack.c.h.b16 %v916
        %v1670 = vunpack.c.l.b16 %v917
        %v1671 = vunpack.c.h.b16 %v917
        %v1672 = vunpack.c.l.b16 %v918
        %v1673 = vunpack.c.h.b16 %v918
        %v1674 = vunpack.c.l.b16 %v919
        %v1675 = vunpack.c.h.b16 %v919
        %v1676 = vunpack.c.l.b16 %v920
        %v1677 = vunpack.c.h.b16 %v920
        %v1678 = vunpack.c.l.b16 %v921
        %v1679 = vunpack.c.h.b16 %v921
        %v1680 = vunpack.c.l.b16 %v922
        %v1681 = vunpack.c.h.b16 %v922
        %v1682 = vunpack.c.l.b16 %v923
        %v1683 = vunpack.c.h.b16 %v923
        %v1684 = vunpack.c.l.b16 %v924
        %v1685 = vunpack.c.h.b16 %v924
        %v1686 = vunpack.c.l.b16 %v925
        %v1687 = vunpack.c.h.b16 %v925
        %v1688 = vunpack.c.l.b16 %v926
        %v1689 = vunpack.c.h.b16 %v926
        %v1690 = vunpack.c.l.b16 %v927
        %v1691 = vunpack.c.h.b16 %v927
        %v1692 = vunpack.c.l.b16 %v928
        %v1693 = vunpack.c.h.b16 %v928
        %v1694 = vunpack.c.l.b16 %v929
        %v1695 = vunpack.c.h.b16 %v929
        %v1696 = vunpack.c.l.b16 %v930
        %v1697 = vunpack.c.h.b16 %v930
        %v1698 = vunpack.c.l.b16 %v931
        %v1699 = vunpack.c.h.b16 %v931
        %v1700 = vunpack.c.l.b16 %v932
        %v1701 = vunpack.c.h.b16 %v932
        %v1702 = vpack.c.b16 %v1330, %v1318
        %v1703 = vpack.c.b16 %v1331, %v1319
        %v1704 = vpack.c.b16 %v1332, %v1320
        %v1705 = vpack.c.b16 %v1333, %v1321
        %v1706 = vpack.c.b16 %v1334, %v1322
        %v1707 = vpack.c.b16 %v1335, %v1323
        %v1708 = vpack.c.b16 %v1336, %v1324
        %v1709 = vpack.c.b16 %v1337, %v1325
        %v1710 = vpack.c.b16 %v1338, %v1326
        %v1711 = vpack.c.b16 %v1339, %v1327
        %v1712 = vpack.c.b16 %v1340, %v1328
        %v1713 = vpack.c.b16 %v1341, %v1329
        %v1714 = vpack.c.b16 %v1354, %v1342
        %v1715 = vpack.c.b16 %v1355, %v1343
        %v1716 = vpack.c.b16 %v1356, %v1344
        %v1717 = vpack.c.b16 %v1357, %v1345
        %v1718 = vpack.c.b16 %v1358, %v1346
        %v1719 = vpack.c.b16 %v1359, %v1347
        %v1720 = vpack.c.b16 %v1360, %v1348
        %v1721 = vpack.c.b16 %v1361, %v1349
        %v1722 = vpack.c.b16 %v1362, %v1350
        %v1723 = vpack.c.b16 %v1363, %v1351
        %v1724 = vpack.c.b16 %v1364, %v1352
        %v1725 = vpack.c.b16 %v1365, %v1353
        %v1726 = vpack.c.b16 %v1378, %v1366
        %v1727 = vpack.c.b16 %v1379, %v1367
        %v1728 = vpack.c.b16 %v1380, %v1368
        %v1729 = vpack.c.b16 %v1381, %v1369
        %v1730 = vpack.c.b16 %v1382, %v1370
        %v1731 = vpack.c.b16 %v1383, %v1371
        %v1732 = vpack.c.b16 %v1384, %v1372
        %v1733 = vpack.c.b16 %v1385, %v1373
        %v1734 = vpack.c.b16 %v1386, %v1374
        %v1735 = vpack.c.b16 %v1387, %v1375
        %v1736 = vpack.c.b16 %v1388, %v1376
        %v1737 = vpack.c.b16 %v1389, %v1377
        %v1738 = vpack.c.b16 %v1402, %v1390
        %v1739 = vpack.c.b16 %v1403, %v1391
        %v1740 = vpack.c.b16 %v1404, %v1392
        %v1741 = vpack.c.b16 %v1405, %v1393
        %v1742 = vpack.c.b16 %v1406, %v1394
        %v1743 = vpack.c.b16 %v1407, %v1395
        %v1744 = vpack.c.b16 %v1408, %v1396
        %v1745 = vpack.c.b16 %v1409, %v1397
        %v1746 = vpack.c.b16 %v1410, %v1398
        %v1747 = vpack.c.b16 %v1411, %v1399
        %v1748 = vpack.c.b16 %v1412, %v1400
        %v1749 = vpack.c.b16 %v1413, %v1401
        %v1750 = vpack.c.b16 %v1426, %v1414
        %v1751 = vpack.c.b16 %v1427, %v1415
        %v1752 = vpack.c.b16 %v1428, %v1416
        %v1753 = vpack.c.b16 %v1429, %v1417
        %v1754 = vpack.c.b16 %v1430, %v1418
        %v1755 = vpack.c.b16 %v1431, %v1419
        %v1756 = vpack.c.b16 %v1432, %v1420
        %v1757 = vpack.c.b16 %v1433, %v1421
        %v1758 = vpack.c.b16 %v1434, %v1422
        %v1759 = vpack.c.b16 %v1435, %v1423
        %v1760 = vpack.c.b16 %v1436, %v1424
        %v1761 = vpack.c.b16 %v1437, %v1425
        %v1762 = vpack.c.b16 %v1450, %v1438
        %v1763 = vpack.c.b16 %v1451, %v1439
        %v1764 = vpack.c.b16 %v1452, %v1440
        %v1765 = vpack.c.b16 %v1453, %v1441
        %v1766 = vpack.c.b16 %v1454, %v1442
        %v1767 = vpack.c.b16 %v1455, %v1443
        %v1768 = vpack.c.b16 %v1456, %v1444
        %v1769 = vpack.c.b16 %v1457, %v1445
        %v1770 = vpack.c.b16 %v1458, %v1446
        %v1771 = vpack.c.b16 %v1459, %v1447
        %v1772 = vpack.c.b16 %v1460, %v1448
        %v1773 = vpack.c.b16 %v1461, %v1449
        %v1774 = vpack.c.b16 %v1474, %v1462
        %v1775 = vpack.c.b16 %v1475, %v1463
        %v1776 = vpack.c.b16 %v1476, %v1464
        %v1777 = vpack.c.b16 %v1477, %v1465
        %v1778 = vpack.c.b16 %v1478, %v1466
        %v1779 = vpack.c.b16 %v1479, %v1467
        %v1780 = vpack.c.b16 %v1480, %v1468
        %v1781 = vpack.c.b16 %v1481, %v1469
        %v1782 = vpack.c.b16 %v1482, %v1470
        %v1783 = vpack.c.b16 %v1483, %v1471
        %v1784 = vpack.c.b16 %v1484, %v1472
        %v1785 = vpack.c.b16 %v1485, %v1473
        %v1786 = vpack.c.b16 %v1498, %v1486
        %v1787 = vpack.c.b16 %v1499, %v1487
        %v1788 = vpack.c.b16 %v1500, %v1488
        %v1789 = vpack.c.b16 %v1501, %v1489
        %v1790 = vpack.c.b16 %v1502, %v1490
        %v1791 = vpack.c.b16 %v1503, %v1491
        %v1792 = vpack.c.b16 %v1504, %v1492
        %v1793 = vpack.c.b16 %v1505, %v1493
        %v1794 = vpack.c.b16 %v1506, %v1494
        %v1795 = vpack.c.b16 %v1507, %v1495
        %v1796 = vpack.c.b16 %v1508, %v1496
        %v1797 = vpack.c.b16 %v1509, %v1497
        %v1798 = vpack.c.b16 %v1522, %v1510
        %v1799 = vpack.c.b16 %v1523, %v1511
        %v1800 = vpack.c.b16 %v1524, %v1512
        %v1801 = vpack.c.b16 %v1525, %v1513
        %v1802 = vpack.c.b16 %v1526, %v1514
        %v1803 = vpack.c.b16 %v1527, %v1515
        %v1804 = vpack.c.b16 %v1528, %v1516
        %v1805 = vpack.c.b16 %v1529, %v1517
        %v1806 = vpack.c.b16 %v1530, %v1518
        %v1807 = vpack.c.b16 %v1531, %v1519
        %v1808 = vpack.c.b16 %v1532, %v1520
        %v1809 = vpack.c.b16 %v1533, %v1521
        %v1810 = vpack.c.b16 %v1546, %v1534
        %v1811 = vpack.c.b16 %v1547, %v1535
        %v1812 = vpack.c.b16 %v1548, %v1536
        %v1813 = vpack.c.b16 %v1549, %v1537
        %v1814 = vpack.c.b16 %v1550, %v1538
        %v1815 = vpack.c.b16 %v1551, %v1539
        %v1816 = vpack.c.b16 %v1552, %v1540
        %v1817 = vpack.c.b16 %v1553, %v1541
        %v1818 = vpack.c.b16 %v1554, %v1542
        %v1819 = vpack.c.b16 %v1555, %v1543
        %v1820 = vpack.c.b16 %v1556, %v1544
        %v1821 = vpack.c.b16 %v1557, %v1545
        %v1822 = vpack.c.b16 %v1570, %v1558
        %v1823 = vpack.c.b16 %v1571, %v1559
        %v1824 = vpack.c.b16 %v1572, %v1560
        %v1825 = vpack.c.b16 %v1573, %v1561
        %v1826 = vpack.c.b16 %v1574, %v1562
        %v1827 = vpack.c.b16 %v1575, %v1563
        %v1828 = vpack.c.b16 %v1576, %v1564
        %v1829 = vpack.c.b16 %v1577, %v1565
        %v1830 = vpack.c.b16 %v1578, %v1566
        %v1831 = vpack.c.b16 %v1579, %v1567
        %v1832 = vpack.c.b16 %v1580, %v1568
        %v1833 = vpack.c.b16 %v1581, %v1569
        %v1834 = vpack.c.b16 %v1594, %v1582
        %v1835 = vpack.c.b16 %v1595, %v1583
        %v1836 = vpack.c.b16 %v1596, %v1584
        %v1837 = vpack.c.b16 %v1597, %v1585
        %v1838 = vpack.c.b16 %v1598, %v1586
        %v1839 = vpack.c.b16 %v1599, %v1587
        %v1840 = vpack.c.b16 %v1600, %v1588
        %v1841 = vpack.c.b16 %v1601, %v1589
        %v1842 = vpack.c.b16 %v1602, %v1590
        %v1843 = vpack.c.b16 %v1603, %v1591
        %v1844 = vpack.c.b16 %v1604, %v1592
        %v1845 = vpack.c.b16 %v1605, %v1593
        %v1846 = vpack.c.b16 %v1618, %v1606
        %v1847 = vpack.c.b16 %v1619, %v1607
        %v1848 = vpack.c.b16 %v1620, %v1608
        %v1849 = vpack.c.b16 %v1621, %v1609
        %v1850 = vpack.c.b16 %v1622, %v1610
        %v1851 = vpack.c.b16 %v1623, %v1611
        %v1852 = vpack.c.b16 %v1624, %v1612
        %v1853 = vpack.c.b16 %v1625, %v1613
        %v1854 = vpack.c.b16 %v1626, %v1614
        %v1855 = vpack.c.b16 %v1627, %v1615
        %v1856 = vpack.c.b16 %v1628, %v1616
        %v1857 = vpack.c.b16 %v1629, %v1617
        %v1858 = vpack.c.b16 %v1642, %v1630
        %v1859 = vpack.c.b16 %v1643, %v1631
        %v1860 = vpack.c.b16 %v1644, %v1632
        %v1861 = vpack.c.b16 %v1645, %v1633
        %v1862 = vpack.c.b16 %v1646, %v1634
        %v1863 = vpack.c.b16 %v1647, %v1635
        %v1864 = vpack.c.b16 %v1648, %v1636
        %v1865 = vpack.c.b16 %v1649, %v1637
        %v1866 = vpack.c.b16 %v1650, %v1638
        %v1867 = vpack.c.b16 %v1651, %v1639
        %v1868 = vpack.c.b16 %v1652, %v1640
        %v1869 = vpack.c.b16 %v1653, %v1641
        %v1870 = vpack.c.b16 %v1666, %v1654
        %v1871 = vpack.c.b16 %v1667, %v1655
        %v1872 = vpack.c.b16 %v1668, %v1656
        %v1873 = vpack.c.b16 %v1669, %v1657
        %v1874 = vpack.c.b16 %v1670, %v1658
        %v1875 = vpack.c.b16 %v1671, %v1659
        %v1876 = vpack.c.b16 %v1672, %v1660
        %v1877 = vpack.c.b16 %v1673, %v1661
        %v1878 = vpack.c.b16 %v1674, %v1662
        %v1879 = vpack.c.b16 %v1675, %v1663
        %v1880 = vpack.c.b16 %v1676, %v1664
        %v1881 = vpack.c.b16 %v1677, %v1665
        %v1882 = vpack.c.b16 %v1690, %v1678
        %v1883 = vpack.c.b16 %v1691, %v1679
        %v1884 = vpack.c.b16 %v1692, %v1680
        %v1885 = vpack.c.b16 %v1693, %v1681
        %v1886 = vpack.c.b16 %v1694, %v1682
        %v1887 = vpack.c.b16 %v1695, %v1683
        %v1888 = vpack.c.b16 %v1696, %v1684
        %v1889 = vpack.c.b16 %v1697, %v1685
        %v1890 = vpack.c.b16 %v1698, %v1686
        %v1891 = vpack.c.b16 %v1699, %v1687
        %v1892 = vpack.c.b16 %v1700, %v1688
        %v1893 = vpack.c.b16 %v1701, %v1689
        %v2278 = vunpack.c.l.b16 %v934
        %v2279 = vunpack.c.l.b16 %v935
        %v2280 = vunpack.c.l.b16 %v936
        %v2281 = vunpack.c.l.b16 %v937
        %v2282 = vunpack.c.l.b16 %v938
        %v2283 = vunpack.c.l.b16 %v939
        %v2284 = vunpack.c.l.b16 %v940
        %v2285 = vunpack.c.l.b16 %v941
        %v2286 = vunpack.c.l.b16 %v942
        %v2287 = vunpack.c.l.b16 %v943
        %v2288 = vunpack.c.l.b16 %v944
        %v2289 = vunpack.c.l.b16 %v945
        %v2290 = vunpack.c.l.b16 %v946
        %v2291 = vunpack.c.l.b16 %v947
        %v2292 = vunpack.c.l.b16 %v948
        %v2293 = vunpack.c.l.b16 %v949
        %v2294 = vunpack.c.l.b16 %v950
        %v2295 = vunpack.c.l.b16 %v951
        %v2296 = vunpack.c.l.b16 %v952
        %v2297 = vunpack.c.l.b16 %v953
        %v2298 = vunpack.c.l.b16 %v954
        %v2299 = vunpack.c.l.b16 %v955
        %v2300 = vunpack.c.l.b16 %v956
        %v2301 = vunpack.c.l.b16 %v957
        %v2302 = vunpack.c.l.b16 %v958
        %v2303 = vunpack.c.l.b16 %v959
        %v2304 = vunpack.c.l.b16 %v960
        %v2305 = vunpack.c.l.b16 %v961
        %v2306 = vunpack.c.l.b16 %v962
        %v2307 = vunpack.c.l.b16 %v963
        %v2308 = vunpack.c.l.b16 %v964
        %v2309 = vunpack.c.l.b16 %v965
        %v2310 = vunpack.c.l.b16 %v966
        %v2311 = vunpack.c.l.b16 %v967
        %v2312 = vunpack.c.l.b16 %v968
        %v2313 = vunpack.c.l.b16 %v969
        %v2314 = vunpack.c.l.b16 %v970
        %v2315 = vunpack.c.l.b16 %v971
        %v2316 = vunpack.c.l.b16 %v972
        %v2317 = vunpack.c.l.b16 %v973
        %v2318 = vunpack.c.l.b16 %v974
        %v2319 = vunpack.c.l.b16 %v975
        %v2320 = vunpack.c.l.b16 %v976
        %v2321 = vunpack.c.l.b16 %v977
        %v2322 = vunpack.c.l.b16 %v978
        %v2323 = vunpack.c.l.b16 %v979
        %v2324 = vunpack.c.l.b16 %v980
        %v2325 = vunpack.c.l.b16 %v981
        %v2326 = vunpack.c.l.b16 %v982
        %v2327 = vunpack.c.l.b16 %v983
        %v2328 = vunpack.c.l.b16 %v984
        %v2329 = vunpack.c.l.b16 %v985
        %v2330 = vunpack.c.l.b16 %v986
        %v2331 = vunpack.c.l.b16 %v987
        %v2332 = vunpack.c.l.b16 %v988
        %v2333 = vunpack.c.l.b16 %v989
        %v2334 = vunpack.c.l.b16 %v990
        %v2335 = vunpack.c.l.b16 %v991
        %v2336 = vunpack.c.l.b16 %v992
        %v2337 = vunpack.c.l.b16 %v993
        %v2338 = vunpack.c.l.b16 %v994
        %v2339 = vunpack.c.l.b16 %v995
        %v2340 = vunpack.c.l.b16 %v996
        %v2341 = vunpack.c.l.b16 %v997
        %v2342 = vunpack.c.l.b16 %v998
        %v2343 = vunpack.c.l.b16 %v999
        %v2344 = vunpack.c.l.b16 %v1000
        %v2345 = vunpack.c.l.b16 %v1001
        %v2346 = vunpack.c.l.b16 %v1002
        %v2347 = vunpack.c.l.b16 %v1003
        %v2348 = vunpack.c.l.b16 %v1004
        %v2349 = vunpack.c.l.b16 %v1005
        %v2350 = vunpack.c.l.b16 %v1006
        %v2351 = vunpack.c.l.b16 %v1007
        %v2352 = vunpack.c.l.b16 %v1008
        %v2353 = vunpack.c.l.b16 %v1009
        %v2354 = vunpack.c.l.b16 %v1010
        %v2355 = vunpack.c.l.b16 %v1011
        %v2356 = vunpack.c.l.b16 %v1012
        %v2357 = vunpack.c.l.b16 %v1013
        %v2358 = vunpack.c.l.b16 %v1014
        %v2359 = vunpack.c.l.b16 %v1015
        %v2360 = vunpack.c.l.b16 %v1016
        %v2361 = vunpack.c.l.b16 %v1017
        %v2362 = vunpack.c.l.b16 %v1018
        %v2363 = vunpack.c.l.b16 %v1019
        %v2364 = vunpack.c.l.b16 %v1020
        %v2365 = vunpack.c.l.b16 %v1021
        %v2366 = vunpack.c.l.b16 %v1022
        %v2367 = vunpack.c.l.b16 %v1023
        %v2368 = vunpack.c.l.b16 %v1024
        %v2369 = vunpack.c.l.b16 %v1025
        %v2370 = vunpack.c.l.b16 %v1026
        %v2371 = vunpack.c.l.b16 %v1027
        %v2372 = vunpack.c.l.b16 %v1028
        %v2373 = vunpack.c.l.b16 %v1029
        %v2374 = vunpack.c.l.b16 %v1030
        %v2375 = vunpack.c.l.b16 %v1031
        %v2376 = vunpack.c.l.b16 %v1032
        %v2377 = vunpack.c.l.b16 %v1033
        %v2378 = vunpack.c.l.b16 %v1034
        %v2379 = vunpack.c.l.b16 %v1035
        %v2380 = vunpack.c.l.b16 %v1036
        %v2381 = vunpack.c.l.b16 %v1037
        %v2382 = vunpack.c.l.b16 %v1038
        %v2383 = vunpack.c.l.b16 %v1039
        %v2384 = vunpack.c.l.b16 %v1040
        %v2385 = vunpack.c.l.b16 %v1041
        %v2386 = vunpack.c.l.b16 %v1042
        %v2387 = vunpack.c.l.b16 %v1043
        %v2388 = vunpack.c.l.b16 %v1044
        %v2389 = vunpack.c.l.b16 %v1045
        %v2390 = vunpack.c.l.b16 %v1046
        %v2391 = vunpack.c.l.b16 %v1047
        %v2392 = vunpack.c.l.b16 %v1048
        %v2393 = vunpack.c.l.b16 %v1049
        %v2394 = vunpack.c.l.b16 %v1050
        %v2395 = vunpack.c.l.b16 %v1051
        %v2396 = vunpack.c.l.b16 %v1052
        %v2397 = vunpack.c.l.b16 %v1053
        %v2398 = vunpack.c.l.b16 %v1054
        %v2399 = vunpack.c.l.b16 %v1055
        %v2400 = vunpack.c.l.b16 %v1056
        %v2401 = vunpack.c.l.b16 %v1057
        %v2402 = vunpack.c.l.b16 %v1058
        %v2403 = vunpack.c.l.b16 %v1059
        %v2404 = vunpack.c.l.b16 %v1060
        %v2405 = vunpack.c.l.b16 %v1061
        %v2406 = vunpack.c.l.b16 %v1062
        %v2407 = vunpack.c.l.b16 %v1063
        %v2408 = vunpack.c.l.b16 %v1064
        %v2409 = vunpack.c.l.b16 %v1065
        %v2410 = vunpack.c.l.b16 %v1066
        %v2411 = vunpack.c.l.b16 %v1067
        %v2412 = vunpack.c.l.b16 %v1068
        %v2413 = vunpack.c.l.b16 %v1069
        %v2414 = vunpack.c.l.b16 %v1070
        %v2415 = vunpack.c.l.b16 %v1071
        %v2416 = vunpack.c.l.b16 %v1072
        %v2417 = vunpack.c.l.b16 %v1073
        %v2418 = vunpack.c.l.b16 %v1074
        %v2419 = vunpack.c.l.b16 %v1075
        %v2420 = vunpack.c.l.b16 %v1076
        %v2421 = vunpack.c.l.b16 %v1077
        %v2422 = vunpack.c.l.b16 %v1078
        %v2423 = vunpack.c.l.b16 %v1079
        %v2424 = vunpack.c.l.b16 %v1080
        %v2425 = vunpack.c.l.b16 %v1081
        %v2426 = vunpack.c.l.b16 %v1082
        %v2427 = vunpack.c.l.b16 %v1083
        %v2428 = vunpack.c.l.b16 %v1084
        %v2429 = vunpack.c.l.b16 %v1085
        %v2430 = vunpack.c.l.b16 %v1086
        %v2431 = vunpack.c.l.b16 %v1087
        %v2432 = vunpack.c.l.b16 %v1088
        %v2433 = vunpack.c.l.b16 %v1089
        %v2434 = vunpack.c.l.b16 %v1090
        %v2435 = vunpack.c.l.b16 %v1091
        %v2436 = vunpack.c.l.b16 %v1092
        %v2437 = vunpack.c.l.b16 %v1093
        %v2438 = vunpack.c.l.b16 %v1094
        %v2439 = vunpack.c.l.b16 %v1095
        %v2440 = vunpack.c.l.b16 %v1096
        %v2441 = vunpack.c.l.b16 %v1097
        %v2442 = vunpack.c.l.b16 %v1098
        %v2443 = vunpack.c.l.b16 %v1099
        %v2444 = vunpack.c.l.b16 %v1100
        %v2445 = vunpack.c.l.b16 %v1101
        %v2446 = vunpack.c.l.b16 %v1102
        %v2447 = vunpack.c.l.b16 %v1103
        %v2448 = vunpack.c.l.b16 %v1104
        %v2449 = vunpack.c.l.b16 %v1105
        %v2450 = vunpack.c.l.b16 %v1106
        %v2451 = vunpack.c.l.b16 %v1107
        %v2452 = vunpack.c.l.b16 %v1108
        %v2453 = vunpack.c.l.b16 %v1109
        %v2454 = vunpack.c.l.b16 %v1110
        %v2455 = vunpack.c.l.b16 %v1111
        %v2456 = vunpack.c.l.b16 %v1112
        %v2457 = vunpack.c.l.b16 %v1113
        %v2458 = vunpack.c.l.b16 %v1114
        %v2459 = vunpack.c.l.b16 %v1115
        %v2460 = vunpack.c.l.b16 %v1116
        %v2461 = vunpack.c.l.b16 %v1117
        %v2462 = vunpack.c.l.b16 %v1118
        %v2463 = vunpack.c.l.b16 %v1119
        %v2464 = vunpack.c.l.b16 %v1120
        %v2465 = vunpack.c.l.b16 %v1121
        %v2466 = vunpack.c.l.b16 %v1122
        %v2467 = vunpack.c.l.b16 %v1123
        %v2468 = vunpack.c.l.b16 %v1124
        %v2469 = vunpack.c.l.b16 %v1125
        %v2470 = vpack.c.b16 %v2279, %v2278
        %v2471 = vpack.c.b16 %v2281, %v2280
        %v2472 = vpack.c.b16 %v2283, %v2282
        %v2473 = vpack.c.b16 %v2285, %v2284
        %v2474 = vpack.c.b16 %v2287, %v2286
        %v2475 = vpack.c.b16 %v2289, %v2288
        %v2476 = vpack.c.b16 %v2291, %v2290
        %v2477 = vpack.c.b16 %v2293, %v2292
        %v2478 = vpack.c.b16 %v2295, %v2294
        %v2479 = vpack.c.b16 %v2297, %v2296
        %v2480 = vpack.c.b16 %v2299, %v2298
        %v2481 = vpack.c.b16 %v2301, %v2300
        %v2482 = vpack.c.b16 %v2303, %v2302
        %v2483 = vpack.c.b16 %v2305, %v2304
        %v2484 = vpack.c.b16 %v2307, %v2306
        %v2485 = vpack.c.b16 %v2309, %v2308
        %v2486 = vpack.c.b16 %v2311, %v2310
        %v2487 = vpack.c.b16 %v2313, %v2312
        %v2488 = vpack.c.b16 %v2315, %v2314
        %v2489 = vpack.c.b16 %v2317, %v2316
        %v2490 = vpack.c.b16 %v2319, %v2318
        %v2491 = vpack.c.b16 %v2321, %v2320
        %v2492 = vpack.c.b16 %v2323, %v2322
        %v2493 = vpack.c.b16 %v2325, %v2324
        %v2494 = vpack.c.b16 %v2327, %v2326
        %v2495 = vpack.c.b16 %v2329, %v2328
        %v2496 = vpack.c.b16 %v2331, %v2330
        %v2497 = vpack.c.b16 %v2333, %v2332
        %v2498 = vpack.c.b16 %v2335, %v2334
        %v2499 = vpack.c.b16 %v2337, %v2336
        %v2500 = vpack.c.b16 %v2339, %v2338
        %v2501 = vpack.c.b16 %v2341, %v2340
        %v2502 = vpack.c.b16 %v2343, %v2342
        %v2503 = vpack.c.b16 %v2345, %v2344
        %v2504 = vpack.c.b16 %v2347, %v2346
        %v2505 = vpack.c.b16 %v2349, %v2348
        %v2506 = vpack.c.b16 %v2351, %v2350
        %v2507 = vpack.c.b16 %v2353, %v2352
        %v2508 = vpack.c.b16 %v2355, %v2354
        %v2509 = vpack.c.b16 %v2357, %v2356
        %v2510 = vpack.c.b16 %v2359, %v2358
        %v2511 = vpack.c.b16 %v2361, %v2360
        %v2512 = vpack.c.b16 %v2363, %v2362
        %v2513 = vpack.c.b16 %v2365, %v2364
        %v2514 = vpack.c.b16 %v2367, %v2366
        %v2515 = vpack.c.b16 %v2369, %v2368
        %v2516 = vpack.c.b16 %v2371, %v2370
        %v2517 = vpack.c.b16 %v2373, %v2372
        %v2518 = vpack.c.b16 %v2375, %v2374
        %v2519 = vpack.c.b16 %v2377, %v2376
        %v2520 = vpack.c.b16 %v2379, %v2378
        %v2521 = vpack.c.b16 %v2381, %v2380
        %v2522 = vpack.c.b16 %v2383, %v2382
        %v2523 = vpack.c.b16 %v2385, %v2384
        %v2524 = vpack.c.b16 %v2387, %v2386
        %v2525 = vpack.c.b16 %v2389, %v2388
        %v2526 = vpack.c.b16 %v2391, %v2390
        %v2527 = vpack.c.b16 %v2393, %v2392
        %v2528 = vpack.c.b16 %v2395, %v2394
        %v2529 = vpack.c.b16 %v2397, %v2396
        %v2530 = vpack.c.b16 %v2399, %v2398
        %v2531 = vpack.c.b16 %v2401, %v2400
        %v2532 = vpack.c.b16 %v2403, %v2402
        %v2533 = vpack.c.b16 %v2405, %v2404
        %v2534 = vpack.c.b16 %v2407, %v2406
        %v2535 = vpack.c.b16 %v2409, %v2408
        %v2536 = vpack.c.b16 %v2411, %v2410
        %v2537 = vpack.c.b16 %v2413, %v2412
        %v2538 = vpack.c.b16 %v2415, %v2414
        %v2539 = vpack.c.b16 %v2417, %v2416
        %v2540 = vpack.c.b16 %v2419, %v2418
        %v2541 = vpack.c.b16 %v2421, %v2420
        %v2542 = vpack.c.b16 %v2423, %v2422
        %v2543 = vpack.c.b16 %v2425, %v2424
        %v2544 = vpack.c.b16 %v2427, %v2426
        %v2545 = vpack.c.b16 %v2429, %v2428
        %v2546 = vpack.c.b16 %v2431, %v2430
        %v2547 = vpack.c.b16 %v2433, %v2432
        %v2548 = vpack.c.b16 %v2435, %v2434
        %v2549 = vpack.c.b16 %v2437, %v2436
        %v2550 = vpack.c.b16 %v2439, %v2438
        %v2551 = vpack.c.b16 %v2441, %v2440
        %v2552 = vpack.c.b16 %v2443, %v2442
        %v2553 = vpack.c.b16 %v2445, %v2444
        %v2554 = vpack.c.b16 %v2447, %v2446
        %v2555 = vpack.c.b16 %v2449, %v2448
        %v2556 = vpack.c.b16 %v2451, %v2450
        %v2557 = vpack.c.b16 %v2453, %v2452
        %v2558 = vpack.c.b16 %v2455, %v2454
        %v2559 = vpack.c.b16 %v2457, %v2456
        %v2560 = vpack.c.b16 %v2459, %v2458
        %v2561 = vpack.c.b16 %v2461, %v2460
        %v2562 = vpack.c.b16 %v2463, %v2462
        %v2563 = vpack.c.b16 %v2465, %v2464
        %v2564 = vpack.c.b16 %v2467, %v2466
        %v2565 = vpack.c.b16 %v2469, %v2468
        %2662 = vmatprep.subr.bf16.mxu0 0
        %2663 = vmatpush1.bf16.msra.mxu0 %v2470
        %2664 = vmatprep.subr.bf16.mxu0 0
        %2665 = vmatpush1.bf16.msra.mxu0 %v2471
        %2666 = vmatprep.subr.bf16.mxu0 0
        %2667 = vmatpush1.bf16.msra.mxu0 %v2472
        %2668 = vmatprep.subr.bf16.mxu0 0
        %2669 = vmatpush1.bf16.msra.mxu0 %v2473
        %2670 = vmatprep.subr.bf16.mxu0 0
        %2671 = vmatpush1.bf16.msra.mxu0 %v2474
        %2672 = vmatprep.subr.bf16.mxu0 0
        %2673 = vmatpush1.bf16.msra.mxu0 %v2475
        %2674 = vmatprep.subr.bf16.mxu0 0
        %2675 = vmatpush1.bf16.msra.mxu0 %v2476
        %2676 = vmatprep.subr.bf16.mxu0 0
        %2677 = vmatpush1.bf16.msra.mxu0 %v2477
        %2678 = vmatprep.subr.bf16.mxu0 0
        %2679 = vmatpush1.bf16.msra.mxu0 %v2478
        %2680 = vmatprep.subr.bf16.mxu0 0
        %2681 = vmatpush1.bf16.msra.mxu0 %v2479
        %2682 = vmatprep.subr.bf16.mxu0 0
        %2683 = vmatpush1.bf16.msra.mxu0 %v2480
        %2684 = vmatprep.subr.bf16.mxu0 0
        %2685 = vmatpush1.bf16.msra.mxu0 %v2481
        %2686 = vmatprep.subr.bf16.mxu0 0
        %2687 = vmatpush1.bf16.msra.mxu0 %v2482
        %2688 = vmatprep.subr.bf16.mxu0 0
        %2689 = vmatpush1.bf16.msra.mxu0 %v2483
        %2690 = vmatprep.subr.bf16.mxu0 0
        %2691 = vmatpush1.bf16.msra.mxu0 %v2484
        %2692 = vmatprep.subr.bf16.mxu0 0
        %2693 = vmatpush1.bf16.msra.mxu0 %v2485
        %2694 = vmatprep.mubr.bf16.mxu0 %v1703
        %2695 = vmatmul.mubr.bf16.gmra.mrb[0].mxu0 %v1702
        %v2696 = vpop.f32.mrb[0].mxu0
        %v2697 = vadd.f32 0.0, %v2696
        %v2698 = vpop.f32.mrb[0].mxu0
        %v2699 = vpop.f32.mrb[0].mxu0
        %v2700 = vadd.f32 0.0, %v2699
        %v2701 = vpop.f32.mrb[0].mxu0
        %2702 = vmatprep.mubr.bf16.mxu0 %v1715
        %2703 = vmatmul.mubr.bf16.gmra.mrb[0].mxu0 %v1714
        %v2704 = vpop.f32.mrb[0].mxu0
        %v2705 = vadd.f32 0.0, %v2704
        %v2706 = vpop.f32.mrb[0].mxu0
        %v2707 = vpop.f32.mrb[0].mxu0
        %v2708 = vadd.f32 0.0, %v2707
        %v2709 = vpop.f32.mrb[0].mxu0
        %2710 = vmatprep.mubr.bf16.mxu0 %v1727
        %2711 = vmatmul.mubr.bf16.gmra.mrb[0].mxu0 %v1726
        %v2712 = vpop.f32.mrb[0].mxu0
        %v2713 = vadd.f32 0.0, %v2712
        %v2714 = vpop.f32.mrb[0].mxu0
        %v2715 = vpop.f32.mrb[0].mxu0
        %v2716 = vadd.f32 0.0, %v2715
        %v2717 = vpop.f32.mrb[0].mxu0
        %2718 = vmatprep.mubr.bf16.mxu0 %v1739
        %2719 = vmatmul.mubr.bf16.gmra.mrb[0].mxu0 %v1738
        %v2720 = vpop.f32.mrb[0].mxu0
        %v2721 = vadd.f32 0.0, %v2720
        %v2722 = vpop.f32.mrb[0].mxu0
        %v2723 = vpop.f32.mrb[0].mxu0
        %v2724 = vadd.f32 0.0, %v2723
        %v2725 = vpop.f32.mrb[0].mxu0
        %2726 = vmatprep.mubr.bf16.mxu0 %v1751
        %2727 = vmatmul.mubr.bf16.gmra.mrb[0].mxu0 %v1750
        %v2728 = vpop.f32.mrb[0].mxu0
        %v2729 = vadd.f32 0.0, %v2728
        %v2730 = vpop.f32.mrb[0].mxu0
        %v2731 = vpop.f32.mrb[0].mxu0
        %v2732 = vadd.f32 0.0, %v2731
        %v2733 = vpop.f32.mrb[0].mxu0
        %2734 = vmatprep.mubr.bf16.mxu0 %v1763
        %2735 = vmatmul.mubr.bf16.gmra.mrb[0].mxu0 %v1762
        %v2736 = vpop.f32.mrb[0].mxu0
        %v2737 = vadd.f32 0.0, %v2736
        %v2738 = vpop.f32.mrb[0].mxu0
        %v2739 = vpop.f32.mrb[0].mxu0
        %v2740 = vadd.f32 0.0, %v2739
        %v2741 = vpop.f32.mrb[0].mxu0
        %2742 = vmatprep.mubr.bf16.mxu0 %v1775
        %2743 = vmatmul.mubr.bf16.gmra.mrb[0].mxu0 %v1774
        %v2744 = vpop.f32.mrb[0].mxu0
        %v2745 = vadd.f32 0.0, %v2744
        %v2746 = vpop.f32.mrb[0].mxu0
        %v2747 = vpop.f32.mrb[0].mxu0
        %v2748 = vadd.f32 0.0, %v2747
        %v2749 = vpop.f32.mrb[0].mxu0
        %2750 = vmatprep.mubr.bf16.mxu0 %v1787
        %2751 = vmatmul.mubr.bf16.gmra.mrb[0].mxu0 %v1786
        %v2752 = vpop.f32.mrb[0].mxu0
        %v2753 = vadd.f32 0.0, %v2752
        %v2754 = vpop.f32.mrb[0].mxu0
        %v2755 = vpop.f32.mrb[0].mxu0
        %v2756 = vadd.f32 0.0, %v2755
        %v2757 = vpop.f32.mrb[0].mxu0
        %2758 = vmatprep.mubr.bf16.mxu0 %v1799
        %2759 = vmatmul.mubr.bf16.gmra.mrb[0].mxu0 %v1798
        %v2760 = vpop.f32.mrb[0].mxu0
        %v2761 = vadd.f32 0.0, %v2760
        %v2762 = vpop.f32.mrb[0].mxu0
        %v2763 = vpop.f32.mrb[0].mxu0
        %v2764 = vadd.f32 0.0, %v2763
        %v2765 = vpop.f32.mrb[0].mxu0
        %2766 = vmatprep.mubr.bf16.mxu0 %v1811
        %2767 = vmatmul.mubr.bf16.gmra.mrb[0].mxu0 %v1810
        %v2768 = vpop.f32.mrb[0].mxu0
        %v2769 = vadd.f32 0.0, %v2768
        %v2770 = vpop.f32.mrb[0].mxu0
        %v2771 = vpop.f32.mrb[0].mxu0
        %v2772 = vadd.f32 0.0, %v2771
        %v2773 = vpop.f32.mrb[0].mxu0
        %2774 = vmatprep.mubr.bf16.mxu0 %v1823
        %2775 = vmatmul.mubr.bf16.gmra.mrb[0].mxu0 %v1822
        %v2776 = vpop.f32.mrb[0].mxu0
        %v2777 = vadd.f32 0.0, %v2776
        %v2778 = vpop.f32.mrb[0].mxu0
        %v2779 = vpop.f32.mrb[0].mxu0
        %v2780 = vadd.f32 0.0, %v2779
        %v2781 = vpop.f32.mrb[0].mxu0
        %2782 = vmatprep.mubr.bf16.mxu0 %v1835
        %2783 = vmatmul.mubr.bf16.gmra.mrb[0].mxu0 %v1834
        %v2784 = vpop.f32.mrb[0].mxu0
        %v2785 = vadd.f32 0.0, %v2784
        %v2786 = vpop.f32.mrb[0].mxu0
        %v2787 = vpop.f32.mrb[0].mxu0
        %v2788 = vadd.f32 0.0, %v2787
        %v2789 = vpop.f32.mrb[0].mxu0
        %2790 = vmatprep.mubr.bf16.mxu0 %v1847
        %2791 = vmatmul.mubr.bf16.gmra.mrb[0].mxu0 %v1846
        %v2792 = vpop.f32.mrb[0].mxu0
        %v2793 = vadd.f32 0.0, %v2792
        %v2794 = vpop.f32.mrb[0].mxu0
        %v2795 = vpop.f32.mrb[0].mxu0
        %v2796 = vadd.f32 0.0, %v2795
        %v2797 = vpop.f32.mrb[0].mxu0
        %2798 = vmatprep.mubr.bf16.mxu0 %v1859
        %2799 = vmatmul.mubr.bf16.gmra.mrb[0].mxu0 %v1858
        %v2800 = vpop.f32.mrb[0].mxu0
        %v2801 = vadd.f32 0.0, %v2800
        %v2802 = vpop.f32.mrb[0].mxu0
        %v2803 = vpop.f32.mrb[0].mxu0
        %v2804 = vadd.f32 0.0, %v2803
        %v2805 = vpop.f32.mrb[0].mxu0
        %2806 = vmatprep.mubr.bf16.mxu0 %v1871
        %2807 = vmatmul.mubr.bf16.gmra.mrb[0].mxu0 %v1870
        %v2808 = vpop.f32.mrb[0].mxu0
        %v2809 = vadd.f32 0.0, %v2808
        %v2810 = vpop.f32.mrb[0].mxu0
        %v2811 = vpop.f32.mrb[0].mxu0
        %v2812 = vadd.f32 0.0, %v2811
        %v2813 = vpop.f32.mrb[0].mxu0
        %2814 = vmatprep.mubr.bf16.mxu0 %v1883
        %2815 = vmatmul.mubr.bf16.gmra.mrb[0].mxu0 %v1882
        %v2816 = vpop.f32.mrb[0].mxu0
        %v2817 = vadd.f32 0.0, %v2816
        %v2818 = vpop.f32.mrb[0].mxu0
        %v2819 = vpop.f32.mrb[0].mxu0
        %v2820 = vadd.f32 0.0, %v2819
        %v2821 = vpop.f32.mrb[0].mxu0
        %2822 = vdwg.mxu0
        %2823 = vmatprep.subr.bf16.mxu0 0
        %2824 = vmatpush1.bf16.msra.mxu0 %v2486
        %2825 = vmatprep.subr.bf16.mxu0 0
        %2826 = vmatpush1.bf16.msra.mxu0 %v2487
        %2827 = vmatprep.subr.bf16.mxu0 0
        %2828 = vmatpush1.bf16.msra.mxu0 %v2488
        %2829 = vmatprep.subr.bf16.mxu0 0
        %2830 = vmatpush1.bf16.msra.mxu0 %v2489
        %2831 = vmatprep.subr.bf16.mxu0 0
        %2832 = vmatpush1.bf16.msra.mxu0 %v2490
        %2833 = vmatprep.subr.bf16.mxu0 0
        %2834 = vmatpush1.bf16.msra.mxu0 %v2491
        %2835 = vmatprep.subr.bf16.mxu0 0
        %2836 = vmatpush1.bf16.msra.mxu0 %v2492
        %2837 = vmatprep.subr.bf16.mxu0 0
        %2838 = vmatpush1.bf16.msra.mxu0 %v2493
        %2839 = vmatprep.subr.bf16.mxu0 0
        %2840 = vmatpush1.bf16.msra.mxu0 %v2494
        %2841 = vmatprep.subr.bf16.mxu0 0
        %2842 = vmatpush1.bf16.msra.mxu0 %v2495
        %2843 = vmatprep.subr.bf16.mxu0 0
        %2844 = vmatpush1.bf16.msra.mxu0 %v2496
        %2845 = vmatprep.subr.bf16.mxu0 0
        %2846 = vmatpush1.bf16.msra.mxu0 %v2497
        %2847 = vmatprep.subr.bf16.mxu0 0
        %2848 = vmatpush1.bf16.msra.mxu0 %v2498
        %2849 = vmatprep.subr.bf16.mxu0 0
        %2850 = vmatpush1.bf16.msra.mxu0 %v2499
        %2851 = vmatprep.subr.bf16.mxu0 0
        %2852 = vmatpush1.bf16.msra.mxu0 %v2500
        %2853 = vmatprep.subr.bf16.mxu0 0
        %2854 = vmatpush1.bf16.msra.mxu0 %v2501
        %2855 = vmatprep.mubr.bf16.mxu0 %v1705
        %2856 = vmatmul.mubr.bf16.gmra.mrb[0].mxu0 %v1704
        %v2857 = vpop.f32.mrb[0].mxu0
        %v2858 = vadd.f32 %v2697, %v2857
        %v2859 = vpop.f32.mrb[0].mxu0
        %v2860 = vpop.f32.mrb[0].mxu0
        %v2861 = vadd.f32 %v2700, %v2860
        %v2862 = vpop.f32.mrb[0].mxu0
        %2863 = vmatprep.mubr.bf16.mxu0 %v1717
        %2864 = vmatmul.mubr.bf16.gmra.mrb[0].mxu0 %v1716
        %v2865 = vpop.f32.mrb[0].mxu0
        %v2866 = vadd.f32 %v2705, %v2865
        %v2867 = vpop.f32.mrb[0].mxu0
        %v2868 = vpop.f32.mrb[0].mxu0
        %v2869 = vadd.f32 %v2708, %v2868
        %v2870 = vpop.f32.mrb[0].mxu0
        %2871 = vmatprep.mubr.bf16.mxu0 %v1729
        %2872 = vmatmul.mubr.bf16.gmra.mrb[0].mxu0 %v1728
        %v2873 = vpop.f32.mrb[0].mxu0
        %v2874 = vadd.f32 %v2713, %v2873
        %v2875 = vpop.f32.mrb[0].mxu0
        %v2876 = vpop.f32.mrb[0].mxu0
        %v2877 = vadd.f32 %v2716, %v2876
        %v2878 = vpop.f32.mrb[0].mxu0
        %2879 = vmatprep.mubr.bf16.mxu0 %v1741
        %2880 = vmatmul.mubr.bf16.gmra.mrb[0].mxu0 %v1740
        %v2881 = vpop.f32.mrb[0].mxu0
        %v2882 = vadd.f32 %v2721, %v2881
        %v2883 = vpop.f32.mrb[0].mxu0
        %v2884 = vpop.f32.mrb[0].mxu0
        %v2885 = vadd.f32 %v2724, %v2884
        %v2886 = vpop.f32.mrb[0].mxu0
        %2887 = vmatprep.mubr.bf16.mxu0 %v1753
        %2888 = vmatmul.mubr.bf16.gmra.mrb[0].mxu0 %v1752
        %v2889 = vpop.f32.mrb[0].mxu0
        %v2890 = vadd.f32 %v2729, %v2889
        %v2891 = vpop.f32.mrb[0].mxu0
        %v2892 = vpop.f32.mrb[0].mxu0
        %v2893 = vadd.f32 %v2732, %v2892
        %v2894 = vpop.f32.mrb[0].mxu0
        %2895 = vmatprep.mubr.bf16.mxu0 %v1765
        %2896 = vmatmul.mubr.bf16.gmra.mrb[0].mxu0 %v1764
        %v2897 = vpop.f32.mrb[0].mxu0
        %v2898 = vadd.f32 %v2737, %v2897
        %v2899 = vpop.f32.mrb[0].mxu0
        %v2900 = vpop.f32.mrb[0].mxu0
        %v2901 = vadd.f32 %v2740, %v2900
        %v2902 = vpop.f32.mrb[0].mxu0
        %2903 = vmatprep.mubr.bf16.mxu0 %v1777
        %2904 = vmatmul.mubr.bf16.gmra.mrb[0].mxu0 %v1776
        %v2905 = vpop.f32.mrb[0].mxu0
        %v2906 = vadd.f32 %v2745, %v2905
        %v2907 = vpop.f32.mrb[0].mxu0
        %v2908 = vpop.f32.mrb[0].mxu0
        %v2909 = vadd.f32 %v2748, %v2908
        %v2910 = vpop.f32.mrb[0].mxu0
        %2911 = vmatprep.mubr.bf16.mxu0 %v1789
        %2912 = vmatmul.mubr.bf16.gmra.mrb[0].mxu0 %v1788
        %v2913 = vpop.f32.mrb[0].mxu0
        %v2914 = vadd.f32 %v2753, %v2913
        %v2915 = vpop.f32.mrb[0].mxu0
        %v2916 = vpop.f32.mrb[0].mxu0
        %v2917 = vadd.f32 %v2756, %v2916
        %v2918 = vpop.f32.mrb[0].mxu0
        %2919 = vmatprep.mubr.bf16.mxu0 %v1801
        %2920 = vmatmul.mubr.bf16.gmra.mrb[0].mxu0 %v1800
        %v2921 = vpop.f32.mrb[0].mxu0
        %v2922 = vadd.f32 %v2761, %v2921
        %v2923 = vpop.f32.mrb[0].mxu0
        %v2924 = vpop.f32.mrb[0].mxu0
        %v2925 = vadd.f32 %v2764, %v2924
        %v2926 = vpop.f32.mrb[0].mxu0
        %2927 = vmatprep.mubr.bf16.mxu0 %v1813
        %2928 = vmatmul.mubr.bf16.gmra.mrb[0].mxu0 %v1812
        %v2929 = vpop.f32.mrb[0].mxu0
        %v2930 = vadd.f32 %v2769, %v2929
        %v2931 = vpop.f32.mrb[0].mxu0
        %v2932 = vpop.f32.mrb[0].mxu0
        %v2933 = vadd.f32 %v2772, %v2932
        %v2934 = vpop.f32.mrb[0].mxu0
        %2935 = vmatprep.mubr.bf16.mxu0 %v1825
        %2936 = vmatmul.mubr.bf16.gmra.mrb[0].mxu0 %v1824
        %v2937 = vpop.f32.mrb[0].mxu0
        %v2938 = vadd.f32 %v2777, %v2937
        %v2939 = vpop.f32.mrb[0].mxu0
        %v2940 = vpop.f32.mrb[0].mxu0
        %v2941 = vadd.f32 %v2780, %v2940
        %v2942 = vpop.f32.mrb[0].mxu0
        %2943 = vmatprep.mubr.bf16.mxu0 %v1837
        %2944 = vmatmul.mubr.bf16.gmra.mrb[0].mxu0 %v1836
        %v2945 = vpop.f32.mrb[0].mxu0
        %v2946 = vadd.f32 %v2785, %v2945
        %v2947 = vpop.f32.mrb[0].mxu0
        %v2948 = vpop.f32.mrb[0].mxu0
        %v2949 = vadd.f32 %v2788, %v2948
        %v2950 = vpop.f32.mrb[0].mxu0
        %2951 = vmatprep.mubr.bf16.mxu0 %v1849
        %2952 = vmatmul.mubr.bf16.gmra.mrb[0].mxu0 %v1848
        %v2953 = vpop.f32.mrb[0].mxu0
        %v2954 = vadd.f32 %v2793, %v2953
        %v2955 = vpop.f32.mrb[0].mxu0
        %v2956 = vpop.f32.mrb[0].mxu0
        %v2957 = vadd.f32 %v2796, %v2956
        %v2958 = vpop.f32.mrb[0].mxu0
        %2959 = vmatprep.mubr.bf16.mxu0 %v1861
        %2960 = vmatmul.mubr.bf16.gmra.mrb[0].mxu0 %v1860
        %v2961 = vpop.f32.mrb[0].mxu0
        %v2962 = vadd.f32 %v2801, %v2961
        %v2963 = vpop.f32.mrb[0].mxu0
        %v2964 = vpop.f32.mrb[0].mxu0
        %v2965 = vadd.f32 %v2804, %v2964
        %v2966 = vpop.f32.mrb[0].mxu0
        %2967 = vmatprep.mubr.bf16.mxu0 %v1873
        %2968 = vmatmul.mubr.bf16.gmra.mrb[0].mxu0 %v1872
        %v2969 = vpop.f32.mrb[0].mxu0
        %v2970 = vadd.f32 %v2809, %v2969
        %v2971 = vpop.f32.mrb[0].mxu0
        %v2972 = vpop.f32.mrb[0].mxu0
        %v2973 = vadd.f32 %v2812, %v2972
        %v2974 = vpop.f32.mrb[0].mxu0
        %2975 = vmatprep.mubr.bf16.mxu0 %v1885
        %2976 = vmatmul.mubr.bf16.gmra.mrb[0].mxu0 %v1884
        %v2977 = vpop.f32.mrb[0].mxu0
        %v2978 = vadd.f32 %v2817, %v2977
        %v2979 = vpop.f32.mrb[0].mxu0
        %v2980 = vpop.f32.mrb[0].mxu0
        %v2981 = vadd.f32 %v2820, %v2980
        %v2982 = vpop.f32.mrb[0].mxu0
        %2983 = vdwg.mxu0
        %2984 = vmatprep.subr.bf16.mxu0 0
        %2985 = vmatpush1.bf16.msra.mxu0 %v2502
        %2986 = vmatprep.subr.bf16.mxu0 0
        %2987 = vmatpush1.bf16.msra.mxu0 %v2503
        %2988 = vmatprep.subr.bf16.mxu0 0
        %2989 = vmatpush1.bf16.msra.mxu0 %v2504
        %2990 = vmatprep.subr.bf16.mxu0 0
        %2991 = vmatpush1.bf16.msra.mxu0 %v2505
        %2992 = vmatprep.subr.bf16.mxu0 0
        %2993 = vmatpush1.bf16.msra.mxu0 %v2506
        %2994 = vmatprep.subr.bf16.mxu0 0
        %2995 = vmatpush1.bf16.msra.mxu0 %v2507
        %2996 = vmatprep.subr.bf16.mxu0 0
        %2997 = vmatpush1.bf16.msra.mxu0 %v2508
        %2998 = vmatprep.subr.bf16.mxu0 0
        %2999 = vmatpush1.bf16.msra.mxu0 %v2509
        %3000 = vmatprep.subr.bf16.mxu0 0
        %3001 = vmatpush1.bf16.msra.mxu0 %v2510
        %3002 = vmatprep.subr.bf16.mxu0 0
        %3003 = vmatpush1.bf16.msra.mxu0 %v2511
        %3004 = vmatprep.subr.bf16.mxu0 0
        %3005 = vmatpush1.bf16.msra.mxu0 %v2512
        %3006 = vmatprep.subr.bf16.mxu0 0
        %3007 = vmatpush1.bf16.msra.mxu0 %v2513
        %3008 = vmatprep.subr.bf16.mxu0 0
        %3009 = vmatpush1.bf16.msra.mxu0 %v2514
        %3010 = vmatprep.subr.bf16.mxu0 0
        %3011 = vmatpush1.bf16.msra.mxu0 %v2515
        %3012 = vmatprep.subr.bf16.mxu0 0
        %3013 = vmatpush1.bf16.msra.mxu0 %v2516
        %3014 = vmatprep.subr.bf16.mxu0 0
        %3015 = vmatpush1.bf16.msra.mxu0 %v2517
        %3016 = vmatprep.mubr.bf16.mxu0 %v1707
        %3017 = vmatmul.mubr.bf16.gmra.mrb[0].mxu0 %v1706
        %v3018 = vpop.f32.mrb[0].mxu0
        %v3019 = vadd.f32 %v2858, %v3018
        %v3020 = vpop.f32.mrb[0].mxu0
        %v3021 = vpop.f32.mrb[0].mxu0
        %v3022 = vadd.f32 %v2861, %v3021
        %v3023 = vpop.f32.mrb[0].mxu0
        %3024 = vmatprep.mubr.bf16.mxu0 %v1719
        %3025 = vmatmul.mubr.bf16.gmra.mrb[0].mxu0 %v1718
        %v3026 = vpop.f32.mrb[0].mxu0
        %v3027 = vadd.f32 %v2866, %v3026
        %v3028 = vpop.f32.mrb[0].mxu0
        %v3029 = vpop.f32.mrb[0].mxu0
        %v3030 = vadd.f32 %v2869, %v3029
        %v3031 = vpop.f32.mrb[0].mxu0
        %3032 = vmatprep.mubr.bf16.mxu0 %v1731
        %3033 = vmatmul.mubr.bf16.gmra.mrb[0].mxu0 %v1730
        %v3034 = vpop.f32.mrb[0].mxu0
        %v3035 = vadd.f32 %v2874, %v3034
        %v3036 = vpop.f32.mrb[0].mxu0
        %v3037 = vpop.f32.mrb[0].mxu0
        %v3038 = vadd.f32 %v2877, %v3037
        %v3039 = vpop.f32.mrb[0].mxu0
        %3040 = vmatprep.mubr.bf16.mxu0 %v1743
        %3041 = vmatmul.mubr.bf16.gmra.mrb[0].mxu0 %v1742
        %v3042 = vpop.f32.mrb[0].mxu0
        %v3043 = vadd.f32 %v2882, %v3042
        %v3044 = vpop.f32.mrb[0].mxu0
        %v3045 = vpop.f32.mrb[0].mxu0
        %v3046 = vadd.f32 %v2885, %v3045
        %v3047 = vpop.f32.mrb[0].mxu0
        %3048 = vmatprep.mubr.bf16.mxu0 %v1755
        %3049 = vmatmul.mubr.bf16.gmra.mrb[0].mxu0 %v1754
        %v3050 = vpop.f32.mrb[0].mxu0
        %v3051 = vadd.f32 %v2890, %v3050
        %v3052 = vpop.f32.mrb[0].mxu0
        %v3053 = vpop.f32.mrb[0].mxu0
        %v3054 = vadd.f32 %v2893, %v3053
        %v3055 = vpop.f32.mrb[0].mxu0
        %3056 = vmatprep.mubr.bf16.mxu0 %v1767
        %3057 = vmatmul.mubr.bf16.gmra.mrb[0].mxu0 %v1766
        %v3058 = vpop.f32.mrb[0].mxu0
        %v3059 = vadd.f32 %v2898, %v3058
        %v3060 = vpop.f32.mrb[0].mxu0
        %v3061 = vpop.f32.mrb[0].mxu0
        %v3062 = vadd.f32 %v2901, %v3061
        %v3063 = vpop.f32.mrb[0].mxu0
        %3064 = vmatprep.mubr.bf16.mxu0 %v1779
        %3065 = vmatmul.mubr.bf16.gmra.mrb[0].mxu0 %v1778
        %v3066 = vpop.f32.mrb[0].mxu0
        %v3067 = vadd.f32 %v2906, %v3066
        %v3068 = vpop.f32.mrb[0].mxu0
        %v3069 = vpop.f32.mrb[0].mxu0
        %v3070 = vadd.f32 %v2909, %v3069
        %v3071 = vpop.f32.mrb[0].mxu0
        %3072 = vmatprep.mubr.bf16.mxu0 %v1791
        %3073 = vmatmul.mubr.bf16.gmra.mrb[0].mxu0 %v1790
        %v3074 = vpop.f32.mrb[0].mxu0
        %v3075 = vadd.f32 %v2914, %v3074
        %v3076 = vpop.f32.mrb[0].mxu0
        %v3077 = vpop.f32.mrb[0].mxu0
        %v3078 = vadd.f32 %v2917, %v3077
        %v3079 = vpop.f32.mrb[0].mxu0
        %3080 = vmatprep.mubr.bf16.mxu0 %v1803
        %3081 = vmatmul.mubr.bf16.gmra.mrb[0].mxu0 %v1802
        %v3082 = vpop.f32.mrb[0].mxu0
        %v3083 = vadd.f32 %v2922, %v3082
        %v3084 = vpop.f32.mrb[0].mxu0
        %v3085 = vpop.f32.mrb[0].mxu0
        %v3086 = vadd.f32 %v2925, %v3085
        %v3087 = vpop.f32.mrb[0].mxu0
        %3088 = vmatprep.mubr.bf16.mxu0 %v1815
        %3089 = vmatmul.mubr.bf16.gmra.mrb[0].mxu0 %v1814
        %v3090 = vpop.f32.mrb[0].mxu0
        %v3091 = vadd.f32 %v2930, %v3090
        %v3092 = vpop.f32.mrb[0].mxu0
        %v3093 = vpop.f32.mrb[0].mxu0
        %v3094 = vadd.f32 %v2933, %v3093
        %v3095 = vpop.f32.mrb[0].mxu0
        %3096 = vmatprep.mubr.bf16.mxu0 %v1827
        %3097 = vmatmul.mubr.bf16.gmra.mrb[0].mxu0 %v1826
        %v3098 = vpop.f32.mrb[0].mxu0
        %v3099 = vadd.f32 %v2938, %v3098
        %v3100 = vpop.f32.mrb[0].mxu0
        %v3101 = vpop.f32.mrb[0].mxu0
        %v3102 = vadd.f32 %v2941, %v3101
        %v3103 = vpop.f32.mrb[0].mxu0
        %3104 = vmatprep.mubr.bf16.mxu0 %v1839
        %3105 = vmatmul.mubr.bf16.gmra.mrb[0].mxu0 %v1838
        %v3106 = vpop.f32.mrb[0].mxu0
        %v3107 = vadd.f32 %v2946, %v3106
        %v3108 = vpop.f32.mrb[0].mxu0
        %v3109 = vpop.f32.mrb[0].mxu0
        %v3110 = vadd.f32 %v2949, %v3109
        %v3111 = vpop.f32.mrb[0].mxu0
        %3112 = vmatprep.mubr.bf16.mxu0 %v1851
        %3113 = vmatmul.mubr.bf16.gmra.mrb[0].mxu0 %v1850
        %v3114 = vpop.f32.mrb[0].mxu0
        %v3115 = vadd.f32 %v2954, %v3114
        %v3116 = vpop.f32.mrb[0].mxu0
        %v3117 = vpop.f32.mrb[0].mxu0
        %v3118 = vadd.f32 %v2957, %v3117
        %v3119 = vpop.f32.mrb[0].mxu0
        %3120 = vmatprep.mubr.bf16.mxu0 %v1863
        %3121 = vmatmul.mubr.bf16.gmra.mrb[0].mxu0 %v1862
        %v3122 = vpop.f32.mrb[0].mxu0
        %v3123 = vadd.f32 %v2962, %v3122
        %v3124 = vpop.f32.mrb[0].mxu0
        %v3125 = vpop.f32.mrb[0].mxu0
        %v3126 = vadd.f32 %v2965, %v3125
        %v3127 = vpop.f32.mrb[0].mxu0
        %3128 = vmatprep.mubr.bf16.mxu0 %v1875
        %3129 = vmatmul.mubr.bf16.gmra.mrb[0].mxu0 %v1874
        %v3130 = vpop.f32.mrb[0].mxu0
        %v3131 = vadd.f32 %v2970, %v3130
        %v3132 = vpop.f32.mrb[0].mxu0
        %v3133 = vpop.f32.mrb[0].mxu0
        %v3134 = vadd.f32 %v2973, %v3133
        %v3135 = vpop.f32.mrb[0].mxu0
        %3136 = vmatprep.mubr.bf16.mxu0 %v1887
        %3137 = vmatmul.mubr.bf16.gmra.mrb[0].mxu0 %v1886
        %v3138 = vpop.f32.mrb[0].mxu0
        %v3139 = vadd.f32 %v2978, %v3138
        %v3140 = vpop.f32.mrb[0].mxu0
        %v3141 = vpop.f32.mrb[0].mxu0
        %v3142 = vadd.f32 %v2981, %v3141
        %v3143 = vpop.f32.mrb[0].mxu0
        %3144 = vdwg.mxu0
        %3145 = vmatprep.subr.bf16.mxu0 0
        %3146 = vmatpush1.bf16.msra.mxu0 %v2518
        %3147 = vmatprep.subr.bf16.mxu0 0
        %3148 = vmatpush1.bf16.msra.mxu0 %v2519
        %3149 = vmatprep.subr.bf16.mxu0 0
        %3150 = vmatpush1.bf16.msra.mxu0 %v2520
        %3151 = vmatprep.subr.bf16.mxu0 0
        %3152 = vmatpush1.bf16.msra.mxu0 %v2521
        %3153 = vmatprep.subr.bf16.mxu0 0
        %3154 = vmatpush1.bf16.msra.mxu0 %v2522
        %3155 = vmatprep.subr.bf16.mxu0 0
        %3156 = vmatpush1.bf16.msra.mxu0 %v2523
        %3157 = vmatprep.subr.bf16.mxu0 0
        %3158 = vmatpush1.bf16.msra.mxu0 %v2524
        %3159 = vmatprep.subr.bf16.mxu0 0
        %3160 = vmatpush1.bf16.msra.mxu0 %v2525
        %3161 = vmatprep.subr.bf16.mxu0 0
        %3162 = vmatpush1.bf16.msra.mxu0 %v2526
        %3163 = vmatprep.subr.bf16.mxu0 0
        %3164 = vmatpush1.bf16.msra.mxu0 %v2527
        %3165 = vmatprep.subr.bf16.mxu0 0
        %3166 = vmatpush1.bf16.msra.mxu0 %v2528
        %3167 = vmatprep.subr.bf16.mxu0 0
        %3168 = vmatpush1.bf16.msra.mxu0 %v2529
        %3169 = vmatprep.subr.bf16.mxu0 0
        %3170 = vmatpush1.bf16.msra.mxu0 %v2530
        %3171 = vmatprep.subr.bf16.mxu0 0
        %3172 = vmatpush1.bf16.msra.mxu0 %v2531
        %3173 = vmatprep.subr.bf16.mxu0 0
        %3174 = vmatpush1.bf16.msra.mxu0 %v2532
        %3175 = vmatprep.subr.bf16.mxu0 0
        %3176 = vmatpush1.bf16.msra.mxu0 %v2533
        %3177 = vmatprep.mubr.bf16.mxu0 %v1709
        %3178 = vmatmul.mubr.bf16.gmra.mrb[0].mxu0 %v1708
        %v3179 = vpop.f32.mrb[0].mxu0
        %v3180 = vadd.f32 %v3019, %v3179
        %v3181 = vpop.f32.mrb[0].mxu0
        %v3182 = vpop.f32.mrb[0].mxu0
        %v3183 = vadd.f32 %v3022, %v3182
        %v3184 = vpop.f32.mrb[0].mxu0
        %3185 = vmatprep.mubr.bf16.mxu0 %v1721
        %3186 = vmatmul.mubr.bf16.gmra.mrb[0].mxu0 %v1720
        %v3187 = vpop.f32.mrb[0].mxu0
        %v3188 = vadd.f32 %v3027, %v3187
        %v3189 = vpop.f32.mrb[0].mxu0
        %v3190 = vpop.f32.mrb[0].mxu0
        %v3191 = vadd.f32 %v3030, %v3190
        %v3192 = vpop.f32.mrb[0].mxu0
        %3193 = vmatprep.mubr.bf16.mxu0 %v1733
        %3194 = vmatmul.mubr.bf16.gmra.mrb[0].mxu0 %v1732
        %v3195 = vpop.f32.mrb[0].mxu0
        %v3196 = vadd.f32 %v3035, %v3195
        %v3197 = vpop.f32.mrb[0].mxu0
        %v3198 = vpop.f32.mrb[0].mxu0
        %v3199 = vadd.f32 %v3038, %v3198
        %v3200 = vpop.f32.mrb[0].mxu0
        %3201 = vmatprep.mubr.bf16.mxu0 %v1745
        %3202 = vmatmul.mubr.bf16.gmra.mrb[0].mxu0 %v1744
        %v3203 = vpop.f32.mrb[0].mxu0
        %v3204 = vadd.f32 %v3043, %v3203
        %v3205 = vpop.f32.mrb[0].mxu0
        %v3206 = vpop.f32.mrb[0].mxu0
        %v3207 = vadd.f32 %v3046, %v3206
        %v3208 = vpop.f32.mrb[0].mxu0
        %3209 = vmatprep.mubr.bf16.mxu0 %v1757
        %3210 = vmatmul.mubr.bf16.gmra.mrb[0].mxu0 %v1756
        %v3211 = vpop.f32.mrb[0].mxu0
        %v3212 = vadd.f32 %v3051, %v3211
        %v3213 = vpop.f32.mrb[0].mxu0
        %v3214 = vpop.f32.mrb[0].mxu0
        %v3215 = vadd.f32 %v3054, %v3214
        %v3216 = vpop.f32.mrb[0].mxu0
        %3217 = vmatprep.mubr.bf16.mxu0 %v1769
        %3218 = vmatmul.mubr.bf16.gmra.mrb[0].mxu0 %v1768
        %v3219 = vpop.f32.mrb[0].mxu0
        %v3220 = vadd.f32 %v3059, %v3219
        %v3221 = vpop.f32.mrb[0].mxu0
        %v3222 = vpop.f32.mrb[0].mxu0
        %v3223 = vadd.f32 %v3062, %v3222
        %v3224 = vpop.f32.mrb[0].mxu0
        %3225 = vmatprep.mubr.bf16.mxu0 %v1781
        %3226 = vmatmul.mubr.bf16.gmra.mrb[0].mxu0 %v1780
        %v3227 = vpop.f32.mrb[0].mxu0
        %v3228 = vadd.f32 %v3067, %v3227
        %v3229 = vpop.f32.mrb[0].mxu0
        %v3230 = vpop.f32.mrb[0].mxu0
        %v3231 = vadd.f32 %v3070, %v3230
        %v3232 = vpop.f32.mrb[0].mxu0
        %3233 = vmatprep.mubr.bf16.mxu0 %v1793
        %3234 = vmatmul.mubr.bf16.gmra.mrb[0].mxu0 %v1792
        %v3235 = vpop.f32.mrb[0].mxu0
        %v3236 = vadd.f32 %v3075, %v3235
        %v3237 = vpop.f32.mrb[0].mxu0
        %v3238 = vpop.f32.mrb[0].mxu0
        %v3239 = vadd.f32 %v3078, %v3238
        %v3240 = vpop.f32.mrb[0].mxu0
        %3241 = vmatprep.mubr.bf16.mxu0 %v1805
        %3242 = vmatmul.mubr.bf16.gmra.mrb[0].mxu0 %v1804
        %v3243 = vpop.f32.mrb[0].mxu0
        %v3244 = vadd.f32 %v3083, %v3243
        %v3245 = vpop.f32.mrb[0].mxu0
        %v3246 = vpop.f32.mrb[0].mxu0
        %v3247 = vadd.f32 %v3086, %v3246
        %v3248 = vpop.f32.mrb[0].mxu0
        %3249 = vmatprep.mubr.bf16.mxu0 %v1817
        %3250 = vmatmul.mubr.bf16.gmra.mrb[0].mxu0 %v1816
        %v3251 = vpop.f32.mrb[0].mxu0
        %v3252 = vadd.f32 %v3091, %v3251
        %v3253 = vpop.f32.mrb[0].mxu0
        %v3254 = vpop.f32.mrb[0].mxu0
        %v3255 = vadd.f32 %v3094, %v3254
        %v3256 = vpop.f32.mrb[0].mxu0
        %3257 = vmatprep.mubr.bf16.mxu0 %v1829
        %3258 = vmatmul.mubr.bf16.gmra.mrb[0].mxu0 %v1828
        %v3259 = vpop.f32.mrb[0].mxu0
        %v3260 = vadd.f32 %v3099, %v3259
        %v3261 = vpop.f32.mrb[0].mxu0
        %v3262 = vpop.f32.mrb[0].mxu0
        %v3263 = vadd.f32 %v3102, %v3262
        %v3264 = vpop.f32.mrb[0].mxu0
        %3265 = vmatprep.mubr.bf16.mxu0 %v1841
        %3266 = vmatmul.mubr.bf16.gmra.mrb[0].mxu0 %v1840
        %v3267 = vpop.f32.mrb[0].mxu0
        %v3268 = vadd.f32 %v3107, %v3267
        %v3269 = vpop.f32.mrb[0].mxu0
        %v3270 = vpop.f32.mrb[0].mxu0
        %v3271 = vadd.f32 %v3110, %v3270
        %v3272 = vpop.f32.mrb[0].mxu0
        %3273 = vmatprep.mubr.bf16.mxu0 %v1853
        %3274 = vmatmul.mubr.bf16.gmra.mrb[0].mxu0 %v1852
        %v3275 = vpop.f32.mrb[0].mxu0
        %v3276 = vadd.f32 %v3115, %v3275
        %v3277 = vpop.f32.mrb[0].mxu0
        %v3278 = vpop.f32.mrb[0].mxu0
        %v3279 = vadd.f32 %v3118, %v3278
        %v3280 = vpop.f32.mrb[0].mxu0
        %3281 = vmatprep.mubr.bf16.mxu0 %v1865
        %3282 = vmatmul.mubr.bf16.gmra.mrb[0].mxu0 %v1864
        %v3283 = vpop.f32.mrb[0].mxu0
        %v3284 = vadd.f32 %v3123, %v3283
        %v3285 = vpop.f32.mrb[0].mxu0
        %v3286 = vpop.f32.mrb[0].mxu0
        %v3287 = vadd.f32 %v3126, %v3286
        %v3288 = vpop.f32.mrb[0].mxu0
        %3289 = vmatprep.mubr.bf16.mxu0 %v1877
        %3290 = vmatmul.mubr.bf16.gmra.mrb[0].mxu0 %v1876
        %v3291 = vpop.f32.mrb[0].mxu0
        %v3292 = vadd.f32 %v3131, %v3291
        %v3293 = vpop.f32.mrb[0].mxu0
        %v3294 = vpop.f32.mrb[0].mxu0
        %v3295 = vadd.f32 %v3134, %v3294
        %v3296 = vpop.f32.mrb[0].mxu0
        %3297 = vmatprep.mubr.bf16.mxu0 %v1889
        %3298 = vmatmul.mubr.bf16.gmra.mrb[0].mxu0 %v1888
        %v3299 = vpop.f32.mrb[0].mxu0
        %v3300 = vadd.f32 %v3139, %v3299
        %v3301 = vpop.f32.mrb[0].mxu0
        %v3302 = vpop.f32.mrb[0].mxu0
        %v3303 = vadd.f32 %v3142, %v3302
        %v3304 = vpop.f32.mrb[0].mxu0
        %3305 = vdwg.mxu0
        %3306 = vmatprep.subr.bf16.mxu0 0
        %3307 = vmatpush1.bf16.msra.mxu0 %v2534
        %3308 = vmatprep.subr.bf16.mxu0 0
        %3309 = vmatpush1.bf16.msra.mxu0 %v2535
        %3310 = vmatprep.subr.bf16.mxu0 0
        %3311 = vmatpush1.bf16.msra.mxu0 %v2536
        %3312 = vmatprep.subr.bf16.mxu0 0
        %3313 = vmatpush1.bf16.msra.mxu0 %v2537
        %3314 = vmatprep.subr.bf16.mxu0 0
        %3315 = vmatpush1.bf16.msra.mxu0 %v2538
        %3316 = vmatprep.subr.bf16.mxu0 0
        %3317 = vmatpush1.bf16.msra.mxu0 %v2539
        %3318 = vmatprep.subr.bf16.mxu0 0
        %3319 = vmatpush1.bf16.msra.mxu0 %v2540
        %3320 = vmatprep.subr.bf16.mxu0 0
        %3321 = vmatpush1.bf16.msra.mxu0 %v2541
        %3322 = vmatprep.subr.bf16.mxu0 0
        %3323 = vmatpush1.bf16.msra.mxu0 %v2542
        %3324 = vmatprep.subr.bf16.mxu0 0
        %3325 = vmatpush1.bf16.msra.mxu0 %v2543
        %3326 = vmatprep.subr.bf16.mxu0 0
        %3327 = vmatpush1.bf16.msra.mxu0 %v2544
        %3328 = vmatprep.subr.bf16.mxu0 0
        %3329 = vmatpush1.bf16.msra.mxu0 %v2545
        %3330 = vmatprep.subr.bf16.mxu0 0
        %3331 = vmatpush1.bf16.msra.mxu0 %v2546
        %3332 = vmatprep.subr.bf16.mxu0 0
        %3333 = vmatpush1.bf16.msra.mxu0 %v2547
        %3334 = vmatprep.subr.bf16.mxu0 0
        %3335 = vmatpush1.bf16.msra.mxu0 %v2548
        %3336 = vmatprep.subr.bf16.mxu0 0
        %3337 = vmatpush1.bf16.msra.mxu0 %v2549
        %3338 = vmatprep.mubr.bf16.mxu0 %v1711
        %3339 = vmatmul.mubr.bf16.gmra.mrb[0].mxu0 %v1710
        %v3340 = vpop.f32.mrb[0].mxu0
        %v3341 = vadd.f32 %v3180, %v3340
        %v3342 = vpop.f32.mrb[0].mxu0
        %v3343 = vpop.f32.mrb[0].mxu0
        %v3344 = vadd.f32 %v3183, %v3343
        %v3345 = vpop.f32.mrb[0].mxu0
        %3346 = vmatprep.mubr.bf16.mxu0 %v1723
        %3347 = vmatmul.mubr.bf16.gmra.mrb[0].mxu0 %v1722
        %v3348 = vpop.f32.mrb[0].mxu0
        %v3349 = vadd.f32 %v3188, %v3348
        %v3350 = vpop.f32.mrb[0].mxu0
        %v3351 = vpop.f32.mrb[0].mxu0
        %v3352 = vadd.f32 %v3191, %v3351
        %v3353 = vpop.f32.mrb[0].mxu0
        %3354 = vmatprep.mubr.bf16.mxu0 %v1735
        %3355 = vmatmul.mubr.bf16.gmra.mrb[0].mxu0 %v1734
        %v3356 = vpop.f32.mrb[0].mxu0
        %v3357 = vadd.f32 %v3196, %v3356
        %v3358 = vpop.f32.mrb[0].mxu0
        %v3359 = vpop.f32.mrb[0].mxu0
        %v3360 = vadd.f32 %v3199, %v3359
        %v3361 = vpop.f32.mrb[0].mxu0
        %3362 = vmatprep.mubr.bf16.mxu0 %v1747
        %3363 = vmatmul.mubr.bf16.gmra.mrb[0].mxu0 %v1746
        %v3364 = vpop.f32.mrb[0].mxu0
        %v3365 = vadd.f32 %v3204, %v3364
        %v3366 = vpop.f32.mrb[0].mxu0
        %v3367 = vpop.f32.mrb[0].mxu0
        %v3368 = vadd.f32 %v3207, %v3367
        %v3369 = vpop.f32.mrb[0].mxu0
        %3370 = vmatprep.mubr.bf16.mxu0 %v1759
        %3371 = vmatmul.mubr.bf16.gmra.mrb[0].mxu0 %v1758
        %v3372 = vpop.f32.mrb[0].mxu0
        %v3373 = vadd.f32 %v3212, %v3372
        %v3374 = vpop.f32.mrb[0].mxu0
        %v3375 = vpop.f32.mrb[0].mxu0
        %v3376 = vadd.f32 %v3215, %v3375
        %v3377 = vpop.f32.mrb[0].mxu0
        %3378 = vmatprep.mubr.bf16.mxu0 %v1771
        %3379 = vmatmul.mubr.bf16.gmra.mrb[0].mxu0 %v1770
        %v3380 = vpop.f32.mrb[0].mxu0
        %v3381 = vadd.f32 %v3220, %v3380
        %v3382 = vpop.f32.mrb[0].mxu0
        %v3383 = vpop.f32.mrb[0].mxu0
        %v3384 = vadd.f32 %v3223, %v3383
        %v3385 = vpop.f32.mrb[0].mxu0
        %3386 = vmatprep.mubr.bf16.mxu0 %v1783
        %3387 = vmatmul.mubr.bf16.gmra.mrb[0].mxu0 %v1782
        %v3388 = vpop.f32.mrb[0].mxu0
        %v3389 = vadd.f32 %v3228, %v3388
        %v3390 = vpop.f32.mrb[0].mxu0
        %v3391 = vpop.f32.mrb[0].mxu0
        %v3392 = vadd.f32 %v3231, %v3391
        %v3393 = vpop.f32.mrb[0].mxu0
        %3394 = vmatprep.mubr.bf16.mxu0 %v1795
        %3395 = vmatmul.mubr.bf16.gmra.mrb[0].mxu0 %v1794
        %v3396 = vpop.f32.mrb[0].mxu0
        %v3397 = vadd.f32 %v3236, %v3396
        %v3398 = vpop.f32.mrb[0].mxu0
        %v3399 = vpop.f32.mrb[0].mxu0
        %v3400 = vadd.f32 %v3239, %v3399
        %v3401 = vpop.f32.mrb[0].mxu0
        %3402 = vmatprep.mubr.bf16.mxu0 %v1807
        %3403 = vmatmul.mubr.bf16.gmra.mrb[0].mxu0 %v1806
        %v3404 = vpop.f32.mrb[0].mxu0
        %v3405 = vadd.f32 %v3244, %v3404
        %v3406 = vpop.f32.mrb[0].mxu0
        %v3407 = vpop.f32.mrb[0].mxu0
        %v3408 = vadd.f32 %v3247, %v3407
        %v3409 = vpop.f32.mrb[0].mxu0
        %3410 = vmatprep.mubr.bf16.mxu0 %v1819
        %3411 = vmatmul.mubr.bf16.gmra.mrb[0].mxu0 %v1818
        %v3412 = vpop.f32.mrb[0].mxu0
        %v3413 = vadd.f32 %v3252, %v3412
        %v3414 = vpop.f32.mrb[0].mxu0
        %v3415 = vpop.f32.mrb[0].mxu0
        %v3416 = vadd.f32 %v3255, %v3415
        %v3417 = vpop.f32.mrb[0].mxu0
        %3418 = vmatprep.mubr.bf16.mxu0 %v1831
        %3419 = vmatmul.mubr.bf16.gmra.mrb[0].mxu0 %v1830
        %v3420 = vpop.f32.mrb[0].mxu0
        %v3421 = vadd.f32 %v3260, %v3420
        %v3422 = vpop.f32.mrb[0].mxu0
        %v3423 = vpop.f32.mrb[0].mxu0
        %v3424 = vadd.f32 %v3263, %v3423
        %v3425 = vpop.f32.mrb[0].mxu0
        %3426 = vmatprep.mubr.bf16.mxu0 %v1843
        %3427 = vmatmul.mubr.bf16.gmra.mrb[0].mxu0 %v1842
        %v3428 = vpop.f32.mrb[0].mxu0
        %v3429 = vadd.f32 %v3268, %v3428
        %v3430 = vpop.f32.mrb[0].mxu0
        %v3431 = vpop.f32.mrb[0].mxu0
        %v3432 = vadd.f32 %v3271, %v3431
        %v3433 = vpop.f32.mrb[0].mxu0
        %3434 = vmatprep.mubr.bf16.mxu0 %v1855
        %3435 = vmatmul.mubr.bf16.gmra.mrb[0].mxu0 %v1854
        %v3436 = vpop.f32.mrb[0].mxu0
        %v3437 = vadd.f32 %v3276, %v3436
        %v3438 = vpop.f32.mrb[0].mxu0
        %v3439 = vpop.f32.mrb[0].mxu0
        %v3440 = vadd.f32 %v3279, %v3439
        %v3441 = vpop.f32.mrb[0].mxu0
        %3442 = vmatprep.mubr.bf16.mxu0 %v1867
        %3443 = vmatmul.mubr.bf16.gmra.mrb[0].mxu0 %v1866
        %v3444 = vpop.f32.mrb[0].mxu0
        %v3445 = vadd.f32 %v3284, %v3444
        %v3446 = vpop.f32.mrb[0].mxu0
        %v3447 = vpop.f32.mrb[0].mxu0
        %v3448 = vadd.f32 %v3287, %v3447
        %v3449 = vpop.f32.mrb[0].mxu0
        %3450 = vmatprep.mubr.bf16.mxu0 %v1879
        %3451 = vmatmul.mubr.bf16.gmra.mrb[0].mxu0 %v1878
        %v3452 = vpop.f32.mrb[0].mxu0
        %v3453 = vadd.f32 %v3292, %v3452
        %v3454 = vpop.f32.mrb[0].mxu0
        %v3455 = vpop.f32.mrb[0].mxu0
        %v3456 = vadd.f32 %v3295, %v3455
        %v3457 = vpop.f32.mrb[0].mxu0
        %3458 = vmatprep.mubr.bf16.mxu0 %v1891
        %3459 = vmatmul.mubr.bf16.gmra.mrb[0].mxu0 %v1890
        %v3460 = vpop.f32.mrb[0].mxu0
        %v3461 = vadd.f32 %v3300, %v3460
        %v3462 = vpop.f32.mrb[0].mxu0
        %v3463 = vpop.f32.mrb[0].mxu0
        %v3464 = vadd.f32 %v3303, %v3463
        %v3465 = vpop.f32.mrb[0].mxu0
        %3466 = vdwg.mxu0
        %3467 = vmatprep.subr.bf16.mxu0 0
        %3468 = vmatpush1.bf16.msra.mxu0 %v2550
        %3469 = vmatprep.subr.bf16.mxu0 0
        %3470 = vmatpush1.bf16.msra.mxu0 %v2551
        %3471 = vmatprep.subr.bf16.mxu0 0
        %3472 = vmatpush1.bf16.msra.mxu0 %v2552
        %3473 = vmatprep.subr.bf16.mxu0 0
        %3474 = vmatpush1.bf16.msra.mxu0 %v2553
        %3475 = vmatprep.subr.bf16.mxu0 0
        %3476 = vmatpush1.bf16.msra.mxu0 %v2554
        %3477 = vmatprep.subr.bf16.mxu0 0
        %3478 = vmatpush1.bf16.msra.mxu0 %v2555
        %3479 = vmatprep.subr.bf16.mxu0 0
        %3480 = vmatpush1.bf16.msra.mxu0 %v2556
        %3481 = vmatprep.subr.bf16.mxu0 0
        %3482 = vmatpush1.bf16.msra.mxu0 %v2557
        %3483 = vmatprep.subr.bf16.mxu0 0
        %3484 = vmatpush1.bf16.msra.mxu0 %v2558
        %3485 = vmatprep.subr.bf16.mxu0 0
        %3486 = vmatpush1.bf16.msra.mxu0 %v2559
        %3487 = vmatprep.subr.bf16.mxu0 0
        %3488 = vmatpush1.bf16.msra.mxu0 %v2560
        %3489 = vmatprep.subr.bf16.mxu0 0
        %3490 = vmatpush1.bf16.msra.mxu0 %v2561
        %3491 = vmatprep.subr.bf16.mxu0 0
        %3492 = vmatpush1.bf16.msra.mxu0 %v2562
        %3493 = vmatprep.subr.bf16.mxu0 0
        %3494 = vmatpush1.bf16.msra.mxu0 %v2563
        %3495 = vmatprep.subr.bf16.mxu0 0
        %3496 = vmatpush1.bf16.msra.mxu0 %v2564
        %3497 = vmatprep.subr.bf16.mxu0 0
        %3498 = vmatpush1.bf16.msra.mxu0 %v2565
        %3499 = vmatprep.mubr.bf16.mxu0 %v1713
        %3500 = vmatmul.mubr.bf16.gmra.mrb[0].mxu0 %v1712
        %v3501 = vpop.f32.mrb[0].mxu0
        %v3502 = vadd.f32 %v3341, %v3501
        %v3503 = vpop.f32.mrb[0].mxu0
        %v3504 = vpop.f32.mrb[0].mxu0
        %v3505 = vadd.f32 %v3344, %v3504
        %v3506 = vpop.f32.mrb[0].mxu0
        %3507 = vmatprep.mubr.bf16.mxu0 %v1725
        %3508 = vmatmul.mubr.bf16.gmra.mrb[0].mxu0 %v1724
        %v3509 = vpop.f32.mrb[0].mxu0
        %v3510 = vadd.f32 %v3349, %v3509
        %v3511 = vpop.f32.mrb[0].mxu0
        %v3512 = vpop.f32.mrb[0].mxu0
        %v3513 = vadd.f32 %v3352, %v3512
        %v3514 = vpop.f32.mrb[0].mxu0
        %3515 = vmatprep.mubr.bf16.mxu0 %v1737
        %3516 = vmatmul.mubr.bf16.gmra.mrb[0].mxu0 %v1736
        %v3517 = vpop.f32.mrb[0].mxu0
        %v3518 = vadd.f32 %v3357, %v3517
        %v3519 = vpop.f32.mrb[0].mxu0
        %v3520 = vpop.f32.mrb[0].mxu0
        %v3521 = vadd.f32 %v3360, %v3520
        %v3522 = vpop.f32.mrb[0].mxu0
        %3523 = vmatprep.mubr.bf16.mxu0 %v1749
        %3524 = vmatmul.mubr.bf16.gmra.mrb[0].mxu0 %v1748
        %v3525 = vpop.f32.mrb[0].mxu0
        %v3526 = vadd.f32 %v3365, %v3525
        %v3527 = vpop.f32.mrb[0].mxu0
        %v3528 = vpop.f32.mrb[0].mxu0
        %v3529 = vadd.f32 %v3368, %v3528
        %v3530 = vpop.f32.mrb[0].mxu0
        %3531 = vmatprep.mubr.bf16.mxu0 %v1761
        %3532 = vmatmul.mubr.bf16.gmra.mrb[0].mxu0 %v1760
        %v3533 = vpop.f32.mrb[0].mxu0
        %v3534 = vadd.f32 %v3373, %v3533
        %v3535 = vpop.f32.mrb[0].mxu0
        %v3536 = vpop.f32.mrb[0].mxu0
        %v3537 = vadd.f32 %v3376, %v3536
        %v3538 = vpop.f32.mrb[0].mxu0
        %3539 = vmatprep.mubr.bf16.mxu0 %v1773
        %3540 = vmatmul.mubr.bf16.gmra.mrb[0].mxu0 %v1772
        %v3541 = vpop.f32.mrb[0].mxu0
        %v3542 = vadd.f32 %v3381, %v3541
        %v3543 = vpop.f32.mrb[0].mxu0
        %v3544 = vpop.f32.mrb[0].mxu0
        %v3545 = vadd.f32 %v3384, %v3544
        %v3546 = vpop.f32.mrb[0].mxu0
        %3547 = vmatprep.mubr.bf16.mxu0 %v1785
        %3548 = vmatmul.mubr.bf16.gmra.mrb[0].mxu0 %v1784
        %v3549 = vpop.f32.mrb[0].mxu0
        %v3550 = vadd.f32 %v3389, %v3549
        %v3551 = vpop.f32.mrb[0].mxu0
        %v3552 = vpop.f32.mrb[0].mxu0
        %v3553 = vadd.f32 %v3392, %v3552
        %v3554 = vpop.f32.mrb[0].mxu0
        %3555 = vmatprep.mubr.bf16.mxu0 %v1797
        %3556 = vmatmul.mubr.bf16.gmra.mrb[0].mxu0 %v1796
        %v3557 = vpop.f32.mrb[0].mxu0
        %v3558 = vadd.f32 %v3397, %v3557
        %v3559 = vpop.f32.mrb[0].mxu0
        %v3560 = vpop.f32.mrb[0].mxu0
        %v3561 = vadd.f32 %v3400, %v3560
        %v3562 = vpop.f32.mrb[0].mxu0
        %3563 = vmatprep.mubr.bf16.mxu0 %v1809
        %3564 = vmatmul.mubr.bf16.gmra.mrb[0].mxu0 %v1808
        %v3565 = vpop.f32.mrb[0].mxu0
        %v3566 = vadd.f32 %v3405, %v3565
        %v3567 = vpop.f32.mrb[0].mxu0
        %v3568 = vpop.f32.mrb[0].mxu0
        %v3569 = vadd.f32 %v3408, %v3568
        %v3570 = vpop.f32.mrb[0].mxu0
        %3571 = vmatprep.mubr.bf16.mxu0 %v1821
        %3572 = vmatmul.mubr.bf16.gmra.mrb[0].mxu0 %v1820
        %v3573 = vpop.f32.mrb[0].mxu0
        %v3574 = vadd.f32 %v3413, %v3573
        %v3575 = vpop.f32.mrb[0].mxu0
        %v3576 = vpop.f32.mrb[0].mxu0
        %v3577 = vadd.f32 %v3416, %v3576
        %v3578 = vpop.f32.mrb[0].mxu0
        %3579 = vmatprep.mubr.bf16.mxu0 %v1833
        %3580 = vmatmul.mubr.bf16.gmra.mrb[0].mxu0 %v1832
        %v3581 = vpop.f32.mrb[0].mxu0
        %v3582 = vadd.f32 %v3421, %v3581
        %v3583 = vpop.f32.mrb[0].mxu0
        %v3584 = vpop.f32.mrb[0].mxu0
        %v3585 = vadd.f32 %v3424, %v3584
        %v3586 = vpop.f32.mrb[0].mxu0
        %3587 = vmatprep.mubr.bf16.mxu0 %v1845
        %3588 = vmatmul.mubr.bf16.gmra.mrb[0].mxu0 %v1844
        %v3589 = vpop.f32.mrb[0].mxu0
        %v3590 = vadd.f32 %v3429, %v3589
        %v3591 = vpop.f32.mrb[0].mxu0
        %v3592 = vpop.f32.mrb[0].mxu0
        %v3593 = vadd.f32 %v3432, %v3592
        %v3594 = vpop.f32.mrb[0].mxu0
        %3595 = vmatprep.mubr.bf16.mxu0 %v1857
        %3596 = vmatmul.mubr.bf16.gmra.mrb[0].mxu0 %v1856
        %v3597 = vpop.f32.mrb[0].mxu0
        %v3598 = vadd.f32 %v3437, %v3597
        %v3599 = vpop.f32.mrb[0].mxu0
        %v3600 = vpop.f32.mrb[0].mxu0
        %v3601 = vadd.f32 %v3440, %v3600
        %v3602 = vpop.f32.mrb[0].mxu0
        %3603 = vmatprep.mubr.bf16.mxu0 %v1869
        %3604 = vmatmul.mubr.bf16.gmra.mrb[0].mxu0 %v1868
        %v3605 = vpop.f32.mrb[0].mxu0
        %v3606 = vadd.f32 %v3445, %v3605
        %v3607 = vpop.f32.mrb[0].mxu0
        %v3608 = vpop.f32.mrb[0].mxu0
        %v3609 = vadd.f32 %v3448, %v3608
        %v3610 = vpop.f32.mrb[0].mxu0
        %3611 = vmatprep.mubr.bf16.mxu0 %v1881
        %3612 = vmatmul.mubr.bf16.gmra.mrb[0].mxu0 %v1880
        %v3613 = vpop.f32.mrb[0].mxu0
        %v3614 = vadd.f32 %v3453, %v3613
        %v3615 = vpop.f32.mrb[0].mxu0
        %v3616 = vpop.f32.mrb[0].mxu0
        %v3617 = vadd.f32 %v3456, %v3616
        %v3618 = vpop.f32.mrb[0].mxu0
        %3619 = vmatprep.mubr.bf16.mxu0 %v1893
        %3620 = vmatmul.mubr.bf16.gmra.mrb[0].mxu0 %v1892
        %v3621 = vpop.f32.mrb[0].mxu0
        %v3622 = vadd.f32 %v3461, %v3621
        %v3623 = vpop.f32.mrb[0].mxu0
        %v3624 = vpop.f32.mrb[0].mxu0
        %v3625 = vadd.f32 %v3464, %v3624
        %v3626 = vpop.f32.mrb[0].mxu0
        %3627 = vdwg.mxu0
        %v3820 = vunpack.c.l.b16 %v356
        %v3821 = vunpack.c.h.b16 %v356
        %v3822 = vunpack.c.l.b16 %v357
        %v3823 = vunpack.c.h.b16 %v357
        %v3824 = vunpack.c.l.b16 %v358
        %v3825 = vunpack.c.h.b16 %v358
        %v3826 = vunpack.c.l.b16 %v359
        %v3827 = vunpack.c.h.b16 %v359
        %v3828 = vunpack.c.l.b16 %v360
        %v3829 = vunpack.c.h.b16 %v360
        %v3830 = vunpack.c.l.b16 %v361
        %v3831 = vunpack.c.h.b16 %v361
        %v3832 = vunpack.c.l.b16 %v362
        %v3833 = vunpack.c.h.b16 %v362
        %v3834 = vunpack.c.l.b16 %v363
        %v3835 = vunpack.c.h.b16 %v363
        %v3836 = vunpack.c.l.b16 %v364
        %v3837 = vunpack.c.h.b16 %v364
        %v3838 = vunpack.c.l.b16 %v365
        %v3839 = vunpack.c.h.b16 %v365
        %v3840 = vunpack.c.l.b16 %v366
        %v3841 = vunpack.c.h.b16 %v366
        %v3842 = vunpack.c.l.b16 %v367
        %v3843 = vunpack.c.h.b16 %v367
        %v3844 = vunpack.c.l.b16 %v368
        %v3845 = vunpack.c.h.b16 %v368
        %v3846 = vunpack.c.l.b16 %v369
        %v3847 = vunpack.c.h.b16 %v369
        %v3848 = vunpack.c.l.b16 %v370
        %v3849 = vunpack.c.h.b16 %v370
        %v3850 = vunpack.c.l.b16 %v371
        %v3851 = vunpack.c.h.b16 %v371
        %v3852 = vunpack.c.l.b16 %v372
        %v3853 = vunpack.c.h.b16 %v372
        %v3854 = vunpack.c.l.b16 %v373
        %v3855 = vunpack.c.h.b16 %v373
        %v3856 = vunpack.c.l.b16 %v374
        %v3857 = vunpack.c.h.b16 %v374
        %v3858 = vunpack.c.l.b16 %v375
        %v3859 = vunpack.c.h.b16 %v375
        %v3860 = vunpack.c.l.b16 %v376
        %v3861 = vunpack.c.h.b16 %v376
        %v3862 = vunpack.c.l.b16 %v377
        %v3863 = vunpack.c.h.b16 %v377
        %v3864 = vunpack.c.l.b16 %v378
        %v3865 = vunpack.c.h.b16 %v378
        %v3866 = vunpack.c.l.b16 %v379
        %v3867 = vunpack.c.h.b16 %v379
        %v3868 = vunpack.c.l.b16 %v380
        %v3869 = vunpack.c.h.b16 %v380
        %v3870 = vunpack.c.l.b16 %v381
        %v3871 = vunpack.c.h.b16 %v381
        %v3872 = vunpack.c.l.b16 %v382
        %v3873 = vunpack.c.h.b16 %v382
        %v3874 = vunpack.c.l.b16 %v383
        %v3875 = vunpack.c.h.b16 %v383
        %v3876 = vunpack.c.l.b16 %v384
        %v3877 = vunpack.c.h.b16 %v384
        %v3878 = vunpack.c.l.b16 %v385
        %v3879 = vunpack.c.h.b16 %v385
        %v3880 = vunpack.c.l.b16 %v386
        %v3881 = vunpack.c.h.b16 %v386
        %v3882 = vunpack.c.l.b16 %v387
        %v3883 = vunpack.c.h.b16 %v387
        %v3884 = vunpack.c.l.b16 %v388
        %v3885 = vunpack.c.h.b16 %v388
        %v3886 = vunpack.c.l.b16 %v389
        %v3887 = vunpack.c.h.b16 %v389
        %v3888 = vunpack.c.l.b16 %v390
        %v3889 = vunpack.c.h.b16 %v390
        %v3890 = vunpack.c.l.b16 %v391
        %v3891 = vunpack.c.h.b16 %v391
        %v3892 = vunpack.c.l.b16 %v392
        %v3893 = vunpack.c.h.b16 %v392
        %v3894 = vunpack.c.l.b16 %v393
        %v3895 = vunpack.c.h.b16 %v393
        %v3896 = vunpack.c.l.b16 %v394
        %v3897 = vunpack.c.h.b16 %v394
        %v3898 = vunpack.c.l.b16 %v395
        %v3899 = vunpack.c.h.b16 %v395
        %v3900 = vunpack.c.l.b16 %v396
        %v3901 = vunpack.c.h.b16 %v396
        %v3902 = vunpack.c.l.b16 %v397
        %v3903 = vunpack.c.h.b16 %v397
        %v3904 = vunpack.c.l.b16 %v398
        %v3905 = vunpack.c.h.b16 %v398
        %v3906 = vunpack.c.l.b16 %v399
        %v3907 = vunpack.c.h.b16 %v399
        %v3908 = vunpack.c.l.b16 %v400
        %v3909 = vunpack.c.h.b16 %v400
        %v3910 = vunpack.c.l.b16 %v401
        %v3911 = vunpack.c.h.b16 %v401
        %v3912 = vunpack.c.l.b16 %v402
        %v3913 = vunpack.c.h.b16 %v402
        %v3914 = vunpack.c.l.b16 %v403
        %v3915 = vunpack.c.h.b16 %v403
        %v3916 = vunpack.c.l.b16 %v404
        %v3917 = vunpack.c.h.b16 %v404
        %v3918 = vunpack.c.l.b16 %v405
        %v3919 = vunpack.c.h.b16 %v405
        %v3920 = vunpack.c.l.b16 %v406
        %v3921 = vunpack.c.h.b16 %v406
        %v3922 = vunpack.c.l.b16 %v407
        %v3923 = vunpack.c.h.b16 %v407
        %v3924 = vunpack.c.l.b16 %v408
        %v3925 = vunpack.c.h.b16 %v408
        %v3926 = vunpack.c.l.b16 %v409
        %v3927 = vunpack.c.h.b16 %v409
        %v3928 = vunpack.c.l.b16 %v410
        %v3929 = vunpack.c.h.b16 %v410
        %v3930 = vunpack.c.l.b16 %v411
        %v3931 = vunpack.c.h.b16 %v411
        %v3932 = vunpack.c.l.b16 %v412
        %v3933 = vunpack.c.h.b16 %v412
        %v3934 = vunpack.c.l.b16 %v413
        %v3935 = vunpack.c.h.b16 %v413
        %v3936 = vunpack.c.l.b16 %v414
        %v3937 = vunpack.c.h.b16 %v414
        %v3938 = vunpack.c.l.b16 %v415
        %v3939 = vunpack.c.h.b16 %v415
        %v3940 = vunpack.c.l.b16 %v416
        %v3941 = vunpack.c.h.b16 %v416
        %v3942 = vunpack.c.l.b16 %v417
        %v3943 = vunpack.c.h.b16 %v417
        %v3944 = vunpack.c.l.b16 %v418
        %v3945 = vunpack.c.h.b16 %v418
        %v3946 = vunpack.c.l.b16 %v419
        %v3947 = vunpack.c.h.b16 %v419
        %v3948 = vunpack.c.l.b16 %v420
        %v3949 = vunpack.c.h.b16 %v420
        %v3950 = vunpack.c.l.b16 %v421
        %v3951 = vunpack.c.h.b16 %v421
        %v3952 = vunpack.c.l.b16 %v422
        %v3953 = vunpack.c.h.b16 %v422
        %v3954 = vunpack.c.l.b16 %v423
        %v3955 = vunpack.c.h.b16 %v423
        %v3956 = vunpack.c.l.b16 %v424
        %v3957 = vunpack.c.h.b16 %v424
        %v3958 = vunpack.c.l.b16 %v425
        %v3959 = vunpack.c.h.b16 %v425
        %v3960 = vunpack.c.l.b16 %v426
        %v3961 = vunpack.c.h.b16 %v426
        %v3962 = vunpack.c.l.b16 %v427
        %v3963 = vunpack.c.h.b16 %v427
        %v3964 = vunpack.c.l.b16 %v428
        %v3965 = vunpack.c.h.b16 %v428
        %v3966 = vunpack.c.l.b16 %v429
        %v3967 = vunpack.c.h.b16 %v429
        %v3968 = vunpack.c.l.b16 %v430
        %v3969 = vunpack.c.h.b16 %v430
        %v3970 = vunpack.c.l.b16 %v431
        %v3971 = vunpack.c.h.b16 %v431
        %v3972 = vunpack.c.l.b16 %v432
        %v3973 = vunpack.c.h.b16 %v432
        %v3974 = vunpack.c.l.b16 %v433
        %v3975 = vunpack.c.h.b16 %v433
        %v3976 = vunpack.c.l.b16 %v434
        %v3977 = vunpack.c.h.b16 %v434
        %v3978 = vunpack.c.l.b16 %v435
        %v3979 = vunpack.c.h.b16 %v435
        %v3980 = vunpack.c.l.b16 %v436
        %v3981 = vunpack.c.h.b16 %v436
        %v3982 = vunpack.c.l.b16 %v437
        %v3983 = vunpack.c.h.b16 %v437
        %v3984 = vunpack.c.l.b16 %v438
        %v3985 = vunpack.c.h.b16 %v438
        %v3986 = vunpack.c.l.b16 %v439
        %v3987 = vunpack.c.h.b16 %v439
        %v3988 = vunpack.c.l.b16 %v440
        %v3989 = vunpack.c.h.b16 %v440
        %v3990 = vunpack.c.l.b16 %v441
        %v3991 = vunpack.c.h.b16 %v441
        %v3992 = vunpack.c.l.b16 %v442
        %v3993 = vunpack.c.h.b16 %v442
        %v3994 = vunpack.c.l.b16 %v443
        %v3995 = vunpack.c.h.b16 %v443
        %v3996 = vunpack.c.l.b16 %v444
        %v3997 = vunpack.c.h.b16 %v444
        %v3998 = vunpack.c.l.b16 %v445
        %v3999 = vunpack.c.h.b16 %v445
        %v4000 = vunpack.c.l.b16 %v446
        %v4001 = vunpack.c.h.b16 %v446
        %v4002 = vunpack.c.l.b16 %v447
        %v4003 = vunpack.c.h.b16 %v447
        %v4004 = vunpack.c.l.b16 %v448
        %v4005 = vunpack.c.h.b16 %v448
        %v4006 = vunpack.c.l.b16 %v449
        %v4007 = vunpack.c.h.b16 %v449
        %v4008 = vunpack.c.l.b16 %v450
        %v4009 = vunpack.c.h.b16 %v450
        %v4010 = vunpack.c.l.b16 %v451
        %v4011 = vunpack.c.h.b16 %v451
        %v4012 = vunpack.c.l.b16 %v452
        %v4013 = vunpack.c.h.b16 %v452
        %v4014 = vunpack.c.l.b16 %v453
        %v4015 = vunpack.c.h.b16 %v453
        %v4016 = vunpack.c.l.b16 %v454
        %v4017 = vunpack.c.h.b16 %v454
        %v4018 = vunpack.c.l.b16 %v455
        %v4019 = vunpack.c.h.b16 %v455
        %v4020 = vunpack.c.l.b16 %v456
        %v4021 = vunpack.c.h.b16 %v456
        %v4022 = vunpack.c.l.b16 %v457
        %v4023 = vunpack.c.h.b16 %v457
        %v4024 = vunpack.c.l.b16 %v458
        %v4025 = vunpack.c.h.b16 %v458
        %v4026 = vunpack.c.l.b16 %v459
        %v4027 = vunpack.c.h.b16 %v459
        %v4028 = vunpack.c.l.b16 %v460
        %v4029 = vunpack.c.h.b16 %v460
        %v4030 = vunpack.c.l.b16 %v461
        %v4031 = vunpack.c.h.b16 %v461
        %v4032 = vunpack.c.l.b16 %v462
        %v4033 = vunpack.c.h.b16 %v462
        %v4034 = vunpack.c.l.b16 %v463
        %v4035 = vunpack.c.h.b16 %v463
        %v4036 = vunpack.c.l.b16 %v464
        %v4037 = vunpack.c.h.b16 %v464
        %v4038 = vunpack.c.l.b16 %v465
        %v4039 = vunpack.c.h.b16 %v465
        %v4040 = vunpack.c.l.b16 %v466
        %v4041 = vunpack.c.h.b16 %v466
        %v4042 = vunpack.c.l.b16 %v467
        %v4043 = vunpack.c.h.b16 %v467
        %v4044 = vunpack.c.l.b16 %v468
        %v4045 = vunpack.c.h.b16 %v468
        %v4046 = vunpack.c.l.b16 %v469
        %v4047 = vunpack.c.h.b16 %v469
        %v4048 = vunpack.c.l.b16 %v470
        %v4049 = vunpack.c.h.b16 %v470
        %v4050 = vunpack.c.l.b16 %v471
        %v4051 = vunpack.c.h.b16 %v471
        %v4052 = vunpack.c.l.b16 %v472
        %v4053 = vunpack.c.h.b16 %v472
        %v4054 = vunpack.c.l.b16 %v473
        %v4055 = vunpack.c.h.b16 %v473
        %v4056 = vunpack.c.l.b16 %v474
        %v4057 = vunpack.c.h.b16 %v474
        %v4058 = vunpack.c.l.b16 %v475
        %v4059 = vunpack.c.h.b16 %v475
        %v4060 = vunpack.c.l.b16 %v476
        %v4061 = vunpack.c.h.b16 %v476
        %v4062 = vunpack.c.l.b16 %v477
        %v4063 = vunpack.c.h.b16 %v477
        %v4064 = vunpack.c.l.b16 %v478
        %v4065 = vunpack.c.h.b16 %v478
        %v4066 = vunpack.c.l.b16 %v479
        %v4067 = vunpack.c.h.b16 %v479
        %v4068 = vunpack.c.l.b16 %v480
        %v4069 = vunpack.c.h.b16 %v480
        %v4070 = vunpack.c.l.b16 %v481
        %v4071 = vunpack.c.h.b16 %v481
        %v4072 = vunpack.c.l.b16 %v482
        %v4073 = vunpack.c.h.b16 %v482
        %v4074 = vunpack.c.l.b16 %v483
        %v4075 = vunpack.c.h.b16 %v483
        %v4076 = vunpack.c.l.b16 %v484
        %v4077 = vunpack.c.h.b16 %v484
        %v4078 = vunpack.c.l.b16 %v485
        %v4079 = vunpack.c.h.b16 %v485
        %v4080 = vunpack.c.l.b16 %v486
        %v4081 = vunpack.c.h.b16 %v486
        %v4082 = vunpack.c.l.b16 %v487
        %v4083 = vunpack.c.h.b16 %v487
        %v4084 = vunpack.c.l.b16 %v488
        %v4085 = vunpack.c.h.b16 %v488
        %v4086 = vunpack.c.l.b16 %v489
        %v4087 = vunpack.c.h.b16 %v489
        %v4088 = vunpack.c.l.b16 %v490
        %v4089 = vunpack.c.h.b16 %v490
        %v4090 = vunpack.c.l.b16 %v491
        %v4091 = vunpack.c.h.b16 %v491
        %v4092 = vunpack.c.l.b16 %v492
        %v4093 = vunpack.c.h.b16 %v492
        %v4094 = vunpack.c.l.b16 %v493
        %v4095 = vunpack.c.h.b16 %v493
        %v4096 = vunpack.c.l.b16 %v494
        %v4097 = vunpack.c.h.b16 %v494
        %v4098 = vunpack.c.l.b16 %v495
        %v4099 = vunpack.c.h.b16 %v495
        %v4100 = vunpack.c.l.b16 %v496
        %v4101 = vunpack.c.h.b16 %v496
        %v4102 = vunpack.c.l.b16 %v497
        %v4103 = vunpack.c.h.b16 %v497
        %v4104 = vunpack.c.l.b16 %v498
        %v4105 = vunpack.c.h.b16 %v498
        %v4106 = vunpack.c.l.b16 %v499
        %v4107 = vunpack.c.h.b16 %v499
        %v4108 = vunpack.c.l.b16 %v500
        %v4109 = vunpack.c.h.b16 %v500
        %v4110 = vunpack.c.l.b16 %v501
        %v4111 = vunpack.c.h.b16 %v501
        %v4112 = vunpack.c.l.b16 %v502
        %v4113 = vunpack.c.h.b16 %v502
        %v4114 = vunpack.c.l.b16 %v503
        %v4115 = vunpack.c.h.b16 %v503
        %v4116 = vunpack.c.l.b16 %v504
        %v4117 = vunpack.c.h.b16 %v504
        %v4118 = vunpack.c.l.b16 %v505
        %v4119 = vunpack.c.h.b16 %v505
        %v4120 = vunpack.c.l.b16 %v506
        %v4121 = vunpack.c.h.b16 %v506
        %v4122 = vunpack.c.l.b16 %v507
        %v4123 = vunpack.c.h.b16 %v507
        %v4124 = vunpack.c.l.b16 %v508
        %v4125 = vunpack.c.h.b16 %v508
        %v4126 = vunpack.c.l.b16 %v509
        %v4127 = vunpack.c.h.b16 %v509
        %v4128 = vunpack.c.l.b16 %v510
        %v4129 = vunpack.c.h.b16 %v510
        %v4130 = vunpack.c.l.b16 %v511
        %v4131 = vunpack.c.h.b16 %v511
        %v4132 = vunpack.c.l.b16 %v512
        %v4133 = vunpack.c.h.b16 %v512
        %v4134 = vunpack.c.l.b16 %v513
        %v4135 = vunpack.c.h.b16 %v513
        %v4136 = vunpack.c.l.b16 %v514
        %v4137 = vunpack.c.h.b16 %v514
        %v4138 = vunpack.c.l.b16 %v515
        %v4139 = vunpack.c.h.b16 %v515
        %v4140 = vunpack.c.l.b16 %v516
        %v4141 = vunpack.c.h.b16 %v516
        %v4142 = vunpack.c.l.b16 %v517
        %v4143 = vunpack.c.h.b16 %v517
        %v4144 = vunpack.c.l.b16 %v518
        %v4145 = vunpack.c.h.b16 %v518
        %v4146 = vunpack.c.l.b16 %v519
        %v4147 = vunpack.c.h.b16 %v519
        %v4148 = vunpack.c.l.b16 %v520
        %v4149 = vunpack.c.h.b16 %v520
        %v4150 = vunpack.c.l.b16 %v521
        %v4151 = vunpack.c.h.b16 %v521
        %v4152 = vunpack.c.l.b16 %v522
        %v4153 = vunpack.c.h.b16 %v522
        %v4154 = vunpack.c.l.b16 %v523
        %v4155 = vunpack.c.h.b16 %v523
        %v4156 = vunpack.c.l.b16 %v524
        %v4157 = vunpack.c.h.b16 %v524
        %v4158 = vunpack.c.l.b16 %v525
        %v4159 = vunpack.c.h.b16 %v525
        %v4160 = vunpack.c.l.b16 %v526
        %v4161 = vunpack.c.h.b16 %v526
        %v4162 = vunpack.c.l.b16 %v527
        %v4163 = vunpack.c.h.b16 %v527
        %v4164 = vunpack.c.l.b16 %v528
        %v4165 = vunpack.c.h.b16 %v528
        %v4166 = vunpack.c.l.b16 %v529
        %v4167 = vunpack.c.h.b16 %v529
        %v4168 = vunpack.c.l.b16 %v530
        %v4169 = vunpack.c.h.b16 %v530
        %v4170 = vunpack.c.l.b16 %v531
        %v4171 = vunpack.c.h.b16 %v531
        %v4172 = vunpack.c.l.b16 %v532
        %v4173 = vunpack.c.h.b16 %v532
        %v4174 = vunpack.c.l.b16 %v533
        %v4175 = vunpack.c.h.b16 %v533
        %v4176 = vunpack.c.l.b16 %v534
        %v4177 = vunpack.c.h.b16 %v534
        %v4178 = vunpack.c.l.b16 %v535
        %v4179 = vunpack.c.h.b16 %v535
        %v4180 = vunpack.c.l.b16 %v536
        %v4181 = vunpack.c.h.b16 %v536
        %v4182 = vunpack.c.l.b16 %v537
        %v4183 = vunpack.c.h.b16 %v537
        %v4184 = vunpack.c.l.b16 %v538
        %v4185 = vunpack.c.h.b16 %v538
        %v4186 = vunpack.c.l.b16 %v539
        %v4187 = vunpack.c.h.b16 %v539
        %v4188 = vunpack.c.l.b16 %v540
        %v4189 = vunpack.c.h.b16 %v540
        %v4190 = vunpack.c.l.b16 %v541
        %v4191 = vunpack.c.h.b16 %v541
        %v4192 = vunpack.c.l.b16 %v542
        %v4193 = vunpack.c.h.b16 %v542
        %v4194 = vunpack.c.l.b16 %v543
        %v4195 = vunpack.c.h.b16 %v543
        %v4196 = vunpack.c.l.b16 %v544
        %v4197 = vunpack.c.h.b16 %v544
        %v4198 = vunpack.c.l.b16 %v545
        %v4199 = vunpack.c.h.b16 %v545
        %v4200 = vunpack.c.l.b16 %v546
        %v4201 = vunpack.c.h.b16 %v546
        %v4202 = vunpack.c.l.b16 %v547
        %v4203 = vunpack.c.h.b16 %v547
        %v4204 = vpack.c.b16 %v3832, %v3820
        %v4205 = vpack.c.b16 %v3833, %v3821
        %v4206 = vpack.c.b16 %v3834, %v3822
        %v4207 = vpack.c.b16 %v3835, %v3823
        %v4208 = vpack.c.b16 %v3836, %v3824
        %v4209 = vpack.c.b16 %v3837, %v3825
        %v4210 = vpack.c.b16 %v3838, %v3826
        %v4211 = vpack.c.b16 %v3839, %v3827
        %v4212 = vpack.c.b16 %v3840, %v3828
        %v4213 = vpack.c.b16 %v3841, %v3829
        %v4214 = vpack.c.b16 %v3842, %v3830
        %v4215 = vpack.c.b16 %v3843, %v3831
        %v4216 = vpack.c.b16 %v3856, %v3844
        %v4217 = vpack.c.b16 %v3857, %v3845
        %v4218 = vpack.c.b16 %v3858, %v3846
        %v4219 = vpack.c.b16 %v3859, %v3847
        %v4220 = vpack.c.b16 %v3860, %v3848
        %v4221 = vpack.c.b16 %v3861, %v3849
        %v4222 = vpack.c.b16 %v3862, %v3850
        %v4223 = vpack.c.b16 %v3863, %v3851
        %v4224 = vpack.c.b16 %v3864, %v3852
        %v4225 = vpack.c.b16 %v3865, %v3853
        %v4226 = vpack.c.b16 %v3866, %v3854
        %v4227 = vpack.c.b16 %v3867, %v3855
        %v4228 = vpack.c.b16 %v3880, %v3868
        %v4229 = vpack.c.b16 %v3881, %v3869
        %v4230 = vpack.c.b16 %v3882, %v3870
        %v4231 = vpack.c.b16 %v3883, %v3871
        %v4232 = vpack.c.b16 %v3884, %v3872
        %v4233 = vpack.c.b16 %v3885, %v3873
        %v4234 = vpack.c.b16 %v3886, %v3874
        %v4235 = vpack.c.b16 %v3887, %v3875
        %v4236 = vpack.c.b16 %v3888, %v3876
        %v4237 = vpack.c.b16 %v3889, %v3877
        %v4238 = vpack.c.b16 %v3890, %v3878
        %v4239 = vpack.c.b16 %v3891, %v3879
        %v4240 = vpack.c.b16 %v3904, %v3892
        %v4241 = vpack.c.b16 %v3905, %v3893
        %v4242 = vpack.c.b16 %v3906, %v3894
        %v4243 = vpack.c.b16 %v3907, %v3895
        %v4244 = vpack.c.b16 %v3908, %v3896
        %v4245 = vpack.c.b16 %v3909, %v3897
        %v4246 = vpack.c.b16 %v3910, %v3898
        %v4247 = vpack.c.b16 %v3911, %v3899
        %v4248 = vpack.c.b16 %v3912, %v3900
        %v4249 = vpack.c.b16 %v3913, %v3901
        %v4250 = vpack.c.b16 %v3914, %v3902
        %v4251 = vpack.c.b16 %v3915, %v3903
        %v4252 = vpack.c.b16 %v3928, %v3916
        %v4253 = vpack.c.b16 %v3929, %v3917
        %v4254 = vpack.c.b16 %v3930, %v3918
        %v4255 = vpack.c.b16 %v3931, %v3919
        %v4256 = vpack.c.b16 %v3932, %v3920
        %v4257 = vpack.c.b16 %v3933, %v3921
        %v4258 = vpack.c.b16 %v3934, %v3922
        %v4259 = vpack.c.b16 %v3935, %v3923
        %v4260 = vpack.c.b16 %v3936, %v3924
        %v4261 = vpack.c.b16 %v3937, %v3925
        %v4262 = vpack.c.b16 %v3938, %v3926
        %v4263 = vpack.c.b16 %v3939, %v3927
        %v4264 = vpack.c.b16 %v3952, %v3940
        %v4265 = vpack.c.b16 %v3953, %v3941
        %v4266 = vpack.c.b16 %v3954, %v3942
        %v4267 = vpack.c.b16 %v3955, %v3943
        %v4268 = vpack.c.b16 %v3956, %v3944
        %v4269 = vpack.c.b16 %v3957, %v3945
        %v4270 = vpack.c.b16 %v3958, %v3946
        %v4271 = vpack.c.b16 %v3959, %v3947
        %v4272 = vpack.c.b16 %v3960, %v3948
        %v4273 = vpack.c.b16 %v3961, %v3949
        %v4274 = vpack.c.b16 %v3962, %v3950
        %v4275 = vpack.c.b16 %v3963, %v3951
        %v4276 = vpack.c.b16 %v3976, %v3964
        %v4277 = vpack.c.b16 %v3977, %v3965
        %v4278 = vpack.c.b16 %v3978, %v3966
        %v4279 = vpack.c.b16 %v3979, %v3967
        %v4280 = vpack.c.b16 %v3980, %v3968
        %v4281 = vpack.c.b16 %v3981, %v3969
        %v4282 = vpack.c.b16 %v3982, %v3970
        %v4283 = vpack.c.b16 %v3983, %v3971
        %v4284 = vpack.c.b16 %v3984, %v3972
        %v4285 = vpack.c.b16 %v3985, %v3973
        %v4286 = vpack.c.b16 %v3986, %v3974
        %v4287 = vpack.c.b16 %v3987, %v3975
        %v4288 = vpack.c.b16 %v4000, %v3988
        %v4289 = vpack.c.b16 %v4001, %v3989
        %v4290 = vpack.c.b16 %v4002, %v3990
        %v4291 = vpack.c.b16 %v4003, %v3991
        %v4292 = vpack.c.b16 %v4004, %v3992
        %v4293 = vpack.c.b16 %v4005, %v3993
        %v4294 = vpack.c.b16 %v4006, %v3994
        %v4295 = vpack.c.b16 %v4007, %v3995
        %v4296 = vpack.c.b16 %v4008, %v3996
        %v4297 = vpack.c.b16 %v4009, %v3997
        %v4298 = vpack.c.b16 %v4010, %v3998
        %v4299 = vpack.c.b16 %v4011, %v3999
        %v4300 = vpack.c.b16 %v4024, %v4012
        %v4301 = vpack.c.b16 %v4025, %v4013
        %v4302 = vpack.c.b16 %v4026, %v4014
        %v4303 = vpack.c.b16 %v4027, %v4015
        %v4304 = vpack.c.b16 %v4028, %v4016
        %v4305 = vpack.c.b16 %v4029, %v4017
        %v4306 = vpack.c.b16 %v4030, %v4018
        %v4307 = vpack.c.b16 %v4031, %v4019
        %v4308 = vpack.c.b16 %v4032, %v4020
        %v4309 = vpack.c.b16 %v4033, %v4021
        %v4310 = vpack.c.b16 %v4034, %v4022
        %v4311 = vpack.c.b16 %v4035, %v4023
        %v4312 = vpack.c.b16 %v4048, %v4036
        %v4313 = vpack.c.b16 %v4049, %v4037
        %v4314 = vpack.c.b16 %v4050, %v4038
        %v4315 = vpack.c.b16 %v4051, %v4039
        %v4316 = vpack.c.b16 %v4052, %v4040
        %v4317 = vpack.c.b16 %v4053, %v4041
        %v4318 = vpack.c.b16 %v4054, %v4042
        %v4319 = vpack.c.b16 %v4055, %v4043
        %v4320 = vpack.c.b16 %v4056, %v4044
        %v4321 = vpack.c.b16 %v4057, %v4045
        %v4322 = vpack.c.b16 %v4058, %v4046
        %v4323 = vpack.c.b16 %v4059, %v4047
        %v4324 = vpack.c.b16 %v4072, %v4060
        %v4325 = vpack.c.b16 %v4073, %v4061
        %v4326 = vpack.c.b16 %v4074, %v4062
        %v4327 = vpack.c.b16 %v4075, %v4063
        %v4328 = vpack.c.b16 %v4076, %v4064
        %v4329 = vpack.c.b16 %v4077, %v4065
        %v4330 = vpack.c.b16 %v4078, %v4066
        %v4331 = vpack.c.b16 %v4079, %v4067
        %v4332 = vpack.c.b16 %v4080, %v4068
        %v4333 = vpack.c.b16 %v4081, %v4069
        %v4334 = vpack.c.b16 %v4082, %v4070
        %v4335 = vpack.c.b16 %v4083, %v4071
        %v4336 = vpack.c.b16 %v4096, %v4084
        %v4337 = vpack.c.b16 %v4097, %v4085
        %v4338 = vpack.c.b16 %v4098, %v4086
        %v4339 = vpack.c.b16 %v4099, %v4087
        %v4340 = vpack.c.b16 %v4100, %v4088
        %v4341 = vpack.c.b16 %v4101, %v4089
        %v4342 = vpack.c.b16 %v4102, %v4090
        %v4343 = vpack.c.b16 %v4103, %v4091
        %v4344 = vpack.c.b16 %v4104, %v4092
        %v4345 = vpack.c.b16 %v4105, %v4093
        %v4346 = vpack.c.b16 %v4106, %v4094
        %v4347 = vpack.c.b16 %v4107, %v4095
        %v4348 = vpack.c.b16 %v4120, %v4108
        %v4349 = vpack.c.b16 %v4121, %v4109
        %v4350 = vpack.c.b16 %v4122, %v4110
        %v4351 = vpack.c.b16 %v4123, %v4111
        %v4352 = vpack.c.b16 %v4124, %v4112
        %v4353 = vpack.c.b16 %v4125, %v4113
        %v4354 = vpack.c.b16 %v4126, %v4114
        %v4355 = vpack.c.b16 %v4127, %v4115
        %v4356 = vpack.c.b16 %v4128, %v4116
        %v4357 = vpack.c.b16 %v4129, %v4117
        %v4358 = vpack.c.b16 %v4130, %v4118
        %v4359 = vpack.c.b16 %v4131, %v4119
        %v4360 = vpack.c.b16 %v4144, %v4132
        %v4361 = vpack.c.b16 %v4145, %v4133
        %v4362 = vpack.c.b16 %v4146, %v4134
        %v4363 = vpack.c.b16 %v4147, %v4135
        %v4364 = vpack.c.b16 %v4148, %v4136
        %v4365 = vpack.c.b16 %v4149, %v4137
        %v4366 = vpack.c.b16 %v4150, %v4138
        %v4367 = vpack.c.b16 %v4151, %v4139
        %v4368 = vpack.c.b16 %v4152, %v4140
        %v4369 = vpack.c.b16 %v4153, %v4141
        %v4370 = vpack.c.b16 %v4154, %v4142
        %v4371 = vpack.c.b16 %v4155, %v4143
        %v4372 = vpack.c.b16 %v4168, %v4156
        %v4373 = vpack.c.b16 %v4169, %v4157
        %v4374 = vpack.c.b16 %v4170, %v4158
        %v4375 = vpack.c.b16 %v4171, %v4159
        %v4376 = vpack.c.b16 %v4172, %v4160
        %v4377 = vpack.c.b16 %v4173, %v4161
        %v4378 = vpack.c.b16 %v4174, %v4162
        %v4379 = vpack.c.b16 %v4175, %v4163
        %v4380 = vpack.c.b16 %v4176, %v4164
        %v4381 = vpack.c.b16 %v4177, %v4165
        %v4382 = vpack.c.b16 %v4178, %v4166
        %v4383 = vpack.c.b16 %v4179, %v4167
        %v4384 = vpack.c.b16 %v4192, %v4180
        %v4385 = vpack.c.b16 %v4193, %v4181
        %v4386 = vpack.c.b16 %v4194, %v4182
        %v4387 = vpack.c.b16 %v4195, %v4183
        %v4388 = vpack.c.b16 %v4196, %v4184
        %v4389 = vpack.c.b16 %v4197, %v4185
        %v4390 = vpack.c.b16 %v4198, %v4186
        %v4391 = vpack.c.b16 %v4199, %v4187
        %v4392 = vpack.c.b16 %v4200, %v4188
        %v4393 = vpack.c.b16 %v4201, %v4189
        %v4394 = vpack.c.b16 %v4202, %v4190
        %v4395 = vpack.c.b16 %v4203, %v4191
        %v4780 = vunpack.c.l.b16 %v548
        %v4781 = vunpack.c.l.b16 %v549
        %v4782 = vunpack.c.l.b16 %v550
        %v4783 = vunpack.c.l.b16 %v551
        %v4784 = vunpack.c.l.b16 %v552
        %v4785 = vunpack.c.l.b16 %v553
        %v4786 = vunpack.c.l.b16 %v554
        %v4787 = vunpack.c.l.b16 %v555
        %v4788 = vunpack.c.l.b16 %v556
        %v4789 = vunpack.c.l.b16 %v557
        %v4790 = vunpack.c.l.b16 %v558
        %v4791 = vunpack.c.l.b16 %v559
        %v4792 = vunpack.c.l.b16 %v560
        %v4793 = vunpack.c.l.b16 %v561
        %v4794 = vunpack.c.l.b16 %v562
        %v4795 = vunpack.c.l.b16 %v563
        %v4796 = vunpack.c.l.b16 %v564
        %v4797 = vunpack.c.l.b16 %v565
        %v4798 = vunpack.c.l.b16 %v566
        %v4799 = vunpack.c.l.b16 %v567
        %v4800 = vunpack.c.l.b16 %v568
        %v4801 = vunpack.c.l.b16 %v569
        %v4802 = vunpack.c.l.b16 %v570
        %v4803 = vunpack.c.l.b16 %v571
        %v4804 = vunpack.c.l.b16 %v572
        %v4805 = vunpack.c.l.b16 %v573
        %v4806 = vunpack.c.l.b16 %v574
        %v4807 = vunpack.c.l.b16 %v575
        %v4808 = vunpack.c.l.b16 %v576
        %v4809 = vunpack.c.l.b16 %v577
        %v4810 = vunpack.c.l.b16 %v578
        %v4811 = vunpack.c.l.b16 %v579
        %v4812 = vunpack.c.l.b16 %v580
        %v4813 = vunpack.c.l.b16 %v581
        %v4814 = vunpack.c.l.b16 %v582
        %v4815 = vunpack.c.l.b16 %v583
        %v4816 = vunpack.c.l.b16 %v584
        %v4817 = vunpack.c.l.b16 %v585
        %v4818 = vunpack.c.l.b16 %v586
        %v4819 = vunpack.c.l.b16 %v587
        %v4820 = vunpack.c.l.b16 %v588
        %v4821 = vunpack.c.l.b16 %v589
        %v4822 = vunpack.c.l.b16 %v590
        %v4823 = vunpack.c.l.b16 %v591
        %v4824 = vunpack.c.l.b16 %v592
        %v4825 = vunpack.c.l.b16 %v593
        %v4826 = vunpack.c.l.b16 %v594
        %v4827 = vunpack.c.l.b16 %v595
        %v4828 = vunpack.c.l.b16 %v596
        %v4829 = vunpack.c.l.b16 %v597
        %v4830 = vunpack.c.l.b16 %v598
        %v4831 = vunpack.c.l.b16 %v599
        %v4832 = vunpack.c.l.b16 %v600
        %v4833 = vunpack.c.l.b16 %v601
        %v4834 = vunpack.c.l.b16 %v602
        %v4835 = vunpack.c.l.b16 %v603
        %v4836 = vunpack.c.l.b16 %v604
        %v4837 = vunpack.c.l.b16 %v605
        %v4838 = vunpack.c.l.b16 %v606
        %v4839 = vunpack.c.l.b16 %v607
        %v4840 = vunpack.c.l.b16 %v608
        %v4841 = vunpack.c.l.b16 %v609
        %v4842 = vunpack.c.l.b16 %v610
        %v4843 = vunpack.c.l.b16 %v611
        %v4844 = vunpack.c.l.b16 %v612
        %v4845 = vunpack.c.l.b16 %v613
        %v4846 = vunpack.c.l.b16 %v614
        %v4847 = vunpack.c.l.b16 %v615
        %v4848 = vunpack.c.l.b16 %v616
        %v4849 = vunpack.c.l.b16 %v617
        %v4850 = vunpack.c.l.b16 %v618
        %v4851 = vunpack.c.l.b16 %v619
        %v4852 = vunpack.c.l.b16 %v620
        %v4853 = vunpack.c.l.b16 %v621
        %v4854 = vunpack.c.l.b16 %v622
        %v4855 = vunpack.c.l.b16 %v623
        %v4856 = vunpack.c.l.b16 %v624
        %v4857 = vunpack.c.l.b16 %v625
        %v4858 = vunpack.c.l.b16 %v626
        %v4859 = vunpack.c.l.b16 %v627
        %v4860 = vunpack.c.l.b16 %v628
        %v4861 = vunpack.c.l.b16 %v629
        %v4862 = vunpack.c.l.b16 %v630
        %v4863 = vunpack.c.l.b16 %v631
        %v4864 = vunpack.c.l.b16 %v632
        %v4865 = vunpack.c.l.b16 %v633
        %v4866 = vunpack.c.l.b16 %v634
        %v4867 = vunpack.c.l.b16 %v635
        %v4868 = vunpack.c.l.b16 %v636
        %v4869 = vunpack.c.l.b16 %v637
        %v4870 = vunpack.c.l.b16 %v638
        %v4871 = vunpack.c.l.b16 %v639
        %v4872 = vunpack.c.l.b16 %v640
        %v4873 = vunpack.c.l.b16 %v641
        %v4874 = vunpack.c.l.b16 %v642
        %v4875 = vunpack.c.l.b16 %v643
        %v4876 = vunpack.c.l.b16 %v644
        %v4877 = vunpack.c.l.b16 %v645
        %v4878 = vunpack.c.l.b16 %v646
        %v4879 = vunpack.c.l.b16 %v647
        %v4880 = vunpack.c.l.b16 %v648
        %v4881 = vunpack.c.l.b16 %v649
        %v4882 = vunpack.c.l.b16 %v650
        %v4883 = vunpack.c.l.b16 %v651
        %v4884 = vunpack.c.l.b16 %v652
        %v4885 = vunpack.c.l.b16 %v653
        %v4886 = vunpack.c.l.b16 %v654
        %v4887 = vunpack.c.l.b16 %v655
        %v4888 = vunpack.c.l.b16 %v656
        %v4889 = vunpack.c.l.b16 %v657
        %v4890 = vunpack.c.l.b16 %v658
        %v4891 = vunpack.c.l.b16 %v659
        %v4892 = vunpack.c.l.b16 %v660
        %v4893 = vunpack.c.l.b16 %v661
        %v4894 = vunpack.c.l.b16 %v662
        %v4895 = vunpack.c.l.b16 %v663
        %v4896 = vunpack.c.l.b16 %v664
        %v4897 = vunpack.c.l.b16 %v665
        %v4898 = vunpack.c.l.b16 %v666
        %v4899 = vunpack.c.l.b16 %v667
        %v4900 = vunpack.c.l.b16 %v668
        %v4901 = vunpack.c.l.b16 %v669
        %v4902 = vunpack.c.l.b16 %v670
        %v4903 = vunpack.c.l.b16 %v671
        %v4904 = vunpack.c.l.b16 %v672
        %v4905 = vunpack.c.l.b16 %v673
        %v4906 = vunpack.c.l.b16 %v674
        %v4907 = vunpack.c.l.b16 %v675
        %v4908 = vunpack.c.l.b16 %v676
        %v4909 = vunpack.c.l.b16 %v677
        %v4910 = vunpack.c.l.b16 %v678
        %v4911 = vunpack.c.l.b16 %v679
        %v4912 = vunpack.c.l.b16 %v680
        %v4913 = vunpack.c.l.b16 %v681
        %v4914 = vunpack.c.l.b16 %v682
        %v4915 = vunpack.c.l.b16 %v683
        %v4916 = vunpack.c.l.b16 %v684
        %v4917 = vunpack.c.l.b16 %v685
        %v4918 = vunpack.c.l.b16 %v686
        %v4919 = vunpack.c.l.b16 %v687
        %v4920 = vunpack.c.l.b16 %v688
        %v4921 = vunpack.c.l.b16 %v689
        %v4922 = vunpack.c.l.b16 %v690
        %v4923 = vunpack.c.l.b16 %v691
        %v4924 = vunpack.c.l.b16 %v692
        %v4925 = vunpack.c.l.b16 %v693
        %v4926 = vunpack.c.l.b16 %v694
        %v4927 = vunpack.c.l.b16 %v695
        %v4928 = vunpack.c.l.b16 %v696
        %v4929 = vunpack.c.l.b16 %v697
        %v4930 = vunpack.c.l.b16 %v698
        %v4931 = vunpack.c.l.b16 %v699
        %v4932 = vunpack.c.l.b16 %v700
        %v4933 = vunpack.c.l.b16 %v701
        %v4934 = vunpack.c.l.b16 %v702
        %v4935 = vunpack.c.l.b16 %v703
        %v4936 = vunpack.c.l.b16 %v704
        %v4937 = vunpack.c.l.b16 %v705
        %v4938 = vunpack.c.l.b16 %v706
        %v4939 = vunpack.c.l.b16 %v707
        %v4940 = vunpack.c.l.b16 %v708
        %v4941 = vunpack.c.l.b16 %v709
        %v4942 = vunpack.c.l.b16 %v710
        %v4943 = vunpack.c.l.b16 %v711
        %v4944 = vunpack.c.l.b16 %v712
        %v4945 = vunpack.c.l.b16 %v713
        %v4946 = vunpack.c.l.b16 %v714
        %v4947 = vunpack.c.l.b16 %v715
        %v4948 = vunpack.c.l.b16 %v716
        %v4949 = vunpack.c.l.b16 %v717
        %v4950 = vunpack.c.l.b16 %v718
        %v4951 = vunpack.c.l.b16 %v719
        %v4952 = vunpack.c.l.b16 %v720
        %v4953 = vunpack.c.l.b16 %v721
        %v4954 = vunpack.c.l.b16 %v722
        %v4955 = vunpack.c.l.b16 %v723
        %v4956 = vunpack.c.l.b16 %v724
        %v4957 = vunpack.c.l.b16 %v725
        %v4958 = vunpack.c.l.b16 %v726
        %v4959 = vunpack.c.l.b16 %v727
        %v4960 = vunpack.c.l.b16 %v728
        %v4961 = vunpack.c.l.b16 %v729
        %v4962 = vunpack.c.l.b16 %v730
        %v4963 = vunpack.c.l.b16 %v731
        %v4964 = vunpack.c.l.b16 %v732
        %v4965 = vunpack.c.l.b16 %v733
        %v4966 = vunpack.c.l.b16 %v734
        %v4967 = vunpack.c.l.b16 %v735
        %v4968 = vunpack.c.l.b16 %v736
        %v4969 = vunpack.c.l.b16 %v737
        %v4970 = vunpack.c.l.b16 %v738
        %v4971 = vunpack.c.l.b16 %v739
        %v4972 = vpack.c.b16 %v4781, %v4780
        %v4973 = vpack.c.b16 %v4783, %v4782
        %v4974 = vpack.c.b16 %v4785, %v4784
        %v4975 = vpack.c.b16 %v4787, %v4786
        %v4976 = vpack.c.b16 %v4789, %v4788
        %v4977 = vpack.c.b16 %v4791, %v4790
        %v4978 = vpack.c.b16 %v4793, %v4792
        %v4979 = vpack.c.b16 %v4795, %v4794
        %v4980 = vpack.c.b16 %v4797, %v4796
        %v4981 = vpack.c.b16 %v4799, %v4798
        %v4982 = vpack.c.b16 %v4801, %v4800
        %v4983 = vpack.c.b16 %v4803, %v4802
        %v4984 = vpack.c.b16 %v4805, %v4804
        %v4985 = vpack.c.b16 %v4807, %v4806
        %v4986 = vpack.c.b16 %v4809, %v4808
        %v4987 = vpack.c.b16 %v4811, %v4810
        %v4988 = vpack.c.b16 %v4813, %v4812
        %v4989 = vpack.c.b16 %v4815, %v4814
        %v4990 = vpack.c.b16 %v4817, %v4816
        %v4991 = vpack.c.b16 %v4819, %v4818
        %v4992 = vpack.c.b16 %v4821, %v4820
        %v4993 = vpack.c.b16 %v4823, %v4822
        %v4994 = vpack.c.b16 %v4825, %v4824
        %v4995 = vpack.c.b16 %v4827, %v4826
        %v4996 = vpack.c.b16 %v4829, %v4828
        %v4997 = vpack.c.b16 %v4831, %v4830
        %v4998 = vpack.c.b16 %v4833, %v4832
        %v4999 = vpack.c.b16 %v4835, %v4834
        %v5000 = vpack.c.b16 %v4837, %v4836
        %v5001 = vpack.c.b16 %v4839, %v4838
        %v5002 = vpack.c.b16 %v4841, %v4840
        %v5003 = vpack.c.b16 %v4843, %v4842
        %v5004 = vpack.c.b16 %v4845, %v4844
        %v5005 = vpack.c.b16 %v4847, %v4846
        %v5006 = vpack.c.b16 %v4849, %v4848
        %v5007 = vpack.c.b16 %v4851, %v4850
        %v5008 = vpack.c.b16 %v4853, %v4852
        %v5009 = vpack.c.b16 %v4855, %v4854
        %v5010 = vpack.c.b16 %v4857, %v4856
        %v5011 = vpack.c.b16 %v4859, %v4858
        %v5012 = vpack.c.b16 %v4861, %v4860
        %v5013 = vpack.c.b16 %v4863, %v4862
        %v5014 = vpack.c.b16 %v4865, %v4864
        %v5015 = vpack.c.b16 %v4867, %v4866
        %v5016 = vpack.c.b16 %v4869, %v4868
        %v5017 = vpack.c.b16 %v4871, %v4870
        %v5018 = vpack.c.b16 %v4873, %v4872
        %v5019 = vpack.c.b16 %v4875, %v4874
        %v5020 = vpack.c.b16 %v4877, %v4876
        %v5021 = vpack.c.b16 %v4879, %v4878
        %v5022 = vpack.c.b16 %v4881, %v4880
        %v5023 = vpack.c.b16 %v4883, %v4882
        %v5024 = vpack.c.b16 %v4885, %v4884
        %v5025 = vpack.c.b16 %v4887, %v4886
        %v5026 = vpack.c.b16 %v4889, %v4888
        %v5027 = vpack.c.b16 %v4891, %v4890
        %v5028 = vpack.c.b16 %v4893, %v4892
        %v5029 = vpack.c.b16 %v4895, %v4894
        %v5030 = vpack.c.b16 %v4897, %v4896
        %v5031 = vpack.c.b16 %v4899, %v4898
        %v5032 = vpack.c.b16 %v4901, %v4900
        %v5033 = vpack.c.b16 %v4903, %v4902
        %v5034 = vpack.c.b16 %v4905, %v4904
        %v5035 = vpack.c.b16 %v4907, %v4906
        %v5036 = vpack.c.b16 %v4909, %v4908
        %v5037 = vpack.c.b16 %v4911, %v4910
        %v5038 = vpack.c.b16 %v4913, %v4912
        %v5039 = vpack.c.b16 %v4915, %v4914
        %v5040 = vpack.c.b16 %v4917, %v4916
        %v5041 = vpack.c.b16 %v4919, %v4918
        %v5042 = vpack.c.b16 %v4921, %v4920
        %v5043 = vpack.c.b16 %v4923, %v4922
        %v5044 = vpack.c.b16 %v4925, %v4924
        %v5045 = vpack.c.b16 %v4927, %v4926
        %v5046 = vpack.c.b16 %v4929, %v4928
        %v5047 = vpack.c.b16 %v4931, %v4930
        %v5048 = vpack.c.b16 %v4933, %v4932
        %v5049 = vpack.c.b16 %v4935, %v4934
        %v5050 = vpack.c.b16 %v4937, %v4936
        %v5051 = vpack.c.b16 %v4939, %v4938
        %v5052 = vpack.c.b16 %v4941, %v4940
        %v5053 = vpack.c.b16 %v4943, %v4942
        %v5054 = vpack.c.b16 %v4945, %v4944
        %v5055 = vpack.c.b16 %v4947, %v4946
        %v5056 = vpack.c.b16 %v4949, %v4948
        %v5057 = vpack.c.b16 %v4951, %v4950
        %v5058 = vpack.c.b16 %v4953, %v4952
        %v5059 = vpack.c.b16 %v4955, %v4954
        %v5060 = vpack.c.b16 %v4957, %v4956
        %v5061 = vpack.c.b16 %v4959, %v4958
        %v5062 = vpack.c.b16 %v4961, %v4960
        %v5063 = vpack.c.b16 %v4963, %v4962
        %v5064 = vpack.c.b16 %v4965, %v4964
        %v5065 = vpack.c.b16 %v4967, %v4966
        %v5066 = vpack.c.b16 %v4969, %v4968
        %v5067 = vpack.c.b16 %v4971, %v4970
        %5164 = vmatprep.subr.bf16.mxu0 0
        %5165 = vmatpush1.bf16.msra.mxu0 %v4972
        %5166 = vmatprep.subr.bf16.mxu0 0
        %5167 = vmatpush1.bf16.msra.mxu0 %v4973
        %5168 = vmatprep.subr.bf16.mxu0 0
        %5169 = vmatpush1.bf16.msra.mxu0 %v4974
        %5170 = vmatprep.subr.bf16.mxu0 0
        %5171 = vmatpush1.bf16.msra.mxu0 %v4975
        %5172 = vmatprep.subr.bf16.mxu0 0
        %5173 = vmatpush1.bf16.msra.mxu0 %v4976
        %5174 = vmatprep.subr.bf16.mxu0 0
        %5175 = vmatpush1.bf16.msra.mxu0 %v4977
        %5176 = vmatprep.subr.bf16.mxu0 0
        %5177 = vmatpush1.bf16.msra.mxu0 %v4978
        %5178 = vmatprep.subr.bf16.mxu0 0
        %5179 = vmatpush1.bf16.msra.mxu0 %v4979
        %5180 = vmatprep.subr.bf16.mxu0 0
        %5181 = vmatpush1.bf16.msra.mxu0 %v4980
        %5182 = vmatprep.subr.bf16.mxu0 0
        %5183 = vmatpush1.bf16.msra.mxu0 %v4981
        %5184 = vmatprep.subr.bf16.mxu0 0
        %5185 = vmatpush1.bf16.msra.mxu0 %v4982
        %5186 = vmatprep.subr.bf16.mxu0 0
        %5187 = vmatpush1.bf16.msra.mxu0 %v4983
        %5188 = vmatprep.subr.bf16.mxu0 0
        %5189 = vmatpush1.bf16.msra.mxu0 %v4984
        %5190 = vmatprep.subr.bf16.mxu0 0
        %5191 = vmatpush1.bf16.msra.mxu0 %v4985
        %5192 = vmatprep.subr.bf16.mxu0 0
        %5193 = vmatpush1.bf16.msra.mxu0 %v4986
        %5194 = vmatprep.subr.bf16.mxu0 0
        %5195 = vmatpush1.bf16.msra.mxu0 %v4987
        %5196 = vmatprep.mubr.bf16.mxu0 %v4205
        %5197 = vmatmul.mubr.bf16.gmra.mrb[0].mxu0 %v4204
        %v5198 = vpop.f32.mrb[0].mxu0
        %v5199 = vadd.f32 %v3502, %v5198
        %v5200 = vpop.f32.mrb[0].mxu0
        %v5201 = vpop.f32.mrb[0].mxu0
        %v5202 = vadd.f32 %v3505, %v5201
        %v5203 = vpop.f32.mrb[0].mxu0
        %5204 = vmatprep.mubr.bf16.mxu0 %v4217
        %5205 = vmatmul.mubr.bf16.gmra.mrb[0].mxu0 %v4216
        %v5206 = vpop.f32.mrb[0].mxu0
        %v5207 = vadd.f32 %v3510, %v5206
        %v5208 = vpop.f32.mrb[0].mxu0
        %v5209 = vpop.f32.mrb[0].mxu0
        %v5210 = vadd.f32 %v3513, %v5209
        %v5211 = vpop.f32.mrb[0].mxu0
        %5212 = vmatprep.mubr.bf16.mxu0 %v4229
        %5213 = vmatmul.mubr.bf16.gmra.mrb[0].mxu0 %v4228
        %v5214 = vpop.f32.mrb[0].mxu0
        %v5215 = vadd.f32 %v3518, %v5214
        %v5216 = vpop.f32.mrb[0].mxu0
        %v5217 = vpop.f32.mrb[0].mxu0
        %v5218 = vadd.f32 %v3521, %v5217
        %v5219 = vpop.f32.mrb[0].mxu0
        %5220 = vmatprep.mubr.bf16.mxu0 %v4241
        %5221 = vmatmul.mubr.bf16.gmra.mrb[0].mxu0 %v4240
        %v5222 = vpop.f32.mrb[0].mxu0
        %v5223 = vadd.f32 %v3526, %v5222
        %v5224 = vpop.f32.mrb[0].mxu0
        %v5225 = vpop.f32.mrb[0].mxu0
        %v5226 = vadd.f32 %v3529, %v5225
        %v5227 = vpop.f32.mrb[0].mxu0
        %5228 = vmatprep.mubr.bf16.mxu0 %v4253
        %5229 = vmatmul.mubr.bf16.gmra.mrb[0].mxu0 %v4252
        %v5230 = vpop.f32.mrb[0].mxu0
        %v5231 = vadd.f32 %v3534, %v5230
        %v5232 = vpop.f32.mrb[0].mxu0
        %v5233 = vpop.f32.mrb[0].mxu0
        %v5234 = vadd.f32 %v3537, %v5233
        %v5235 = vpop.f32.mrb[0].mxu0
        %5236 = vmatprep.mubr.bf16.mxu0 %v4265
        %5237 = vmatmul.mubr.bf16.gmra.mrb[0].mxu0 %v4264
        %v5238 = vpop.f32.mrb[0].mxu0
        %v5239 = vadd.f32 %v3542, %v5238
        %v5240 = vpop.f32.mrb[0].mxu0
        %v5241 = vpop.f32.mrb[0].mxu0
        %v5242 = vadd.f32 %v3545, %v5241
        %v5243 = vpop.f32.mrb[0].mxu0
        %5244 = vmatprep.mubr.bf16.mxu0 %v4277
        %5245 = vmatmul.mubr.bf16.gmra.mrb[0].mxu0 %v4276
        %v5246 = vpop.f32.mrb[0].mxu0
        %v5247 = vadd.f32 %v3550, %v5246
        %v5248 = vpop.f32.mrb[0].mxu0
        %v5249 = vpop.f32.mrb[0].mxu0
        %v5250 = vadd.f32 %v3553, %v5249
        %v5251 = vpop.f32.mrb[0].mxu0
        %5252 = vmatprep.mubr.bf16.mxu0 %v4289
        %5253 = vmatmul.mubr.bf16.gmra.mrb[0].mxu0 %v4288
        %v5254 = vpop.f32.mrb[0].mxu0
        %v5255 = vadd.f32 %v3558, %v5254
        %v5256 = vpop.f32.mrb[0].mxu0
        %v5257 = vpop.f32.mrb[0].mxu0
        %v5258 = vadd.f32 %v3561, %v5257
        %v5259 = vpop.f32.mrb[0].mxu0
        %5260 = vmatprep.mubr.bf16.mxu0 %v4301
        %5261 = vmatmul.mubr.bf16.gmra.mrb[0].mxu0 %v4300
        %v5262 = vpop.f32.mrb[0].mxu0
        %v5263 = vadd.f32 %v3566, %v5262
        %v5264 = vpop.f32.mrb[0].mxu0
        %v5265 = vpop.f32.mrb[0].mxu0
        %v5266 = vadd.f32 %v3569, %v5265
        %v5267 = vpop.f32.mrb[0].mxu0
        %5268 = vmatprep.mubr.bf16.mxu0 %v4313
        %5269 = vmatmul.mubr.bf16.gmra.mrb[0].mxu0 %v4312
        %v5270 = vpop.f32.mrb[0].mxu0
        %v5271 = vadd.f32 %v3574, %v5270
        %v5272 = vpop.f32.mrb[0].mxu0
        %v5273 = vpop.f32.mrb[0].mxu0
        %v5274 = vadd.f32 %v3577, %v5273
        %v5275 = vpop.f32.mrb[0].mxu0
        %5276 = vmatprep.mubr.bf16.mxu0 %v4325
        %5277 = vmatmul.mubr.bf16.gmra.mrb[0].mxu0 %v4324
        %v5278 = vpop.f32.mrb[0].mxu0
        %v5279 = vadd.f32 %v3582, %v5278
        %v5280 = vpop.f32.mrb[0].mxu0
        %v5281 = vpop.f32.mrb[0].mxu0
        %v5282 = vadd.f32 %v3585, %v5281
        %v5283 = vpop.f32.mrb[0].mxu0
        %5284 = vmatprep.mubr.bf16.mxu0 %v4337
        %5285 = vmatmul.mubr.bf16.gmra.mrb[0].mxu0 %v4336
        %v5286 = vpop.f32.mrb[0].mxu0
        %v5287 = vadd.f32 %v3590, %v5286
        %v5288 = vpop.f32.mrb[0].mxu0
        %v5289 = vpop.f32.mrb[0].mxu0
        %v5290 = vadd.f32 %v3593, %v5289
        %v5291 = vpop.f32.mrb[0].mxu0
        %5292 = vmatprep.mubr.bf16.mxu0 %v4349
        %5293 = vmatmul.mubr.bf16.gmra.mrb[0].mxu0 %v4348
        %v5294 = vpop.f32.mrb[0].mxu0
        %v5295 = vadd.f32 %v3598, %v5294
        %v5296 = vpop.f32.mrb[0].mxu0
        %v5297 = vpop.f32.mrb[0].mxu0
        %v5298 = vadd.f32 %v3601, %v5297
        %v5299 = vpop.f32.mrb[0].mxu0
        %5300 = vmatprep.mubr.bf16.mxu0 %v4361
        %5301 = vmatmul.mubr.bf16.gmra.mrb[0].mxu0 %v4360
        %v5302 = vpop.f32.mrb[0].mxu0
        %v5303 = vadd.f32 %v3606, %v5302
        %v5304 = vpop.f32.mrb[0].mxu0
        %v5305 = vpop.f32.mrb[0].mxu0
        %v5306 = vadd.f32 %v3609, %v5305
        %v5307 = vpop.f32.mrb[0].mxu0
        %5308 = vmatprep.mubr.bf16.mxu0 %v4373
        %5309 = vmatmul.mubr.bf16.gmra.mrb[0].mxu0 %v4372
        %v5310 = vpop.f32.mrb[0].mxu0
        %v5311 = vadd.f32 %v3614, %v5310
        %v5312 = vpop.f32.mrb[0].mxu0
        %v5313 = vpop.f32.mrb[0].mxu0
        %v5314 = vadd.f32 %v3617, %v5313
        %v5315 = vpop.f32.mrb[0].mxu0
        %5316 = vmatprep.mubr.bf16.mxu0 %v4385
        %5317 = vmatmul.mubr.bf16.gmra.mrb[0].mxu0 %v4384
        %v5318 = vpop.f32.mrb[0].mxu0
        %v5319 = vadd.f32 %v3622, %v5318
        %v5320 = vpop.f32.mrb[0].mxu0
        %v5321 = vpop.f32.mrb[0].mxu0
        %v5322 = vadd.f32 %v3625, %v5321
        %v5323 = vpop.f32.mrb[0].mxu0
        %5324 = vdwg.mxu0
        %5325 = vmatprep.subr.bf16.mxu0 0
        %5326 = vmatpush1.bf16.msra.mxu0 %v4988
        %5327 = vmatprep.subr.bf16.mxu0 0
        %5328 = vmatpush1.bf16.msra.mxu0 %v4989
        %5329 = vmatprep.subr.bf16.mxu0 0
        %5330 = vmatpush1.bf16.msra.mxu0 %v4990
        %5331 = vmatprep.subr.bf16.mxu0 0
        %5332 = vmatpush1.bf16.msra.mxu0 %v4991
        %5333 = vmatprep.subr.bf16.mxu0 0
        %5334 = vmatpush1.bf16.msra.mxu0 %v4992
        %5335 = vmatprep.subr.bf16.mxu0 0
        %5336 = vmatpush1.bf16.msra.mxu0 %v4993
        %5337 = vmatprep.subr.bf16.mxu0 0
        %5338 = vmatpush1.bf16.msra.mxu0 %v4994
        %5339 = vmatprep.subr.bf16.mxu0 0
        %5340 = vmatpush1.bf16.msra.mxu0 %v4995
        %5341 = vmatprep.subr.bf16.mxu0 0
        %5342 = vmatpush1.bf16.msra.mxu0 %v4996
        %5343 = vmatprep.subr.bf16.mxu0 0
        %5344 = vmatpush1.bf16.msra.mxu0 %v4997
        %5345 = vmatprep.subr.bf16.mxu0 0
        %5346 = vmatpush1.bf16.msra.mxu0 %v4998
        %5347 = vmatprep.subr.bf16.mxu0 0
        %5348 = vmatpush1.bf16.msra.mxu0 %v4999
        %5349 = vmatprep.subr.bf16.mxu0 0
        %5350 = vmatpush1.bf16.msra.mxu0 %v5000
        %5351 = vmatprep.subr.bf16.mxu0 0
        %5352 = vmatpush1.bf16.msra.mxu0 %v5001
        %5353 = vmatprep.subr.bf16.mxu0 0
        %5354 = vmatpush1.bf16.msra.mxu0 %v5002
        %5355 = vmatprep.subr.bf16.mxu0 0
        %5356 = vmatpush1.bf16.msra.mxu0 %v5003
        %5357 = vmatprep.mubr.bf16.mxu0 %v4207
        %5358 = vmatmul.mubr.bf16.gmra.mrb[0].mxu0 %v4206
        %v5359 = vpop.f32.mrb[0].mxu0
        %v5360 = vadd.f32 %v5199, %v5359
        %v5361 = vpop.f32.mrb[0].mxu0
        %v5362 = vpop.f32.mrb[0].mxu0
        %v5363 = vadd.f32 %v5202, %v5362
        %v5364 = vpop.f32.mrb[0].mxu0
        %5365 = vmatprep.mubr.bf16.mxu0 %v4219
        %5366 = vmatmul.mubr.bf16.gmra.mrb[0].mxu0 %v4218
        %v5367 = vpop.f32.mrb[0].mxu0
        %v5368 = vadd.f32 %v5207, %v5367
        %v5369 = vpop.f32.mrb[0].mxu0
        %v5370 = vpop.f32.mrb[0].mxu0
        %v5371 = vadd.f32 %v5210, %v5370
        %v5372 = vpop.f32.mrb[0].mxu0
        %5373 = vmatprep.mubr.bf16.mxu0 %v4231
        %5374 = vmatmul.mubr.bf16.gmra.mrb[0].mxu0 %v4230
        %v5375 = vpop.f32.mrb[0].mxu0
        %v5376 = vadd.f32 %v5215, %v5375
        %v5377 = vpop.f32.mrb[0].mxu0
        %v5378 = vpop.f32.mrb[0].mxu0
        %v5379 = vadd.f32 %v5218, %v5378
        %v5380 = vpop.f32.mrb[0].mxu0
        %5381 = vmatprep.mubr.bf16.mxu0 %v4243
        %5382 = vmatmul.mubr.bf16.gmra.mrb[0].mxu0 %v4242
        %v5383 = vpop.f32.mrb[0].mxu0
        %v5384 = vadd.f32 %v5223, %v5383
        %v5385 = vpop.f32.mrb[0].mxu0
        %v5386 = vpop.f32.mrb[0].mxu0
        %v5387 = vadd.f32 %v5226, %v5386
        %v5388 = vpop.f32.mrb[0].mxu0
        %5389 = vmatprep.mubr.bf16.mxu0 %v4255
        %5390 = vmatmul.mubr.bf16.gmra.mrb[0].mxu0 %v4254
        %v5391 = vpop.f32.mrb[0].mxu0
        %v5392 = vadd.f32 %v5231, %v5391
        %v5393 = vpop.f32.mrb[0].mxu0
        %v5394 = vpop.f32.mrb[0].mxu0
        %v5395 = vadd.f32 %v5234, %v5394
        %v5396 = vpop.f32.mrb[0].mxu0
        %5397 = vmatprep.mubr.bf16.mxu0 %v4267
        %5398 = vmatmul.mubr.bf16.gmra.mrb[0].mxu0 %v4266
        %v5399 = vpop.f32.mrb[0].mxu0
        %v5400 = vadd.f32 %v5239, %v5399
        %v5401 = vpop.f32.mrb[0].mxu0
        %v5402 = vpop.f32.mrb[0].mxu0
        %v5403 = vadd.f32 %v5242, %v5402
        %v5404 = vpop.f32.mrb[0].mxu0
        %5405 = vmatprep.mubr.bf16.mxu0 %v4279
        %5406 = vmatmul.mubr.bf16.gmra.mrb[0].mxu0 %v4278
        %v5407 = vpop.f32.mrb[0].mxu0
        %v5408 = vadd.f32 %v5247, %v5407
        %v5409 = vpop.f32.mrb[0].mxu0
        %v5410 = vpop.f32.mrb[0].mxu0
        %v5411 = vadd.f32 %v5250, %v5410
        %v5412 = vpop.f32.mrb[0].mxu0
        %5413 = vmatprep.mubr.bf16.mxu0 %v4291
        %5414 = vmatmul.mubr.bf16.gmra.mrb[0].mxu0 %v4290
        %v5415 = vpop.f32.mrb[0].mxu0
        %v5416 = vadd.f32 %v5255, %v5415
        %v5417 = vpop.f32.mrb[0].mxu0
        %v5418 = vpop.f32.mrb[0].mxu0
        %v5419 = vadd.f32 %v5258, %v5418
        %v5420 = vpop.f32.mrb[0].mxu0
        %5421 = vmatprep.mubr.bf16.mxu0 %v4303
        %5422 = vmatmul.mubr.bf16.gmra.mrb[0].mxu0 %v4302
        %v5423 = vpop.f32.mrb[0].mxu0
        %v5424 = vadd.f32 %v5263, %v5423
        %v5425 = vpop.f32.mrb[0].mxu0
        %v5426 = vpop.f32.mrb[0].mxu0
        %v5427 = vadd.f32 %v5266, %v5426
        %v5428 = vpop.f32.mrb[0].mxu0
        %5429 = vmatprep.mubr.bf16.mxu0 %v4315
        %5430 = vmatmul.mubr.bf16.gmra.mrb[0].mxu0 %v4314
        %v5431 = vpop.f32.mrb[0].mxu0
        %v5432 = vadd.f32 %v5271, %v5431
        %v5433 = vpop.f32.mrb[0].mxu0
        %v5434 = vpop.f32.mrb[0].mxu0
        %v5435 = vadd.f32 %v5274, %v5434
        %v5436 = vpop.f32.mrb[0].mxu0
        %5437 = vmatprep.mubr.bf16.mxu0 %v4327
        %5438 = vmatmul.mubr.bf16.gmra.mrb[0].mxu0 %v4326
        %v5439 = vpop.f32.mrb[0].mxu0
        %v5440 = vadd.f32 %v5279, %v5439
        %v5441 = vpop.f32.mrb[0].mxu0
        %v5442 = vpop.f32.mrb[0].mxu0
        %v5443 = vadd.f32 %v5282, %v5442
        %v5444 = vpop.f32.mrb[0].mxu0
        %5445 = vmatprep.mubr.bf16.mxu0 %v4339
        %5446 = vmatmul.mubr.bf16.gmra.mrb[0].mxu0 %v4338
        %v5447 = vpop.f32.mrb[0].mxu0
        %v5448 = vadd.f32 %v5287, %v5447
        %v5449 = vpop.f32.mrb[0].mxu0
        %v5450 = vpop.f32.mrb[0].mxu0
        %v5451 = vadd.f32 %v5290, %v5450
        %v5452 = vpop.f32.mrb[0].mxu0
        %5453 = vmatprep.mubr.bf16.mxu0 %v4351
        %5454 = vmatmul.mubr.bf16.gmra.mrb[0].mxu0 %v4350
        %v5455 = vpop.f32.mrb[0].mxu0
        %v5456 = vadd.f32 %v5295, %v5455
        %v5457 = vpop.f32.mrb[0].mxu0
        %v5458 = vpop.f32.mrb[0].mxu0
        %v5459 = vadd.f32 %v5298, %v5458
        %v5460 = vpop.f32.mrb[0].mxu0
        %5461 = vmatprep.mubr.bf16.mxu0 %v4363
        %5462 = vmatmul.mubr.bf16.gmra.mrb[0].mxu0 %v4362
        %v5463 = vpop.f32.mrb[0].mxu0
        %v5464 = vadd.f32 %v5303, %v5463
        %v5465 = vpop.f32.mrb[0].mxu0
        %v5466 = vpop.f32.mrb[0].mxu0
        %v5467 = vadd.f32 %v5306, %v5466
        %v5468 = vpop.f32.mrb[0].mxu0
        %5469 = vmatprep.mubr.bf16.mxu0 %v4375
        %5470 = vmatmul.mubr.bf16.gmra.mrb[0].mxu0 %v4374
        %v5471 = vpop.f32.mrb[0].mxu0
        %v5472 = vadd.f32 %v5311, %v5471
        %v5473 = vpop.f32.mrb[0].mxu0
        %v5474 = vpop.f32.mrb[0].mxu0
        %v5475 = vadd.f32 %v5314, %v5474
        %v5476 = vpop.f32.mrb[0].mxu0
        %5477 = vmatprep.mubr.bf16.mxu0 %v4387
        %5478 = vmatmul.mubr.bf16.gmra.mrb[0].mxu0 %v4386
        %v5479 = vpop.f32.mrb[0].mxu0
        %v5480 = vadd.f32 %v5319, %v5479
        %v5481 = vpop.f32.mrb[0].mxu0
        %v5482 = vpop.f32.mrb[0].mxu0
        %v5483 = vadd.f32 %v5322, %v5482
        %v5484 = vpop.f32.mrb[0].mxu0
        %5485 = vdwg.mxu0
        %5486 = vmatprep.subr.bf16.mxu0 0
        %5487 = vmatpush1.bf16.msra.mxu0 %v5004
        %5488 = vmatprep.subr.bf16.mxu0 0
        %5489 = vmatpush1.bf16.msra.mxu0 %v5005
        %5490 = vmatprep.subr.bf16.mxu0 0
        %5491 = vmatpush1.bf16.msra.mxu0 %v5006
        %5492 = vmatprep.subr.bf16.mxu0 0
        %5493 = vmatpush1.bf16.msra.mxu0 %v5007
        %5494 = vmatprep.subr.bf16.mxu0 0
        %5495 = vmatpush1.bf16.msra.mxu0 %v5008
        %5496 = vmatprep.subr.bf16.mxu0 0
        %5497 = vmatpush1.bf16.msra.mxu0 %v5009
        %5498 = vmatprep.subr.bf16.mxu0 0
        %5499 = vmatpush1.bf16.msra.mxu0 %v5010
        %5500 = vmatprep.subr.bf16.mxu0 0
        %5501 = vmatpush1.bf16.msra.mxu0 %v5011
        %5502 = vmatprep.subr.bf16.mxu0 0
        %5503 = vmatpush1.bf16.msra.mxu0 %v5012
        %5504 = vmatprep.subr.bf16.mxu0 0
        %5505 = vmatpush1.bf16.msra.mxu0 %v5013
        %5506 = vmatprep.subr.bf16.mxu0 0
        %5507 = vmatpush1.bf16.msra.mxu0 %v5014
        %5508 = vmatprep.subr.bf16.mxu0 0
        %5509 = vmatpush1.bf16.msra.mxu0 %v5015
        %5510 = vmatprep.subr.bf16.mxu0 0
        %5511 = vmatpush1.bf16.msra.mxu0 %v5016
        %5512 = vmatprep.subr.bf16.mxu0 0
        %5513 = vmatpush1.bf16.msra.mxu0 %v5017
        %5514 = vmatprep.subr.bf16.mxu0 0
        %5515 = vmatpush1.bf16.msra.mxu0 %v5018
        %5516 = vmatprep.subr.bf16.mxu0 0
        %5517 = vmatpush1.bf16.msra.mxu0 %v5019
        %5518 = vmatprep.mubr.bf16.mxu0 %v4209
        %5519 = vmatmul.mubr.bf16.gmra.mrb[0].mxu0 %v4208
        %v5520 = vpop.f32.mrb[0].mxu0
        %v5521 = vadd.f32 %v5360, %v5520
        %v5522 = vpop.f32.mrb[0].mxu0
        %v5523 = vpop.f32.mrb[0].mxu0
        %v5524 = vadd.f32 %v5363, %v5523
        %v5525 = vpop.f32.mrb[0].mxu0
        %5526 = vmatprep.mubr.bf16.mxu0 %v4221
        %5527 = vmatmul.mubr.bf16.gmra.mrb[0].mxu0 %v4220
        %v5528 = vpop.f32.mrb[0].mxu0
        %v5529 = vadd.f32 %v5368, %v5528
        %v5530 = vpop.f32.mrb[0].mxu0
        %v5531 = vpop.f32.mrb[0].mxu0
        %v5532 = vadd.f32 %v5371, %v5531
        %v5533 = vpop.f32.mrb[0].mxu0
        %5534 = vmatprep.mubr.bf16.mxu0 %v4233
        %5535 = vmatmul.mubr.bf16.gmra.mrb[0].mxu0 %v4232
        %v5536 = vpop.f32.mrb[0].mxu0
        %v5537 = vadd.f32 %v5376, %v5536
        %v5538 = vpop.f32.mrb[0].mxu0
        %v5539 = vpop.f32.mrb[0].mxu0
        %v5540 = vadd.f32 %v5379, %v5539
        %v5541 = vpop.f32.mrb[0].mxu0
        %5542 = vmatprep.mubr.bf16.mxu0 %v4245
        %5543 = vmatmul.mubr.bf16.gmra.mrb[0].mxu0 %v4244
        %v5544 = vpop.f32.mrb[0].mxu0
        %v5545 = vadd.f32 %v5384, %v5544
        %v5546 = vpop.f32.mrb[0].mxu0
        %v5547 = vpop.f32.mrb[0].mxu0
        %v5548 = vadd.f32 %v5387, %v5547
        %v5549 = vpop.f32.mrb[0].mxu0
        %5550 = vmatprep.mubr.bf16.mxu0 %v4257
        %5551 = vmatmul.mubr.bf16.gmra.mrb[0].mxu0 %v4256
        %v5552 = vpop.f32.mrb[0].mxu0
        %v5553 = vadd.f32 %v5392, %v5552
        %v5554 = vpop.f32.mrb[0].mxu0
        %v5555 = vpop.f32.mrb[0].mxu0
        %v5556 = vadd.f32 %v5395, %v5555
        %v5557 = vpop.f32.mrb[0].mxu0
        %5558 = vmatprep.mubr.bf16.mxu0 %v4269
        %5559 = vmatmul.mubr.bf16.gmra.mrb[0].mxu0 %v4268
        %v5560 = vpop.f32.mrb[0].mxu0
        %v5561 = vadd.f32 %v5400, %v5560
        %v5562 = vpop.f32.mrb[0].mxu0
        %v5563 = vpop.f32.mrb[0].mxu0
        %v5564 = vadd.f32 %v5403, %v5563
        %v5565 = vpop.f32.mrb[0].mxu0
        %5566 = vmatprep.mubr.bf16.mxu0 %v4281
        %5567 = vmatmul.mubr.bf16.gmra.mrb[0].mxu0 %v4280
        %v5568 = vpop.f32.mrb[0].mxu0
        %v5569 = vadd.f32 %v5408, %v5568
        %v5570 = vpop.f32.mrb[0].mxu0
        %v5571 = vpop.f32.mrb[0].mxu0
        %v5572 = vadd.f32 %v5411, %v5571
        %v5573 = vpop.f32.mrb[0].mxu0
        %5574 = vmatprep.mubr.bf16.mxu0 %v4293
        %5575 = vmatmul.mubr.bf16.gmra.mrb[0].mxu0 %v4292
        %v5576 = vpop.f32.mrb[0].mxu0
        %v5577 = vadd.f32 %v5416, %v5576
        %v5578 = vpop.f32.mrb[0].mxu0
        %v5579 = vpop.f32.mrb[0].mxu0
        %v5580 = vadd.f32 %v5419, %v5579
        %v5581 = vpop.f32.mrb[0].mxu0
        %5582 = vmatprep.mubr.bf16.mxu0 %v4305
        %5583 = vmatmul.mubr.bf16.gmra.mrb[0].mxu0 %v4304
        %v5584 = vpop.f32.mrb[0].mxu0
        %v5585 = vadd.f32 %v5424, %v5584
        %v5586 = vpop.f32.mrb[0].mxu0
        %v5587 = vpop.f32.mrb[0].mxu0
        %v5588 = vadd.f32 %v5427, %v5587
        %v5589 = vpop.f32.mrb[0].mxu0
        %5590 = vmatprep.mubr.bf16.mxu0 %v4317
        %5591 = vmatmul.mubr.bf16.gmra.mrb[0].mxu0 %v4316
        %v5592 = vpop.f32.mrb[0].mxu0
        %v5593 = vadd.f32 %v5432, %v5592
        %v5594 = vpop.f32.mrb[0].mxu0
        %v5595 = vpop.f32.mrb[0].mxu0
        %v5596 = vadd.f32 %v5435, %v5595
        %v5597 = vpop.f32.mrb[0].mxu0
        %5598 = vmatprep.mubr.bf16.mxu0 %v4329
        %5599 = vmatmul.mubr.bf16.gmra.mrb[0].mxu0 %v4328
        %v5600 = vpop.f32.mrb[0].mxu0
        %v5601 = vadd.f32 %v5440, %v5600
        %v5602 = vpop.f32.mrb[0].mxu0
        %v5603 = vpop.f32.mrb[0].mxu0
        %v5604 = vadd.f32 %v5443, %v5603
        %v5605 = vpop.f32.mrb[0].mxu0
        %5606 = vmatprep.mubr.bf16.mxu0 %v4341
        %5607 = vmatmul.mubr.bf16.gmra.mrb[0].mxu0 %v4340
        %v5608 = vpop.f32.mrb[0].mxu0
        %v5609 = vadd.f32 %v5448, %v5608
        %v5610 = vpop.f32.mrb[0].mxu0
        %v5611 = vpop.f32.mrb[0].mxu0
        %v5612 = vadd.f32 %v5451, %v5611
        %v5613 = vpop.f32.mrb[0].mxu0
        %5614 = vmatprep.mubr.bf16.mxu0 %v4353
        %5615 = vmatmul.mubr.bf16.gmra.mrb[0].mxu0 %v4352
        %v5616 = vpop.f32.mrb[0].mxu0
        %v5617 = vadd.f32 %v5456, %v5616
        %v5618 = vpop.f32.mrb[0].mxu0
        %v5619 = vpop.f32.mrb[0].mxu0
        %v5620 = vadd.f32 %v5459, %v5619
        %v5621 = vpop.f32.mrb[0].mxu0
        %5622 = vmatprep.mubr.bf16.mxu0 %v4365
        %5623 = vmatmul.mubr.bf16.gmra.mrb[0].mxu0 %v4364
        %v5624 = vpop.f32.mrb[0].mxu0
        %v5625 = vadd.f32 %v5464, %v5624
        %v5626 = vpop.f32.mrb[0].mxu0
        %v5627 = vpop.f32.mrb[0].mxu0
        %v5628 = vadd.f32 %v5467, %v5627
        %v5629 = vpop.f32.mrb[0].mxu0
        %5630 = vmatprep.mubr.bf16.mxu0 %v4377
        %5631 = vmatmul.mubr.bf16.gmra.mrb[0].mxu0 %v4376
        %v5632 = vpop.f32.mrb[0].mxu0
        %v5633 = vadd.f32 %v5472, %v5632
        %v5634 = vpop.f32.mrb[0].mxu0
        %v5635 = vpop.f32.mrb[0].mxu0
        %v5636 = vadd.f32 %v5475, %v5635
        %v5637 = vpop.f32.mrb[0].mxu0
        %5638 = vmatprep.mubr.bf16.mxu0 %v4389
        %5639 = vmatmul.mubr.bf16.gmra.mrb[0].mxu0 %v4388
        %v5640 = vpop.f32.mrb[0].mxu0
        %v5641 = vadd.f32 %v5480, %v5640
        %v5642 = vpop.f32.mrb[0].mxu0
        %v5643 = vpop.f32.mrb[0].mxu0
        %v5644 = vadd.f32 %v5483, %v5643
        %v5645 = vpop.f32.mrb[0].mxu0
        %5646 = vdwg.mxu0
        %5647 = vmatprep.subr.bf16.mxu0 0
        %5648 = vmatpush1.bf16.msra.mxu0 %v5020
        %5649 = vmatprep.subr.bf16.mxu0 0
        %5650 = vmatpush1.bf16.msra.mxu0 %v5021
        %5651 = vmatprep.subr.bf16.mxu0 0
        %5652 = vmatpush1.bf16.msra.mxu0 %v5022
        %5653 = vmatprep.subr.bf16.mxu0 0
        %5654 = vmatpush1.bf16.msra.mxu0 %v5023
        %5655 = vmatprep.subr.bf16.mxu0 0
        %5656 = vmatpush1.bf16.msra.mxu0 %v5024
        %5657 = vmatprep.subr.bf16.mxu0 0
        %5658 = vmatpush1.bf16.msra.mxu0 %v5025
        %5659 = vmatprep.subr.bf16.mxu0 0
        %5660 = vmatpush1.bf16.msra.mxu0 %v5026
        %5661 = vmatprep.subr.bf16.mxu0 0
        %5662 = vmatpush1.bf16.msra.mxu0 %v5027
        %5663 = vmatprep.subr.bf16.mxu0 0
        %5664 = vmatpush1.bf16.msra.mxu0 %v5028
        %5665 = vmatprep.subr.bf16.mxu0 0
        %5666 = vmatpush1.bf16.msra.mxu0 %v5029
        %5667 = vmatprep.subr.bf16.mxu0 0
        %5668 = vmatpush1.bf16.msra.mxu0 %v5030
        %5669 = vmatprep.subr.bf16.mxu0 0
        %5670 = vmatpush1.bf16.msra.mxu0 %v5031
        %5671 = vmatprep.subr.bf16.mxu0 0
        %5672 = vmatpush1.bf16.msra.mxu0 %v5032
        %5673 = vmatprep.subr.bf16.mxu0 0
        %5674 = vmatpush1.bf16.msra.mxu0 %v5033
        %5675 = vmatprep.subr.bf16.mxu0 0
        %5676 = vmatpush1.bf16.msra.mxu0 %v5034
        %5677 = vmatprep.subr.bf16.mxu0 0
        %5678 = vmatpush1.bf16.msra.mxu0 %v5035
        %5679 = vmatprep.mubr.bf16.mxu0 %v4211
        %5680 = vmatmul.mubr.bf16.gmra.mrb[0].mxu0 %v4210
        %v5681 = vpop.f32.mrb[0].mxu0
        %v5682 = vadd.f32 %v5521, %v5681
        %v5683 = vpop.f32.mrb[0].mxu0
        %v5684 = vpop.f32.mrb[0].mxu0
        %v5685 = vadd.f32 %v5524, %v5684
        %v5686 = vpop.f32.mrb[0].mxu0
        %5687 = vmatprep.mubr.bf16.mxu0 %v4223
        %5688 = vmatmul.mubr.bf16.gmra.mrb[0].mxu0 %v4222
        %v5689 = vpop.f32.mrb[0].mxu0
        %v5690 = vadd.f32 %v5529, %v5689
        %v5691 = vpop.f32.mrb[0].mxu0
        %v5692 = vpop.f32.mrb[0].mxu0
        %v5693 = vadd.f32 %v5532, %v5692
        %v5694 = vpop.f32.mrb[0].mxu0
        %5695 = vmatprep.mubr.bf16.mxu0 %v4235
        %5696 = vmatmul.mubr.bf16.gmra.mrb[0].mxu0 %v4234
        %v5697 = vpop.f32.mrb[0].mxu0
        %v5698 = vadd.f32 %v5537, %v5697
        %v5699 = vpop.f32.mrb[0].mxu0
        %v5700 = vpop.f32.mrb[0].mxu0
        %v5701 = vadd.f32 %v5540, %v5700
        %v5702 = vpop.f32.mrb[0].mxu0
        %5703 = vmatprep.mubr.bf16.mxu0 %v4247
        %5704 = vmatmul.mubr.bf16.gmra.mrb[0].mxu0 %v4246
        %v5705 = vpop.f32.mrb[0].mxu0
        %v5706 = vadd.f32 %v5545, %v5705
        %v5707 = vpop.f32.mrb[0].mxu0
        %v5708 = vpop.f32.mrb[0].mxu0
        %v5709 = vadd.f32 %v5548, %v5708
        %v5710 = vpop.f32.mrb[0].mxu0
        %5711 = vmatprep.mubr.bf16.mxu0 %v4259
        %5712 = vmatmul.mubr.bf16.gmra.mrb[0].mxu0 %v4258
        %v5713 = vpop.f32.mrb[0].mxu0
        %v5714 = vadd.f32 %v5553, %v5713
        %v5715 = vpop.f32.mrb[0].mxu0
        %v5716 = vpop.f32.mrb[0].mxu0
        %v5717 = vadd.f32 %v5556, %v5716
        %v5718 = vpop.f32.mrb[0].mxu0
        %5719 = vmatprep.mubr.bf16.mxu0 %v4271
        %5720 = vmatmul.mubr.bf16.gmra.mrb[0].mxu0 %v4270
        %v5721 = vpop.f32.mrb[0].mxu0
        %v5722 = vadd.f32 %v5561, %v5721
        %v5723 = vpop.f32.mrb[0].mxu0
        %v5724 = vpop.f32.mrb[0].mxu0
        %v5725 = vadd.f32 %v5564, %v5724
        %v5726 = vpop.f32.mrb[0].mxu0
        %5727 = vmatprep.mubr.bf16.mxu0 %v4283
        %5728 = vmatmul.mubr.bf16.gmra.mrb[0].mxu0 %v4282
        %v5729 = vpop.f32.mrb[0].mxu0
        %v5730 = vadd.f32 %v5569, %v5729
        %v5731 = vpop.f32.mrb[0].mxu0
        %v5732 = vpop.f32.mrb[0].mxu0
        %v5733 = vadd.f32 %v5572, %v5732
        %v5734 = vpop.f32.mrb[0].mxu0
        %5735 = vmatprep.mubr.bf16.mxu0 %v4295
        %5736 = vmatmul.mubr.bf16.gmra.mrb[0].mxu0 %v4294
        %v5737 = vpop.f32.mrb[0].mxu0
        %v5738 = vadd.f32 %v5577, %v5737
        %v5739 = vpop.f32.mrb[0].mxu0
        %v5740 = vpop.f32.mrb[0].mxu0
        %v5741 = vadd.f32 %v5580, %v5740
        %v5742 = vpop.f32.mrb[0].mxu0
        %5743 = vmatprep.mubr.bf16.mxu0 %v4307
        %5744 = vmatmul.mubr.bf16.gmra.mrb[0].mxu0 %v4306
        %v5745 = vpop.f32.mrb[0].mxu0
        %v5746 = vadd.f32 %v5585, %v5745
        %v5747 = vpop.f32.mrb[0].mxu0
        %v5748 = vpop.f32.mrb[0].mxu0
        %v5749 = vadd.f32 %v5588, %v5748
        %v5750 = vpop.f32.mrb[0].mxu0
        %5751 = vmatprep.mubr.bf16.mxu0 %v4319
        %5752 = vmatmul.mubr.bf16.gmra.mrb[0].mxu0 %v4318
        %v5753 = vpop.f32.mrb[0].mxu0
        %v5754 = vadd.f32 %v5593, %v5753
        %v5755 = vpop.f32.mrb[0].mxu0
        %v5756 = vpop.f32.mrb[0].mxu0
        %v5757 = vadd.f32 %v5596, %v5756
        %v5758 = vpop.f32.mrb[0].mxu0
        %5759 = vmatprep.mubr.bf16.mxu0 %v4331
        %5760 = vmatmul.mubr.bf16.gmra.mrb[0].mxu0 %v4330
        %v5761 = vpop.f32.mrb[0].mxu0
        %v5762 = vadd.f32 %v5601, %v5761
        %v5763 = vpop.f32.mrb[0].mxu0
        %v5764 = vpop.f32.mrb[0].mxu0
        %v5765 = vadd.f32 %v5604, %v5764
        %v5766 = vpop.f32.mrb[0].mxu0
        %5767 = vmatprep.mubr.bf16.mxu0 %v4343
        %5768 = vmatmul.mubr.bf16.gmra.mrb[0].mxu0 %v4342
        %v5769 = vpop.f32.mrb[0].mxu0
        %v5770 = vadd.f32 %v5609, %v5769
        %v5771 = vpop.f32.mrb[0].mxu0
        %v5772 = vpop.f32.mrb[0].mxu0
        %v5773 = vadd.f32 %v5612, %v5772
        %v5774 = vpop.f32.mrb[0].mxu0
        %5775 = vmatprep.mubr.bf16.mxu0 %v4355
        %5776 = vmatmul.mubr.bf16.gmra.mrb[0].mxu0 %v4354
        %v5777 = vpop.f32.mrb[0].mxu0
        %v5778 = vadd.f32 %v5617, %v5777
        %v5779 = vpop.f32.mrb[0].mxu0
        %v5780 = vpop.f32.mrb[0].mxu0
        %v5781 = vadd.f32 %v5620, %v5780
        %v5782 = vpop.f32.mrb[0].mxu0
        %5783 = vmatprep.mubr.bf16.mxu0 %v4367
        %5784 = vmatmul.mubr.bf16.gmra.mrb[0].mxu0 %v4366
        %v5785 = vpop.f32.mrb[0].mxu0
        %v5786 = vadd.f32 %v5625, %v5785
        %v5787 = vpop.f32.mrb[0].mxu0
        %v5788 = vpop.f32.mrb[0].mxu0
        %v5789 = vadd.f32 %v5628, %v5788
        %v5790 = vpop.f32.mrb[0].mxu0
        %5791 = vmatprep.mubr.bf16.mxu0 %v4379
        %5792 = vmatmul.mubr.bf16.gmra.mrb[0].mxu0 %v4378
        %v5793 = vpop.f32.mrb[0].mxu0
        %v5794 = vadd.f32 %v5633, %v5793
        %v5795 = vpop.f32.mrb[0].mxu0
        %v5796 = vpop.f32.mrb[0].mxu0
        %v5797 = vadd.f32 %v5636, %v5796
        %v5798 = vpop.f32.mrb[0].mxu0
        %5799 = vmatprep.mubr.bf16.mxu0 %v4391
        %5800 = vmatmul.mubr.bf16.gmra.mrb[0].mxu0 %v4390
        %v5801 = vpop.f32.mrb[0].mxu0
        %v5802 = vadd.f32 %v5641, %v5801
        %v5803 = vpop.f32.mrb[0].mxu0
        %v5804 = vpop.f32.mrb[0].mxu0
        %v5805 = vadd.f32 %v5644, %v5804
        %v5806 = vpop.f32.mrb[0].mxu0
        %5807 = vdwg.mxu0
        %5808 = vmatprep.subr.bf16.mxu0 0
        %5809 = vmatpush1.bf16.msra.mxu0 %v5036
        %5810 = vmatprep.subr.bf16.mxu0 0
        %5811 = vmatpush1.bf16.msra.mxu0 %v5037
        %5812 = vmatprep.subr.bf16.mxu0 0
        %5813 = vmatpush1.bf16.msra.mxu0 %v5038
        %5814 = vmatprep.subr.bf16.mxu0 0
        %5815 = vmatpush1.bf16.msra.mxu0 %v5039
        %5816 = vmatprep.subr.bf16.mxu0 0
        %5817 = vmatpush1.bf16.msra.mxu0 %v5040
        %5818 = vmatprep.subr.bf16.mxu0 0
        %5819 = vmatpush1.bf16.msra.mxu0 %v5041
        %5820 = vmatprep.subr.bf16.mxu0 0
        %5821 = vmatpush1.bf16.msra.mxu0 %v5042
        %5822 = vmatprep.subr.bf16.mxu0 0
        %5823 = vmatpush1.bf16.msra.mxu0 %v5043
        %5824 = vmatprep.subr.bf16.mxu0 0
        %5825 = vmatpush1.bf16.msra.mxu0 %v5044
        %5826 = vmatprep.subr.bf16.mxu0 0
        %5827 = vmatpush1.bf16.msra.mxu0 %v5045
        %5828 = vmatprep.subr.bf16.mxu0 0
        %5829 = vmatpush1.bf16.msra.mxu0 %v5046
        %5830 = vmatprep.subr.bf16.mxu0 0
        %5831 = vmatpush1.bf16.msra.mxu0 %v5047
        %5832 = vmatprep.subr.bf16.mxu0 0
        %5833 = vmatpush1.bf16.msra.mxu0 %v5048
        %5834 = vmatprep.subr.bf16.mxu0 0
        %5835 = vmatpush1.bf16.msra.mxu0 %v5049
        %5836 = vmatprep.subr.bf16.mxu0 0
        %5837 = vmatpush1.bf16.msra.mxu0 %v5050
        %5838 = vmatprep.subr.bf16.mxu0 0
        %5839 = vmatpush1.bf16.msra.mxu0 %v5051
        %5840 = vmatprep.mubr.bf16.mxu0 %v4213
        %5841 = vmatmul.mubr.bf16.gmra.mrb[0].mxu0 %v4212
        %v5842 = vpop.f32.mrb[0].mxu0
        %v5843 = vadd.f32 %v5682, %v5842
        %v5844 = vpop.f32.mrb[0].mxu0
        %v5845 = vpop.f32.mrb[0].mxu0
        %v5846 = vadd.f32 %v5685, %v5845
        %v5847 = vpop.f32.mrb[0].mxu0
        %5848 = vmatprep.mubr.bf16.mxu0 %v4225
        %5849 = vmatmul.mubr.bf16.gmra.mrb[0].mxu0 %v4224
        %v5850 = vpop.f32.mrb[0].mxu0
        %v5851 = vadd.f32 %v5690, %v5850
        %v5852 = vpop.f32.mrb[0].mxu0
        %v5853 = vpop.f32.mrb[0].mxu0
        %v5854 = vadd.f32 %v5693, %v5853
        %v5855 = vpop.f32.mrb[0].mxu0
        %5856 = vmatprep.mubr.bf16.mxu0 %v4237
        %5857 = vmatmul.mubr.bf16.gmra.mrb[0].mxu0 %v4236
        %v5858 = vpop.f32.mrb[0].mxu0
        %v5859 = vadd.f32 %v5698, %v5858
        %v5860 = vpop.f32.mrb[0].mxu0
        %v5861 = vpop.f32.mrb[0].mxu0
        %v5862 = vadd.f32 %v5701, %v5861
        %v5863 = vpop.f32.mrb[0].mxu0
        %5864 = vmatprep.mubr.bf16.mxu0 %v4249
        %5865 = vmatmul.mubr.bf16.gmra.mrb[0].mxu0 %v4248
        %v5866 = vpop.f32.mrb[0].mxu0
        %v5867 = vadd.f32 %v5706, %v5866
        %v5868 = vpop.f32.mrb[0].mxu0
        %v5869 = vpop.f32.mrb[0].mxu0
        %v5870 = vadd.f32 %v5709, %v5869
        %v5871 = vpop.f32.mrb[0].mxu0
        %5872 = vmatprep.mubr.bf16.mxu0 %v4261
        %5873 = vmatmul.mubr.bf16.gmra.mrb[0].mxu0 %v4260
        %v5874 = vpop.f32.mrb[0].mxu0
        %v5875 = vadd.f32 %v5714, %v5874
        %v5876 = vpop.f32.mrb[0].mxu0
        %v5877 = vpop.f32.mrb[0].mxu0
        %v5878 = vadd.f32 %v5717, %v5877
        %v5879 = vpop.f32.mrb[0].mxu0
        %5880 = vmatprep.mubr.bf16.mxu0 %v4273
        %5881 = vmatmul.mubr.bf16.gmra.mrb[0].mxu0 %v4272
        %v5882 = vpop.f32.mrb[0].mxu0
        %v5883 = vadd.f32 %v5722, %v5882
        %v5884 = vpop.f32.mrb[0].mxu0
        %v5885 = vpop.f32.mrb[0].mxu0
        %v5886 = vadd.f32 %v5725, %v5885
        %v5887 = vpop.f32.mrb[0].mxu0
        %5888 = vmatprep.mubr.bf16.mxu0 %v4285
        %5889 = vmatmul.mubr.bf16.gmra.mrb[0].mxu0 %v4284
        %v5890 = vpop.f32.mrb[0].mxu0
        %v5891 = vadd.f32 %v5730, %v5890
        %v5892 = vpop.f32.mrb[0].mxu0
        %v5893 = vpop.f32.mrb[0].mxu0
        %v5894 = vadd.f32 %v5733, %v5893
        %v5895 = vpop.f32.mrb[0].mxu0
        %5896 = vmatprep.mubr.bf16.mxu0 %v4297
        %5897 = vmatmul.mubr.bf16.gmra.mrb[0].mxu0 %v4296
        %v5898 = vpop.f32.mrb[0].mxu0
        %v5899 = vadd.f32 %v5738, %v5898
        %v5900 = vpop.f32.mrb[0].mxu0
        %v5901 = vpop.f32.mrb[0].mxu0
        %v5902 = vadd.f32 %v5741, %v5901
        %v5903 = vpop.f32.mrb[0].mxu0
        %5904 = vmatprep.mubr.bf16.mxu0 %v4309
        %5905 = vmatmul.mubr.bf16.gmra.mrb[0].mxu0 %v4308
        %v5906 = vpop.f32.mrb[0].mxu0
        %v5907 = vadd.f32 %v5746, %v5906
        %v5908 = vpop.f32.mrb[0].mxu0
        %v5909 = vpop.f32.mrb[0].mxu0
        %v5910 = vadd.f32 %v5749, %v5909
        %v5911 = vpop.f32.mrb[0].mxu0
        %5912 = vmatprep.mubr.bf16.mxu0 %v4321
        %5913 = vmatmul.mubr.bf16.gmra.mrb[0].mxu0 %v4320
        %v5914 = vpop.f32.mrb[0].mxu0
        %v5915 = vadd.f32 %v5754, %v5914
        %v5916 = vpop.f32.mrb[0].mxu0
        %v5917 = vpop.f32.mrb[0].mxu0
        %v5918 = vadd.f32 %v5757, %v5917
        %v5919 = vpop.f32.mrb[0].mxu0
        %5920 = vmatprep.mubr.bf16.mxu0 %v4333
        %5921 = vmatmul.mubr.bf16.gmra.mrb[0].mxu0 %v4332
        %v5922 = vpop.f32.mrb[0].mxu0
        %v5923 = vadd.f32 %v5762, %v5922
        %v5924 = vpop.f32.mrb[0].mxu0
        %v5925 = vpop.f32.mrb[0].mxu0
        %v5926 = vadd.f32 %v5765, %v5925
        %v5927 = vpop.f32.mrb[0].mxu0
        %5928 = vmatprep.mubr.bf16.mxu0 %v4345
        %5929 = vmatmul.mubr.bf16.gmra.mrb[0].mxu0 %v4344
        %v5930 = vpop.f32.mrb[0].mxu0
        %v5931 = vadd.f32 %v5770, %v5930
        %v5932 = vpop.f32.mrb[0].mxu0
        %v5933 = vpop.f32.mrb[0].mxu0
        %v5934 = vadd.f32 %v5773, %v5933
        %v5935 = vpop.f32.mrb[0].mxu0
        %5936 = vmatprep.mubr.bf16.mxu0 %v4357
        %5937 = vmatmul.mubr.bf16.gmra.mrb[0].mxu0 %v4356
        %v5938 = vpop.f32.mrb[0].mxu0
        %v5939 = vadd.f32 %v5778, %v5938
        %v5940 = vpop.f32.mrb[0].mxu0
        %v5941 = vpop.f32.mrb[0].mxu0
        %v5942 = vadd.f32 %v5781, %v5941
        %v5943 = vpop.f32.mrb[0].mxu0
        %5944 = vmatprep.mubr.bf16.mxu0 %v4369
        %5945 = vmatmul.mubr.bf16.gmra.mrb[0].mxu0 %v4368
        %v5946 = vpop.f32.mrb[0].mxu0
        %v5947 = vadd.f32 %v5786, %v5946
        %v5948 = vpop.f32.mrb[0].mxu0
        %v5949 = vpop.f32.mrb[0].mxu0
        %v5950 = vadd.f32 %v5789, %v5949
        %v5951 = vpop.f32.mrb[0].mxu0
        %5952 = vmatprep.mubr.bf16.mxu0 %v4381
        %5953 = vmatmul.mubr.bf16.gmra.mrb[0].mxu0 %v4380
        %v5954 = vpop.f32.mrb[0].mxu0
        %v5955 = vadd.f32 %v5794, %v5954
        %v5956 = vpop.f32.mrb[0].mxu0
        %v5957 = vpop.f32.mrb[0].mxu0
        %v5958 = vadd.f32 %v5797, %v5957
        %v5959 = vpop.f32.mrb[0].mxu0
        %5960 = vmatprep.mubr.bf16.mxu0 %v4393
        %5961 = vmatmul.mubr.bf16.gmra.mrb[0].mxu0 %v4392
        %v5962 = vpop.f32.mrb[0].mxu0
        %v5963 = vadd.f32 %v5802, %v5962
        %v5964 = vpop.f32.mrb[0].mxu0
        %v5965 = vpop.f32.mrb[0].mxu0
        %v5966 = vadd.f32 %v5805, %v5965
        %v5967 = vpop.f32.mrb[0].mxu0
        %5968 = vdwg.mxu0
        %5969 = vmatprep.subr.bf16.mxu0 0
        %5970 = vmatpush1.bf16.msra.mxu0 %v5052
        %5971 = vmatprep.subr.bf16.mxu0 0
        %5972 = vmatpush1.bf16.msra.mxu0 %v5053
        %5973 = vmatprep.subr.bf16.mxu0 0
        %5974 = vmatpush1.bf16.msra.mxu0 %v5054
        %5975 = vmatprep.subr.bf16.mxu0 0
        %5976 = vmatpush1.bf16.msra.mxu0 %v5055
        %5977 = vmatprep.subr.bf16.mxu0 0
        %5978 = vmatpush1.bf16.msra.mxu0 %v5056
        %5979 = vmatprep.subr.bf16.mxu0 0
        %5980 = vmatpush1.bf16.msra.mxu0 %v5057
        %5981 = vmatprep.subr.bf16.mxu0 0
        %5982 = vmatpush1.bf16.msra.mxu0 %v5058
        %5983 = vmatprep.subr.bf16.mxu0 0
        %5984 = vmatpush1.bf16.msra.mxu0 %v5059
        %5985 = vmatprep.subr.bf16.mxu0 0
        %5986 = vmatpush1.bf16.msra.mxu0 %v5060
        %5987 = vmatprep.subr.bf16.mxu0 0
        %5988 = vmatpush1.bf16.msra.mxu0 %v5061
        %5989 = vmatprep.subr.bf16.mxu0 0
        %5990 = vmatpush1.bf16.msra.mxu0 %v5062
        %5991 = vmatprep.subr.bf16.mxu0 0
        %5992 = vmatpush1.bf16.msra.mxu0 %v5063
        %5993 = vmatprep.subr.bf16.mxu0 0
        %5994 = vmatpush1.bf16.msra.mxu0 %v5064
        %5995 = vmatprep.subr.bf16.mxu0 0
        %5996 = vmatpush1.bf16.msra.mxu0 %v5065
        %5997 = vmatprep.subr.bf16.mxu0 0
        %5998 = vmatpush1.bf16.msra.mxu0 %v5066
        %5999 = vmatprep.subr.bf16.mxu0 0
        %6000 = vmatpush1.bf16.msra.mxu0 %v5067
        %6001 = vmatprep.mubr.bf16.mxu0 %v4215
        %6002 = vmatmul.mubr.bf16.gmra.mrb[0].mxu0 %v4214
        %v6003 = vpop.f32.mrb[0].mxu0
        %v6004 = vadd.f32 %v5843, %v6003
        %v6005 = vpop.f32.mrb[0].mxu0
        %v6006 = vpop.f32.mrb[0].mxu0
        %v6007 = vadd.f32 %v5846, %v6006
        %v6008 = vpop.f32.mrb[0].mxu0
        %6009 = vmatprep.mubr.bf16.mxu0 %v4227
        %6010 = vmatmul.mubr.bf16.gmra.mrb[0].mxu0 %v4226
        %v6011 = vpop.f32.mrb[0].mxu0
        %v6012 = vadd.f32 %v5851, %v6011
        %v6013 = vpop.f32.mrb[0].mxu0
        %v6014 = vpop.f32.mrb[0].mxu0
        %v6015 = vadd.f32 %v5854, %v6014
        %v6016 = vpop.f32.mrb[0].mxu0
        %6017 = vmatprep.mubr.bf16.mxu0 %v4239
        %6018 = vmatmul.mubr.bf16.gmra.mrb[0].mxu0 %v4238
        %v6019 = vpop.f32.mrb[0].mxu0
        %v6020 = vadd.f32 %v5859, %v6019
        %v6021 = vpop.f32.mrb[0].mxu0
        %v6022 = vpop.f32.mrb[0].mxu0
        %v6023 = vadd.f32 %v5862, %v6022
        %v6024 = vpop.f32.mrb[0].mxu0
        %6025 = vmatprep.mubr.bf16.mxu0 %v4251
        %6026 = vmatmul.mubr.bf16.gmra.mrb[0].mxu0 %v4250
        %v6027 = vpop.f32.mrb[0].mxu0
        %v6028 = vadd.f32 %v5867, %v6027
        %v6029 = vpop.f32.mrb[0].mxu0
        %v6030 = vpop.f32.mrb[0].mxu0
        %v6031 = vadd.f32 %v5870, %v6030
        %v6032 = vpop.f32.mrb[0].mxu0
        %6033 = vmatprep.mubr.bf16.mxu0 %v4263
        %6034 = vmatmul.mubr.bf16.gmra.mrb[0].mxu0 %v4262
        %v6035 = vpop.f32.mrb[0].mxu0
        %v6036 = vadd.f32 %v5875, %v6035
        %v6037 = vpop.f32.mrb[0].mxu0
        %v6038 = vpop.f32.mrb[0].mxu0
        %v6039 = vadd.f32 %v5878, %v6038
        %v6040 = vpop.f32.mrb[0].mxu0
        %6041 = vmatprep.mubr.bf16.mxu0 %v4275
        %6042 = vmatmul.mubr.bf16.gmra.mrb[0].mxu0 %v4274
        %v6043 = vpop.f32.mrb[0].mxu0
        %v6044 = vadd.f32 %v5883, %v6043
        %v6045 = vpop.f32.mrb[0].mxu0
        %v6046 = vpop.f32.mrb[0].mxu0
        %v6047 = vadd.f32 %v5886, %v6046
        %v6048 = vpop.f32.mrb[0].mxu0
        %6049 = vmatprep.mubr.bf16.mxu0 %v4287
        %6050 = vmatmul.mubr.bf16.gmra.mrb[0].mxu0 %v4286
        %v6051 = vpop.f32.mrb[0].mxu0
        %v6052 = vadd.f32 %v5891, %v6051
        %v6053 = vpop.f32.mrb[0].mxu0
        %v6054 = vpop.f32.mrb[0].mxu0
        %v6055 = vadd.f32 %v5894, %v6054
        %v6056 = vpop.f32.mrb[0].mxu0
        %6057 = vmatprep.mubr.bf16.mxu0 %v4299
        %6058 = vmatmul.mubr.bf16.gmra.mrb[0].mxu0 %v4298
        %v6059 = vpop.f32.mrb[0].mxu0
        %v6060 = vadd.f32 %v5899, %v6059
        %v6061 = vpop.f32.mrb[0].mxu0
        %v6062 = vpop.f32.mrb[0].mxu0
        %v6063 = vadd.f32 %v5902, %v6062
        %v6064 = vpop.f32.mrb[0].mxu0
        %6065 = vmatprep.mubr.bf16.mxu0 %v4311
        %6066 = vmatmul.mubr.bf16.gmra.mrb[0].mxu0 %v4310
        %v6067 = vpop.f32.mrb[0].mxu0
        %v6068 = vadd.f32 %v5907, %v6067
        %v6069 = vpop.f32.mrb[0].mxu0
        %v6070 = vpop.f32.mrb[0].mxu0
        %v6071 = vadd.f32 %v5910, %v6070
        %v6072 = vpop.f32.mrb[0].mxu0
        %6073 = vmatprep.mubr.bf16.mxu0 %v4323
        %6074 = vmatmul.mubr.bf16.gmra.mrb[0].mxu0 %v4322
        %v6075 = vpop.f32.mrb[0].mxu0
        %v6076 = vadd.f32 %v5915, %v6075
        %v6077 = vpop.f32.mrb[0].mxu0
        %v6078 = vpop.f32.mrb[0].mxu0
        %v6079 = vadd.f32 %v5918, %v6078
        %v6080 = vpop.f32.mrb[0].mxu0
        %6081 = vmatprep.mubr.bf16.mxu0 %v4335
        %6082 = vmatmul.mubr.bf16.gmra.mrb[0].mxu0 %v4334
        %v6083 = vpop.f32.mrb[0].mxu0
        %v6084 = vadd.f32 %v5923, %v6083
        %v6085 = vpop.f32.mrb[0].mxu0
        %v6086 = vpop.f32.mrb[0].mxu0
        %v6087 = vadd.f32 %v5926, %v6086
        %v6088 = vpop.f32.mrb[0].mxu0
        %6089 = vmatprep.mubr.bf16.mxu0 %v4347
        %6090 = vmatmul.mubr.bf16.gmra.mrb[0].mxu0 %v4346
        %v6091 = vpop.f32.mrb[0].mxu0
        %v6092 = vadd.f32 %v5931, %v6091
        %v6093 = vpop.f32.mrb[0].mxu0
        %v6094 = vpop.f32.mrb[0].mxu0
        %v6095 = vadd.f32 %v5934, %v6094
        %v6096 = vpop.f32.mrb[0].mxu0
        %6097 = vmatprep.mubr.bf16.mxu0 %v4359
        %6098 = vmatmul.mubr.bf16.gmra.mrb[0].mxu0 %v4358
        %v6099 = vpop.f32.mrb[0].mxu0
        %v6100 = vadd.f32 %v5939, %v6099
        %v6101 = vpop.f32.mrb[0].mxu0
        %v6102 = vpop.f32.mrb[0].mxu0
        %v6103 = vadd.f32 %v5942, %v6102
        %v6104 = vpop.f32.mrb[0].mxu0
        %6105 = vmatprep.mubr.bf16.mxu0 %v4371
        %6106 = vmatmul.mubr.bf16.gmra.mrb[0].mxu0 %v4370
        %v6107 = vpop.f32.mrb[0].mxu0
        %v6108 = vadd.f32 %v5947, %v6107
        %v6109 = vpop.f32.mrb[0].mxu0
        %v6110 = vpop.f32.mrb[0].mxu0
        %v6111 = vadd.f32 %v5950, %v6110
        %v6112 = vpop.f32.mrb[0].mxu0
        %6113 = vmatprep.mubr.bf16.mxu0 %v4383
        %6114 = vmatmul.mubr.bf16.gmra.mrb[0].mxu0 %v4382
        %v6115 = vpop.f32.mrb[0].mxu0
        %v6116 = vadd.f32 %v5955, %v6115
        %v6117 = vpop.f32.mrb[0].mxu0
        %v6118 = vpop.f32.mrb[0].mxu0
        %v6119 = vadd.f32 %v5958, %v6118
        %v6120 = vpop.f32.mrb[0].mxu0
        %6121 = vmatprep.mubr.bf16.mxu0 %v4395
        %6122 = vmatmul.mubr.bf16.gmra.mrb[0].mxu0 %v4394
        %v6123 = vpop.f32.mrb[0].mxu0
        %v6124 = vadd.f32 %v5963, %v6123
        %v6125 = vpop.f32.mrb[0].mxu0
        %v6126 = vpop.f32.mrb[0].mxu0
        %v6127 = vadd.f32 %v5966, %v6126
        %v6128 = vpop.f32.mrb[0].mxu0
        %6129 = vdwg.mxu0
        %s6130 = scalar_lea.vmem %s306, 192 [#allocation2]
        %v6131 = vld [vmem:[%s6130] sm:$0xff]
        %v6132 = vld [vmem:[%s6130 + $0x8] sm:$0xff]
        %v6133 = vld [vmem:[%s6130 + $0x10] sm:$0xff]
        %v6134 = vld [vmem:[%s6130 + $0x18] sm:$0xff]
        %v6135 = vld [vmem:[%s6130 + $0x20] sm:$0xff]
        %v6136 = vld [vmem:[%s6130 + $0x28] sm:$0xff]
        %v6137 = vld [vmem:[%s6130 + $0x30] sm:$0xff]
        %v6138 = vld [vmem:[%s6130 + $0x38] sm:$0xff]
        %v6139 = vld [vmem:[%s6130 + $0x40] sm:$0xff]
        %v6140 = vld [vmem:[%s6130 + $0x48] sm:$0xff]
        %v6141 = vld [vmem:[%s6130 + $0x50] sm:$0xff]
        %v6142 = vld [vmem:[%s6130 + $0x58] sm:$0xff]
        %v6143 = vld [vmem:[%s6130 + $0x60] sm:$0xff]
        %v6144 = vld [vmem:[%s6130 + $0x68] sm:$0xff]
        %v6145 = vld [vmem:[%s6130 + $0x70] sm:$0xff]
        %v6146 = vld [vmem:[%s6130 + $0x78] sm:$0xff]
        %v6147 = vld [vmem:[%s6130 + $0x80] sm:$0xff]
        %v6148 = vld [vmem:[%s6130 + $0x88] sm:$0xff]
        %v6149 = vld [vmem:[%s6130 + $0x90] sm:$0xff]
        %v6150 = vld [vmem:[%s6130 + $0x98] sm:$0xff]
        %v6151 = vld [vmem:[%s6130 + $0xa0] sm:$0xff]
        %v6152 = vld [vmem:[%s6130 + $0xa8] sm:$0xff]
        %v6153 = vld [vmem:[%s6130 + $0xb0] sm:$0xff]
        %v6154 = vld [vmem:[%s6130 + $0xb8] sm:$0xff]
        %v6155 = vld [vmem:[%s6130 + $0xc0] sm:$0xff]
        %v6156 = vld [vmem:[%s6130 + $0xc8] sm:$0xff]
        %v6157 = vld [vmem:[%s6130 + $0xd0] sm:$0xff]
        %v6158 = vld [vmem:[%s6130 + $0xd8] sm:$0xff]
        %v6159 = vld [vmem:[%s6130 + $0xe0] sm:$0xff]
        %v6160 = vld [vmem:[%s6130 + $0xe8] sm:$0xff]
        %v6161 = vld [vmem:[%s6130 + $0xf0] sm:$0xff]
        %v6162 = vld [vmem:[%s6130 + $0xf8] sm:$0xff]
        %v6163 = vld [vmem:[%s6130 + $0x100] sm:$0xff]
        %v6164 = vld [vmem:[%s6130 + $0x108] sm:$0xff]
        %v6165 = vld [vmem:[%s6130 + $0x110] sm:$0xff]
        %v6166 = vld [vmem:[%s6130 + $0x118] sm:$0xff]
        %v6167 = vld [vmem:[%s6130 + $0x120] sm:$0xff]
        %v6168 = vld [vmem:[%s6130 + $0x128] sm:$0xff]
        %v6169 = vld [vmem:[%s6130 + $0x130] sm:$0xff]
        %v6170 = vld [vmem:[%s6130 + $0x138] sm:$0xff]
        %v6171 = vld [vmem:[%s6130 + $0x140] sm:$0xff]
        %v6172 = vld [vmem:[%s6130 + $0x148] sm:$0xff]
        %v6173 = vld [vmem:[%s6130 + $0x150] sm:$0xff]
        %v6174 = vld [vmem:[%s6130 + $0x158] sm:$0xff]
        %v6175 = vld [vmem:[%s6130 + $0x160] sm:$0xff]
        %v6176 = vld [vmem:[%s6130 + $0x168] sm:$0xff]
        %v6177 = vld [vmem:[%s6130 + $0x170] sm:$0xff]
        %v6178 = vld [vmem:[%s6130 + $0x178] sm:$0xff]
        %v6179 = vld [vmem:[%s6130 + $0x180] sm:$0xff]
        %v6180 = vld [vmem:[%s6130 + $0x188] sm:$0xff]
        %v6181 = vld [vmem:[%s6130 + $0x190] sm:$0xff]
        %v6182 = vld [vmem:[%s6130 + $0x198] sm:$0xff]
        %v6183 = vld [vmem:[%s6130 + $0x1a0] sm:$0xff]
        %v6184 = vld [vmem:[%s6130 + $0x1a8] sm:$0xff]
        %v6185 = vld [vmem:[%s6130 + $0x1b0] sm:$0xff]
        %v6186 = vld [vmem:[%s6130 + $0x1b8] sm:$0xff]
        %v6187 = vld [vmem:[%s6130 + $0x1c0] sm:$0xff]
        %v6188 = vld [vmem:[%s6130 + $0x1c8] sm:$0xff]
        %v6189 = vld [vmem:[%s6130 + $0x1d0] sm:$0xff]
        %v6190 = vld [vmem:[%s6130 + $0x1d8] sm:$0xff]
        %v6191 = vld [vmem:[%s6130 + $0x1e0] sm:$0xff]
        %v6192 = vld [vmem:[%s6130 + $0x1e8] sm:$0xff]
        %v6193 = vld [vmem:[%s6130 + $0x1f0] sm:$0xff]
        %v6194 = vld [vmem:[%s6130 + $0x1f8] sm:$0xff]
        %v6195 = vld [vmem:[%s6130 + $0x200] sm:$0xff]
        %v6196 = vld [vmem:[%s6130 + $0x208] sm:$0xff]
        %v6197 = vld [vmem:[%s6130 + $0x210] sm:$0xff]
        %v6198 = vld [vmem:[%s6130 + $0x218] sm:$0xff]
        %v6199 = vld [vmem:[%s6130 + $0x220] sm:$0xff]
        %v6200 = vld [vmem:[%s6130 + $0x228] sm:$0xff]
        %v6201 = vld [vmem:[%s6130 + $0x230] sm:$0xff]
        %v6202 = vld [vmem:[%s6130 + $0x238] sm:$0xff]
        %v6203 = vld [vmem:[%s6130 + $0x240] sm:$0xff]
        %v6204 = vld [vmem:[%s6130 + $0x248] sm:$0xff]
        %v6205 = vld [vmem:[%s6130 + $0x250] sm:$0xff]
        %v6206 = vld [vmem:[%s6130 + $0x258] sm:$0xff]
        %v6207 = vld [vmem:[%s6130 + $0x260] sm:$0xff]
        %v6208 = vld [vmem:[%s6130 + $0x268] sm:$0xff]
        %v6209 = vld [vmem:[%s6130 + $0x270] sm:$0xff]
        %v6210 = vld [vmem:[%s6130 + $0x278] sm:$0xff]
        %v6211 = vld [vmem:[%s6130 + $0x280] sm:$0xff]
        %v6212 = vld [vmem:[%s6130 + $0x288] sm:$0xff]
        %v6213 = vld [vmem:[%s6130 + $0x290] sm:$0xff]
        %v6214 = vld [vmem:[%s6130 + $0x298] sm:$0xff]
        %v6215 = vld [vmem:[%s6130 + $0x2a0] sm:$0xff]
        %v6216 = vld [vmem:[%s6130 + $0x2a8] sm:$0xff]
        %v6217 = vld [vmem:[%s6130 + $0x2b0] sm:$0xff]
        %v6218 = vld [vmem:[%s6130 + $0x2b8] sm:$0xff]
        %v6219 = vld [vmem:[%s6130 + $0x2c0] sm:$0xff]
        %v6220 = vld [vmem:[%s6130 + $0x2c8] sm:$0xff]
        %v6221 = vld [vmem:[%s6130 + $0x2d0] sm:$0xff]
        %v6222 = vld [vmem:[%s6130 + $0x2d8] sm:$0xff]
        %v6223 = vld [vmem:[%s6130 + $0x2e0] sm:$0xff]
        %v6224 = vld [vmem:[%s6130 + $0x2e8] sm:$0xff]
        %v6225 = vld [vmem:[%s6130 + $0x2f0] sm:$0xff]
        %v6226 = vld [vmem:[%s6130 + $0x2f8] sm:$0xff]
        %v6227 = vld [vmem:[%s6130 + $0x300] sm:$0xff]
        %v6228 = vld [vmem:[%s6130 + $0x308] sm:$0xff]
        %v6229 = vld [vmem:[%s6130 + $0x310] sm:$0xff]
        %v6230 = vld [vmem:[%s6130 + $0x318] sm:$0xff]
        %v6231 = vld [vmem:[%s6130 + $0x320] sm:$0xff]
        %v6232 = vld [vmem:[%s6130 + $0x328] sm:$0xff]
        %v6233 = vld [vmem:[%s6130 + $0x330] sm:$0xff]
        %v6234 = vld [vmem:[%s6130 + $0x338] sm:$0xff]
        %v6235 = vld [vmem:[%s6130 + $0x340] sm:$0xff]
        %v6236 = vld [vmem:[%s6130 + $0x348] sm:$0xff]
        %v6237 = vld [vmem:[%s6130 + $0x350] sm:$0xff]
        %v6238 = vld [vmem:[%s6130 + $0x358] sm:$0xff]
        %v6239 = vld [vmem:[%s6130 + $0x360] sm:$0xff]
        %v6240 = vld [vmem:[%s6130 + $0x368] sm:$0xff]
        %v6241 = vld [vmem:[%s6130 + $0x370] sm:$0xff]
        %v6242 = vld [vmem:[%s6130 + $0x378] sm:$0xff]
        %v6243 = vld [vmem:[%s6130 + $0x380] sm:$0xff]
        %v6244 = vld [vmem:[%s6130 + $0x388] sm:$0xff]
        %v6245 = vld [vmem:[%s6130 + $0x390] sm:$0xff]
        %v6246 = vld [vmem:[%s6130 + $0x398] sm:$0xff]
        %v6247 = vld [vmem:[%s6130 + $0x3a0] sm:$0xff]
        %v6248 = vld [vmem:[%s6130 + $0x3a8] sm:$0xff]
        %v6249 = vld [vmem:[%s6130 + $0x3b0] sm:$0xff]
        %v6250 = vld [vmem:[%s6130 + $0x3b8] sm:$0xff]
        %v6251 = vld [vmem:[%s6130 + $0x3c0] sm:$0xff]
        %v6252 = vld [vmem:[%s6130 + $0x3c8] sm:$0xff]
        %v6253 = vld [vmem:[%s6130 + $0x3d0] sm:$0xff]
        %v6254 = vld [vmem:[%s6130 + $0x3d8] sm:$0xff]
        %v6255 = vld [vmem:[%s6130 + $0x3e0] sm:$0xff]
        %v6256 = vld [vmem:[%s6130 + $0x3e8] sm:$0xff]
        %v6257 = vld [vmem:[%s6130 + $0x3f0] sm:$0xff]
        %v6258 = vld [vmem:[%s6130 + $0x3f8] sm:$0xff]
        %v6259 = vld [vmem:[%s6130 + $0x400] sm:$0xff]
        %v6260 = vld [vmem:[%s6130 + $0x408] sm:$0xff]
        %v6261 = vld [vmem:[%s6130 + $0x410] sm:$0xff]
        %v6262 = vld [vmem:[%s6130 + $0x418] sm:$0xff]
        %v6263 = vld [vmem:[%s6130 + $0x420] sm:$0xff]
        %v6264 = vld [vmem:[%s6130 + $0x428] sm:$0xff]
        %v6265 = vld [vmem:[%s6130 + $0x430] sm:$0xff]
        %v6266 = vld [vmem:[%s6130 + $0x438] sm:$0xff]
        %v6267 = vld [vmem:[%s6130 + $0x440] sm:$0xff]
        %v6268 = vld [vmem:[%s6130 + $0x448] sm:$0xff]
        %v6269 = vld [vmem:[%s6130 + $0x450] sm:$0xff]
        %v6270 = vld [vmem:[%s6130 + $0x458] sm:$0xff]
        %v6271 = vld [vmem:[%s6130 + $0x460] sm:$0xff]
        %v6272 = vld [vmem:[%s6130 + $0x468] sm:$0xff]
        %v6273 = vld [vmem:[%s6130 + $0x470] sm:$0xff]
        %v6274 = vld [vmem:[%s6130 + $0x478] sm:$0xff]
        %v6275 = vld [vmem:[%s6130 + $0x480] sm:$0xff]
        %v6276 = vld [vmem:[%s6130 + $0x488] sm:$0xff]
        %v6277 = vld [vmem:[%s6130 + $0x490] sm:$0xff]
        %v6278 = vld [vmem:[%s6130 + $0x498] sm:$0xff]
        %v6279 = vld [vmem:[%s6130 + $0x4a0] sm:$0xff]
        %v6280 = vld [vmem:[%s6130 + $0x4a8] sm:$0xff]
        %v6281 = vld [vmem:[%s6130 + $0x4b0] sm:$0xff]
        %v6282 = vld [vmem:[%s6130 + $0x4b8] sm:$0xff]
        %v6283 = vld [vmem:[%s6130 + $0x4c0] sm:$0xff]
        %v6284 = vld [vmem:[%s6130 + $0x4c8] sm:$0xff]
        %v6285 = vld [vmem:[%s6130 + $0x4d0] sm:$0xff]
        %v6286 = vld [vmem:[%s6130 + $0x4d8] sm:$0xff]
        %v6287 = vld [vmem:[%s6130 + $0x4e0] sm:$0xff]
        %v6288 = vld [vmem:[%s6130 + $0x4e8] sm:$0xff]
        %v6289 = vld [vmem:[%s6130 + $0x4f0] sm:$0xff]
        %v6290 = vld [vmem:[%s6130 + $0x4f8] sm:$0xff]
        %v6291 = vld [vmem:[%s6130 + $0x500] sm:$0xff]
        %v6292 = vld [vmem:[%s6130 + $0x508] sm:$0xff]
        %v6293 = vld [vmem:[%s6130 + $0x510] sm:$0xff]
        %v6294 = vld [vmem:[%s6130 + $0x518] sm:$0xff]
        %v6295 = vld [vmem:[%s6130 + $0x520] sm:$0xff]
        %v6296 = vld [vmem:[%s6130 + $0x528] sm:$0xff]
        %v6297 = vld [vmem:[%s6130 + $0x530] sm:$0xff]
        %v6298 = vld [vmem:[%s6130 + $0x538] sm:$0xff]
        %v6299 = vld [vmem:[%s6130 + $0x540] sm:$0xff]
        %v6300 = vld [vmem:[%s6130 + $0x548] sm:$0xff]
        %v6301 = vld [vmem:[%s6130 + $0x550] sm:$0xff]
        %v6302 = vld [vmem:[%s6130 + $0x558] sm:$0xff]
        %v6303 = vld [vmem:[%s6130 + $0x560] sm:$0xff]
        %v6304 = vld [vmem:[%s6130 + $0x568] sm:$0xff]
        %v6305 = vld [vmem:[%s6130 + $0x570] sm:$0xff]
        %v6306 = vld [vmem:[%s6130 + $0x578] sm:$0xff]
        %v6307 = vld [vmem:[%s6130 + $0x580] sm:$0xff]
        %v6308 = vld [vmem:[%s6130 + $0x588] sm:$0xff]
        %v6309 = vld [vmem:[%s6130 + $0x590] sm:$0xff]
        %v6310 = vld [vmem:[%s6130 + $0x598] sm:$0xff]
        %v6311 = vld [vmem:[%s6130 + $0x5a0] sm:$0xff]
        %v6312 = vld [vmem:[%s6130 + $0x5a8] sm:$0xff]
        %v6313 = vld [vmem:[%s6130 + $0x5b0] sm:$0xff]
        %v6314 = vld [vmem:[%s6130 + $0x5b8] sm:$0xff]
        %v6315 = vld [vmem:[%s6130 + $0x5c0] sm:$0xff]
        %v6316 = vld [vmem:[%s6130 + $0x5c8] sm:$0xff]
        %v6317 = vld [vmem:[%s6130 + $0x5d0] sm:$0xff]
        %v6318 = vld [vmem:[%s6130 + $0x5d8] sm:$0xff]
        %v6319 = vld [vmem:[%s6130 + $0x5e0] sm:$0xff]
        %v6320 = vld [vmem:[%s6130 + $0x5e8] sm:$0xff]
        %v6321 = vld [vmem:[%s6130 + $0x5f0] sm:$0xff]
        %v6322 = vld [vmem:[%s6130 + $0x5f8] sm:$0xff]
        %s6323 = scalar_lea.vmem [#allocation5], 1536
        %v6324 = vld [vmem:[%s6323] sm:$0xf]
        %v6325 = vld [vmem:[%s6323 + $0x4] sm:$0xf]
        %v6326 = vld [vmem:[%s6323 + $0x8] sm:$0xf]
        %v6327 = vld [vmem:[%s6323 + $0xc] sm:$0xf]
        %v6328 = vld [vmem:[%s6323 + $0x10] sm:$0xf]
        %v6329 = vld [vmem:[%s6323 + $0x14] sm:$0xf]
        %v6330 = vld [vmem:[%s6323 + $0x18] sm:$0xf]
        %v6331 = vld [vmem:[%s6323 + $0x1c] sm:$0xf]
        %v6332 = vld [vmem:[%s6323 + $0x20] sm:$0xf]
        %v6333 = vld [vmem:[%s6323 + $0x24] sm:$0xf]
        %v6334 = vld [vmem:[%s6323 + $0x28] sm:$0xf]
        %v6335 = vld [vmem:[%s6323 + $0x2c] sm:$0xf]
        %v6336 = vld [vmem:[%s6323 + $0x30] sm:$0xf]
        %v6337 = vld [vmem:[%s6323 + $0x34] sm:$0xf]
        %v6338 = vld [vmem:[%s6323 + $0x38] sm:$0xf]
        %v6339 = vld [vmem:[%s6323 + $0x3c] sm:$0xf]
        %v6340 = vld [vmem:[%s6323 + $0x40] sm:$0xf]
        %v6341 = vld [vmem:[%s6323 + $0x44] sm:$0xf]
        %v6342 = vld [vmem:[%s6323 + $0x48] sm:$0xf]
        %v6343 = vld [vmem:[%s6323 + $0x4c] sm:$0xf]
        %v6344 = vld [vmem:[%s6323 + $0x50] sm:$0xf]
        %v6345 = vld [vmem:[%s6323 + $0x54] sm:$0xf]
        %v6346 = vld [vmem:[%s6323 + $0x58] sm:$0xf]
        %v6347 = vld [vmem:[%s6323 + $0x5c] sm:$0xf]
        %v6348 = vld [vmem:[%s6323 + $0x60] sm:$0xf]
        %v6349 = vld [vmem:[%s6323 + $0x64] sm:$0xf]
        %v6350 = vld [vmem:[%s6323 + $0x68] sm:$0xf]
        %v6351 = vld [vmem:[%s6323 + $0x6c] sm:$0xf]
        %v6352 = vld [vmem:[%s6323 + $0x70] sm:$0xf]
        %v6353 = vld [vmem:[%s6323 + $0x74] sm:$0xf]
        %v6354 = vld [vmem:[%s6323 + $0x78] sm:$0xf]
        %v6355 = vld [vmem:[%s6323 + $0x7c] sm:$0xf]
        %v6356 = vld [vmem:[%s6323 + $0x80] sm:$0xf]
        %v6357 = vld [vmem:[%s6323 + $0x84] sm:$0xf]
        %v6358 = vld [vmem:[%s6323 + $0x88] sm:$0xf]
        %v6359 = vld [vmem:[%s6323 + $0x8c] sm:$0xf]
        %v6360 = vld [vmem:[%s6323 + $0x90] sm:$0xf]
        %v6361 = vld [vmem:[%s6323 + $0x94] sm:$0xf]
        %v6362 = vld [vmem:[%s6323 + $0x98] sm:$0xf]
        %v6363 = vld [vmem:[%s6323 + $0x9c] sm:$0xf]
        %v6364 = vld [vmem:[%s6323 + $0xa0] sm:$0xf]
        %v6365 = vld [vmem:[%s6323 + $0xa4] sm:$0xf]
        %v6366 = vld [vmem:[%s6323 + $0xa8] sm:$0xf]
        %v6367 = vld [vmem:[%s6323 + $0xac] sm:$0xf]
        %v6368 = vld [vmem:[%s6323 + $0xb0] sm:$0xf]
        %v6369 = vld [vmem:[%s6323 + $0xb4] sm:$0xf]
        %v6370 = vld [vmem:[%s6323 + $0xb8] sm:$0xf]
        %v6371 = vld [vmem:[%s6323 + $0xbc] sm:$0xf]
        %v6372 = vld [vmem:[%s6323 + $0xc0] sm:$0xf]
        %v6373 = vld [vmem:[%s6323 + $0xc4] sm:$0xf]
        %v6374 = vld [vmem:[%s6323 + $0xc8] sm:$0xf]
        %v6375 = vld [vmem:[%s6323 + $0xcc] sm:$0xf]
        %v6376 = vld [vmem:[%s6323 + $0xd0] sm:$0xf]
        %v6377 = vld [vmem:[%s6323 + $0xd4] sm:$0xf]
        %v6378 = vld [vmem:[%s6323 + $0xd8] sm:$0xf]
        %v6379 = vld [vmem:[%s6323 + $0xdc] sm:$0xf]
        %v6380 = vld [vmem:[%s6323 + $0xe0] sm:$0xf]
        %v6381 = vld [vmem:[%s6323 + $0xe4] sm:$0xf]
        %v6382 = vld [vmem:[%s6323 + $0xe8] sm:$0xf]
        %v6383 = vld [vmem:[%s6323 + $0xec] sm:$0xf]
        %v6384 = vld [vmem:[%s6323 + $0xf0] sm:$0xf]
        %v6385 = vld [vmem:[%s6323 + $0xf4] sm:$0xf]
        %v6386 = vld [vmem:[%s6323 + $0xf8] sm:$0xf]
        %v6387 = vld [vmem:[%s6323 + $0xfc] sm:$0xf]
        %v6388 = vld [vmem:[%s6323 + $0x100] sm:$0xf]
        %v6389 = vld [vmem:[%s6323 + $0x104] sm:$0xf]
        %v6390 = vld [vmem:[%s6323 + $0x108] sm:$0xf]
        %v6391 = vld [vmem:[%s6323 + $0x10c] sm:$0xf]
        %v6392 = vld [vmem:[%s6323 + $0x110] sm:$0xf]
        %v6393 = vld [vmem:[%s6323 + $0x114] sm:$0xf]
        %v6394 = vld [vmem:[%s6323 + $0x118] sm:$0xf]
        %v6395 = vld [vmem:[%s6323 + $0x11c] sm:$0xf]
        %v6396 = vld [vmem:[%s6323 + $0x120] sm:$0xf]
        %v6397 = vld [vmem:[%s6323 + $0x124] sm:$0xf]
        %v6398 = vld [vmem:[%s6323 + $0x128] sm:$0xf]
        %v6399 = vld [vmem:[%s6323 + $0x12c] sm:$0xf]
        %v6400 = vld [vmem:[%s6323 + $0x130] sm:$0xf]
        %v6401 = vld [vmem:[%s6323 + $0x134] sm:$0xf]
        %v6402 = vld [vmem:[%s6323 + $0x138] sm:$0xf]
        %v6403 = vld [vmem:[%s6323 + $0x13c] sm:$0xf]
        %v6404 = vld [vmem:[%s6323 + $0x140] sm:$0xf]
        %v6405 = vld [vmem:[%s6323 + $0x144] sm:$0xf]
        %v6406 = vld [vmem:[%s6323 + $0x148] sm:$0xf]
        %v6407 = vld [vmem:[%s6323 + $0x14c] sm:$0xf]
        %v6408 = vld [vmem:[%s6323 + $0x150] sm:$0xf]
        %v6409 = vld [vmem:[%s6323 + $0x154] sm:$0xf]
        %v6410 = vld [vmem:[%s6323 + $0x158] sm:$0xf]
        %v6411 = vld [vmem:[%s6323 + $0x15c] sm:$0xf]
        %v6412 = vld [vmem:[%s6323 + $0x160] sm:$0xf]
        %v6413 = vld [vmem:[%s6323 + $0x164] sm:$0xf]
        %v6414 = vld [vmem:[%s6323 + $0x168] sm:$0xf]
        %v6415 = vld [vmem:[%s6323 + $0x16c] sm:$0xf]
        %v6416 = vld [vmem:[%s6323 + $0x170] sm:$0xf]
        %v6417 = vld [vmem:[%s6323 + $0x174] sm:$0xf]
        %v6418 = vld [vmem:[%s6323 + $0x178] sm:$0xf]
        %v6419 = vld [vmem:[%s6323 + $0x17c] sm:$0xf]
        %v6420 = vld [vmem:[%s6323 + $0x180] sm:$0xf]
        %v6421 = vld [vmem:[%s6323 + $0x184] sm:$0xf]
        %v6422 = vld [vmem:[%s6323 + $0x188] sm:$0xf]
        %v6423 = vld [vmem:[%s6323 + $0x18c] sm:$0xf]
        %v6424 = vld [vmem:[%s6323 + $0x190] sm:$0xf]
        %v6425 = vld [vmem:[%s6323 + $0x194] sm:$0xf]
        %v6426 = vld [vmem:[%s6323 + $0x198] sm:$0xf]
        %v6427 = vld [vmem:[%s6323 + $0x19c] sm:$0xf]
        %v6428 = vld [vmem:[%s6323 + $0x1a0] sm:$0xf]
        %v6429 = vld [vmem:[%s6323 + $0x1a4] sm:$0xf]
        %v6430 = vld [vmem:[%s6323 + $0x1a8] sm:$0xf]
        %v6431 = vld [vmem:[%s6323 + $0x1ac] sm:$0xf]
        %v6432 = vld [vmem:[%s6323 + $0x1b0] sm:$0xf]
        %v6433 = vld [vmem:[%s6323 + $0x1b4] sm:$0xf]
        %v6434 = vld [vmem:[%s6323 + $0x1b8] sm:$0xf]
        %v6435 = vld [vmem:[%s6323 + $0x1bc] sm:$0xf]
        %v6436 = vld [vmem:[%s6323 + $0x1c0] sm:$0xf]
        %v6437 = vld [vmem:[%s6323 + $0x1c4] sm:$0xf]
        %v6438 = vld [vmem:[%s6323 + $0x1c8] sm:$0xf]
        %v6439 = vld [vmem:[%s6323 + $0x1cc] sm:$0xf]
        %v6440 = vld [vmem:[%s6323 + $0x1d0] sm:$0xf]
        %v6441 = vld [vmem:[%s6323 + $0x1d4] sm:$0xf]
        %v6442 = vld [vmem:[%s6323 + $0x1d8] sm:$0xf]
        %v6443 = vld [vmem:[%s6323 + $0x1dc] sm:$0xf]
        %v6444 = vld [vmem:[%s6323 + $0x1e0] sm:$0xf]
        %v6445 = vld [vmem:[%s6323 + $0x1e4] sm:$0xf]
        %v6446 = vld [vmem:[%s6323 + $0x1e8] sm:$0xf]
        %v6447 = vld [vmem:[%s6323 + $0x1ec] sm:$0xf]
        %v6448 = vld [vmem:[%s6323 + $0x1f0] sm:$0xf]
        %v6449 = vld [vmem:[%s6323 + $0x1f4] sm:$0xf]
        %v6450 = vld [vmem:[%s6323 + $0x1f8] sm:$0xf]
        %v6451 = vld [vmem:[%s6323 + $0x1fc] sm:$0xf]
        %v6452 = vld [vmem:[%s6323 + $0x200] sm:$0xf]
        %v6453 = vld [vmem:[%s6323 + $0x204] sm:$0xf]
        %v6454 = vld [vmem:[%s6323 + $0x208] sm:$0xf]
        %v6455 = vld [vmem:[%s6323 + $0x20c] sm:$0xf]
        %v6456 = vld [vmem:[%s6323 + $0x210] sm:$0xf]
        %v6457 = vld [vmem:[%s6323 + $0x214] sm:$0xf]
        %v6458 = vld [vmem:[%s6323 + $0x218] sm:$0xf]
        %v6459 = vld [vmem:[%s6323 + $0x21c] sm:$0xf]
        %v6460 = vld [vmem:[%s6323 + $0x220] sm:$0xf]
        %v6461 = vld [vmem:[%s6323 + $0x224] sm:$0xf]
        %v6462 = vld [vmem:[%s6323 + $0x228] sm:$0xf]
        %v6463 = vld [vmem:[%s6323 + $0x22c] sm:$0xf]
        %v6464 = vld [vmem:[%s6323 + $0x230] sm:$0xf]
        %v6465 = vld [vmem:[%s6323 + $0x234] sm:$0xf]
        %v6466 = vld [vmem:[%s6323 + $0x238] sm:$0xf]
        %v6467 = vld [vmem:[%s6323 + $0x23c] sm:$0xf]
        %v6468 = vld [vmem:[%s6323 + $0x240] sm:$0xf]
        %v6469 = vld [vmem:[%s6323 + $0x244] sm:$0xf]
        %v6470 = vld [vmem:[%s6323 + $0x248] sm:$0xf]
        %v6471 = vld [vmem:[%s6323 + $0x24c] sm:$0xf]
        %v6472 = vld [vmem:[%s6323 + $0x250] sm:$0xf]
        %v6473 = vld [vmem:[%s6323 + $0x254] sm:$0xf]
        %v6474 = vld [vmem:[%s6323 + $0x258] sm:$0xf]
        %v6475 = vld [vmem:[%s6323 + $0x25c] sm:$0xf]
        %v6476 = vld [vmem:[%s6323 + $0x260] sm:$0xf]
        %v6477 = vld [vmem:[%s6323 + $0x264] sm:$0xf]
        %v6478 = vld [vmem:[%s6323 + $0x268] sm:$0xf]
        %v6479 = vld [vmem:[%s6323 + $0x26c] sm:$0xf]
        %v6480 = vld [vmem:[%s6323 + $0x270] sm:$0xf]
        %v6481 = vld [vmem:[%s6323 + $0x274] sm:$0xf]
        %v6482 = vld [vmem:[%s6323 + $0x278] sm:$0xf]
        %v6483 = vld [vmem:[%s6323 + $0x27c] sm:$0xf]
        %v6484 = vld [vmem:[%s6323 + $0x280] sm:$0xf]
        %v6485 = vld [vmem:[%s6323 + $0x284] sm:$0xf]
        %v6486 = vld [vmem:[%s6323 + $0x288] sm:$0xf]
        %v6487 = vld [vmem:[%s6323 + $0x28c] sm:$0xf]
        %v6488 = vld [vmem:[%s6323 + $0x290] sm:$0xf]
        %v6489 = vld [vmem:[%s6323 + $0x294] sm:$0xf]
        %v6490 = vld [vmem:[%s6323 + $0x298] sm:$0xf]
        %v6491 = vld [vmem:[%s6323 + $0x29c] sm:$0xf]
        %v6492 = vld [vmem:[%s6323 + $0x2a0] sm:$0xf]
        %v6493 = vld [vmem:[%s6323 + $0x2a4] sm:$0xf]
        %v6494 = vld [vmem:[%s6323 + $0x2a8] sm:$0xf]
        %v6495 = vld [vmem:[%s6323 + $0x2ac] sm:$0xf]
        %v6496 = vld [vmem:[%s6323 + $0x2b0] sm:$0xf]
        %v6497 = vld [vmem:[%s6323 + $0x2b4] sm:$0xf]
        %v6498 = vld [vmem:[%s6323 + $0x2b8] sm:$0xf]
        %v6499 = vld [vmem:[%s6323 + $0x2bc] sm:$0xf]
        %v6500 = vld [vmem:[%s6323 + $0x2c0] sm:$0xf]
        %v6501 = vld [vmem:[%s6323 + $0x2c4] sm:$0xf]
        %v6502 = vld [vmem:[%s6323 + $0x2c8] sm:$0xf]
        %v6503 = vld [vmem:[%s6323 + $0x2cc] sm:$0xf]
        %v6504 = vld [vmem:[%s6323 + $0x2d0] sm:$0xf]
        %v6505 = vld [vmem:[%s6323 + $0x2d4] sm:$0xf]
        %v6506 = vld [vmem:[%s6323 + $0x2d8] sm:$0xf]
        %v6507 = vld [vmem:[%s6323 + $0x2dc] sm:$0xf]
        %v6508 = vld [vmem:[%s6323 + $0x2e0] sm:$0xf]
        %v6509 = vld [vmem:[%s6323 + $0x2e4] sm:$0xf]
        %v6510 = vld [vmem:[%s6323 + $0x2e8] sm:$0xf]
        %v6511 = vld [vmem:[%s6323 + $0x2ec] sm:$0xf]
        %v6512 = vld [vmem:[%s6323 + $0x2f0] sm:$0xf]
        %v6513 = vld [vmem:[%s6323 + $0x2f4] sm:$0xf]
        %v6514 = vld [vmem:[%s6323 + $0x2f8] sm:$0xf]
        %v6515 = vld [vmem:[%s6323 + $0x2fc] sm:$0xf]
        %v6708 = vunpack.c.l.b16 %v6131
        %v6709 = vunpack.c.h.b16 %v6131
        %v6710 = vunpack.c.l.b16 %v6132
        %v6711 = vunpack.c.h.b16 %v6132
        %v6712 = vunpack.c.l.b16 %v6133
        %v6713 = vunpack.c.h.b16 %v6133
        %v6714 = vunpack.c.l.b16 %v6134
        %v6715 = vunpack.c.h.b16 %v6134
        %v6716 = vunpack.c.l.b16 %v6135
        %v6717 = vunpack.c.h.b16 %v6135
        %v6718 = vunpack.c.l.b16 %v6136
        %v6719 = vunpack.c.h.b16 %v6136
        %v6720 = vunpack.c.l.b16 %v6137
        %v6721 = vunpack.c.h.b16 %v6137
        %v6722 = vunpack.c.l.b16 %v6138
        %v6723 = vunpack.c.h.b16 %v6138
        %v6724 = vunpack.c.l.b16 %v6139
        %v6725 = vunpack.c.h.b16 %v6139
        %v6726 = vunpack.c.l.b16 %v6140
        %v6727 = vunpack.c.h.b16 %v6140
        %v6728 = vunpack.c.l.b16 %v6141
        %v6729 = vunpack.c.h.b16 %v6141
        %v6730 = vunpack.c.l.b16 %v6142
        %v6731 = vunpack.c.h.b16 %v6142
        %v6732 = vunpack.c.l.b16 %v6143
        %v6733 = vunpack.c.h.b16 %v6143
        %v6734 = vunpack.c.l.b16 %v6144
        %v6735 = vunpack.c.h.b16 %v6144
        %v6736 = vunpack.c.l.b16 %v6145
        %v6737 = vunpack.c.h.b16 %v6145
        %v6738 = vunpack.c.l.b16 %v6146
        %v6739 = vunpack.c.h.b16 %v6146
        %v6740 = vunpack.c.l.b16 %v6147
        %v6741 = vunpack.c.h.b16 %v6147
        %v6742 = vunpack.c.l.b16 %v6148
        %v6743 = vunpack.c.h.b16 %v6148
        %v6744 = vunpack.c.l.b16 %v6149
        %v6745 = vunpack.c.h.b16 %v6149
        %v6746 = vunpack.c.l.b16 %v6150
        %v6747 = vunpack.c.h.b16 %v6150
        %v6748 = vunpack.c.l.b16 %v6151
        %v6749 = vunpack.c.h.b16 %v6151
        %v6750 = vunpack.c.l.b16 %v6152
        %v6751 = vunpack.c.h.b16 %v6152
        %v6752 = vunpack.c.l.b16 %v6153
        %v6753 = vunpack.c.h.b16 %v6153
        %v6754 = vunpack.c.l.b16 %v6154
        %v6755 = vunpack.c.h.b16 %v6154
        %v6756 = vunpack.c.l.b16 %v6155
        %v6757 = vunpack.c.h.b16 %v6155
        %v6758 = vunpack.c.l.b16 %v6156
        %v6759 = vunpack.c.h.b16 %v6156
        %v6760 = vunpack.c.l.b16 %v6157
        %v6761 = vunpack.c.h.b16 %v6157
        %v6762 = vunpack.c.l.b16 %v6158
        %v6763 = vunpack.c.h.b16 %v6158
        %v6764 = vunpack.c.l.b16 %v6159
        %v6765 = vunpack.c.h.b16 %v6159
        %v6766 = vunpack.c.l.b16 %v6160
        %v6767 = vunpack.c.h.b16 %v6160
        %v6768 = vunpack.c.l.b16 %v6161
        %v6769 = vunpack.c.h.b16 %v6161
        %v6770 = vunpack.c.l.b16 %v6162
        %v6771 = vunpack.c.h.b16 %v6162
        %v6772 = vunpack.c.l.b16 %v6163
        %v6773 = vunpack.c.h.b16 %v6163
        %v6774 = vunpack.c.l.b16 %v6164
        %v6775 = vunpack.c.h.b16 %v6164
        %v6776 = vunpack.c.l.b16 %v6165
        %v6777 = vunpack.c.h.b16 %v6165
        %v6778 = vunpack.c.l.b16 %v6166
        %v6779 = vunpack.c.h.b16 %v6166
        %v6780 = vunpack.c.l.b16 %v6167
        %v6781 = vunpack.c.h.b16 %v6167
        %v6782 = vunpack.c.l.b16 %v6168
        %v6783 = vunpack.c.h.b16 %v6168
        %v6784 = vunpack.c.l.b16 %v6169
        %v6785 = vunpack.c.h.b16 %v6169
        %v6786 = vunpack.c.l.b16 %v6170
        %v6787 = vunpack.c.h.b16 %v6170
        %v6788 = vunpack.c.l.b16 %v6171
        %v6789 = vunpack.c.h.b16 %v6171
        %v6790 = vunpack.c.l.b16 %v6172
        %v6791 = vunpack.c.h.b16 %v6172
        %v6792 = vunpack.c.l.b16 %v6173
        %v6793 = vunpack.c.h.b16 %v6173
        %v6794 = vunpack.c.l.b16 %v6174
        %v6795 = vunpack.c.h.b16 %v6174
        %v6796 = vunpack.c.l.b16 %v6175
        %v6797 = vunpack.c.h.b16 %v6175
        %v6798 = vunpack.c.l.b16 %v6176
        %v6799 = vunpack.c.h.b16 %v6176
        %v6800 = vunpack.c.l.b16 %v6177
        %v6801 = vunpack.c.h.b16 %v6177
        %v6802 = vunpack.c.l.b16 %v6178
        %v6803 = vunpack.c.h.b16 %v6178
        %v6804 = vunpack.c.l.b16 %v6179
        %v6805 = vunpack.c.h.b16 %v6179
        %v6806 = vunpack.c.l.b16 %v6180
        %v6807 = vunpack.c.h.b16 %v6180
        %v6808 = vunpack.c.l.b16 %v6181
        %v6809 = vunpack.c.h.b16 %v6181
        %v6810 = vunpack.c.l.b16 %v6182
        %v6811 = vunpack.c.h.b16 %v6182
        %v6812 = vunpack.c.l.b16 %v6183
        %v6813 = vunpack.c.h.b16 %v6183
        %v6814 = vunpack.c.l.b16 %v6184
        %v6815 = vunpack.c.h.b16 %v6184
        %v6816 = vunpack.c.l.b16 %v6185
        %v6817 = vunpack.c.h.b16 %v6185
        %v6818 = vunpack.c.l.b16 %v6186
        %v6819 = vunpack.c.h.b16 %v6186
        %v6820 = vunpack.c.l.b16 %v6187
        %v6821 = vunpack.c.h.b16 %v6187
        %v6822 = vunpack.c.l.b16 %v6188
        %v6823 = vunpack.c.h.b16 %v6188
        %v6824 = vunpack.c.l.b16 %v6189
        %v6825 = vunpack.c.h.b16 %v6189
        %v6826 = vunpack.c.l.b16 %v6190
        %v6827 = vunpack.c.h.b16 %v6190
        %v6828 = vunpack.c.l.b16 %v6191
        %v6829 = vunpack.c.h.b16 %v6191
        %v6830 = vunpack.c.l.b16 %v6192
        %v6831 = vunpack.c.h.b16 %v6192
        %v6832 = vunpack.c.l.b16 %v6193
        %v6833 = vunpack.c.h.b16 %v6193
        %v6834 = vunpack.c.l.b16 %v6194
        %v6835 = vunpack.c.h.b16 %v6194
        %v6836 = vunpack.c.l.b16 %v6195
        %v6837 = vunpack.c.h.b16 %v6195
        %v6838 = vunpack.c.l.b16 %v6196
        %v6839 = vunpack.c.h.b16 %v6196
        %v6840 = vunpack.c.l.b16 %v6197
        %v6841 = vunpack.c.h.b16 %v6197
        %v6842 = vunpack.c.l.b16 %v6198
        %v6843 = vunpack.c.h.b16 %v6198
        %v6844 = vunpack.c.l.b16 %v6199
        %v6845 = vunpack.c.h.b16 %v6199
        %v6846 = vunpack.c.l.b16 %v6200
        %v6847 = vunpack.c.h.b16 %v6200
        %v6848 = vunpack.c.l.b16 %v6201
        %v6849 = vunpack.c.h.b16 %v6201
        %v6850 = vunpack.c.l.b16 %v6202
        %v6851 = vunpack.c.h.b16 %v6202
        %v6852 = vunpack.c.l.b16 %v6203
        %v6853 = vunpack.c.h.b16 %v6203
        %v6854 = vunpack.c.l.b16 %v6204
        %v6855 = vunpack.c.h.b16 %v6204
        %v6856 = vunpack.c.l.b16 %v6205
        %v6857 = vunpack.c.h.b16 %v6205
        %v6858 = vunpack.c.l.b16 %v6206
        %v6859 = vunpack.c.h.b16 %v6206
        %v6860 = vunpack.c.l.b16 %v6207
        %v6861 = vunpack.c.h.b16 %v6207
        %v6862 = vunpack.c.l.b16 %v6208
        %v6863 = vunpack.c.h.b16 %v6208
        %v6864 = vunpack.c.l.b16 %v6209
        %v6865 = vunpack.c.h.b16 %v6209
        %v6866 = vunpack.c.l.b16 %v6210
        %v6867 = vunpack.c.h.b16 %v6210
        %v6868 = vunpack.c.l.b16 %v6211
        %v6869 = vunpack.c.h.b16 %v6211
        %v6870 = vunpack.c.l.b16 %v6212
        %v6871 = vunpack.c.h.b16 %v6212
        %v6872 = vunpack.c.l.b16 %v6213
        %v6873 = vunpack.c.h.b16 %v6213
        %v6874 = vunpack.c.l.b16 %v6214
        %v6875 = vunpack.c.h.b16 %v6214
        %v6876 = vunpack.c.l.b16 %v6215
        %v6877 = vunpack.c.h.b16 %v6215
        %v6878 = vunpack.c.l.b16 %v6216
        %v6879 = vunpack.c.h.b16 %v6216
        %v6880 = vunpack.c.l.b16 %v6217
        %v6881 = vunpack.c.h.b16 %v6217
        %v6882 = vunpack.c.l.b16 %v6218
        %v6883 = vunpack.c.h.b16 %v6218
        %v6884 = vunpack.c.l.b16 %v6219
        %v6885 = vunpack.c.h.b16 %v6219
        %v6886 = vunpack.c.l.b16 %v6220
        %v6887 = vunpack.c.h.b16 %v6220
        %v6888 = vunpack.c.l.b16 %v6221
        %v6889 = vunpack.c.h.b16 %v6221
        %v6890 = vunpack.c.l.b16 %v6222
        %v6891 = vunpack.c.h.b16 %v6222
        %v6892 = vunpack.c.l.b16 %v6223
        %v6893 = vunpack.c.h.b16 %v6223
        %v6894 = vunpack.c.l.b16 %v6224
        %v6895 = vunpack.c.h.b16 %v6224
        %v6896 = vunpack.c.l.b16 %v6225
        %v6897 = vunpack.c.h.b16 %v6225
        %v6898 = vunpack.c.l.b16 %v6226
        %v6899 = vunpack.c.h.b16 %v6226
        %v6900 = vunpack.c.l.b16 %v6227
        %v6901 = vunpack.c.h.b16 %v6227
        %v6902 = vunpack.c.l.b16 %v6228
        %v6903 = vunpack.c.h.b16 %v6228
        %v6904 = vunpack.c.l.b16 %v6229
        %v6905 = vunpack.c.h.b16 %v6229
        %v6906 = vunpack.c.l.b16 %v6230
        %v6907 = vunpack.c.h.b16 %v6230
        %v6908 = vunpack.c.l.b16 %v6231
        %v6909 = vunpack.c.h.b16 %v6231
        %v6910 = vunpack.c.l.b16 %v6232
        %v6911 = vunpack.c.h.b16 %v6232
        %v6912 = vunpack.c.l.b16 %v6233
        %v6913 = vunpack.c.h.b16 %v6233
        %v6914 = vunpack.c.l.b16 %v6234
        %v6915 = vunpack.c.h.b16 %v6234
        %v6916 = vunpack.c.l.b16 %v6235
        %v6917 = vunpack.c.h.b16 %v6235
        %v6918 = vunpack.c.l.b16 %v6236
        %v6919 = vunpack.c.h.b16 %v6236
        %v6920 = vunpack.c.l.b16 %v6237
        %v6921 = vunpack.c.h.b16 %v6237
        %v6922 = vunpack.c.l.b16 %v6238
        %v6923 = vunpack.c.h.b16 %v6238
        %v6924 = vunpack.c.l.b16 %v6239
        %v6925 = vunpack.c.h.b16 %v6239
        %v6926 = vunpack.c.l.b16 %v6240
        %v6927 = vunpack.c.h.b16 %v6240
        %v6928 = vunpack.c.l.b16 %v6241
        %v6929 = vunpack.c.h.b16 %v6241
        %v6930 = vunpack.c.l.b16 %v6242
        %v6931 = vunpack.c.h.b16 %v6242
        %v6932 = vunpack.c.l.b16 %v6243
        %v6933 = vunpack.c.h.b16 %v6243
        %v6934 = vunpack.c.l.b16 %v6244
        %v6935 = vunpack.c.h.b16 %v6244
        %v6936 = vunpack.c.l.b16 %v6245
        %v6937 = vunpack.c.h.b16 %v6245
        %v6938 = vunpack.c.l.b16 %v6246
        %v6939 = vunpack.c.h.b16 %v6246
        %v6940 = vunpack.c.l.b16 %v6247
        %v6941 = vunpack.c.h.b16 %v6247
        %v6942 = vunpack.c.l.b16 %v6248
        %v6943 = vunpack.c.h.b16 %v6248
        %v6944 = vunpack.c.l.b16 %v6249
        %v6945 = vunpack.c.h.b16 %v6249
        %v6946 = vunpack.c.l.b16 %v6250
        %v6947 = vunpack.c.h.b16 %v6250
        %v6948 = vunpack.c.l.b16 %v6251
        %v6949 = vunpack.c.h.b16 %v6251
        %v6950 = vunpack.c.l.b16 %v6252
        %v6951 = vunpack.c.h.b16 %v6252
        %v6952 = vunpack.c.l.b16 %v6253
        %v6953 = vunpack.c.h.b16 %v6253
        %v6954 = vunpack.c.l.b16 %v6254
        %v6955 = vunpack.c.h.b16 %v6254
        %v6956 = vunpack.c.l.b16 %v6255
        %v6957 = vunpack.c.h.b16 %v6255
        %v6958 = vunpack.c.l.b16 %v6256
        %v6959 = vunpack.c.h.b16 %v6256
        %v6960 = vunpack.c.l.b16 %v6257
        %v6961 = vunpack.c.h.b16 %v6257
        %v6962 = vunpack.c.l.b16 %v6258
        %v6963 = vunpack.c.h.b16 %v6258
        %v6964 = vunpack.c.l.b16 %v6259
        %v6965 = vunpack.c.h.b16 %v6259
        %v6966 = vunpack.c.l.b16 %v6260
        %v6967 = vunpack.c.h.b16 %v6260
        %v6968 = vunpack.c.l.b16 %v6261
        %v6969 = vunpack.c.h.b16 %v6261
        %v6970 = vunpack.c.l.b16 %v6262
        %v6971 = vunpack.c.h.b16 %v6262
        %v6972 = vunpack.c.l.b16 %v6263
        %v6973 = vunpack.c.h.b16 %v6263
        %v6974 = vunpack.c.l.b16 %v6264
        %v6975 = vunpack.c.h.b16 %v6264
        %v6976 = vunpack.c.l.b16 %v6265
        %v6977 = vunpack.c.h.b16 %v6265
        %v6978 = vunpack.c.l.b16 %v6266
        %v6979 = vunpack.c.h.b16 %v6266
        %v6980 = vunpack.c.l.b16 %v6267
        %v6981 = vunpack.c.h.b16 %v6267
        %v6982 = vunpack.c.l.b16 %v6268
        %v6983 = vunpack.c.h.b16 %v6268
        %v6984 = vunpack.c.l.b16 %v6269
        %v6985 = vunpack.c.h.b16 %v6269
        %v6986 = vunpack.c.l.b16 %v6270
        %v6987 = vunpack.c.h.b16 %v6270
        %v6988 = vunpack.c.l.b16 %v6271
        %v6989 = vunpack.c.h.b16 %v6271
        %v6990 = vunpack.c.l.b16 %v6272
        %v6991 = vunpack.c.h.b16 %v6272
        %v6992 = vunpack.c.l.b16 %v6273
        %v6993 = vunpack.c.h.b16 %v6273
        %v6994 = vunpack.c.l.b16 %v6274
        %v6995 = vunpack.c.h.b16 %v6274
        %v6996 = vunpack.c.l.b16 %v6275
        %v6997 = vunpack.c.h.b16 %v6275
        %v6998 = vunpack.c.l.b16 %v6276
        %v6999 = vunpack.c.h.b16 %v6276
        %v7000 = vunpack.c.l.b16 %v6277
        %v7001 = vunpack.c.h.b16 %v6277
        %v7002 = vunpack.c.l.b16 %v6278
        %v7003 = vunpack.c.h.b16 %v6278
        %v7004 = vunpack.c.l.b16 %v6279
        %v7005 = vunpack.c.h.b16 %v6279
        %v7006 = vunpack.c.l.b16 %v6280
        %v7007 = vunpack.c.h.b16 %v6280
        %v7008 = vunpack.c.l.b16 %v6281
        %v7009 = vunpack.c.h.b16 %v6281
        %v7010 = vunpack.c.l.b16 %v6282
        %v7011 = vunpack.c.h.b16 %v6282
        %v7012 = vunpack.c.l.b16 %v6283
        %v7013 = vunpack.c.h.b16 %v6283
        %v7014 = vunpack.c.l.b16 %v6284
        %v7015 = vunpack.c.h.b16 %v6284
        %v7016 = vunpack.c.l.b16 %v6285
        %v7017 = vunpack.c.h.b16 %v6285
        %v7018 = vunpack.c.l.b16 %v6286
        %v7019 = vunpack.c.h.b16 %v6286
        %v7020 = vunpack.c.l.b16 %v6287
        %v7021 = vunpack.c.h.b16 %v6287
        %v7022 = vunpack.c.l.b16 %v6288
        %v7023 = vunpack.c.h.b16 %v6288
        %v7024 = vunpack.c.l.b16 %v6289
        %v7025 = vunpack.c.h.b16 %v6289
        %v7026 = vunpack.c.l.b16 %v6290
        %v7027 = vunpack.c.h.b16 %v6290
        %v7028 = vunpack.c.l.b16 %v6291
        %v7029 = vunpack.c.h.b16 %v6291
        %v7030 = vunpack.c.l.b16 %v6292
        %v7031 = vunpack.c.h.b16 %v6292
        %v7032 = vunpack.c.l.b16 %v6293
        %v7033 = vunpack.c.h.b16 %v6293
        %v7034 = vunpack.c.l.b16 %v6294
        %v7035 = vunpack.c.h.b16 %v6294
        %v7036 = vunpack.c.l.b16 %v6295
        %v7037 = vunpack.c.h.b16 %v6295
        %v7038 = vunpack.c.l.b16 %v6296
        %v7039 = vunpack.c.h.b16 %v6296
        %v7040 = vunpack.c.l.b16 %v6297
        %v7041 = vunpack.c.h.b16 %v6297
        %v7042 = vunpack.c.l.b16 %v6298
        %v7043 = vunpack.c.h.b16 %v6298
        %v7044 = vunpack.c.l.b16 %v6299
        %v7045 = vunpack.c.h.b16 %v6299
        %v7046 = vunpack.c.l.b16 %v6300
        %v7047 = vunpack.c.h.b16 %v6300
        %v7048 = vunpack.c.l.b16 %v6301
        %v7049 = vunpack.c.h.b16 %v6301
        %v7050 = vunpack.c.l.b16 %v6302
        %v7051 = vunpack.c.h.b16 %v6302
        %v7052 = vunpack.c.l.b16 %v6303
        %v7053 = vunpack.c.h.b16 %v6303
        %v7054 = vunpack.c.l.b16 %v6304
        %v7055 = vunpack.c.h.b16 %v6304
        %v7056 = vunpack.c.l.b16 %v6305
        %v7057 = vunpack.c.h.b16 %v6305
        %v7058 = vunpack.c.l.b16 %v6306
        %v7059 = vunpack.c.h.b16 %v6306
        %v7060 = vunpack.c.l.b16 %v6307
        %v7061 = vunpack.c.h.b16 %v6307
        %v7062 = vunpack.c.l.b16 %v6308
        %v7063 = vunpack.c.h.b16 %v6308
        %v7064 = vunpack.c.l.b16 %v6309
        %v7065 = vunpack.c.h.b16 %v6309
        %v7066 = vunpack.c.l.b16 %v6310
        %v7067 = vunpack.c.h.b16 %v6310
        %v7068 = vunpack.c.l.b16 %v6311
        %v7069 = vunpack.c.h.b16 %v6311
        %v7070 = vunpack.c.l.b16 %v6312
        %v7071 = vunpack.c.h.b16 %v6312
        %v7072 = vunpack.c.l.b16 %v6313
        %v7073 = vunpack.c.h.b16 %v6313
        %v7074 = vunpack.c.l.b16 %v6314
        %v7075 = vunpack.c.h.b16 %v6314
        %v7076 = vunpack.c.l.b16 %v6315
        %v7077 = vunpack.c.h.b16 %v6315
        %v7078 = vunpack.c.l.b16 %v6316
        %v7079 = vunpack.c.h.b16 %v6316
        %v7080 = vunpack.c.l.b16 %v6317
        %v7081 = vunpack.c.h.b16 %v6317
        %v7082 = vunpack.c.l.b16 %v6318
        %v7083 = vunpack.c.h.b16 %v6318
        %v7084 = vunpack.c.l.b16 %v6319
        %v7085 = vunpack.c.h.b16 %v6319
        %v7086 = vunpack.c.l.b16 %v6320
        %v7087 = vunpack.c.h.b16 %v6320
        %v7088 = vunpack.c.l.b16 %v6321
        %v7089 = vunpack.c.h.b16 %v6321
        %v7090 = vunpack.c.l.b16 %v6322
        %v7091 = vunpack.c.h.b16 %v6322
        %v7092 = vpack.c.b16 %v6720, %v6708
        %v7093 = vpack.c.b16 %v6721, %v6709
        %v7094 = vpack.c.b16 %v6722, %v6710
        %v7095 = vpack.c.b16 %v6723, %v6711
        %v7096 = vpack.c.b16 %v6724, %v6712
        %v7097 = vpack.c.b16 %v6725, %v6713
        %v7098 = vpack.c.b16 %v6726, %v6714
        %v7099 = vpack.c.b16 %v6727, %v6715
        %v7100 = vpack.c.b16 %v6728, %v6716
        %v7101 = vpack.c.b16 %v6729, %v6717
        %v7102 = vpack.c.b16 %v6730, %v6718
        %v7103 = vpack.c.b16 %v6731, %v6719
        %v7104 = vpack.c.b16 %v6744, %v6732
        %v7105 = vpack.c.b16 %v6745, %v6733
        %v7106 = vpack.c.b16 %v6746, %v6734
        %v7107 = vpack.c.b16 %v6747, %v6735
        %v7108 = vpack.c.b16 %v6748, %v6736
        %v7109 = vpack.c.b16 %v6749, %v6737
        %v7110 = vpack.c.b16 %v6750, %v6738
        %v7111 = vpack.c.b16 %v6751, %v6739
        %v7112 = vpack.c.b16 %v6752, %v6740
        %v7113 = vpack.c.b16 %v6753, %v6741
        %v7114 = vpack.c.b16 %v6754, %v6742
        %v7115 = vpack.c.b16 %v6755, %v6743
        %v7116 = vpack.c.b16 %v6768, %v6756
        %v7117 = vpack.c.b16 %v6769, %v6757
        %v7118 = vpack.c.b16 %v6770, %v6758
        %v7119 = vpack.c.b16 %v6771, %v6759
        %v7120 = vpack.c.b16 %v6772, %v6760
        %v7121 = vpack.c.b16 %v6773, %v6761
        %v7122 = vpack.c.b16 %v6774, %v6762
        %v7123 = vpack.c.b16 %v6775, %v6763
        %v7124 = vpack.c.b16 %v6776, %v6764
        %v7125 = vpack.c.b16 %v6777, %v6765
        %v7126 = vpack.c.b16 %v6778, %v6766
        %v7127 = vpack.c.b16 %v6779, %v6767
        %v7128 = vpack.c.b16 %v6792, %v6780
        %v7129 = vpack.c.b16 %v6793, %v6781
        %v7130 = vpack.c.b16 %v6794, %v6782
        %v7131 = vpack.c.b16 %v6795, %v6783
        %v7132 = vpack.c.b16 %v6796, %v6784
        %v7133 = vpack.c.b16 %v6797, %v6785
        %v7134 = vpack.c.b16 %v6798, %v6786
        %v7135 = vpack.c.b16 %v6799, %v6787
        %v7136 = vpack.c.b16 %v6800, %v6788
        %v7137 = vpack.c.b16 %v6801, %v6789
        %v7138 = vpack.c.b16 %v6802, %v6790
        %v7139 = vpack.c.b16 %v6803, %v6791
        %v7140 = vpack.c.b16 %v6816, %v6804
        %v7141 = vpack.c.b16 %v6817, %v6805
        %v7142 = vpack.c.b16 %v6818, %v6806
        %v7143 = vpack.c.b16 %v6819, %v6807
        %v7144 = vpack.c.b16 %v6820, %v6808
        %v7145 = vpack.c.b16 %v6821, %v6809
        %v7146 = vpack.c.b16 %v6822, %v6810
        %v7147 = vpack.c.b16 %v6823, %v6811
        %v7148 = vpack.c.b16 %v6824, %v6812
        %v7149 = vpack.c.b16 %v6825, %v6813
        %v7150 = vpack.c.b16 %v6826, %v6814
        %v7151 = vpack.c.b16 %v6827, %v6815
        %v7152 = vpack.c.b16 %v6840, %v6828
        %v7153 = vpack.c.b16 %v6841, %v6829
        %v7154 = vpack.c.b16 %v6842, %v6830
        %v7155 = vpack.c.b16 %v6843, %v6831
        %v7156 = vpack.c.b16 %v6844, %v6832
        %v7157 = vpack.c.b16 %v6845, %v6833
        %v7158 = vpack.c.b16 %v6846, %v6834
        %v7159 = vpack.c.b16 %v6847, %v6835
        %v7160 = vpack.c.b16 %v6848, %v6836
        %v7161 = vpack.c.b16 %v6849, %v6837
        %v7162 = vpack.c.b16 %v6850, %v6838
        %v7163 = vpack.c.b16 %v6851, %v6839
        %v7164 = vpack.c.b16 %v6864, %v6852
        %v7165 = vpack.c.b16 %v6865, %v6853
        %v7166 = vpack.c.b16 %v6866, %v6854
        %v7167 = vpack.c.b16 %v6867, %v6855
        %v7168 = vpack.c.b16 %v6868, %v6856
        %v7169 = vpack.c.b16 %v6869, %v6857
        %v7170 = vpack.c.b16 %v6870, %v6858
        %v7171 = vpack.c.b16 %v6871, %v6859
        %v7172 = vpack.c.b16 %v6872, %v6860
        %v7173 = vpack.c.b16 %v6873, %v6861
        %v7174 = vpack.c.b16 %v6874, %v6862
        %v7175 = vpack.c.b16 %v6875, %v6863
        %v7176 = vpack.c.b16 %v6888, %v6876
        %v7177 = vpack.c.b16 %v6889, %v6877
        %v7178 = vpack.c.b16 %v6890, %v6878
        %v7179 = vpack.c.b16 %v6891, %v6879
        %v7180 = vpack.c.b16 %v6892, %v6880
        %v7181 = vpack.c.b16 %v6893, %v6881
        %v7182 = vpack.c.b16 %v6894, %v6882
        %v7183 = vpack.c.b16 %v6895, %v6883
        %v7184 = vpack.c.b16 %v6896, %v6884
        %v7185 = vpack.c.b16 %v6897, %v6885
        %v7186 = vpack.c.b16 %v6898, %v6886
        %v7187 = vpack.c.b16 %v6899, %v6887
        %v7188 = vpack.c.b16 %v6912, %v6900
        %v7189 = vpack.c.b16 %v6913, %v6901
        %v7190 = vpack.c.b16 %v6914, %v6902
        %v7191 = vpack.c.b16 %v6915, %v6903
        %v7192 = vpack.c.b16 %v6916, %v6904
        %v7193 = vpack.c.b16 %v6917, %v6905
        %v7194 = vpack.c.b16 %v6918, %v6906
        %v7195 = vpack.c.b16 %v6919, %v6907
        %v7196 = vpack.c.b16 %v6920, %v6908
        %v7197 = vpack.c.b16 %v6921, %v6909
        %v7198 = vpack.c.b16 %v6922, %v6910
        %v7199 = vpack.c.b16 %v6923, %v6911
        %v7200 = vpack.c.b16 %v6936, %v6924
        %v7201 = vpack.c.b16 %v6937, %v6925
        %v7202 = vpack.c.b16 %v6938, %v6926
        %v7203 = vpack.c.b16 %v6939, %v6927
        %v7204 = vpack.c.b16 %v6940, %v6928
        %v7205 = vpack.c.b16 %v6941, %v6929
        %v7206 = vpack.c.b16 %v6942, %v6930
        %v7207 = vpack.c.b16 %v6943, %v6931
        %v7208 = vpack.c.b16 %v6944, %v6932
        %v7209 = vpack.c.b16 %v6945, %v6933
        %v7210 = vpack.c.b16 %v6946, %v6934
        %v7211 = vpack.c.b16 %v6947, %v6935
        %v7212 = vpack.c.b16 %v6960, %v6948
        %v7213 = vpack.c.b16 %v6961, %v6949
        %v7214 = vpack.c.b16 %v6962, %v6950
        %v7215 = vpack.c.b16 %v6963, %v6951
        %v7216 = vpack.c.b16 %v6964, %v6952
        %v7217 = vpack.c.b16 %v6965, %v6953
        %v7218 = vpack.c.b16 %v6966, %v6954
        %v7219 = vpack.c.b16 %v6967, %v6955
        %v7220 = vpack.c.b16 %v6968, %v6956
        %v7221 = vpack.c.b16 %v6969, %v6957
        %v7222 = vpack.c.b16 %v6970, %v6958
        %v7223 = vpack.c.b16 %v6971, %v6959
        %v7224 = vpack.c.b16 %v6984, %v6972
        %v7225 = vpack.c.b16 %v6985, %v6973
        %v7226 = vpack.c.b16 %v6986, %v6974
        %v7227 = vpack.c.b16 %v6987, %v6975
        %v7228 = vpack.c.b16 %v6988, %v6976
        %v7229 = vpack.c.b16 %v6989, %v6977
        %v7230 = vpack.c.b16 %v6990, %v6978
        %v7231 = vpack.c.b16 %v6991, %v6979
        %v7232 = vpack.c.b16 %v6992, %v6980
        %v7233 = vpack.c.b16 %v6993, %v6981
        %v7234 = vpack.c.b16 %v6994, %v6982
        %v7235 = vpack.c.b16 %v6995, %v6983
        %v7236 = vpack.c.b16 %v7008, %v6996
        %v7237 = vpack.c.b16 %v7009, %v6997
        %v7238 = vpack.c.b16 %v7010, %v6998
        %v7239 = vpack.c.b16 %v7011, %v6999
        %v7240 = vpack.c.b16 %v7012, %v7000
        %v7241 = vpack.c.b16 %v7013, %v7001
        %v7242 = vpack.c.b16 %v7014, %v7002
        %v7243 = vpack.c.b16 %v7015, %v7003
        %v7244 = vpack.c.b16 %v7016, %v7004
        %v7245 = vpack.c.b16 %v7017, %v7005
        %v7246 = vpack.c.b16 %v7018, %v7006
        %v7247 = vpack.c.b16 %v7019, %v7007
        %v7248 = vpack.c.b16 %v7032, %v7020
        %v7249 = vpack.c.b16 %v7033, %v7021
        %v7250 = vpack.c.b16 %v7034, %v7022
        %v7251 = vpack.c.b16 %v7035, %v7023
        %v7252 = vpack.c.b16 %v7036, %v7024
        %v7253 = vpack.c.b16 %v7037, %v7025
        %v7254 = vpack.c.b16 %v7038, %v7026
        %v7255 = vpack.c.b16 %v7039, %v7027
        %v7256 = vpack.c.b16 %v7040, %v7028
        %v7257 = vpack.c.b16 %v7041, %v7029
        %v7258 = vpack.c.b16 %v7042, %v7030
        %v7259 = vpack.c.b16 %v7043, %v7031
        %v7260 = vpack.c.b16 %v7056, %v7044
        %v7261 = vpack.c.b16 %v7057, %v7045
        %v7262 = vpack.c.b16 %v7058, %v7046
        %v7263 = vpack.c.b16 %v7059, %v7047
        %v7264 = vpack.c.b16 %v7060, %v7048
        %v7265 = vpack.c.b16 %v7061, %v7049
        %v7266 = vpack.c.b16 %v7062, %v7050
        %v7267 = vpack.c.b16 %v7063, %v7051
        %v7268 = vpack.c.b16 %v7064, %v7052
        %v7269 = vpack.c.b16 %v7065, %v7053
        %v7270 = vpack.c.b16 %v7066, %v7054
        %v7271 = vpack.c.b16 %v7067, %v7055
        %v7272 = vpack.c.b16 %v7080, %v7068
        %v7273 = vpack.c.b16 %v7081, %v7069
        %v7274 = vpack.c.b16 %v7082, %v7070
        %v7275 = vpack.c.b16 %v7083, %v7071
        %v7276 = vpack.c.b16 %v7084, %v7072
        %v7277 = vpack.c.b16 %v7085, %v7073
        %v7278 = vpack.c.b16 %v7086, %v7074
        %v7279 = vpack.c.b16 %v7087, %v7075
        %v7280 = vpack.c.b16 %v7088, %v7076
        %v7281 = vpack.c.b16 %v7089, %v7077
        %v7282 = vpack.c.b16 %v7090, %v7078
        %v7283 = vpack.c.b16 %v7091, %v7079
        %v7668 = vunpack.c.l.b16 %v6324
        %v7669 = vunpack.c.l.b16 %v6325
        %v7670 = vunpack.c.l.b16 %v6326
        %v7671 = vunpack.c.l.b16 %v6327
        %v7672 = vunpack.c.l.b16 %v6328
        %v7673 = vunpack.c.l.b16 %v6329
        %v7674 = vunpack.c.l.b16 %v6330
        %v7675 = vunpack.c.l.b16 %v6331
        %v7676 = vunpack.c.l.b16 %v6332
        %v7677 = vunpack.c.l.b16 %v6333
        %v7678 = vunpack.c.l.b16 %v6334
        %v7679 = vunpack.c.l.b16 %v6335
        %v7680 = vunpack.c.l.b16 %v6336
        %v7681 = vunpack.c.l.b16 %v6337
        %v7682 = vunpack.c.l.b16 %v6338
        %v7683 = vunpack.c.l.b16 %v6339
        %v7684 = vunpack.c.l.b16 %v6340
        %v7685 = vunpack.c.l.b16 %v6341
        %v7686 = vunpack.c.l.b16 %v6342
        %v7687 = vunpack.c.l.b16 %v6343
        %v7688 = vunpack.c.l.b16 %v6344
        %v7689 = vunpack.c.l.b16 %v6345
        %v7690 = vunpack.c.l.b16 %v6346
        %v7691 = vunpack.c.l.b16 %v6347
        %v7692 = vunpack.c.l.b16 %v6348
        %v7693 = vunpack.c.l.b16 %v6349
        %v7694 = vunpack.c.l.b16 %v6350
        %v7695 = vunpack.c.l.b16 %v6351
        %v7696 = vunpack.c.l.b16 %v6352
        %v7697 = vunpack.c.l.b16 %v6353
        %v7698 = vunpack.c.l.b16 %v6354
        %v7699 = vunpack.c.l.b16 %v6355
        %v7700 = vunpack.c.l.b16 %v6356
        %v7701 = vunpack.c.l.b16 %v6357
        %v7702 = vunpack.c.l.b16 %v6358
        %v7703 = vunpack.c.l.b16 %v6359
        %v7704 = vunpack.c.l.b16 %v6360
        %v7705 = vunpack.c.l.b16 %v6361
        %v7706 = vunpack.c.l.b16 %v6362
        %v7707 = vunpack.c.l.b16 %v6363
        %v7708 = vunpack.c.l.b16 %v6364
        %v7709 = vunpack.c.l.b16 %v6365
        %v7710 = vunpack.c.l.b16 %v6366
        %v7711 = vunpack.c.l.b16 %v6367
        %v7712 = vunpack.c.l.b16 %v6368
        %v7713 = vunpack.c.l.b16 %v6369
        %v7714 = vunpack.c.l.b16 %v6370
        %v7715 = vunpack.c.l.b16 %v6371
        %v7716 = vunpack.c.l.b16 %v6372
        %v7717 = vunpack.c.l.b16 %v6373
        %v7718 = vunpack.c.l.b16 %v6374
        %v7719 = vunpack.c.l.b16 %v6375
        %v7720 = vunpack.c.l.b16 %v6376
        %v7721 = vunpack.c.l.b16 %v6377
        %v7722 = vunpack.c.l.b16 %v6378
        %v7723 = vunpack.c.l.b16 %v6379
        %v7724 = vunpack.c.l.b16 %v6380
        %v7725 = vunpack.c.l.b16 %v6381
        %v7726 = vunpack.c.l.b16 %v6382
        %v7727 = vunpack.c.l.b16 %v6383
        %v7728 = vunpack.c.l.b16 %v6384
        %v7729 = vunpack.c.l.b16 %v6385
        %v7730 = vunpack.c.l.b16 %v6386
        %v7731 = vunpack.c.l.b16 %v6387
        %v7732 = vunpack.c.l.b16 %v6388
        %v7733 = vunpack.c.l.b16 %v6389
        %v7734 = vunpack.c.l.b16 %v6390
        %v7735 = vunpack.c.l.b16 %v6391
        %v7736 = vunpack.c.l.b16 %v6392
        %v7737 = vunpack.c.l.b16 %v6393
        %v7738 = vunpack.c.l.b16 %v6394
        %v7739 = vunpack.c.l.b16 %v6395
        %v7740 = vunpack.c.l.b16 %v6396
        %v7741 = vunpack.c.l.b16 %v6397
        %v7742 = vunpack.c.l.b16 %v6398
        %v7743 = vunpack.c.l.b16 %v6399
        %v7744 = vunpack.c.l.b16 %v6400
        %v7745 = vunpack.c.l.b16 %v6401
        %v7746 = vunpack.c.l.b16 %v6402
        %v7747 = vunpack.c.l.b16 %v6403
        %v7748 = vunpack.c.l.b16 %v6404
        %v7749 = vunpack.c.l.b16 %v6405
        %v7750 = vunpack.c.l.b16 %v6406
        %v7751 = vunpack.c.l.b16 %v6407
        %v7752 = vunpack.c.l.b16 %v6408
        %v7753 = vunpack.c.l.b16 %v6409
        %v7754 = vunpack.c.l.b16 %v6410
        %v7755 = vunpack.c.l.b16 %v6411
        %v7756 = vunpack.c.l.b16 %v6412
        %v7757 = vunpack.c.l.b16 %v6413
        %v7758 = vunpack.c.l.b16 %v6414
        %v7759 = vunpack.c.l.b16 %v6415
        %v7760 = vunpack.c.l.b16 %v6416
        %v7761 = vunpack.c.l.b16 %v6417
        %v7762 = vunpack.c.l.b16 %v6418
        %v7763 = vunpack.c.l.b16 %v6419
        %v7764 = vunpack.c.l.b16 %v6420
        %v7765 = vunpack.c.l.b16 %v6421
        %v7766 = vunpack.c.l.b16 %v6422
        %v7767 = vunpack.c.l.b16 %v6423
        %v7768 = vunpack.c.l.b16 %v6424
        %v7769 = vunpack.c.l.b16 %v6425
        %v7770 = vunpack.c.l.b16 %v6426
        %v7771 = vunpack.c.l.b16 %v6427
        %v7772 = vunpack.c.l.b16 %v6428
        %v7773 = vunpack.c.l.b16 %v6429
        %v7774 = vunpack.c.l.b16 %v6430
        %v7775 = vunpack.c.l.b16 %v6431
        %v7776 = vunpack.c.l.b16 %v6432
        %v7777 = vunpack.c.l.b16 %v6433
        %v7778 = vunpack.c.l.b16 %v6434
        %v7779 = vunpack.c.l.b16 %v6435
        %v7780 = vunpack.c.l.b16 %v6436
        %v7781 = vunpack.c.l.b16 %v6437
        %v7782 = vunpack.c.l.b16 %v6438
        %v7783 = vunpack.c.l.b16 %v6439
        %v7784 = vunpack.c.l.b16 %v6440
        %v7785 = vunpack.c.l.b16 %v6441
        %v7786 = vunpack.c.l.b16 %v6442
        %v7787 = vunpack.c.l.b16 %v6443
        %v7788 = vunpack.c.l.b16 %v6444
        %v7789 = vunpack.c.l.b16 %v6445
        %v7790 = vunpack.c.l.b16 %v6446
        %v7791 = vunpack.c.l.b16 %v6447
        %v7792 = vunpack.c.l.b16 %v6448
        %v7793 = vunpack.c.l.b16 %v6449
        %v7794 = vunpack.c.l.b16 %v6450
        %v7795 = vunpack.c.l.b16 %v6451
        %v7796 = vunpack.c.l.b16 %v6452
        %v7797 = vunpack.c.l.b16 %v6453
        %v7798 = vunpack.c.l.b16 %v6454
        %v7799 = vunpack.c.l.b16 %v6455
        %v7800 = vunpack.c.l.b16 %v6456
        %v7801 = vunpack.c.l.b16 %v6457
        %v7802 = vunpack.c.l.b16 %v6458
        %v7803 = vunpack.c.l.b16 %v6459
        %v7804 = vunpack.c.l.b16 %v6460
        %v7805 = vunpack.c.l.b16 %v6461
        %v7806 = vunpack.c.l.b16 %v6462
        %v7807 = vunpack.c.l.b16 %v6463
        %v7808 = vunpack.c.l.b16 %v6464
        %v7809 = vunpack.c.l.b16 %v6465
        %v7810 = vunpack.c.l.b16 %v6466
        %v7811 = vunpack.c.l.b16 %v6467
        %v7812 = vunpack.c.l.b16 %v6468
        %v7813 = vunpack.c.l.b16 %v6469
        %v7814 = vunpack.c.l.b16 %v6470
        %v7815 = vunpack.c.l.b16 %v6471
        %v7816 = vunpack.c.l.b16 %v6472
        %v7817 = vunpack.c.l.b16 %v6473
        %v7818 = vunpack.c.l.b16 %v6474
        %v7819 = vunpack.c.l.b16 %v6475
        %v7820 = vunpack.c.l.b16 %v6476
        %v7821 = vunpack.c.l.b16 %v6477
        %v7822 = vunpack.c.l.b16 %v6478
        %v7823 = vunpack.c.l.b16 %v6479
        %v7824 = vunpack.c.l.b16 %v6480
        %v7825 = vunpack.c.l.b16 %v6481
        %v7826 = vunpack.c.l.b16 %v6482
        %v7827 = vunpack.c.l.b16 %v6483
        %v7828 = vunpack.c.l.b16 %v6484
        %v7829 = vunpack.c.l.b16 %v6485
        %v7830 = vunpack.c.l.b16 %v6486
        %v7831 = vunpack.c.l.b16 %v6487
        %v7832 = vunpack.c.l.b16 %v6488
        %v7833 = vunpack.c.l.b16 %v6489
        %v7834 = vunpack.c.l.b16 %v6490
        %v7835 = vunpack.c.l.b16 %v6491
        %v7836 = vunpack.c.l.b16 %v6492
        %v7837 = vunpack.c.l.b16 %v6493
        %v7838 = vunpack.c.l.b16 %v6494
        %v7839 = vunpack.c.l.b16 %v6495
        %v7840 = vunpack.c.l.b16 %v6496
        %v7841 = vunpack.c.l.b16 %v6497
        %v7842 = vunpack.c.l.b16 %v6498
        %v7843 = vunpack.c.l.b16 %v6499
        %v7844 = vunpack.c.l.b16 %v6500
        %v7845 = vunpack.c.l.b16 %v6501
        %v7846 = vunpack.c.l.b16 %v6502
        %v7847 = vunpack.c.l.b16 %v6503
        %v7848 = vunpack.c.l.b16 %v6504
        %v7849 = vunpack.c.l.b16 %v6505
        %v7850 = vunpack.c.l.b16 %v6506
        %v7851 = vunpack.c.l.b16 %v6507
        %v7852 = vunpack.c.l.b16 %v6508
        %v7853 = vunpack.c.l.b16 %v6509
        %v7854 = vunpack.c.l.b16 %v6510
        %v7855 = vunpack.c.l.b16 %v6511
        %v7856 = vunpack.c.l.b16 %v6512
        %v7857 = vunpack.c.l.b16 %v6513
        %v7858 = vunpack.c.l.b16 %v6514
        %v7859 = vunpack.c.l.b16 %v6515
        %v7860 = vpack.c.b16 %v7669, %v7668
        %v7861 = vpack.c.b16 %v7671, %v7670
        %v7862 = vpack.c.b16 %v7673, %v7672
        %v7863 = vpack.c.b16 %v7675, %v7674
        %v7864 = vpack.c.b16 %v7677, %v7676
        %v7865 = vpack.c.b16 %v7679, %v7678
        %v7866 = vpack.c.b16 %v7681, %v7680
        %v7867 = vpack.c.b16 %v7683, %v7682
        %v7868 = vpack.c.b16 %v7685, %v7684
        %v7869 = vpack.c.b16 %v7687, %v7686
        %v7870 = vpack.c.b16 %v7689, %v7688
        %v7871 = vpack.c.b16 %v7691, %v7690
        %v7872 = vpack.c.b16 %v7693, %v7692
        %v7873 = vpack.c.b16 %v7695, %v7694
        %v7874 = vpack.c.b16 %v7697, %v7696
        %v7875 = vpack.c.b16 %v7699, %v7698
        %v7876 = vpack.c.b16 %v7701, %v7700
        %v7877 = vpack.c.b16 %v7703, %v7702
        %v7878 = vpack.c.b16 %v7705, %v7704
        %v7879 = vpack.c.b16 %v7707, %v7706
        %v7880 = vpack.c.b16 %v7709, %v7708
        %v7881 = vpack.c.b16 %v7711, %v7710
        %v7882 = vpack.c.b16 %v7713, %v7712
        %v7883 = vpack.c.b16 %v7715, %v7714
        %v7884 = vpack.c.b16 %v7717, %v7716
        %v7885 = vpack.c.b16 %v7719, %v7718
        %v7886 = vpack.c.b16 %v7721, %v7720
        %v7887 = vpack.c.b16 %v7723, %v7722
        %v7888 = vpack.c.b16 %v7725, %v7724
        %v7889 = vpack.c.b16 %v7727, %v7726
        %v7890 = vpack.c.b16 %v7729, %v7728
        %v7891 = vpack.c.b16 %v7731, %v7730
        %v7892 = vpack.c.b16 %v7733, %v7732
        %v7893 = vpack.c.b16 %v7735, %v7734
        %v7894 = vpack.c.b16 %v7737, %v7736
        %v7895 = vpack.c.b16 %v7739, %v7738
        %v7896 = vpack.c.b16 %v7741, %v7740
        %v7897 = vpack.c.b16 %v7743, %v7742
        %v7898 = vpack.c.b16 %v7745, %v7744
        %v7899 = vpack.c.b16 %v7747, %v7746
        %v7900 = vpack.c.b16 %v7749, %v7748
        %v7901 = vpack.c.b16 %v7751, %v7750
        %v7902 = vpack.c.b16 %v7753, %v7752
        %v7903 = vpack.c.b16 %v7755, %v7754
        %v7904 = vpack.c.b16 %v7757, %v7756
        %v7905 = vpack.c.b16 %v7759, %v7758
        %v7906 = vpack.c.b16 %v7761, %v7760
        %v7907 = vpack.c.b16 %v7763, %v7762
        %v7908 = vpack.c.b16 %v7765, %v7764
        %v7909 = vpack.c.b16 %v7767, %v7766
        %v7910 = vpack.c.b16 %v7769, %v7768
        %v7911 = vpack.c.b16 %v7771, %v7770
        %v7912 = vpack.c.b16 %v7773, %v7772
        %v7913 = vpack.c.b16 %v7775, %v7774
        %v7914 = vpack.c.b16 %v7777, %v7776
        %v7915 = vpack.c.b16 %v7779, %v7778
        %v7916 = vpack.c.b16 %v7781, %v7780
        %v7917 = vpack.c.b16 %v7783, %v7782
        %v7918 = vpack.c.b16 %v7785, %v7784
        %v7919 = vpack.c.b16 %v7787, %v7786
        %v7920 = vpack.c.b16 %v7789, %v7788
        %v7921 = vpack.c.b16 %v7791, %v7790
        %v7922 = vpack.c.b16 %v7793, %v7792
        %v7923 = vpack.c.b16 %v7795, %v7794
        %v7924 = vpack.c.b16 %v7797, %v7796
        %v7925 = vpack.c.b16 %v7799, %v7798
        %v7926 = vpack.c.b16 %v7801, %v7800
        %v7927 = vpack.c.b16 %v7803, %v7802
        %v7928 = vpack.c.b16 %v7805, %v7804
        %v7929 = vpack.c.b16 %v7807, %v7806
        %v7930 = vpack.c.b16 %v7809, %v7808
        %v7931 = vpack.c.b16 %v7811, %v7810
        %v7932 = vpack.c.b16 %v7813, %v7812
        %v7933 = vpack.c.b16 %v7815, %v7814
        %v7934 = vpack.c.b16 %v7817, %v7816
        %v7935 = vpack.c.b16 %v7819, %v7818
        %v7936 = vpack.c.b16 %v7821, %v7820
        %v7937 = vpack.c.b16 %v7823, %v7822
        %v7938 = vpack.c.b16 %v7825, %v7824
        %v7939 = vpack.c.b16 %v7827, %v7826
        %v7940 = vpack.c.b16 %v7829, %v7828
        %v7941 = vpack.c.b16 %v7831, %v7830
        %v7942 = vpack.c.b16 %v7833, %v7832
        %v7943 = vpack.c.b16 %v7835, %v7834
        %v7944 = vpack.c.b16 %v7837, %v7836
        %v7945 = vpack.c.b16 %v7839, %v7838
        %v7946 = vpack.c.b16 %v7841, %v7840
        %v7947 = vpack.c.b16 %v7843, %v7842
        %v7948 = vpack.c.b16 %v7845, %v7844
        %v7949 = vpack.c.b16 %v7847, %v7846
        %v7950 = vpack.c.b16 %v7849, %v7848
        %v7951 = vpack.c.b16 %v7851, %v7850
        %v7952 = vpack.c.b16 %v7853, %v7852
        %v7953 = vpack.c.b16 %v7855, %v7854
        %v7954 = vpack.c.b16 %v7857, %v7856
        %v7955 = vpack.c.b16 %v7859, %v7858
        %8052 = vmatprep.subr.bf16.mxu0 0
        %8053 = vmatpush1.bf16.msra.mxu0 %v7860
        %8054 = vmatprep.subr.bf16.mxu0 0
        %8055 = vmatpush1.bf16.msra.mxu0 %v7861
        %8056 = vmatprep.subr.bf16.mxu0 0
        %8057 = vmatpush1.bf16.msra.mxu0 %v7862
        %8058 = vmatprep.subr.bf16.mxu0 0
        %8059 = vmatpush1.bf16.msra.mxu0 %v7863
        %8060 = vmatprep.subr.bf16.mxu0 0
        %8061 = vmatpush1.bf16.msra.mxu0 %v7864
        %8062 = vmatprep.subr.bf16.mxu0 0
        %8063 = vmatpush1.bf16.msra.mxu0 %v7865
        %8064 = vmatprep.subr.bf16.mxu0 0
        %8065 = vmatpush1.bf16.msra.mxu0 %v7866
        %8066 = vmatprep.subr.bf16.mxu0 0
        %8067 = vmatpush1.bf16.msra.mxu0 %v7867
        %8068 = vmatprep.subr.bf16.mxu0 0
        %8069 = vmatpush1.bf16.msra.mxu0 %v7868
        %8070 = vmatprep.subr.bf16.mxu0 0
        %8071 = vmatpush1.bf16.msra.mxu0 %v7869
        %8072 = vmatprep.subr.bf16.mxu0 0
        %8073 = vmatpush1.bf16.msra.mxu0 %v7870
        %8074 = vmatprep.subr.bf16.mxu0 0
        %8075 = vmatpush1.bf16.msra.mxu0 %v7871
        %8076 = vmatprep.subr.bf16.mxu0 0
        %8077 = vmatpush1.bf16.msra.mxu0 %v7872
        %8078 = vmatprep.subr.bf16.mxu0 0
        %8079 = vmatpush1.bf16.msra.mxu0 %v7873
        %8080 = vmatprep.subr.bf16.mxu0 0
        %8081 = vmatpush1.bf16.msra.mxu0 %v7874
        %8082 = vmatprep.subr.bf16.mxu0 0
        %8083 = vmatpush1.bf16.msra.mxu0 %v7875
        %8084 = vmatprep.mubr.bf16.mxu0 %v7093
        %8085 = vmatmul.mubr.bf16.gmra.mrb[0].mxu0 %v7092
        %v8086 = vpop.f32.mrb[0].mxu0
        %v8087 = vadd.f32 0.0, %v8086
        %v8088 = vpop.f32.mrb[0].mxu0
        %v8089 = vpop.f32.mrb[0].mxu0
        %v8090 = vadd.f32 0.0, %v8089
        %v8091 = vpop.f32.mrb[0].mxu0
        %8092 = vmatprep.mubr.bf16.mxu0 %v7105
        %8093 = vmatmul.mubr.bf16.gmra.mrb[0].mxu0 %v7104
        %v8094 = vpop.f32.mrb[0].mxu0
        %v8095 = vadd.f32 0.0, %v8094
        %v8096 = vpop.f32.mrb[0].mxu0
        %v8097 = vpop.f32.mrb[0].mxu0
        %v8098 = vadd.f32 0.0, %v8097
        %v8099 = vpop.f32.mrb[0].mxu0
        %8100 = vmatprep.mubr.bf16.mxu0 %v7117
        %8101 = vmatmul.mubr.bf16.gmra.mrb[0].mxu0 %v7116
        %v8102 = vpop.f32.mrb[0].mxu0
        %v8103 = vadd.f32 0.0, %v8102
        %v8104 = vpop.f32.mrb[0].mxu0
        %v8105 = vpop.f32.mrb[0].mxu0
        %v8106 = vadd.f32 0.0, %v8105
        %v8107 = vpop.f32.mrb[0].mxu0
        %8108 = vmatprep.mubr.bf16.mxu0 %v7129
        %8109 = vmatmul.mubr.bf16.gmra.mrb[0].mxu0 %v7128
        %v8110 = vpop.f32.mrb[0].mxu0
        %v8111 = vadd.f32 0.0, %v8110
        %v8112 = vpop.f32.mrb[0].mxu0
        %v8113 = vpop.f32.mrb[0].mxu0
        %v8114 = vadd.f32 0.0, %v8113
        %v8115 = vpop.f32.mrb[0].mxu0
        %8116 = vmatprep.mubr.bf16.mxu0 %v7141
        %8117 = vmatmul.mubr.bf16.gmra.mrb[0].mxu0 %v7140
        %v8118 = vpop.f32.mrb[0].mxu0
        %v8119 = vadd.f32 0.0, %v8118
        %v8120 = vpop.f32.mrb[0].mxu0
        %v8121 = vpop.f32.mrb[0].mxu0
        %v8122 = vadd.f32 0.0, %v8121
        %v8123 = vpop.f32.mrb[0].mxu0
        %8124 = vmatprep.mubr.bf16.mxu0 %v7153
        %8125 = vmatmul.mubr.bf16.gmra.mrb[0].mxu0 %v7152
        %v8126 = vpop.f32.mrb[0].mxu0
        %v8127 = vadd.f32 0.0, %v8126
        %v8128 = vpop.f32.mrb[0].mxu0
        %v8129 = vpop.f32.mrb[0].mxu0
        %v8130 = vadd.f32 0.0, %v8129
        %v8131 = vpop.f32.mrb[0].mxu0
        %8132 = vmatprep.mubr.bf16.mxu0 %v7165
        %8133 = vmatmul.mubr.bf16.gmra.mrb[0].mxu0 %v7164
        %v8134 = vpop.f32.mrb[0].mxu0
        %v8135 = vadd.f32 0.0, %v8134
        %v8136 = vpop.f32.mrb[0].mxu0
        %v8137 = vpop.f32.mrb[0].mxu0
        %v8138 = vadd.f32 0.0, %v8137
        %v8139 = vpop.f32.mrb[0].mxu0
        %8140 = vmatprep.mubr.bf16.mxu0 %v7177
        %8141 = vmatmul.mubr.bf16.gmra.mrb[0].mxu0 %v7176
        %v8142 = vpop.f32.mrb[0].mxu0
        %v8143 = vadd.f32 0.0, %v8142
        %v8144 = vpop.f32.mrb[0].mxu0
        %v8145 = vpop.f32.mrb[0].mxu0
        %v8146 = vadd.f32 0.0, %v8145
        %v8147 = vpop.f32.mrb[0].mxu0
        %8148 = vmatprep.mubr.bf16.mxu0 %v7189
        %8149 = vmatmul.mubr.bf16.gmra.mrb[0].mxu0 %v7188
        %v8150 = vpop.f32.mrb[0].mxu0
        %v8151 = vadd.f32 0.0, %v8150
        %v8152 = vpop.f32.mrb[0].mxu0
        %v8153 = vpop.f32.mrb[0].mxu0
        %v8154 = vadd.f32 0.0, %v8153
        %v8155 = vpop.f32.mrb[0].mxu0
        %8156 = vmatprep.mubr.bf16.mxu0 %v7201
        %8157 = vmatmul.mubr.bf16.gmra.mrb[0].mxu0 %v7200
        %v8158 = vpop.f32.mrb[0].mxu0
        %v8159 = vadd.f32 0.0, %v8158
        %v8160 = vpop.f32.mrb[0].mxu0
        %v8161 = vpop.f32.mrb[0].mxu0
        %v8162 = vadd.f32 0.0, %v8161
        %v8163 = vpop.f32.mrb[0].mxu0
        %8164 = vmatprep.mubr.bf16.mxu0 %v7213
        %8165 = vmatmul.mubr.bf16.gmra.mrb[0].mxu0 %v7212
        %v8166 = vpop.f32.mrb[0].mxu0
        %v8167 = vadd.f32 0.0, %v8166
        %v8168 = vpop.f32.mrb[0].mxu0
        %v8169 = vpop.f32.mrb[0].mxu0
        %v8170 = vadd.f32 0.0, %v8169
        %v8171 = vpop.f32.mrb[0].mxu0
        %8172 = vmatprep.mubr.bf16.mxu0 %v7225
        %8173 = vmatmul.mubr.bf16.gmra.mrb[0].mxu0 %v7224
        %v8174 = vpop.f32.mrb[0].mxu0
        %v8175 = vadd.f32 0.0, %v8174
        %v8176 = vpop.f32.mrb[0].mxu0
        %v8177 = vpop.f32.mrb[0].mxu0
        %v8178 = vadd.f32 0.0, %v8177
        %v8179 = vpop.f32.mrb[0].mxu0
        %8180 = vmatprep.mubr.bf16.mxu0 %v7237
        %8181 = vmatmul.mubr.bf16.gmra.mrb[0].mxu0 %v7236
        %v8182 = vpop.f32.mrb[0].mxu0
        %v8183 = vadd.f32 0.0, %v8182
        %v8184 = vpop.f32.mrb[0].mxu0
        %v8185 = vpop.f32.mrb[0].mxu0
        %v8186 = vadd.f32 0.0, %v8185
        %v8187 = vpop.f32.mrb[0].mxu0
        %8188 = vmatprep.mubr.bf16.mxu0 %v7249
        %8189 = vmatmul.mubr.bf16.gmra.mrb[0].mxu0 %v7248
        %v8190 = vpop.f32.mrb[0].mxu0
        %v8191 = vadd.f32 0.0, %v8190
        %v8192 = vpop.f32.mrb[0].mxu0
        %v8193 = vpop.f32.mrb[0].mxu0
        %v8194 = vadd.f32 0.0, %v8193
        %v8195 = vpop.f32.mrb[0].mxu0
        %8196 = vmatprep.mubr.bf16.mxu0 %v7261
        %8197 = vmatmul.mubr.bf16.gmra.mrb[0].mxu0 %v7260
        %v8198 = vpop.f32.mrb[0].mxu0
        %v8199 = vadd.f32 0.0, %v8198
        %v8200 = vpop.f32.mrb[0].mxu0
        %v8201 = vpop.f32.mrb[0].mxu0
        %v8202 = vadd.f32 0.0, %v8201
        %v8203 = vpop.f32.mrb[0].mxu0
        %8204 = vmatprep.mubr.bf16.mxu0 %v7273
        %8205 = vmatmul.mubr.bf16.gmra.mrb[0].mxu0 %v7272
        %v8206 = vpop.f32.mrb[0].mxu0
        %v8207 = vadd.f32 0.0, %v8206
        %v8208 = vpop.f32.mrb[0].mxu0
        %v8209 = vpop.f32.mrb[0].mxu0
        %v8210 = vadd.f32 0.0, %v8209
        %v8211 = vpop.f32.mrb[0].mxu0
        %8212 = vdwg.mxu0
        %8213 = vmatprep.subr.bf16.mxu0 0
        %8214 = vmatpush1.bf16.msra.mxu0 %v7876
        %8215 = vmatprep.subr.bf16.mxu0 0
        %8216 = vmatpush1.bf16.msra.mxu0 %v7877
        %8217 = vmatprep.subr.bf16.mxu0 0
        %8218 = vmatpush1.bf16.msra.mxu0 %v7878
        %8219 = vmatprep.subr.bf16.mxu0 0
        %8220 = vmatpush1.bf16.msra.mxu0 %v7879
        %8221 = vmatprep.subr.bf16.mxu0 0
        %8222 = vmatpush1.bf16.msra.mxu0 %v7880
        %8223 = vmatprep.subr.bf16.mxu0 0
        %8224 = vmatpush1.bf16.msra.mxu0 %v7881
        %8225 = vmatprep.subr.bf16.mxu0 0
        %8226 = vmatpush1.bf16.msra.mxu0 %v7882
        %8227 = vmatprep.subr.bf16.mxu0 0
        %8228 = vmatpush1.bf16.msra.mxu0 %v7883
        %8229 = vmatprep.subr.bf16.mxu0 0
        %8230 = vmatpush1.bf16.msra.mxu0 %v7884
        %8231 = vmatprep.subr.bf16.mxu0 0
        %8232 = vmatpush1.bf16.msra.mxu0 %v7885
        %8233 = vmatprep.subr.bf16.mxu0 0
        %8234 = vmatpush1.bf16.msra.mxu0 %v7886
        %8235 = vmatprep.subr.bf16.mxu0 0
        %8236 = vmatpush1.bf16.msra.mxu0 %v7887
        %8237 = vmatprep.subr.bf16.mxu0 0
        %8238 = vmatpush1.bf16.msra.mxu0 %v7888
        %8239 = vmatprep.subr.bf16.mxu0 0
        %8240 = vmatpush1.bf16.msra.mxu0 %v7889
        %8241 = vmatprep.subr.bf16.mxu0 0
        %8242 = vmatpush1.bf16.msra.mxu0 %v7890
        %8243 = vmatprep.subr.bf16.mxu0 0
        %8244 = vmatpush1.bf16.msra.mxu0 %v7891
        %8245 = vmatprep.mubr.bf16.mxu0 %v7095
        %8246 = vmatmul.mubr.bf16.gmra.mrb[0].mxu0 %v7094
        %v8247 = vpop.f32.mrb[0].mxu0
        %v8248 = vadd.f32 %v8087, %v8247
        %v8249 = vpop.f32.mrb[0].mxu0
        %v8250 = vpop.f32.mrb[0].mxu0
        %v8251 = vadd.f32 %v8090, %v8250
        %v8252 = vpop.f32.mrb[0].mxu0
        %8253 = vmatprep.mubr.bf16.mxu0 %v7107
        %8254 = vmatmul.mubr.bf16.gmra.mrb[0].mxu0 %v7106
        %v8255 = vpop.f32.mrb[0].mxu0
        %v8256 = vadd.f32 %v8095, %v8255
        %v8257 = vpop.f32.mrb[0].mxu0
        %v8258 = vpop.f32.mrb[0].mxu0
        %v8259 = vadd.f32 %v8098, %v8258
        %v8260 = vpop.f32.mrb[0].mxu0
        %8261 = vmatprep.mubr.bf16.mxu0 %v7119
        %8262 = vmatmul.mubr.bf16.gmra.mrb[0].mxu0 %v7118
        %v8263 = vpop.f32.mrb[0].mxu0
        %v8264 = vadd.f32 %v8103, %v8263
        %v8265 = vpop.f32.mrb[0].mxu0
        %v8266 = vpop.f32.mrb[0].mxu0
        %v8267 = vadd.f32 %v8106, %v8266
        %v8268 = vpop.f32.mrb[0].mxu0
        %8269 = vmatprep.mubr.bf16.mxu0 %v7131
        %8270 = vmatmul.mubr.bf16.gmra.mrb[0].mxu0 %v7130
        %v8271 = vpop.f32.mrb[0].mxu0
        %v8272 = vadd.f32 %v8111, %v8271
        %v8273 = vpop.f32.mrb[0].mxu0
        %v8274 = vpop.f32.mrb[0].mxu0
        %v8275 = vadd.f32 %v8114, %v8274
        %v8276 = vpop.f32.mrb[0].mxu0
        %8277 = vmatprep.mubr.bf16.mxu0 %v7143
        %8278 = vmatmul.mubr.bf16.gmra.mrb[0].mxu0 %v7142
        %v8279 = vpop.f32.mrb[0].mxu0
        %v8280 = vadd.f32 %v8119, %v8279
        %v8281 = vpop.f32.mrb[0].mxu0
        %v8282 = vpop.f32.mrb[0].mxu0
        %v8283 = vadd.f32 %v8122, %v8282
        %v8284 = vpop.f32.mrb[0].mxu0
        %8285 = vmatprep.mubr.bf16.mxu0 %v7155
        %8286 = vmatmul.mubr.bf16.gmra.mrb[0].mxu0 %v7154
        %v8287 = vpop.f32.mrb[0].mxu0
        %v8288 = vadd.f32 %v8127, %v8287
        %v8289 = vpop.f32.mrb[0].mxu0
        %v8290 = vpop.f32.mrb[0].mxu0
        %v8291 = vadd.f32 %v8130, %v8290
        %v8292 = vpop.f32.mrb[0].mxu0
        %8293 = vmatprep.mubr.bf16.mxu0 %v7167
        %8294 = vmatmul.mubr.bf16.gmra.mrb[0].mxu0 %v7166
        %v8295 = vpop.f32.mrb[0].mxu0
        %v8296 = vadd.f32 %v8135, %v8295
        %v8297 = vpop.f32.mrb[0].mxu0
        %v8298 = vpop.f32.mrb[0].mxu0
        %v8299 = vadd.f32 %v8138, %v8298
        %v8300 = vpop.f32.mrb[0].mxu0
        %8301 = vmatprep.mubr.bf16.mxu0 %v7179
        %8302 = vmatmul.mubr.bf16.gmra.mrb[0].mxu0 %v7178
        %v8303 = vpop.f32.mrb[0].mxu0
        %v8304 = vadd.f32 %v8143, %v8303
        %v8305 = vpop.f32.mrb[0].mxu0
        %v8306 = vpop.f32.mrb[0].mxu0
        %v8307 = vadd.f32 %v8146, %v8306
        %v8308 = vpop.f32.mrb[0].mxu0
        %8309 = vmatprep.mubr.bf16.mxu0 %v7191
        %8310 = vmatmul.mubr.bf16.gmra.mrb[0].mxu0 %v7190
        %v8311 = vpop.f32.mrb[0].mxu0
        %v8312 = vadd.f32 %v8151, %v8311
        %v8313 = vpop.f32.mrb[0].mxu0
        %v8314 = vpop.f32.mrb[0].mxu0
        %v8315 = vadd.f32 %v8154, %v8314
        %v8316 = vpop.f32.mrb[0].mxu0
        %8317 = vmatprep.mubr.bf16.mxu0 %v7203
        %8318 = vmatmul.mubr.bf16.gmra.mrb[0].mxu0 %v7202
        %v8319 = vpop.f32.mrb[0].mxu0
        %v8320 = vadd.f32 %v8159, %v8319
        %v8321 = vpop.f32.mrb[0].mxu0
        %v8322 = vpop.f32.mrb[0].mxu0
        %v8323 = vadd.f32 %v8162, %v8322
        %v8324 = vpop.f32.mrb[0].mxu0
        %8325 = vmatprep.mubr.bf16.mxu0 %v7215
        %8326 = vmatmul.mubr.bf16.gmra.mrb[0].mxu0 %v7214
        %v8327 = vpop.f32.mrb[0].mxu0
        %v8328 = vadd.f32 %v8167, %v8327
        %v8329 = vpop.f32.mrb[0].mxu0
        %v8330 = vpop.f32.mrb[0].mxu0
        %v8331 = vadd.f32 %v8170, %v8330
        %v8332 = vpop.f32.mrb[0].mxu0
        %8333 = vmatprep.mubr.bf16.mxu0 %v7227
        %8334 = vmatmul.mubr.bf16.gmra.mrb[0].mxu0 %v7226
        %v8335 = vpop.f32.mrb[0].mxu0
        %v8336 = vadd.f32 %v8175, %v8335
        %v8337 = vpop.f32.mrb[0].mxu0
        %v8338 = vpop.f32.mrb[0].mxu0
        %v8339 = vadd.f32 %v8178, %v8338
        %v8340 = vpop.f32.mrb[0].mxu0
        %8341 = vmatprep.mubr.bf16.mxu0 %v7239
        %8342 = vmatmul.mubr.bf16.gmra.mrb[0].mxu0 %v7238
        %v8343 = vpop.f32.mrb[0].mxu0
        %v8344 = vadd.f32 %v8183, %v8343
        %v8345 = vpop.f32.mrb[0].mxu0
        %v8346 = vpop.f32.mrb[0].mxu0
        %v8347 = vadd.f32 %v8186, %v8346
        %v8348 = vpop.f32.mrb[0].mxu0
        %8349 = vmatprep.mubr.bf16.mxu0 %v7251
        %8350 = vmatmul.mubr.bf16.gmra.mrb[0].mxu0 %v7250
        %v8351 = vpop.f32.mrb[0].mxu0
        %v8352 = vadd.f32 %v8191, %v8351
        %v8353 = vpop.f32.mrb[0].mxu0
        %v8354 = vpop.f32.mrb[0].mxu0
        %v8355 = vadd.f32 %v8194, %v8354
        %v8356 = vpop.f32.mrb[0].mxu0
        %8357 = vmatprep.mubr.bf16.mxu0 %v7263
        %8358 = vmatmul.mubr.bf16.gmra.mrb[0].mxu0 %v7262
        %v8359 = vpop.f32.mrb[0].mxu0
        %v8360 = vadd.f32 %v8199, %v8359
        %v8361 = vpop.f32.mrb[0].mxu0
        %v8362 = vpop.f32.mrb[0].mxu0
        %v8363 = vadd.f32 %v8202, %v8362
        %v8364 = vpop.f32.mrb[0].mxu0
        %8365 = vmatprep.mubr.bf16.mxu0 %v7275
        %8366 = vmatmul.mubr.bf16.gmra.mrb[0].mxu0 %v7274
        %v8367 = vpop.f32.mrb[0].mxu0
        %v8368 = vadd.f32 %v8207, %v8367
        %v8369 = vpop.f32.mrb[0].mxu0
        %v8370 = vpop.f32.mrb[0].mxu0
        %v8371 = vadd.f32 %v8210, %v8370
        %v8372 = vpop.f32.mrb[0].mxu0
        %8373 = vdwg.mxu0
        %8374 = vmatprep.subr.bf16.mxu0 0
        %8375 = vmatpush1.bf16.msra.mxu0 %v7892
        %8376 = vmatprep.subr.bf16.mxu0 0
        %8377 = vmatpush1.bf16.msra.mxu0 %v7893
        %8378 = vmatprep.subr.bf16.mxu0 0
        %8379 = vmatpush1.bf16.msra.mxu0 %v7894
        %8380 = vmatprep.subr.bf16.mxu0 0
        %8381 = vmatpush1.bf16.msra.mxu0 %v7895
        %8382 = vmatprep.subr.bf16.mxu0 0
        %8383 = vmatpush1.bf16.msra.mxu0 %v7896
        %8384 = vmatprep.subr.bf16.mxu0 0
        %8385 = vmatpush1.bf16.msra.mxu0 %v7897
        %8386 = vmatprep.subr.bf16.mxu0 0
        %8387 = vmatpush1.bf16.msra.mxu0 %v7898
        %8388 = vmatprep.subr.bf16.mxu0 0
        %8389 = vmatpush1.bf16.msra.mxu0 %v7899
        %8390 = vmatprep.subr.bf16.mxu0 0
        %8391 = vmatpush1.bf16.msra.mxu0 %v7900
        %8392 = vmatprep.subr.bf16.mxu0 0
        %8393 = vmatpush1.bf16.msra.mxu0 %v7901
        %8394 = vmatprep.subr.bf16.mxu0 0
        %8395 = vmatpush1.bf16.msra.mxu0 %v7902
        %8396 = vmatprep.subr.bf16.mxu0 0
        %8397 = vmatpush1.bf16.msra.mxu0 %v7903
        %8398 = vmatprep.subr.bf16.mxu0 0
        %8399 = vmatpush1.bf16.msra.mxu0 %v7904
        %8400 = vmatprep.subr.bf16.mxu0 0
        %8401 = vmatpush1.bf16.msra.mxu0 %v7905
        %8402 = vmatprep.subr.bf16.mxu0 0
        %8403 = vmatpush1.bf16.msra.mxu0 %v7906
        %8404 = vmatprep.subr.bf16.mxu0 0
        %8405 = vmatpush1.bf16.msra.mxu0 %v7907
        %8406 = vmatprep.mubr.bf16.mxu0 %v7097
        %8407 = vmatmul.mubr.bf16.gmra.mrb[0].mxu0 %v7096
        %v8408 = vpop.f32.mrb[0].mxu0
        %v8409 = vadd.f32 %v8248, %v8408
        %v8410 = vpop.f32.mrb[0].mxu0
        %v8411 = vpop.f32.mrb[0].mxu0
        %v8412 = vadd.f32 %v8251, %v8411
        %v8413 = vpop.f32.mrb[0].mxu0
        %8414 = vmatprep.mubr.bf16.mxu0 %v7109
        %8415 = vmatmul.mubr.bf16.gmra.mrb[0].mxu0 %v7108
        %v8416 = vpop.f32.mrb[0].mxu0
        %v8417 = vadd.f32 %v8256, %v8416
        %v8418 = vpop.f32.mrb[0].mxu0
        %v8419 = vpop.f32.mrb[0].mxu0
        %v8420 = vadd.f32 %v8259, %v8419
        %v8421 = vpop.f32.mrb[0].mxu0
        %8422 = vmatprep.mubr.bf16.mxu0 %v7121
        %8423 = vmatmul.mubr.bf16.gmra.mrb[0].mxu0 %v7120
        %v8424 = vpop.f32.mrb[0].mxu0
        %v8425 = vadd.f32 %v8264, %v8424
        %v8426 = vpop.f32.mrb[0].mxu0
        %v8427 = vpop.f32.mrb[0].mxu0
        %v8428 = vadd.f32 %v8267, %v8427
        %v8429 = vpop.f32.mrb[0].mxu0
        %8430 = vmatprep.mubr.bf16.mxu0 %v7133
        %8431 = vmatmul.mubr.bf16.gmra.mrb[0].mxu0 %v7132
        %v8432 = vpop.f32.mrb[0].mxu0
        %v8433 = vadd.f32 %v8272, %v8432
        %v8434 = vpop.f32.mrb[0].mxu0
        %v8435 = vpop.f32.mrb[0].mxu0
        %v8436 = vadd.f32 %v8275, %v8435
        %v8437 = vpop.f32.mrb[0].mxu0
        %8438 = vmatprep.mubr.bf16.mxu0 %v7145
        %8439 = vmatmul.mubr.bf16.gmra.mrb[0].mxu0 %v7144
        %v8440 = vpop.f32.mrb[0].mxu0
        %v8441 = vadd.f32 %v8280, %v8440
        %v8442 = vpop.f32.mrb[0].mxu0
        %v8443 = vpop.f32.mrb[0].mxu0
        %v8444 = vadd.f32 %v8283, %v8443
        %v8445 = vpop.f32.mrb[0].mxu0
        %8446 = vmatprep.mubr.bf16.mxu0 %v7157
        %8447 = vmatmul.mubr.bf16.gmra.mrb[0].mxu0 %v7156
        %v8448 = vpop.f32.mrb[0].mxu0
        %v8449 = vadd.f32 %v8288, %v8448
        %v8450 = vpop.f32.mrb[0].mxu0
        %v8451 = vpop.f32.mrb[0].mxu0
        %v8452 = vadd.f32 %v8291, %v8451
        %v8453 = vpop.f32.mrb[0].mxu0
        %8454 = vmatprep.mubr.bf16.mxu0 %v7169
        %8455 = vmatmul.mubr.bf16.gmra.mrb[0].mxu0 %v7168
        %v8456 = vpop.f32.mrb[0].mxu0
        %v8457 = vadd.f32 %v8296, %v8456
        %v8458 = vpop.f32.mrb[0].mxu0
        %v8459 = vpop.f32.mrb[0].mxu0
        %v8460 = vadd.f32 %v8299, %v8459
        %v8461 = vpop.f32.mrb[0].mxu0
        %8462 = vmatprep.mubr.bf16.mxu0 %v7181
        %8463 = vmatmul.mubr.bf16.gmra.mrb[0].mxu0 %v7180
        %v8464 = vpop.f32.mrb[0].mxu0
        %v8465 = vadd.f32 %v8304, %v8464
        %v8466 = vpop.f32.mrb[0].mxu0
        %v8467 = vpop.f32.mrb[0].mxu0
        %v8468 = vadd.f32 %v8307, %v8467
        %v8469 = vpop.f32.mrb[0].mxu0
        %8470 = vmatprep.mubr.bf16.mxu0 %v7193
        %8471 = vmatmul.mubr.bf16.gmra.mrb[0].mxu0 %v7192
        %v8472 = vpop.f32.mrb[0].mxu0
        %v8473 = vadd.f32 %v8312, %v8472
        %v8474 = vpop.f32.mrb[0].mxu0
        %v8475 = vpop.f32.mrb[0].mxu0
        %v8476 = vadd.f32 %v8315, %v8475
        %v8477 = vpop.f32.mrb[0].mxu0
        %8478 = vmatprep.mubr.bf16.mxu0 %v7205
        %8479 = vmatmul.mubr.bf16.gmra.mrb[0].mxu0 %v7204
        %v8480 = vpop.f32.mrb[0].mxu0
        %v8481 = vadd.f32 %v8320, %v8480
        %v8482 = vpop.f32.mrb[0].mxu0
        %v8483 = vpop.f32.mrb[0].mxu0
        %v8484 = vadd.f32 %v8323, %v8483
        %v8485 = vpop.f32.mrb[0].mxu0
        %8486 = vmatprep.mubr.bf16.mxu0 %v7217
        %8487 = vmatmul.mubr.bf16.gmra.mrb[0].mxu0 %v7216
        %v8488 = vpop.f32.mrb[0].mxu0
        %v8489 = vadd.f32 %v8328, %v8488
        %v8490 = vpop.f32.mrb[0].mxu0
        %v8491 = vpop.f32.mrb[0].mxu0
        %v8492 = vadd.f32 %v8331, %v8491
        %v8493 = vpop.f32.mrb[0].mxu0
        %8494 = vmatprep.mubr.bf16.mxu0 %v7229
        %8495 = vmatmul.mubr.bf16.gmra.mrb[0].mxu0 %v7228
        %v8496 = vpop.f32.mrb[0].mxu0
        %v8497 = vadd.f32 %v8336, %v8496
        %v8498 = vpop.f32.mrb[0].mxu0
        %v8499 = vpop.f32.mrb[0].mxu0
        %v8500 = vadd.f32 %v8339, %v8499
        %v8501 = vpop.f32.mrb[0].mxu0
        %8502 = vmatprep.mubr.bf16.mxu0 %v7241
        %8503 = vmatmul.mubr.bf16.gmra.mrb[0].mxu0 %v7240
        %v8504 = vpop.f32.mrb[0].mxu0
        %v8505 = vadd.f32 %v8344, %v8504
        %v8506 = vpop.f32.mrb[0].mxu0
        %v8507 = vpop.f32.mrb[0].mxu0
        %v8508 = vadd.f32 %v8347, %v8507
        %v8509 = vpop.f32.mrb[0].mxu0
        %8510 = vmatprep.mubr.bf16.mxu0 %v7253
        %8511 = vmatmul.mubr.bf16.gmra.mrb[0].mxu0 %v7252
        %v8512 = vpop.f32.mrb[0].mxu0
        %v8513 = vadd.f32 %v8352, %v8512
        %v8514 = vpop.f32.mrb[0].mxu0
        %v8515 = vpop.f32.mrb[0].mxu0
        %v8516 = vadd.f32 %v8355, %v8515
        %v8517 = vpop.f32.mrb[0].mxu0
        %8518 = vmatprep.mubr.bf16.mxu0 %v7265
        %8519 = vmatmul.mubr.bf16.gmra.mrb[0].mxu0 %v7264
        %v8520 = vpop.f32.mrb[0].mxu0
        %v8521 = vadd.f32 %v8360, %v8520
        %v8522 = vpop.f32.mrb[0].mxu0
        %v8523 = vpop.f32.mrb[0].mxu0
        %v8524 = vadd.f32 %v8363, %v8523
        %v8525 = vpop.f32.mrb[0].mxu0
        %8526 = vmatprep.mubr.bf16.mxu0 %v7277
        %8527 = vmatmul.mubr.bf16.gmra.mrb[0].mxu0 %v7276
        %v8528 = vpop.f32.mrb[0].mxu0
        %v8529 = vadd.f32 %v8368, %v8528
        %v8530 = vpop.f32.mrb[0].mxu0
        %v8531 = vpop.f32.mrb[0].mxu0
        %v8532 = vadd.f32 %v8371, %v8531
        %v8533 = vpop.f32.mrb[0].mxu0
        %8534 = vdwg.mxu0
        %8535 = vmatprep.subr.bf16.mxu0 0
        %8536 = vmatpush1.bf16.msra.mxu0 %v7908
        %8537 = vmatprep.subr.bf16.mxu0 0
        %8538 = vmatpush1.bf16.msra.mxu0 %v7909
        %8539 = vmatprep.subr.bf16.mxu0 0
        %8540 = vmatpush1.bf16.msra.mxu0 %v7910
        %8541 = vmatprep.subr.bf16.mxu0 0
        %8542 = vmatpush1.bf16.msra.mxu0 %v7911
        %8543 = vmatprep.subr.bf16.mxu0 0
        %8544 = vmatpush1.bf16.msra.mxu0 %v7912
        %8545 = vmatprep.subr.bf16.mxu0 0
        %8546 = vmatpush1.bf16.msra.mxu0 %v7913
        %8547 = vmatprep.subr.bf16.mxu0 0
        %8548 = vmatpush1.bf16.msra.mxu0 %v7914
        %8549 = vmatprep.subr.bf16.mxu0 0
        %8550 = vmatpush1.bf16.msra.mxu0 %v7915
        %8551 = vmatprep.subr.bf16.mxu0 0
        %8552 = vmatpush1.bf16.msra.mxu0 %v7916
        %8553 = vmatprep.subr.bf16.mxu0 0
        %8554 = vmatpush1.bf16.msra.mxu0 %v7917
        %8555 = vmatprep.subr.bf16.mxu0 0
        %8556 = vmatpush1.bf16.msra.mxu0 %v7918
        %8557 = vmatprep.subr.bf16.mxu0 0
        %8558 = vmatpush1.bf16.msra.mxu0 %v7919
        %8559 = vmatprep.subr.bf16.mxu0 0
        %8560 = vmatpush1.bf16.msra.mxu0 %v7920
        %8561 = vmatprep.subr.bf16.mxu0 0
        %8562 = vmatpush1.bf16.msra.mxu0 %v7921
        %8563 = vmatprep.subr.bf16.mxu0 0
        %8564 = vmatpush1.bf16.msra.mxu0 %v7922
        %8565 = vmatprep.subr.bf16.mxu0 0
        %8566 = vmatpush1.bf16.msra.mxu0 %v7923
        %8567 = vmatprep.mubr.bf16.mxu0 %v7099
        %8568 = vmatmul.mubr.bf16.gmra.mrb[0].mxu0 %v7098
        %v8569 = vpop.f32.mrb[0].mxu0
        %v8570 = vadd.f32 %v8409, %v8569
        %v8571 = vpop.f32.mrb[0].mxu0
        %v8572 = vpop.f32.mrb[0].mxu0
        %v8573 = vadd.f32 %v8412, %v8572
        %v8574 = vpop.f32.mrb[0].mxu0
        %8575 = vmatprep.mubr.bf16.mxu0 %v7111
        %8576 = vmatmul.mubr.bf16.gmra.mrb[0].mxu0 %v7110
        %v8577 = vpop.f32.mrb[0].mxu0
        %v8578 = vadd.f32 %v8417, %v8577
        %v8579 = vpop.f32.mrb[0].mxu0
        %v8580 = vpop.f32.mrb[0].mxu0
        %v8581 = vadd.f32 %v8420, %v8580
        %v8582 = vpop.f32.mrb[0].mxu0
        %8583 = vmatprep.mubr.bf16.mxu0 %v7123
        %8584 = vmatmul.mubr.bf16.gmra.mrb[0].mxu0 %v7122
        %v8585 = vpop.f32.mrb[0].mxu0
        %v8586 = vadd.f32 %v8425, %v8585
        %v8587 = vpop.f32.mrb[0].mxu0
        %v8588 = vpop.f32.mrb[0].mxu0
        %v8589 = vadd.f32 %v8428, %v8588
        %v8590 = vpop.f32.mrb[0].mxu0
        %8591 = vmatprep.mubr.bf16.mxu0 %v7135
        %8592 = vmatmul.mubr.bf16.gmra.mrb[0].mxu0 %v7134
        %v8593 = vpop.f32.mrb[0].mxu0
        %v8594 = vadd.f32 %v8433, %v8593
        %v8595 = vpop.f32.mrb[0].mxu0
        %v8596 = vpop.f32.mrb[0].mxu0
        %v8597 = vadd.f32 %v8436, %v8596
        %v8598 = vpop.f32.mrb[0].mxu0
        %8599 = vmatprep.mubr.bf16.mxu0 %v7147
        %8600 = vmatmul.mubr.bf16.gmra.mrb[0].mxu0 %v7146
        %v8601 = vpop.f32.mrb[0].mxu0
        %v8602 = vadd.f32 %v8441, %v8601
        %v8603 = vpop.f32.mrb[0].mxu0
        %v8604 = vpop.f32.mrb[0].mxu0
        %v8605 = vadd.f32 %v8444, %v8604
        %v8606 = vpop.f32.mrb[0].mxu0
        %8607 = vmatprep.mubr.bf16.mxu0 %v7159
        %8608 = vmatmul.mubr.bf16.gmra.mrb[0].mxu0 %v7158
        %v8609 = vpop.f32.mrb[0].mxu0
        %v8610 = vadd.f32 %v8449, %v8609
        %v8611 = vpop.f32.mrb[0].mxu0
        %v8612 = vpop.f32.mrb[0].mxu0
        %v8613 = vadd.f32 %v8452, %v8612
        %v8614 = vpop.f32.mrb[0].mxu0
        %8615 = vmatprep.mubr.bf16.mxu0 %v7171
        %8616 = vmatmul.mubr.bf16.gmra.mrb[0].mxu0 %v7170
        %v8617 = vpop.f32.mrb[0].mxu0
        %v8618 = vadd.f32 %v8457, %v8617
        %v8619 = vpop.f32.mrb[0].mxu0
        %v8620 = vpop.f32.mrb[0].mxu0
        %v8621 = vadd.f32 %v8460, %v8620
        %v8622 = vpop.f32.mrb[0].mxu0
        %8623 = vmatprep.mubr.bf16.mxu0 %v7183
        %8624 = vmatmul.mubr.bf16.gmra.mrb[0].mxu0 %v7182
        %v8625 = vpop.f32.mrb[0].mxu0
        %v8626 = vadd.f32 %v8465, %v8625
        %v8627 = vpop.f32.mrb[0].mxu0
        %v8628 = vpop.f32.mrb[0].mxu0
        %v8629 = vadd.f32 %v8468, %v8628
        %v8630 = vpop.f32.mrb[0].mxu0
        %8631 = vmatprep.mubr.bf16.mxu0 %v7195
        %8632 = vmatmul.mubr.bf16.gmra.mrb[0].mxu0 %v7194
        %v8633 = vpop.f32.mrb[0].mxu0
        %v8634 = vadd.f32 %v8473, %v8633
        %v8635 = vpop.f32.mrb[0].mxu0
        %v8636 = vpop.f32.mrb[0].mxu0
        %v8637 = vadd.f32 %v8476, %v8636
        %v8638 = vpop.f32.mrb[0].mxu0
        %8639 = vmatprep.mubr.bf16.mxu0 %v7207
        %8640 = vmatmul.mubr.bf16.gmra.mrb[0].mxu0 %v7206
        %v8641 = vpop.f32.mrb[0].mxu0
        %v8642 = vadd.f32 %v8481, %v8641
        %v8643 = vpop.f32.mrb[0].mxu0
        %v8644 = vpop.f32.mrb[0].mxu0
        %v8645 = vadd.f32 %v8484, %v8644
        %v8646 = vpop.f32.mrb[0].mxu0
        %8647 = vmatprep.mubr.bf16.mxu0 %v7219
        %8648 = vmatmul.mubr.bf16.gmra.mrb[0].mxu0 %v7218
        %v8649 = vpop.f32.mrb[0].mxu0
        %v8650 = vadd.f32 %v8489, %v8649
        %v8651 = vpop.f32.mrb[0].mxu0
        %v8652 = vpop.f32.mrb[0].mxu0
        %v8653 = vadd.f32 %v8492, %v8652
        %v8654 = vpop.f32.mrb[0].mxu0
        %8655 = vmatprep.mubr.bf16.mxu0 %v7231
        %8656 = vmatmul.mubr.bf16.gmra.mrb[0].mxu0 %v7230
        %v8657 = vpop.f32.mrb[0].mxu0
        %v8658 = vadd.f32 %v8497, %v8657
        %v8659 = vpop.f32.mrb[0].mxu0
        %v8660 = vpop.f32.mrb[0].mxu0
        %v8661 = vadd.f32 %v8500, %v8660
        %v8662 = vpop.f32.mrb[0].mxu0
        %8663 = vmatprep.mubr.bf16.mxu0 %v7243
        %8664 = vmatmul.mubr.bf16.gmra.mrb[0].mxu0 %v7242
        %v8665 = vpop.f32.mrb[0].mxu0
        %v8666 = vadd.f32 %v8505, %v8665
        %v8667 = vpop.f32.mrb[0].mxu0
        %v8668 = vpop.f32.mrb[0].mxu0
        %v8669 = vadd.f32 %v8508, %v8668
        %v8670 = vpop.f32.mrb[0].mxu0
        %8671 = vmatprep.mubr.bf16.mxu0 %v7255
        %8672 = vmatmul.mubr.bf16.gmra.mrb[0].mxu0 %v7254
        %v8673 = vpop.f32.mrb[0].mxu0
        %v8674 = vadd.f32 %v8513, %v8673
        %v8675 = vpop.f32.mrb[0].mxu0
        %v8676 = vpop.f32.mrb[0].mxu0
        %v8677 = vadd.f32 %v8516, %v8676
        %v8678 = vpop.f32.mrb[0].mxu0
        %8679 = vmatprep.mubr.bf16.mxu0 %v7267
        %8680 = vmatmul.mubr.bf16.gmra.mrb[0].mxu0 %v7266
        %v8681 = vpop.f32.mrb[0].mxu0
        %v8682 = vadd.f32 %v8521, %v8681
        %v8683 = vpop.f32.mrb[0].mxu0
        %v8684 = vpop.f32.mrb[0].mxu0
        %v8685 = vadd.f32 %v8524, %v8684
        %v8686 = vpop.f32.mrb[0].mxu0
        %8687 = vmatprep.mubr.bf16.mxu0 %v7279
        %8688 = vmatmul.mubr.bf16.gmra.mrb[0].mxu0 %v7278
        %v8689 = vpop.f32.mrb[0].mxu0
        %v8690 = vadd.f32 %v8529, %v8689
        %v8691 = vpop.f32.mrb[0].mxu0
        %v8692 = vpop.f32.mrb[0].mxu0
        %v8693 = vadd.f32 %v8532, %v8692
        %v8694 = vpop.f32.mrb[0].mxu0
        %8695 = vdwg.mxu0
        %8696 = vmatprep.subr.bf16.mxu0 0
        %8697 = vmatpush1.bf16.msra.mxu0 %v7924
        %8698 = vmatprep.subr.bf16.mxu0 0
        %8699 = vmatpush1.bf16.msra.mxu0 %v7925
        %8700 = vmatprep.subr.bf16.mxu0 0
        %8701 = vmatpush1.bf16.msra.mxu0 %v7926
        %8702 = vmatprep.subr.bf16.mxu0 0
        %8703 = vmatpush1.bf16.msra.mxu0 %v7927
        %8704 = vmatprep.subr.bf16.mxu0 0
        %8705 = vmatpush1.bf16.msra.mxu0 %v7928
        %8706 = vmatprep.subr.bf16.mxu0 0
        %8707 = vmatpush1.bf16.msra.mxu0 %v7929
        %8708 = vmatprep.subr.bf16.mxu0 0
        %8709 = vmatpush1.bf16.msra.mxu0 %v7930
        %8710 = vmatprep.subr.bf16.mxu0 0
        %8711 = vmatpush1.bf16.msra.mxu0 %v7931
        %8712 = vmatprep.subr.bf16.mxu0 0
        %8713 = vmatpush1.bf16.msra.mxu0 %v7932
        %8714 = vmatprep.subr.bf16.mxu0 0
        %8715 = vmatpush1.bf16.msra.mxu0 %v7933
        %8716 = vmatprep.subr.bf16.mxu0 0
        %8717 = vmatpush1.bf16.msra.mxu0 %v7934
        %8718 = vmatprep.subr.bf16.mxu0 0
        %8719 = vmatpush1.bf16.msra.mxu0 %v7935
        %8720 = vmatprep.subr.bf16.mxu0 0
        %8721 = vmatpush1.bf16.msra.mxu0 %v7936
        %8722 = vmatprep.subr.bf16.mxu0 0
        %8723 = vmatpush1.bf16.msra.mxu0 %v7937
        %8724 = vmatprep.subr.bf16.mxu0 0
        %8725 = vmatpush1.bf16.msra.mxu0 %v7938
        %8726 = vmatprep.subr.bf16.mxu0 0
        %8727 = vmatpush1.bf16.msra.mxu0 %v7939
        %8728 = vmatprep.mubr.bf16.mxu0 %v7101
        %8729 = vmatmul.mubr.bf16.gmra.mrb[0].mxu0 %v7100
        %v8730 = vpop.f32.mrb[0].mxu0
        %v8731 = vadd.f32 %v8570, %v8730
        %v8732 = vpop.f32.mrb[0].mxu0
        %v8733 = vpop.f32.mrb[0].mxu0
        %v8734 = vadd.f32 %v8573, %v8733
        %v8735 = vpop.f32.mrb[0].mxu0
        %8736 = vmatprep.mubr.bf16.mxu0 %v7113
        %8737 = vmatmul.mubr.bf16.gmra.mrb[0].mxu0 %v7112
        %v8738 = vpop.f32.mrb[0].mxu0
        %v8739 = vadd.f32 %v8578, %v8738
        %v8740 = vpop.f32.mrb[0].mxu0
        %v8741 = vpop.f32.mrb[0].mxu0
        %v8742 = vadd.f32 %v8581, %v8741
        %v8743 = vpop.f32.mrb[0].mxu0
        %8744 = vmatprep.mubr.bf16.mxu0 %v7125
        %8745 = vmatmul.mubr.bf16.gmra.mrb[0].mxu0 %v7124
        %v8746 = vpop.f32.mrb[0].mxu0
        %v8747 = vadd.f32 %v8586, %v8746
        %v8748 = vpop.f32.mrb[0].mxu0
        %v8749 = vpop.f32.mrb[0].mxu0
        %v8750 = vadd.f32 %v8589, %v8749
        %v8751 = vpop.f32.mrb[0].mxu0
        %8752 = vmatprep.mubr.bf16.mxu0 %v7137
        %8753 = vmatmul.mubr.bf16.gmra.mrb[0].mxu0 %v7136
        %v8754 = vpop.f32.mrb[0].mxu0
        %v8755 = vadd.f32 %v8594, %v8754
        %v8756 = vpop.f32.mrb[0].mxu0
        %v8757 = vpop.f32.mrb[0].mxu0
        %v8758 = vadd.f32 %v8597, %v8757
        %v8759 = vpop.f32.mrb[0].mxu0
        %8760 = vmatprep.mubr.bf16.mxu0 %v7149
        %8761 = vmatmul.mubr.bf16.gmra.mrb[0].mxu0 %v7148
        %v8762 = vpop.f32.mrb[0].mxu0
        %v8763 = vadd.f32 %v8602, %v8762
        %v8764 = vpop.f32.mrb[0].mxu0
        %v8765 = vpop.f32.mrb[0].mxu0
        %v8766 = vadd.f32 %v8605, %v8765
        %v8767 = vpop.f32.mrb[0].mxu0
        %8768 = vmatprep.mubr.bf16.mxu0 %v7161
        %8769 = vmatmul.mubr.bf16.gmra.mrb[0].mxu0 %v7160
        %v8770 = vpop.f32.mrb[0].mxu0
        %v8771 = vadd.f32 %v8610, %v8770
        %v8772 = vpop.f32.mrb[0].mxu0
        %v8773 = vpop.f32.mrb[0].mxu0
        %v8774 = vadd.f32 %v8613, %v8773
        %v8775 = vpop.f32.mrb[0].mxu0
        %8776 = vmatprep.mubr.bf16.mxu0 %v7173
        %8777 = vmatmul.mubr.bf16.gmra.mrb[0].mxu0 %v7172
        %v8778 = vpop.f32.mrb[0].mxu0
        %v8779 = vadd.f32 %v8618, %v8778
        %v8780 = vpop.f32.mrb[0].mxu0
        %v8781 = vpop.f32.mrb[0].mxu0
        %v8782 = vadd.f32 %v8621, %v8781
        %v8783 = vpop.f32.mrb[0].mxu0
        %8784 = vmatprep.mubr.bf16.mxu0 %v7185
        %8785 = vmatmul.mubr.bf16.gmra.mrb[0].mxu0 %v7184
        %v8786 = vpop.f32.mrb[0].mxu0
        %v8787 = vadd.f32 %v8626, %v8786
        %v8788 = vpop.f32.mrb[0].mxu0
        %v8789 = vpop.f32.mrb[0].mxu0
        %v8790 = vadd.f32 %v8629, %v8789
        %v8791 = vpop.f32.mrb[0].mxu0
        %8792 = vmatprep.mubr.bf16.mxu0 %v7197
        %8793 = vmatmul.mubr.bf16.gmra.mrb[0].mxu0 %v7196
        %v8794 = vpop.f32.mrb[0].mxu0
        %v8795 = vadd.f32 %v8634, %v8794
        %v8796 = vpop.f32.mrb[0].mxu0
        %v8797 = vpop.f32.mrb[0].mxu0
        %v8798 = vadd.f32 %v8637, %v8797
        %v8799 = vpop.f32.mrb[0].mxu0
        %8800 = vmatprep.mubr.bf16.mxu0 %v7209
        %8801 = vmatmul.mubr.bf16.gmra.mrb[0].mxu0 %v7208
        %v8802 = vpop.f32.mrb[0].mxu0
        %v8803 = vadd.f32 %v8642, %v8802
        %v8804 = vpop.f32.mrb[0].mxu0
        %v8805 = vpop.f32.mrb[0].mxu0
        %v8806 = vadd.f32 %v8645, %v8805
        %v8807 = vpop.f32.mrb[0].mxu0
        %8808 = vmatprep.mubr.bf16.mxu0 %v7221
        %8809 = vmatmul.mubr.bf16.gmra.mrb[0].mxu0 %v7220
        %v8810 = vpop.f32.mrb[0].mxu0
        %v8811 = vadd.f32 %v8650, %v8810
        %v8812 = vpop.f32.mrb[0].mxu0
        %v8813 = vpop.f32.mrb[0].mxu0
        %v8814 = vadd.f32 %v8653, %v8813
        %v8815 = vpop.f32.mrb[0].mxu0
        %8816 = vmatprep.mubr.bf16.mxu0 %v7233
        %8817 = vmatmul.mubr.bf16.gmra.mrb[0].mxu0 %v7232
        %v8818 = vpop.f32.mrb[0].mxu0
        %v8819 = vadd.f32 %v8658, %v8818
        %v8820 = vpop.f32.mrb[0].mxu0
        %v8821 = vpop.f32.mrb[0].mxu0
        %v8822 = vadd.f32 %v8661, %v8821
        %v8823 = vpop.f32.mrb[0].mxu0
        %8824 = vmatprep.mubr.bf16.mxu0 %v7245
        %8825 = vmatmul.mubr.bf16.gmra.mrb[0].mxu0 %v7244
        %v8826 = vpop.f32.mrb[0].mxu0
        %v8827 = vadd.f32 %v8666, %v8826
        %v8828 = vpop.f32.mrb[0].mxu0
        %v8829 = vpop.f32.mrb[0].mxu0
        %v8830 = vadd.f32 %v8669, %v8829
        %v8831 = vpop.f32.mrb[0].mxu0
        %8832 = vmatprep.mubr.bf16.mxu0 %v7257
        %8833 = vmatmul.mubr.bf16.gmra.mrb[0].mxu0 %v7256
        %v8834 = vpop.f32.mrb[0].mxu0
        %v8835 = vadd.f32 %v8674, %v8834
        %v8836 = vpop.f32.mrb[0].mxu0
        %v8837 = vpop.f32.mrb[0].mxu0
        %v8838 = vadd.f32 %v8677, %v8837
        %v8839 = vpop.f32.mrb[0].mxu0
        %8840 = vmatprep.mubr.bf16.mxu0 %v7269
        %8841 = vmatmul.mubr.bf16.gmra.mrb[0].mxu0 %v7268
        %v8842 = vpop.f32.mrb[0].mxu0
        %v8843 = vadd.f32 %v8682, %v8842
        %v8844 = vpop.f32.mrb[0].mxu0
        %v8845 = vpop.f32.mrb[0].mxu0
        %v8846 = vadd.f32 %v8685, %v8845
        %v8847 = vpop.f32.mrb[0].mxu0
        %8848 = vmatprep.mubr.bf16.mxu0 %v7281
        %8849 = vmatmul.mubr.bf16.gmra.mrb[0].mxu0 %v7280
        %v8850 = vpop.f32.mrb[0].mxu0
        %v8851 = vadd.f32 %v8690, %v8850
        %v8852 = vpop.f32.mrb[0].mxu0
        %v8853 = vpop.f32.mrb[0].mxu0
        %v8854 = vadd.f32 %v8693, %v8853
        %v8855 = vpop.f32.mrb[0].mxu0
        %8856 = vdwg.mxu0
        %8857 = vmatprep.subr.bf16.mxu0 0
        %8858 = vmatpush1.bf16.msra.mxu0 %v7940
        %8859 = vmatprep.subr.bf16.mxu0 0
        %8860 = vmatpush1.bf16.msra.mxu0 %v7941
        %8861 = vmatprep.subr.bf16.mxu0 0
        %8862 = vmatpush1.bf16.msra.mxu0 %v7942
        %8863 = vmatprep.subr.bf16.mxu0 0
        %8864 = vmatpush1.bf16.msra.mxu0 %v7943
        %8865 = vmatprep.subr.bf16.mxu0 0
        %8866 = vmatpush1.bf16.msra.mxu0 %v7944
        %8867 = vmatprep.subr.bf16.mxu0 0
        %8868 = vmatpush1.bf16.msra.mxu0 %v7945
        %8869 = vmatprep.subr.bf16.mxu0 0
        %8870 = vmatpush1.bf16.msra.mxu0 %v7946
        %8871 = vmatprep.subr.bf16.mxu0 0
        %8872 = vmatpush1.bf16.msra.mxu0 %v7947
        %8873 = vmatprep.subr.bf16.mxu0 0
        %8874 = vmatpush1.bf16.msra.mxu0 %v7948
        %8875 = vmatprep.subr.bf16.mxu0 0
        %8876 = vmatpush1.bf16.msra.mxu0 %v7949
        %8877 = vmatprep.subr.bf16.mxu0 0
        %8878 = vmatpush1.bf16.msra.mxu0 %v7950
        %8879 = vmatprep.subr.bf16.mxu0 0
        %8880 = vmatpush1.bf16.msra.mxu0 %v7951
        %8881 = vmatprep.subr.bf16.mxu0 0
        %8882 = vmatpush1.bf16.msra.mxu0 %v7952
        %8883 = vmatprep.subr.bf16.mxu0 0
        %8884 = vmatpush1.bf16.msra.mxu0 %v7953
        %8885 = vmatprep.subr.bf16.mxu0 0
        %8886 = vmatpush1.bf16.msra.mxu0 %v7954
        %8887 = vmatprep.subr.bf16.mxu0 0
        %8888 = vmatpush1.bf16.msra.mxu0 %v7955
        %8889 = vmatprep.mubr.bf16.mxu0 %v7103
        %8890 = vmatmul.mubr.bf16.gmra.mrb[0].mxu0 %v7102
        %v8891 = vpop.f32.mrb[0].mxu0
        %v8892 = vadd.f32 %v8731, %v8891
        %v8893 = vpop.f32.mrb[0].mxu0
        %v8894 = vpop.f32.mrb[0].mxu0
        %v8895 = vadd.f32 %v8734, %v8894
        %v8896 = vpop.f32.mrb[0].mxu0
        %8897 = vmatprep.mubr.bf16.mxu0 %v7115
        %8898 = vmatmul.mubr.bf16.gmra.mrb[0].mxu0 %v7114
        %v8899 = vpop.f32.mrb[0].mxu0
        %v8900 = vadd.f32 %v8739, %v8899
        %v8901 = vpop.f32.mrb[0].mxu0
        %v8902 = vpop.f32.mrb[0].mxu0
        %v8903 = vadd.f32 %v8742, %v8902
        %v8904 = vpop.f32.mrb[0].mxu0
        %8905 = vmatprep.mubr.bf16.mxu0 %v7127
        %8906 = vmatmul.mubr.bf16.gmra.mrb[0].mxu0 %v7126
        %v8907 = vpop.f32.mrb[0].mxu0
        %v8908 = vadd.f32 %v8747, %v8907
        %v8909 = vpop.f32.mrb[0].mxu0
        %v8910 = vpop.f32.mrb[0].mxu0
        %v8911 = vadd.f32 %v8750, %v8910
        %v8912 = vpop.f32.mrb[0].mxu0
        %8913 = vmatprep.mubr.bf16.mxu0 %v7139
        %8914 = vmatmul.mubr.bf16.gmra.mrb[0].mxu0 %v7138
        %v8915 = vpop.f32.mrb[0].mxu0
        %v8916 = vadd.f32 %v8755, %v8915
        %v8917 = vpop.f32.mrb[0].mxu0
        %v8918 = vpop.f32.mrb[0].mxu0
        %v8919 = vadd.f32 %v8758, %v8918
        %v8920 = vpop.f32.mrb[0].mxu0
        %8921 = vmatprep.mubr.bf16.mxu0 %v7151
        %8922 = vmatmul.mubr.bf16.gmra.mrb[0].mxu0 %v7150
        %v8923 = vpop.f32.mrb[0].mxu0
        %v8924 = vadd.f32 %v8763, %v8923
        %v8925 = vpop.f32.mrb[0].mxu0
        %v8926 = vpop.f32.mrb[0].mxu0
        %v8927 = vadd.f32 %v8766, %v8926
        %v8928 = vpop.f32.mrb[0].mxu0
        %8929 = vmatprep.mubr.bf16.mxu0 %v7163
        %8930 = vmatmul.mubr.bf16.gmra.mrb[0].mxu0 %v7162
        %v8931 = vpop.f32.mrb[0].mxu0
        %v8932 = vadd.f32 %v8771, %v8931
        %v8933 = vpop.f32.mrb[0].mxu0
        %v8934 = vpop.f32.mrb[0].mxu0
        %v8935 = vadd.f32 %v8774, %v8934
        %v8936 = vpop.f32.mrb[0].mxu0
        %8937 = vmatprep.mubr.bf16.mxu0 %v7175
        %8938 = vmatmul.mubr.bf16.gmra.mrb[0].mxu0 %v7174
        %v8939 = vpop.f32.mrb[0].mxu0
        %v8940 = vadd.f32 %v8779, %v8939
        %v8941 = vpop.f32.mrb[0].mxu0
        %v8942 = vpop.f32.mrb[0].mxu0
        %v8943 = vadd.f32 %v8782, %v8942
        %v8944 = vpop.f32.mrb[0].mxu0
        %8945 = vmatprep.mubr.bf16.mxu0 %v7187
        %8946 = vmatmul.mubr.bf16.gmra.mrb[0].mxu0 %v7186
        %v8947 = vpop.f32.mrb[0].mxu0
        %v8948 = vadd.f32 %v8787, %v8947
        %v8949 = vpop.f32.mrb[0].mxu0
        %v8950 = vpop.f32.mrb[0].mxu0
        %v8951 = vadd.f32 %v8790, %v8950
        %v8952 = vpop.f32.mrb[0].mxu0
        %8953 = vmatprep.mubr.bf16.mxu0 %v7199
        %8954 = vmatmul.mubr.bf16.gmra.mrb[0].mxu0 %v7198
        %v8955 = vpop.f32.mrb[0].mxu0
        %v8956 = vadd.f32 %v8795, %v8955
        %v8957 = vpop.f32.mrb[0].mxu0
        %v8958 = vpop.f32.mrb[0].mxu0
        %v8959 = vadd.f32 %v8798, %v8958
        %v8960 = vpop.f32.mrb[0].mxu0
        %8961 = vmatprep.mubr.bf16.mxu0 %v7211
        %8962 = vmatmul.mubr.bf16.gmra.mrb[0].mxu0 %v7210
        %v8963 = vpop.f32.mrb[0].mxu0
        %v8964 = vadd.f32 %v8803, %v8963
        %v8965 = vpop.f32.mrb[0].mxu0
        %v8966 = vpop.f32.mrb[0].mxu0
        %v8967 = vadd.f32 %v8806, %v8966
        %v8968 = vpop.f32.mrb[0].mxu0
        %8969 = vmatprep.mubr.bf16.mxu0 %v7223
        %8970 = vmatmul.mubr.bf16.gmra.mrb[0].mxu0 %v7222
        %v8971 = vpop.f32.mrb[0].mxu0
        %v8972 = vadd.f32 %v8811, %v8971
        %v8973 = vpop.f32.mrb[0].mxu0
        %v8974 = vpop.f32.mrb[0].mxu0
        %v8975 = vadd.f32 %v8814, %v8974
        %v8976 = vpop.f32.mrb[0].mxu0
        %8977 = vmatprep.mubr.bf16.mxu0 %v7235
        %8978 = vmatmul.mubr.bf16.gmra.mrb[0].mxu0 %v7234
        %v8979 = vpop.f32.mrb[0].mxu0
        %v8980 = vadd.f32 %v8819, %v8979
        %v8981 = vpop.f32.mrb[0].mxu0
        %v8982 = vpop.f32.mrb[0].mxu0
        %v8983 = vadd.f32 %v8822, %v8982
        %v8984 = vpop.f32.mrb[0].mxu0
        %8985 = vmatprep.mubr.bf16.mxu0 %v7247
        %8986 = vmatmul.mubr.bf16.gmra.mrb[0].mxu0 %v7246
        %v8987 = vpop.f32.mrb[0].mxu0
        %v8988 = vadd.f32 %v8827, %v8987
        %v8989 = vpop.f32.mrb[0].mxu0
        %v8990 = vpop.f32.mrb[0].mxu0
        %v8991 = vadd.f32 %v8830, %v8990
        %v8992 = vpop.f32.mrb[0].mxu0
        %8993 = vmatprep.mubr.bf16.mxu0 %v7259
        %8994 = vmatmul.mubr.bf16.gmra.mrb[0].mxu0 %v7258
        %v8995 = vpop.f32.mrb[0].mxu0
        %v8996 = vadd.f32 %v8835, %v8995
        %v8997 = vpop.f32.mrb[0].mxu0
        %v8998 = vpop.f32.mrb[0].mxu0
        %v8999 = vadd.f32 %v8838, %v8998
        %v9000 = vpop.f32.mrb[0].mxu0
        %9001 = vmatprep.mubr.bf16.mxu0 %v7271
        %9002 = vmatmul.mubr.bf16.gmra.mrb[0].mxu0 %v7270
        %v9003 = vpop.f32.mrb[0].mxu0
        %v9004 = vadd.f32 %v8843, %v9003
        %v9005 = vpop.f32.mrb[0].mxu0
        %v9006 = vpop.f32.mrb[0].mxu0
        %v9007 = vadd.f32 %v8846, %v9006
        %v9008 = vpop.f32.mrb[0].mxu0
        %9009 = vmatprep.mubr.bf16.mxu0 %v7283
        %9010 = vmatmul.mubr.bf16.gmra.mrb[0].mxu0 %v7282
        %v9011 = vpop.f32.mrb[0].mxu0
        %v9012 = vadd.f32 %v8851, %v9011
        %v9013 = vpop.f32.mrb[0].mxu0
        %v9014 = vpop.f32.mrb[0].mxu0
        %v9015 = vadd.f32 %v8854, %v9014
        %v9016 = vpop.f32.mrb[0].mxu0
        %9017 = vdwg.mxu0
        %v9018 = vadd.f32 %v6004, %v8892
        %v9019 = vadd.f32 %v6007, %v8895
        %v9020 = vadd.f32 %v6012, %v8900
        %v9021 = vadd.f32 %v6015, %v8903
        %v9022 = vadd.f32 %v6020, %v8908
        %v9023 = vadd.f32 %v6023, %v8911
        %v9024 = vadd.f32 %v6028, %v8916
        %v9025 = vadd.f32 %v6031, %v8919
        %v9026 = vadd.f32 %v6036, %v8924
        %v9027 = vadd.f32 %v6039, %v8927
        %v9028 = vadd.f32 %v6044, %v8932
        %v9029 = vadd.f32 %v6047, %v8935
        %v9030 = vadd.f32 %v6052, %v8940
        %v9031 = vadd.f32 %v6055, %v8943
        %v9032 = vadd.f32 %v6060, %v8948
        %v9033 = vadd.f32 %v6063, %v8951
        %v9034 = vadd.f32 %v6068, %v8956
        %v9035 = vadd.f32 %v6071, %v8959
        %v9036 = vadd.f32 %v6076, %v8964
        %v9037 = vadd.f32 %v6079, %v8967
        %v9038 = vadd.f32 %v6084, %v8972
        %v9039 = vadd.f32 %v6087, %v8975
        %v9040 = vadd.f32 %v6092, %v8980
        %v9041 = vadd.f32 %v6095, %v8983
        %v9042 = vadd.f32 %v6100, %v8988
        %v9043 = vadd.f32 %v6103, %v8991
        %v9044 = vadd.f32 %v6108, %v8996
        %v9045 = vadd.f32 %v6111, %v8999
        %v9046 = vadd.f32 %v6116, %v9004
        %v9047 = vadd.f32 %v6119, %v9007
        %v9048 = vadd.f32 %v6124, %v9012
        %v9049 = vadd.f32 %v6127, %v9015
        %v9050 = vld [vmem:[#allocation7] sm:$0x1]
        %v9052 = vlaneseq
        %v9053 = vshrl.u32 %v9052, 7
        %v9054 = vsub.s32 0, %v9053
        %v9055 = vrot.slane %v9050, %v9054
        %v9057 = vmul.f32 %v9018, %v9055
        %v9058 = vmul.f32 %v9019, %v9055
        %v9059 = vmul.f32 %v9020, %v9055
        %v9060 = vmul.f32 %v9021, %v9055
        %v9061 = vmul.f32 %v9022, %v9055
        %v9062 = vmul.f32 %v9023, %v9055
        %v9063 = vmul.f32 %v9024, %v9055
        %v9064 = vmul.f32 %v9025, %v9055
        %v9065 = vmul.f32 %v9026, %v9055
        %v9066 = vmul.f32 %v9027, %v9055
        %v9067 = vmul.f32 %v9028, %v9055
        %v9068 = vmul.f32 %v9029, %v9055
        %v9069 = vmul.f32 %v9030, %v9055
        %v9070 = vmul.f32 %v9031, %v9055
        %v9071 = vmul.f32 %v9032, %v9055
        %v9072 = vmul.f32 %v9033, %v9055
        %v9073 = vmul.f32 %v9034, %v9055
        %v9074 = vmul.f32 %v9035, %v9055
        %v9075 = vmul.f32 %v9036, %v9055
        %v9076 = vmul.f32 %v9037, %v9055
        %v9077 = vmul.f32 %v9038, %v9055
        %v9078 = vmul.f32 %v9039, %v9055
        %v9079 = vmul.f32 %v9040, %v9055
        %v9080 = vmul.f32 %v9041, %v9055
        %v9081 = vmul.f32 %v9042, %v9055
        %v9082 = vmul.f32 %v9043, %v9055
        %v9083 = vmul.f32 %v9044, %v9055
        %v9084 = vmul.f32 %v9045, %v9055
        %v9085 = vmul.f32 %v9046, %v9055
        %v9086 = vmul.f32 %v9047, %v9055
        %v9087 = vmul.f32 %v9048, %v9055
        %v9088 = vmul.f32 %v9049, %v9055
        %v9089 = vld [vmem:[#allocation8] sm:$0x1]
        %v9091 = vlaneseq
        %v9092 = vshrl.u32 %v9091, 7
        %v9093 = vsub.s32 0, %v9092
        %v9094 = vrot.slane %v9089, %v9093
        %v9096 = vadd.f32 %v9057, %v9094
        %v9097 = vadd.f32 %v9058, %v9094
        %v9098 = vadd.f32 %v9059, %v9094
        %v9099 = vadd.f32 %v9060, %v9094
        %v9100 = vadd.f32 %v9061, %v9094
        %v9101 = vadd.f32 %v9062, %v9094
        %v9102 = vadd.f32 %v9063, %v9094
        %v9103 = vadd.f32 %v9064, %v9094
        %v9104 = vadd.f32 %v9065, %v9094
        %v9105 = vadd.f32 %v9066, %v9094
        %v9106 = vadd.f32 %v9067, %v9094
        %v9107 = vadd.f32 %v9068, %v9094
        %v9108 = vadd.f32 %v9069, %v9094
        %v9109 = vadd.f32 %v9070, %v9094
        %v9110 = vadd.f32 %v9071, %v9094
        %v9111 = vadd.f32 %v9072, %v9094
        %v9112 = vadd.f32 %v9073, %v9094
        %v9113 = vadd.f32 %v9074, %v9094
        %v9114 = vadd.f32 %v9075, %v9094
        %v9115 = vadd.f32 %v9076, %v9094
        %v9116 = vadd.f32 %v9077, %v9094
        %v9117 = vadd.f32 %v9078, %v9094
        %v9118 = vadd.f32 %v9079, %v9094
        %v9119 = vadd.f32 %v9080, %v9094
        %v9120 = vadd.f32 %v9081, %v9094
        %v9121 = vadd.f32 %v9082, %v9094
        %v9122 = vadd.f32 %v9083, %v9094
        %v9123 = vadd.f32 %v9084, %v9094
        %v9124 = vadd.f32 %v9085, %v9094
        %v9125 = vadd.f32 %v9086, %v9094
        %v9126 = vadd.f32 %v9087, %v9094
        %v9127 = vadd.f32 %v9088, %v9094
        %v9128 = vmax.f32 %v9096, 0.0
        %v9129 = vmax.f32 %v9097, 0.0
        %v9130 = vmax.f32 %v9098, 0.0
        %v9131 = vmax.f32 %v9099, 0.0
        %v9132 = vmax.f32 %v9100, 0.0
        %v9133 = vmax.f32 %v9101, 0.0
        %v9134 = vmax.f32 %v9102, 0.0
        %v9135 = vmax.f32 %v9103, 0.0
        %v9136 = vmax.f32 %v9104, 0.0
        %v9137 = vmax.f32 %v9105, 0.0
        %v9138 = vmax.f32 %v9106, 0.0
        %v9139 = vmax.f32 %v9107, 0.0
        %v9140 = vmax.f32 %v9108, 0.0
        %v9141 = vmax.f32 %v9109, 0.0
        %v9142 = vmax.f32 %v9110, 0.0
        %v9143 = vmax.f32 %v9111, 0.0
        %v9144 = vmax.f32 %v9112, 0.0
        %v9145 = vmax.f32 %v9113, 0.0
        %v9146 = vmax.f32 %v9114, 0.0
        %v9147 = vmax.f32 %v9115, 0.0
        %v9148 = vmax.f32 %v9116, 0.0
        %v9149 = vmax.f32 %v9117, 0.0
        %v9150 = vmax.f32 %v9118, 0.0
        %v9151 = vmax.f32 %v9119, 0.0
        %v9152 = vmax.f32 %v9120, 0.0
        %v9153 = vmax.f32 %v9121, 0.0
        %v9154 = vmax.f32 %v9122, 0.0
        %v9155 = vmax.f32 %v9123, 0.0
        %v9156 = vmax.f32 %v9124, 0.0
        %v9157 = vmax.f32 %v9125, 0.0
        %v9158 = vmax.f32 %v9126, 0.0
        %v9159 = vmax.f32 %v9127, 0.0
        %v9160 = vpack.c.bf16 %v9129, %v9128
        %v9161 = vpack.c.bf16 %v9131, %v9130
        %v9162 = vpack.c.bf16 %v9133, %v9132
        %v9163 = vpack.c.bf16 %v9135, %v9134
        %v9164 = vpack.c.bf16 %v9137, %v9136
        %v9165 = vpack.c.bf16 %v9139, %v9138
        %v9166 = vpack.c.bf16 %v9141, %v9140
        %v9167 = vpack.c.bf16 %v9143, %v9142
        %v9168 = vpack.c.bf16 %v9145, %v9144
        %v9169 = vpack.c.bf16 %v9147, %v9146
        %v9170 = vpack.c.bf16 %v9149, %v9148
        %v9171 = vpack.c.bf16 %v9151, %v9150
        %v9172 = vpack.c.bf16 %v9153, %v9152
        %v9173 = vpack.c.bf16 %v9155, %v9154
        %v9174 = vpack.c.bf16 %v9157, %v9156
        %v9175 = vpack.c.bf16 %v9159, %v9158
        %v9176 = vld [vmem:[#allocation10] sm:$0xf]
        %v9177 = vld [vmem:[#allocation10 + $0x4] sm:$0xf]
        %v9178 = vld [vmem:[#allocation10 + $0x8] sm:$0xf]
        %v9179 = vld [vmem:[#allocation10 + $0xc] sm:$0xf]
        %v9180 = vld [vmem:[#allocation10 + $0x10] sm:$0xf]
        %v9181 = vld [vmem:[#allocation10 + $0x14] sm:$0xf]
        %v9182 = vld [vmem:[#allocation10 + $0x18] sm:$0xf]
        %v9183 = vld [vmem:[#allocation10 + $0x1c] sm:$0xf]
        %v9184 = vld [vmem:[#allocation10 + $0x20] sm:$0xf]
        %v9185 = vld [vmem:[#allocation10 + $0x24] sm:$0xf]
        %v9186 = vld [vmem:[#allocation10 + $0x28] sm:$0xf]
        %v9187 = vld [vmem:[#allocation10 + $0x2c] sm:$0xf]
        %v9188 = vld [vmem:[#allocation10 + $0x30] sm:$0xf]
        %v9189 = vld [vmem:[#allocation10 + $0x34] sm:$0xf]
        %v9190 = vld [vmem:[#allocation10 + $0x38] sm:$0xf]
        %v9191 = vld [vmem:[#allocation10 + $0x3c] sm:$0xf]
        %v9192 = vld [vmem:[#allocation11] sm:$0x1]
        %v9194 = vlaneseq
        %v9195 = vshrl.u32 %v9194, 7
        %v9196 = vsub.s32 0, %v9195
        %v9197 = vrot.slane %v9192, %v9196
        %v9215 = vunpack.c.l.b16 %v9176
        %v9216 = vunpack.c.l.b16 %v9177
        %v9217 = vunpack.c.l.b16 %v9178
        %v9218 = vunpack.c.l.b16 %v9179
        %v9219 = vunpack.c.l.b16 %v9180
        %v9220 = vunpack.c.l.b16 %v9181
        %v9221 = vunpack.c.l.b16 %v9182
        %v9222 = vunpack.c.l.b16 %v9183
        %v9223 = vunpack.c.l.b16 %v9184
        %v9224 = vunpack.c.l.b16 %v9185
        %v9225 = vunpack.c.l.b16 %v9186
        %v9226 = vunpack.c.l.b16 %v9187
        %v9227 = vunpack.c.l.b16 %v9188
        %v9228 = vunpack.c.l.b16 %v9189
        %v9229 = vunpack.c.l.b16 %v9190
        %v9230 = vunpack.c.l.b16 %v9191
        %v9231 = vpack.c.b16 %v9216, %v9215
        %v9232 = vpack.c.b16 %v9218, %v9217
        %v9233 = vpack.c.b16 %v9220, %v9219
        %v9234 = vpack.c.b16 %v9222, %v9221
        %v9235 = vpack.c.b16 %v9224, %v9223
        %v9236 = vpack.c.b16 %v9226, %v9225
        %v9237 = vpack.c.b16 %v9228, %v9227
        %v9238 = vpack.c.b16 %v9230, %v9229
        %9247 = vmatprep.subr.bf16.mxu0 0
        %9248 = vmatpush1.bf16.msra.mxu0 %v9231
        %9249 = vmatprep.subr.bf16.mxu0 0
        %9250 = vmatpush1.bf16.msra.mxu0 %v9232
        %9251 = vmatprep.subr.bf16.mxu0 0
        %9252 = vmatpush1.bf16.msra.mxu0 %v9233
        %9253 = vmatprep.subr.bf16.mxu0 0
        %9254 = vmatpush1.bf16.msra.mxu0 %v9234
        %9255 = vmatprep.subr.bf16.mxu0 0
        %9256 = vmatpush1.bf16.msra.mxu0 %v9235
        %9257 = vmatprep.subr.bf16.mxu0 0
        %9258 = vmatpush1.bf16.msra.mxu0 %v9236
        %9259 = vmatprep.subr.bf16.mxu0 0
        %9260 = vmatpush1.bf16.msra.mxu0 %v9237
        %9261 = vmatprep.subr.bf16.mxu0 0
        %9262 = vmatpush1.bf16.msra.mxu0 %v9238
        %9263 = vmatprep.subr.bf16.mxu0 0
        %9264 = vmatpush1.bf16.msra.mxu0 0
        %9265 = vmatprep.subr.bf16.mxu0 0
        %9266 = vmatpush1.bf16.msra.mxu0 0
        %9267 = vmatprep.subr.bf16.mxu0 0
        %9268 = vmatpush1.bf16.msra.mxu0 0
        %9269 = vmatprep.subr.bf16.mxu0 0
        %9270 = vmatpush1.bf16.msra.mxu0 0
        %9271 = vmatprep.subr.bf16.mxu0 0
        %9272 = vmatpush1.bf16.msra.mxu0 0
        %9273 = vmatprep.subr.bf16.mxu0 0
        %9274 = vmatpush1.bf16.msra.mxu0 0
        %9275 = vmatprep.subr.bf16.mxu0 0
        %9276 = vmatpush1.bf16.msra.mxu0 0
        %9277 = vmatprep.subr.bf16.mxu0 0
        %9278 = vmatpush1.bf16.msra.mxu0 0
        %9279 = vmatprep.mubr.bf16.mxu0 0
        %9280 = vmatmul.mubr.bf16.gmra.mrb[0].mxu0 %v9160
        %v9281 = vpop.f32.mrb[0].mxu0
        %v9282 = vadd.f32 %v9197, %v9281
        %v9283 = vpop.f32.mrb[0].mxu0
        %v9284 = vpop.f32.mrb[0].mxu0
        %v9285 = vadd.f32 %v9197, %v9284
        %v9286 = vpop.f32.mrb[0].mxu0
        %9287 = vmatprep.mubr.bf16.mxu0 0
        %9288 = vmatmul.mubr.bf16.gmra.mrb[0].mxu0 %v9161
        %v9289 = vpop.f32.mrb[0].mxu0
        %v9290 = vadd.f32 %v9197, %v9289
        %v9291 = vpop.f32.mrb[0].mxu0
        %v9292 = vpop.f32.mrb[0].mxu0
        %v9293 = vadd.f32 %v9197, %v9292
        %v9294 = vpop.f32.mrb[0].mxu0
        %9295 = vmatprep.mubr.bf16.mxu0 0
        %9296 = vmatmul.mubr.bf16.gmra.mrb[0].mxu0 %v9162
        %v9297 = vpop.f32.mrb[0].mxu0
        %v9298 = vadd.f32 %v9197, %v9297
        %v9299 = vpop.f32.mrb[0].mxu0
        %v9300 = vpop.f32.mrb[0].mxu0
        %v9301 = vadd.f32 %v9197, %v9300
        %v9302 = vpop.f32.mrb[0].mxu0
        %9303 = vmatprep.mubr.bf16.mxu0 0
        %9304 = vmatmul.mubr.bf16.gmra.mrb[0].mxu0 %v9163
        %v9305 = vpop.f32.mrb[0].mxu0
        %v9306 = vadd.f32 %v9197, %v9305
        %v9307 = vpop.f32.mrb[0].mxu0
        %v9308 = vpop.f32.mrb[0].mxu0
        %v9309 = vadd.f32 %v9197, %v9308
        %v9310 = vpop.f32.mrb[0].mxu0
        %9311 = vmatprep.mubr.bf16.mxu0 0
        %9312 = vmatmul.mubr.bf16.gmra.mrb[0].mxu0 %v9164
        %v9313 = vpop.f32.mrb[0].mxu0
        %v9314 = vadd.f32 %v9197, %v9313
        %v9315 = vpop.f32.mrb[0].mxu0
        %v9316 = vpop.f32.mrb[0].mxu0
        %v9317 = vadd.f32 %v9197, %v9316
        %v9318 = vpop.f32.mrb[0].mxu0
        %9319 = vmatprep.mubr.bf16.mxu0 0
        %9320 = vmatmul.mubr.bf16.gmra.mrb[0].mxu0 %v9165
        %v9321 = vpop.f32.mrb[0].mxu0
        %v9322 = vadd.f32 %v9197, %v9321
        %v9323 = vpop.f32.mrb[0].mxu0
        %v9324 = vpop.f32.mrb[0].mxu0
        %v9325 = vadd.f32 %v9197, %v9324
        %v9326 = vpop.f32.mrb[0].mxu0
        %9327 = vmatprep.mubr.bf16.mxu0 0
        %9328 = vmatmul.mubr.bf16.gmra.mrb[0].mxu0 %v9166
        %v9329 = vpop.f32.mrb[0].mxu0
        %v9330 = vadd.f32 %v9197, %v9329
        %v9331 = vpop.f32.mrb[0].mxu0
        %v9332 = vpop.f32.mrb[0].mxu0
        %v9333 = vadd.f32 %v9197, %v9332
        %v9334 = vpop.f32.mrb[0].mxu0
        %9335 = vmatprep.mubr.bf16.mxu0 0
        %9336 = vmatmul.mubr.bf16.gmra.mrb[0].mxu0 %v9167
        %v9337 = vpop.f32.mrb[0].mxu0
        %v9338 = vadd.f32 %v9197, %v9337
        %v9339 = vpop.f32.mrb[0].mxu0
        %v9340 = vpop.f32.mrb[0].mxu0
        %v9341 = vadd.f32 %v9197, %v9340
        %v9342 = vpop.f32.mrb[0].mxu0
        %9343 = vmatprep.mubr.bf16.mxu0 0
        %9344 = vmatmul.mubr.bf16.gmra.mrb[0].mxu0 %v9168
        %v9345 = vpop.f32.mrb[0].mxu0
        %v9346 = vadd.f32 %v9197, %v9345
        %v9347 = vpop.f32.mrb[0].mxu0
        %v9348 = vpop.f32.mrb[0].mxu0
        %v9349 = vadd.f32 %v9197, %v9348
        %v9350 = vpop.f32.mrb[0].mxu0
        %9351 = vmatprep.mubr.bf16.mxu0 0
        %9352 = vmatmul.mubr.bf16.gmra.mrb[0].mxu0 %v9169
        %v9353 = vpop.f32.mrb[0].mxu0
        %v9354 = vadd.f32 %v9197, %v9353
        %v9355 = vpop.f32.mrb[0].mxu0
        %v9356 = vpop.f32.mrb[0].mxu0
        %v9357 = vadd.f32 %v9197, %v9356
        %v9358 = vpop.f32.mrb[0].mxu0
        %9359 = vmatprep.mubr.bf16.mxu0 0
        %9360 = vmatmul.mubr.bf16.gmra.mrb[0].mxu0 %v9170
        %v9361 = vpop.f32.mrb[0].mxu0
        %v9362 = vadd.f32 %v9197, %v9361
        %v9363 = vpop.f32.mrb[0].mxu0
        %v9364 = vpop.f32.mrb[0].mxu0
        %v9365 = vadd.f32 %v9197, %v9364
        %v9366 = vpop.f32.mrb[0].mxu0
        %9367 = vmatprep.mubr.bf16.mxu0 0
        %9368 = vmatmul.mubr.bf16.gmra.mrb[0].mxu0 %v9171
        %v9369 = vpop.f32.mrb[0].mxu0
        %v9370 = vadd.f32 %v9197, %v9369
        %v9371 = vpop.f32.mrb[0].mxu0
        %v9372 = vpop.f32.mrb[0].mxu0
        %v9373 = vadd.f32 %v9197, %v9372
        %v9374 = vpop.f32.mrb[0].mxu0
        %9375 = vmatprep.mubr.bf16.mxu0 0
        %9376 = vmatmul.mubr.bf16.gmra.mrb[0].mxu0 %v9172
        %v9377 = vpop.f32.mrb[0].mxu0
        %v9378 = vadd.f32 %v9197, %v9377
        %v9379 = vpop.f32.mrb[0].mxu0
        %v9380 = vpop.f32.mrb[0].mxu0
        %v9381 = vadd.f32 %v9197, %v9380
        %v9382 = vpop.f32.mrb[0].mxu0
        %9383 = vmatprep.mubr.bf16.mxu0 0
        %9384 = vmatmul.mubr.bf16.gmra.mrb[0].mxu0 %v9173
        %v9385 = vpop.f32.mrb[0].mxu0
        %v9386 = vadd.f32 %v9197, %v9385
        %v9387 = vpop.f32.mrb[0].mxu0
        %v9388 = vpop.f32.mrb[0].mxu0
        %v9389 = vadd.f32 %v9197, %v9388
        %v9390 = vpop.f32.mrb[0].mxu0
        %9391 = vmatprep.mubr.bf16.mxu0 0
        %9392 = vmatmul.mubr.bf16.gmra.mrb[0].mxu0 %v9174
        %v9393 = vpop.f32.mrb[0].mxu0
        %v9394 = vadd.f32 %v9197, %v9393
        %v9395 = vpop.f32.mrb[0].mxu0
        %v9396 = vpop.f32.mrb[0].mxu0
        %v9397 = vadd.f32 %v9197, %v9396
        %v9398 = vpop.f32.mrb[0].mxu0
        %9399 = vmatprep.mubr.bf16.mxu0 0
        %9400 = vmatmul.mubr.bf16.gmra.mrb[0].mxu0 %v9175
        %v9401 = vpop.f32.mrb[0].mxu0
        %v9402 = vadd.f32 %v9197, %v9401
        %v9403 = vpop.f32.mrb[0].mxu0
        %v9404 = vpop.f32.mrb[0].mxu0
        %v9405 = vadd.f32 %v9197, %v9404
        %v9406 = vpop.f32.mrb[0].mxu0
        %9407 = vdwg.mxu0
        %v9408 = vpack.c.bf16 %v9285, %v9282
        %v9409 = vpack.c.bf16 %v9293, %v9290
        %v9410 = vpack.c.bf16 %v9301, %v9298
        %v9411 = vpack.c.bf16 %v9309, %v9306
        %v9412 = vpack.c.bf16 %v9317, %v9314
        %v9413 = vpack.c.bf16 %v9325, %v9322
        %v9414 = vpack.c.bf16 %v9333, %v9330
        %v9415 = vpack.c.bf16 %v9341, %v9338
        %v9416 = vpack.c.bf16 %v9349, %v9346
        %v9417 = vpack.c.bf16 %v9357, %v9354
        %v9418 = vpack.c.bf16 %v9365, %v9362
        %v9419 = vpack.c.bf16 %v9373, %v9370
        %v9420 = vpack.c.bf16 %v9381, %v9378
        %v9421 = vpack.c.bf16 %v9389, %v9386
        %v9422 = vpack.c.bf16 %v9397, %v9394
        %v9423 = vpack.c.bf16 %v9405, %v9402
        %v9440 = vunpack.c.l.b16 %v9408
        %v9441 = vunpack.c.h.b16 %v9408
        %v9442 = vunpack.c.l.b16 %v9409
        %v9443 = vunpack.c.h.b16 %v9409
        %v9444 = vunpack.c.l.b16 %v9410
        %v9445 = vunpack.c.h.b16 %v9410
        %v9446 = vunpack.c.l.b16 %v9411
        %v9447 = vunpack.c.h.b16 %v9411
        %v9448 = vunpack.c.l.b16 %v9412
        %v9449 = vunpack.c.h.b16 %v9412
        %v9450 = vunpack.c.l.b16 %v9413
        %v9451 = vunpack.c.h.b16 %v9413
        %v9452 = vunpack.c.l.b16 %v9414
        %v9453 = vunpack.c.h.b16 %v9414
        %v9454 = vunpack.c.l.b16 %v9415
        %v9455 = vunpack.c.h.b16 %v9415
        %v9456 = vunpack.c.l.b16 %v9416
        %v9457 = vunpack.c.h.b16 %v9416
        %v9458 = vunpack.c.l.b16 %v9417
        %v9459 = vunpack.c.h.b16 %v9417
        %v9460 = vunpack.c.l.b16 %v9418
        %v9461 = vunpack.c.h.b16 %v9418
        %v9462 = vunpack.c.l.b16 %v9419
        %v9463 = vunpack.c.h.b16 %v9419
        %v9464 = vunpack.c.l.b16 %v9420
        %v9465 = vunpack.c.h.b16 %v9420
        %v9466 = vunpack.c.l.b16 %v9421
        %v9467 = vunpack.c.h.b16 %v9421
        %v9468 = vunpack.c.l.b16 %v9422
        %v9469 = vunpack.c.h.b16 %v9422
        %v9470 = vunpack.c.l.b16 %v9423
        %v9471 = vunpack.c.h.b16 %v9423
        %v9472 = vpack.c.b16 %v9440, %v9440
        %v9473 = vpack.c.b16 %v9441, %v9441
        %v9474 = vpack.c.b16 %v9442, %v9442
        %v9475 = vpack.c.b16 %v9443, %v9443
        %v9476 = vpack.c.b16 %v9444, %v9444
        %v9477 = vpack.c.b16 %v9445, %v9445
        %v9478 = vpack.c.b16 %v9446, %v9446
        %v9479 = vpack.c.b16 %v9447, %v9447
        %v9480 = vpack.c.b16 %v9448, %v9448
        %v9481 = vpack.c.b16 %v9449, %v9449
        %v9482 = vpack.c.b16 %v9450, %v9450
        %v9483 = vpack.c.b16 %v9451, %v9451
        %v9484 = vpack.c.b16 %v9452, %v9452
        %v9485 = vpack.c.b16 %v9453, %v9453
        %v9486 = vpack.c.b16 %v9454, %v9454
        %v9487 = vpack.c.b16 %v9455, %v9455
        %v9488 = vpack.c.b16 %v9456, %v9456
        %v9489 = vpack.c.b16 %v9457, %v9457
        %v9490 = vpack.c.b16 %v9458, %v9458
        %v9491 = vpack.c.b16 %v9459, %v9459
        %v9492 = vpack.c.b16 %v9460, %v9460
        %v9493 = vpack.c.b16 %v9461, %v9461
        %v9494 = vpack.c.b16 %v9462, %v9462
        %v9495 = vpack.c.b16 %v9463, %v9463
        %v9496 = vpack.c.b16 %v9464, %v9464
        %v9497 = vpack.c.b16 %v9465, %v9465
        %v9498 = vpack.c.b16 %v9466, %v9466
        %v9499 = vpack.c.b16 %v9467, %v9467
        %v9500 = vpack.c.b16 %v9468, %v9468
        %v9501 = vpack.c.b16 %v9469, %v9469
        %v9502 = vpack.c.b16 %v9470, %v9470
        %v9503 = vpack.c.b16 %v9471, %v9471
        %9536 = vst [vmem:[%s354] sm:$0xf] %v9472
        %9537 = vst [vmem:[%s354 + $0x4] sm:$0xf] %v9473
        %9538 = vst [vmem:[%s354 + $0x8] sm:$0xf] %v9474
        %9539 = vst [vmem:[%s354 + $0xc] sm:$0xf] %v9475
        %9540 = vst [vmem:[%s354 + $0x10] sm:$0xf] %v9476
        %9541 = vst [vmem:[%s354 + $0x14] sm:$0xf] %v9477
        %9542 = vst [vmem:[%s354 + $0x18] sm:$0xf] %v9478
        %9543 = vst [vmem:[%s354 + $0x1c] sm:$0xf] %v9479
        %9544 = vst [vmem:[%s354 + $0x20] sm:$0xf] %v9480
        %9545 = vst [vmem:[%s354 + $0x24] sm:$0xf] %v9481
        %9546 = vst [vmem:[%s354 + $0x28] sm:$0xf] %v9482
        %9547 = vst [vmem:[%s354 + $0x2c] sm:$0xf] %v9483
        %9548 = vst [vmem:[%s354 + $0x30] sm:$0xf] %v9484
        %9549 = vst [vmem:[%s354 + $0x34] sm:$0xf] %v9485
        %9550 = vst [vmem:[%s354 + $0x38] sm:$0xf] %v9486
        %9551 = vst [vmem:[%s354 + $0x3c] sm:$0xf] %v9487
        %9552 = vst [vmem:[%s354 + $0x40] sm:$0xf] %v9488
        %9553 = vst [vmem:[%s354 + $0x44] sm:$0xf] %v9489
        %9554 = vst [vmem:[%s354 + $0x48] sm:$0xf] %v9490
        %9555 = vst [vmem:[%s354 + $0x4c] sm:$0xf] %v9491
        %9556 = vst [vmem:[%s354 + $0x50] sm:$0xf] %v9492
        %9557 = vst [vmem:[%s354 + $0x54] sm:$0xf] %v9493
        %9558 = vst [vmem:[%s354 + $0x58] sm:$0xf] %v9494
        %9559 = vst [vmem:[%s354 + $0x5c] sm:$0xf] %v9495
        %9560 = vst [vmem:[%s354 + $0x60] sm:$0xf] %v9496
        %9561 = vst [vmem:[%s354 + $0x64] sm:$0xf] %v9497
        %9562 = vst [vmem:[%s354 + $0x68] sm:$0xf] %v9498
        %9563 = vst [vmem:[%s354 + $0x6c] sm:$0xf] %v9499
        %9564 = vst [vmem:[%s354 + $0x70] sm:$0xf] %v9500
        %9565 = vst [vmem:[%s354 + $0x74] sm:$0xf] %v9501
        %9566 = vst [vmem:[%s354 + $0x78] sm:$0xf] %v9502
        %9567 = vst [vmem:[%s354 + $0x7c] sm:$0xf] %v9503
        %s9568 = sand.u32 %s181, 1
        %s9569 = scalar_lea.sflag [#allocation4], %s9568
        %s9570 = sand.u32 %s181, 1
        %s9571 = smul.addr %s9570, 128
        %s9572 = scalar_lea.vmem [#allocation13], %s9571
        // Predicated region
        $region69: #{tpu_custom_call.1} parent=43 // pred_check
          %p9573 = pneg %p191
        $region70: #{tpu_custom_call.1} parent=43 // pred_check_branch
          %9575 = sbr.rel (%p9573) target = $region72
        $region71: #{tpu_custom_call.1} parent=43 // pred_region
          %s9577 = ssub.s32 2048, 2048
          %9578 = vsyncadd %s9569, %s9577
          %s9579 = smul.addr %s31, 32
          %s9580 = smul.addr %s30, 32
          %s9581 = sadd.s32 %s9579, %s9580
          %s9582 = smul.addr %s9581, 64
          %s9583 = scalar_lea.hbm %s6, %s9582
          %s9584 = sshll.u32 %s9572, 4
          %s9585 = int_to_ptr.vmem [resolvable:$true] %s9584
          %9590 = dma.vmem_to_hbm [thread:$0]  %s9585, 2048, %s9583, %s9569, 64, 64, 4
        $region72: #{tpu_custom_call.1} parent=43 // pred_fallthru
          _
      $region44: #{tpu_custom_call.1} parent=5 // pred_fallthru
        _
      %p9591 = scmp.le.s32.totalorder 2, %s21
      // Predicated region
      $region73: #{tpu_custom_call.1} parent=5 // pred_check
        %p9592 = pneg %p9591
      $region74: #{tpu_custom_call.1} parent=5 // pred_check_branch
        %9594 = sbr.rel (%p9592) target = $region76
      $region75: #{tpu_custom_call.1} parent=5 // pred_region
        %s9595 = ssub.s32 %s21, 2
        // Predicated region
        $region77: #{tpu_custom_call.1} parent=75 // pred_check
          %p9596 = pneg %p197
        $region78: #{tpu_custom_call.1} parent=75 // pred_check_branch
          %9598 = sbr.rel (%p9596) target = $region80
        $region79: #{tpu_custom_call.1} parent=75 // pred_region
          %s9599 = sand.u32 %s182, 1
          %s9600 = scalar_lea.sflag [#allocation4], %s9599
          %s9601 = sand.u32 %s182, 1
          %s9602 = smul.addr %s9601, 128
          %s9603 = scalar_lea.vmem [#allocation13], %s9602
          %9604 = dma.done %s9600, 2048
        $region80: #{tpu_custom_call.1} parent=75 // pred_fallthru
          _
      $region76: #{tpu_custom_call.1} parent=5 // pred_fallthru
        _
    $region6: #{tpu_custom_call.1} parent=1 // loop_footer
      %s25 = sadd.s32 1, %s21
    $region7: #{tpu_custom_call.1} parent=1 // loop_footer_branch
      %20 = sbr.rel target = $region3
    $region8: #{tpu_custom_call.1} parent=1 // loop_exit
      _
    %9605 = vsyncpa [#allocation3], 1
    %s9606 = scalar_lea.sflag [#allocation3], 1
    %9607 = vsyncpa %s9606, 1
    %9608 = vsyncpa [#allocation6], 1
    %9609 = vsyncpa [#allocation9], 1
    %9610 = vsyncpa [#allocation12], 1
    %9611 = vsyncpa [#allocation4], 1
    %s9612 = scalar_lea.sflag [#allocation4], 1
    %9613 = vsyncpa %s9612, 1

</llo_original>
